<compile_context>
chip_gen: v6e
topology: v6e:2x2x1
jax: 0.10.0
libtpu: 0.0.40
codegen_flags: <defaults>
</compile_context>

<pallas_src>
import math

import jax
import jax.numpy as jnp
import numpy as np
from jax.experimental import pallas as pl
from jax.experimental.pallas import tpu as pltpu


def _make_fused_layer_kernel(num_layers, h, w, chans):
    """Build a kernel for the fused Conv3x3+BN+ReLU stack.

    chans[l] = (cin_l, cout_l) for layer l (static Python config).

    Kernel ref order:
      x_ref,                      # (1, h, w, cin0)
      w0_ref, b0_ref, w1_ref, b1_ref, ...,   # (3,3,cin,cout) scale-folded, (1,cout)
      o_ref,                      # (1, h, w, cout_last)
      pad0_ref, pad1_ref, ...     # (h+2, w+2, cin_l) VMEM scratch per layer
    """

    def kernel(*refs):
        x_ref = refs[0]
        w_refs = [refs[1 + 2 * l] for l in range(num_layers)]
        b_refs = [refs[2 + 2 * l] for l in range(num_layers)]
        o_ref = refs[1 + 2 * num_layers]
        pad_refs = refs[2 + 2 * num_layers:]

        cur = x_ref[0].astype(jnp.float32)            # (h, w, cin0)

        for l in range(num_layers):
            cin, cout = chans[l]
            pad_ref = pad_refs[l]                     # (h+2, w+2, cin) VMEM

            # In-VMEM halo: zero-fill (borders) then overwrite the interior.
            # (Unconditional so it is correct regardless of how the parallel
            # batch axis is sharded across cores.)
            pad_ref[...] = jnp.zeros(pad_ref.shape, pad_ref.dtype)
            pad_ref[1:h + 1, 1:w + 1, :] = cur

            # 3x3 conv as 9 shifted (H*W, Cin) x (Cin, Cout) MXU matmuls,
            # accumulated in f32.  BN scale is already folded into w.
            acc = jnp.zeros((h * w, cout), jnp.float32)
            w_l = w_refs[l]
            for dy in range(3):
                for dx in range(3):
                    patch = pad_ref[dy:dy + h, dx:dx + w, :].reshape(h * w, cin)
                    acc = acc + jnp.dot(
                        patch, w_l[dy, dx], preferred_element_type=jnp.float32
                    )

            # bias (conv bias + BN shift, pre-folded) + ReLU
            y = jnp.maximum(acc + b_refs[l][0], 0.0)
            cur = y.reshape(h, w, cout)

        o_ref[0] = cur.astype(o_ref.dtype)

    return kernel


class LayerPallas:
    """Mirrors Layer(in_channels, layer_list): sequence of Conv+BN+ReLU blocks,
    executed as one fused Pallas kernel."""

    EPS = 1e-5

    def __init__(self, in_channels, layer_list, key):
        self.in_channels = in_channels
        self.layer_list = list(layer_list)
        self.params = []
        ch = in_channels
        for out_ch in self.layer_list:
            key, kw, kb, kg, kbe, km, kv = jax.random.split(key, 7)
            fan_in = 9 * ch
            w = jax.random.normal(kw, (3, 3, ch, out_ch), jnp.float32) * (
                1.0 / math.sqrt(fan_in)
            )
            conv_b = 0.05 * jax.random.normal(kb, (out_ch,), jnp.float32)
            gamma = 1.0 + 0.1 * jax.random.normal(kg, (out_ch,), jnp.float32)
            beta = 0.1 * jax.random.normal(kbe, (out_ch,), jnp.float32)
            r_mean = 0.1 * jax.random.normal(km, (out_ch,), jnp.float32)
            r_var = jax.random.uniform(
                kv, (out_ch,), jnp.float32, minval=0.5, maxval=1.5
            )
            self.params.append((w, conv_b, gamma, beta, r_mean, r_var))
            ch = out_ch

    # ---- parameter folding (BN scale -> conv weights, everything -> 1 bias) ----
    def _folded_params(self):
        folded = []
        for (w, conv_b, gamma, beta, r_mean, r_var) in self.params:
            scale = gamma / jnp.sqrt(r_var + self.EPS)          # (cout,)
            w_f = w * scale[None, None, None, :]                # fold BN scale
            b_f = (conv_b - r_mean) * scale + beta              # fused bias
            folded.append((w_f, b_f.reshape(1, -1)))
        return folded

    def __call__(self, x_nchw):
        x = jnp.transpose(x_nchw, (0, 2, 3, 1))                 # NCHW -> NHWC
        n, h, w, _ = x.shape

        chans = []
        ch = self.in_channels
        for out_ch in self.layer_list:
            chans.append((ch, out_ch))
            ch = out_ch
        num_layers = len(chans)
        cout_last = chans[-1][1]

        folded = self._folded_params()
        kernel = _make_fused_layer_kernel(num_layers, h, w, chans)

        in_specs = [pl.BlockSpec((1, h, w, self.in_channels),
                                 lambda i: (i, 0, 0, 0))]
        args = [x]
        for (w_f, b_f), (cin, cout) in zip(folded, chans):
            in_specs.append(pl.BlockSpec((3, 3, cin, cout),
                                         lambda i: (0, 0, 0, 0)))
            in_specs.append(pl.BlockSpec((1, cout), lambda i: (0, 0)))
            args.append(w_f)
            args.append(b_f)

        scratch_shapes = [pltpu.VMEM((h + 2, w + 2, cin), jnp.float32)
                          for (cin, _) in chans]

        out = pl.pallas_call(
            kernel,
            out_shape=jax.ShapeDtypeStruct((n, h, w, cout_last), x.dtype),
            grid=(n,),
            in_specs=in_specs,
            out_specs=pl.BlockSpec((1, h, w, cout_last),
                                   lambda i: (i, 0, 0, 0)),
            scratch_shapes=scratch_shapes,
            compiler_params=pltpu.CompilerParams(
                dimension_semantics=("parallel",),
                vmem_limit_bytes=32 * 1024 * 1024,
            ),
        )(*args)

        return jnp.transpose(out, (0, 3, 1, 2))                 # NHWC -> NCHW

    # ---- pure-JAX reference (un-folded params) for correctness checking ----
    def reference(self, x_nchw):
        x = jnp.transpose(x_nchw, (0, 2, 3, 1))
        for (w, conv_b, gamma, beta, r_mean, r_var) in self.params:
            y = jax.lax.conv_general_dilated(
                x, w, window_strides=(1, 1), padding="SAME",
                dimension_numbers=("NHWC", "HWIO", "NHWC"),
            ) + conv_b
            y = (y - r_mean) / jnp.sqrt(r_var + self.EPS) * gamma + beta
            x = jnp.maximum(y, 0.0)
        return jnp.transpose(x, (0, 3, 1, 2))


if __name__ == "__main__":
    key = jax.random.PRNGKey(0)
    k_x, k_p = jax.random.split(key)

    # Small shapes: batch=2, in_channels=4, spatial=16x16, layer_list=[8, 16]
    in_channels = 4
    layer_list = [8, 16]
    x = jax.random.normal(k_x, (2, in_channels, 16, 16), jnp.float32)  # NCHW

    layer = LayerPallas(in_channels, layer_list, k_p)

    out = jax.block_until_ready(layer(x))
    ref = jax.block_until_ready(layer.reference(x))

    np.testing.assert_allclose(np.asarray(out), np.asarray(ref),
                               rtol=1e-4, atol=1e-4)
    assert out.shape == (2, layer_list[-1], 16, 16)

    print("KERNEL_OK")
</pallas_src>

<mosaic_0001>
module attributes {stable_mosaic.version = 11 : i64} {
  func.func @kernel(%arg0: i32, %arg1: memref<1x16x16x4xf32, #tpu.memory_space<vmem>>, %arg2: memref<3x3x4x8xf32, #tpu.memory_space<vmem>>, %arg3: memref<1x8xf32, #tpu.memory_space<vmem>>, %arg4: memref<3x3x8x16xf32, #tpu.memory_space<vmem>>, %arg5: memref<1x16xf32, #tpu.memory_space<vmem>>, %arg6: memref<1x16x16x16xf32, #tpu.memory_space<vmem>>, %arg7: memref<18x18x4xf32, #tpu.memory_space<vmem>>, %arg8: memref<18x18x8xf32, #tpu.memory_space<vmem>>) attributes {dimension_semantics = [#tpu.dimension_semantics<parallel>], iteration_bounds = array<i64: 2>, scalar_prefetch = 0 : i64, scratch_operands = 2 : i64, tpu.core_type = #tpu.core_type<tc>, window_params = [{transform_indices = @transform_0, window_bounds = array<i64: 1, 16, 16, 4>}, {pipeline_mode = #tpu.pipeline_mode<synchronous>, transform_indices = @transform_1, window_bounds = array<i64: 3, 3, 4, 8>}, {pipeline_mode = #tpu.pipeline_mode<synchronous>, transform_indices = @transform_2, window_bounds = array<i64: 1, 8>}, {pipeline_mode = #tpu.pipeline_mode<synchronous>, transform_indices = @transform_3, window_bounds = array<i64: 3, 3, 8, 16>}, {pipeline_mode = #tpu.pipeline_mode<synchronous>, transform_indices = @transform_4, window_bounds = array<i64: 1, 16>}, {transform_indices = @transform_5, window_bounds = array<i64: 1, 16, 16, 16>}]} {
    %c0 = arith.constant 0 : index
    %c0_0 = arith.constant 0 : index
    %c0_1 = arith.constant 0 : index
    %c0_2 = arith.constant 0 : index
    %0 = vector.load %arg1[%c0, %c0_0, %c0_1, %c0_2] : memref<1x16x16x4xf32, #tpu.memory_space<vmem>>, vector<1x16x16x4xf32>
    %1 = vector.shape_cast %0 : vector<1x16x16x4xf32> to vector<16x16x4xf32>
    %cst = arith.constant 0.000000e+00 : f32
    %2 = vector.broadcast %cst : f32 to vector<18x18x4xf32>
    %c0_3 = arith.constant 0 : index
    %c0_4 = arith.constant 0 : index
    %c0_5 = arith.constant 0 : index
    %3 = vector.load %arg7[%c0_3, %c0_4, %c0_5] : memref<18x18x4xf32, #tpu.memory_space<vmem>>, vector<18x18x4xf32>
    tpu.vector_store %arg7[%c0_3, %c0_4, %c0_5], %2 {strides = array<i32>} : memref<18x18x4xf32, #tpu.memory_space<vmem>>, vector<18x18x4xf32>,
    %c1 = arith.constant 1 : index
    %c1_6 = arith.constant 1 : index
    %c0_7 = arith.constant 0 : index
    %4 = vector.load %arg7[%c1, %c1_6, %c0_7] : memref<18x18x4xf32, #tpu.memory_space<vmem>>, vector<16x16x4xf32>
    tpu.vector_store %arg7[%c1, %c1_6, %c0_7], %1 {strides = array<i32>} : memref<18x18x4xf32, #tpu.memory_space<vmem>>, vector<16x16x4xf32>,
    %cst_8 = arith.constant 0.000000e+00 : f32
    %5 = vector.broadcast %cst_8 : f32 to vector<256x8xf32>
    %c0_9 = arith.constant 0 : index
    %c0_10 = arith.constant 0 : index
    %c0_11 = arith.constant 0 : index
    %6 = vector.load %arg7[%c0_9, %c0_10, %c0_11] : memref<18x18x4xf32, #tpu.memory_space<vmem>>, vector<16x16x4xf32>
    %7 = vector.shape_cast %6 : vector<16x16x4xf32> to vector<256x4xf32>
    %c0_12 = arith.constant 0 : index
    %c0_13 = arith.constant 0 : index
    %c0_14 = arith.constant 0 : index
    %c0_15 = arith.constant 0 : index
    %8 = vector.load %arg2[%c0_12, %c0_13, %c0_14, %c0_15] : memref<3x3x4x8xf32, #tpu.memory_space<vmem>>, vector<1x1x4x8xf32>
    %9 = vector.shape_cast %8 : vector<1x1x4x8xf32> to vector<4x8xf32>
    %cst_16 = arith.constant dense<0.000000e+00> : vector<256x8xf32>
    %10 = tpu.matmul %7, %9, %cst_16 {dimension_numbers = #tpu.dot_dimension_numbers<[1], [0], [0], [1], [0, 0, 1, 1], [], []>} : vector<256x4xf32>, vector<4x8xf32>, vector<256x8xf32> -> vector<256x8xf32>
    %11 = arith.addf %5, %10 : vector<256x8xf32>
    %c0_17 = arith.constant 0 : index
    %c1_18 = arith.constant 1 : index
    %c0_19 = arith.constant 0 : index
    %12 = vector.load %arg7[%c0_17, %c1_18, %c0_19] : memref<18x18x4xf32, #tpu.memory_space<vmem>>, vector<16x16x4xf32>
    %13 = vector.shape_cast %12 : vector<16x16x4xf32> to vector<256x4xf32>
    %c0_20 = arith.constant 0 : index
    %c1_21 = arith.constant 1 : index
    %c0_22 = arith.constant 0 : index
    %c0_23 = arith.constant 0 : index
    %14 = vector.load %arg2[%c0_20, %c1_21, %c0_22, %c0_23] : memref<3x3x4x8xf32, #tpu.memory_space<vmem>>, vector<1x1x4x8xf32>
    %15 = vector.shape_cast %14 : vector<1x1x4x8xf32> to vector<4x8xf32>
    %cst_24 = arith.constant dense<0.000000e+00> : vector<256x8xf32>
    %16 = tpu.matmul %13, %15, %cst_24 {dimension_numbers = #tpu.dot_dimension_numbers<[1], [0], [0], [1], [0, 0, 1, 1], [], []>} : vector<256x4xf32>, vector<4x8xf32>, vector<256x8xf32> -> vector<256x8xf32>
    %17 = arith.addf %11, %16 : vector<256x8xf32>
    %c0_25 = arith.constant 0 : index
    %c2 = arith.constant 2 : index
    %c0_26 = arith.constant 0 : index
    %18 = vector.load %arg7[%c0_25, %c2, %c0_26] : memref<18x18x4xf32, #tpu.memory_space<vmem>>, vector<16x16x4xf32>
    %19 = vector.shape_cast %18 : vector<16x16x4xf32> to vector<256x4xf32>
    %c0_27 = arith.constant 0 : index
    %c2_28 = arith.constant 2 : index
    %c0_29 = arith.constant 0 : index
    %c0_30 = arith.constant 0 : index
    %20 = vector.load %arg2[%c0_27, %c2_28, %c0_29, %c0_30] : memref<3x3x4x8xf32, #tpu.memory_space<vmem>>, vector<1x1x4x8xf32>
    %21 = vector.shape_cast %20 : vector<1x1x4x8xf32> to vector<4x8xf32>
    %cst_31 = arith.constant dense<0.000000e+00> : vector<256x8xf32>
    %22 = tpu.matmul %19, %21, %cst_31 {dimension_numbers = #tpu.dot_dimension_numbers<[1], [0], [0], [1], [0, 0, 1, 1], [], []>} : vector<256x4xf32>, vector<4x8xf32>, vector<256x8xf32> -> vector<256x8xf32>
    %23 = arith.addf %17, %22 : vector<256x8xf32>
    %c1_32 = arith.constant 1 : index
    %c0_33 = arith.constant 0 : index
    %c0_34 = arith.constant 0 : index
    %24 = vector.load %arg7[%c1_32, %c0_33, %c0_34] : memref<18x18x4xf32, #tpu.memory_space<vmem>>, vector<16x16x4xf32>
    %25 = vector.shape_cast %24 : vector<16x16x4xf32> to vector<256x4xf32>
    %c1_35 = arith.constant 1 : index
    %c0_36 = arith.constant 0 : index
    %c0_37 = arith.constant 0 : index
    %c0_38 = arith.constant 0 : index
    %26 = vector.load %arg2[%c1_35, %c0_36, %c0_37, %c0_38] : memref<3x3x4x8xf32, #tpu.memory_space<vmem>>, vector<1x1x4x8xf32>
    %27 = vector.shape_cast %26 : vector<1x1x4x8xf32> to vector<4x8xf32>
    %cst_39 = arith.constant dense<0.000000e+00> : vector<256x8xf32>
    %28 = tpu.matmul %25, %27, %cst_39 {dimension_numbers = #tpu.dot_dimension_numbers<[1], [0], [0], [1], [0, 0, 1, 1], [], []>} : vector<256x4xf32>, vector<4x8xf32>, vector<256x8xf32> -> vector<256x8xf32>
    %29 = arith.addf %23, %28 : vector<256x8xf32>
    %c1_40 = arith.constant 1 : index
    %c1_41 = arith.constant 1 : index
    %c0_42 = arith.constant 0 : index
    %30 = vector.load %arg7[%c1_40, %c1_41, %c0_42] : memref<18x18x4xf32, #tpu.memory_space<vmem>>, vector<16x16x4xf32>
    %31 = vector.shape_cast %30 : vector<16x16x4xf32> to vector<256x4xf32>
    %c1_43 = arith.constant 1 : index
    %c1_44 = arith.constant 1 : index
    %c0_45 = arith.constant 0 : index
    %c0_46 = arith.constant 0 : index
    %32 = vector.load %arg2[%c1_43, %c1_44, %c0_45, %c0_46] : memref<3x3x4x8xf32, #tpu.memory_space<vmem>>, vector<1x1x4x8xf32>
    %33 = vector.shape_cast %32 : vector<1x1x4x8xf32> to vector<4x8xf32>
    %cst_47 = arith.constant dense<0.000000e+00> : vector<256x8xf32>
    %34 = tpu.matmul %31, %33, %cst_47 {dimension_numbers = #tpu.dot_dimension_numbers<[1], [0], [0], [1], [0, 0, 1, 1], [], []>} : vector<256x4xf32>, vector<4x8xf32>, vector<256x8xf32> -> vector<256x8xf32>
    %35 = arith.addf %29, %34 : vector<256x8xf32>
    %c1_48 = arith.constant 1 : index
    %c2_49 = arith.constant 2 : index
    %c0_50 = arith.constant 0 : index
    %36 = vector.load %arg7[%c1_48, %c2_49, %c0_50] : memref<18x18x4xf32, #tpu.memory_space<vmem>>, vector<16x16x4xf32>
    %37 = vector.shape_cast %36 : vector<16x16x4xf32> to vector<256x4xf32>
    %c1_51 = arith.constant 1 : index
    %c2_52 = arith.constant 2 : index
    %c0_53 = arith.constant 0 : index
    %c0_54 = arith.constant 0 : index
    %38 = vector.load %arg2[%c1_51, %c2_52, %c0_53, %c0_54] : memref<3x3x4x8xf32, #tpu.memory_space<vmem>>, vector<1x1x4x8xf32>
    %39 = vector.shape_cast %38 : vector<1x1x4x8xf32> to vector<4x8xf32>
    %cst_55 = arith.constant dense<0.000000e+00> : vector<256x8xf32>
    %40 = tpu.matmul %37, %39, %cst_55 {dimension_numbers = #tpu.dot_dimension_numbers<[1], [0], [0], [1], [0, 0, 1, 1], [], []>} : vector<256x4xf32>, vector<4x8xf32>, vector<256x8xf32> -> vector<256x8xf32>
    %41 = arith.addf %35, %40 : vector<256x8xf32>
    %c2_56 = arith.constant 2 : index
    %c0_57 = arith.constant 0 : index
    %c0_58 = arith.constant 0 : index
    %42 = vector.load %arg7[%c2_56, %c0_57, %c0_58] : memref<18x18x4xf32, #tpu.memory_space<vmem>>, vector<16x16x4xf32>
    %43 = vector.shape_cast %42 : vector<16x16x4xf32> to vector<256x4xf32>
    %c2_59 = arith.constant 2 : index
    %c0_60 = arith.constant 0 : index
    %c0_61 = arith.constant 0 : index
    %c0_62 = arith.constant 0 : index
    %44 = vector.load %arg2[%c2_59, %c0_60, %c0_61, %c0_62] : memref<3x3x4x8xf32, #tpu.memory_space<vmem>>, vector<1x1x4x8xf32>
    %45 = vector.shape_cast %44 : vector<1x1x4x8xf32> to vector<4x8xf32>
    %cst_63 = arith.constant dense<0.000000e+00> : vector<256x8xf32>
    %46 = tpu.matmul %43, %45, %cst_63 {dimension_numbers = #tpu.dot_dimension_numbers<[1], [0], [0], [1], [0, 0, 1, 1], [], []>} : vector<256x4xf32>, vector<4x8xf32>, vector<256x8xf32> -> vector<256x8xf32>
    %47 = arith.addf %41, %46 : vector<256x8xf32>
    %c2_64 = arith.constant 2 : index
    %c1_65 = arith.constant 1 : index
    %c0_66 = arith.constant 0 : index
    %48 = vector.load %arg7[%c2_64, %c1_65, %c0_66] : memref<18x18x4xf32, #tpu.memory_space<vmem>>, vector<16x16x4xf32>
    %49 = vector.shape_cast %48 : vector<16x16x4xf32> to vector<256x4xf32>
    %c2_67 = arith.constant 2 : index
    %c1_68 = arith.constant 1 : index
    %c0_69 = arith.constant 0 : index
    %c0_70 = arith.constant 0 : index
    %50 = vector.load %arg2[%c2_67, %c1_68, %c0_69, %c0_70] : memref<3x3x4x8xf32, #tpu.memory_space<vmem>>, vector<1x1x4x8xf32>
    %51 = vector.shape_cast %50 : vector<1x1x4x8xf32> to vector<4x8xf32>
    %cst_71 = arith.constant dense<0.000000e+00> : vector<256x8xf32>
    %52 = tpu.matmul %49, %51, %cst_71 {dimension_numbers = #tpu.dot_dimension_numbers<[1], [0], [0], [1], [0, 0, 1, 1], [], []>} : vector<256x4xf32>, vector<4x8xf32>, vector<256x8xf32> -> vector<256x8xf32>
    %53 = arith.addf %47, %52 : vector<256x8xf32>
    %c2_72 = arith.constant 2 : index
    %c2_73 = arith.constant 2 : index
    %c0_74 = arith.constant 0 : index
    %54 = vector.load %arg7[%c2_72, %c2_73, %c0_74] : memref<18x18x4xf32, #tpu.memory_space<vmem>>, vector<16x16x4xf32>
    %55 = vector.shape_cast %54 : vector<16x16x4xf32> to vector<256x4xf32>
    %c2_75 = arith.constant 2 : index
    %c2_76 = arith.constant 2 : index
    %c0_77 = arith.constant 0 : index
    %c0_78 = arith.constant 0 : index
    %56 = vector.load %arg2[%c2_75, %c2_76, %c0_77, %c0_78] : memref<3x3x4x8xf32, #tpu.memory_space<vmem>>, vector<1x1x4x8xf32>
    %57 = vector.shape_cast %56 : vector<1x1x4x8xf32> to vector<4x8xf32>
    %cst_79 = arith.constant dense<0.000000e+00> : vector<256x8xf32>
    %58 = tpu.matmul %55, %57, %cst_79 {dimension_numbers = #tpu.dot_dimension_numbers<[1], [0], [0], [1], [0, 0, 1, 1], [], []>} : vector<256x4xf32>, vector<4x8xf32>, vector<256x8xf32> -> vector<256x8xf32>
    %59 = arith.addf %53, %58 : vector<256x8xf32>
    %c0_80 = arith.constant 0 : index
    %c0_81 = arith.constant 0 : index
    %60 = vector.load %arg3[%c0_80, %c0_81] : memref<1x8xf32, #tpu.memory_space<vmem>>, vector<1x8xf32>
    %61 = vector.shape_cast %60 : vector<1x8xf32> to vector<8xf32>
    %62 = vector.shape_cast %61 : vector<8xf32> to vector<1x8xf32>
    %63 = vector.broadcast %62 : vector<1x8xf32> to vector<256x8xf32>
    %64 = arith.addf %59, %63 : vector<256x8xf32>
    %cst_82 = arith.constant 0.000000e+00 : f32
    %65 = vector.broadcast %cst_82 : f32 to vector<256x8xf32>
    %66 = arith.maximumf %64, %65 : vector<256x8xf32>
    %67 = vector.shape_cast %66 : vector<256x8xf32> to vector<16x16x8xf32>
    %cst_83 = arith.constant 0.000000e+00 : f32
    %68 = vector.broadcast %cst_83 : f32 to vector<18x18x8xf32>
    %c0_84 = arith.constant 0 : index
    %c0_85 = arith.constant 0 : index
    %c0_86 = arith.constant 0 : index
    %69 = vector.load %arg8[%c0_84, %c0_85, %c0_86] : memref<18x18x8xf32, #tpu.memory_space<vmem>>, vector<18x18x8xf32>
    tpu.vector_store %arg8[%c0_84, %c0_85, %c0_86], %68 {strides = array<i32>} : memref<18x18x8xf32, #tpu.memory_space<vmem>>, vector<18x18x8xf32>,
    %c1_87 = arith.constant 1 : index
    %c1_88 = arith.constant 1 : index
    %c0_89 = arith.constant 0 : index
    %70 = vector.load %arg8[%c1_87, %c1_88, %c0_89] : memref<18x18x8xf32, #tpu.memory_space<vmem>>, vector<16x16x8xf32>
    tpu.vector_store %arg8[%c1_87, %c1_88, %c0_89], %67 {strides = array<i32>} : memref<18x18x8xf32, #tpu.memory_space<vmem>>, vector<16x16x8xf32>,
    %cst_90 = arith.constant 0.000000e+00 : f32
    %71 = vector.broadcast %cst_90 : f32 to vector<256x16xf32>
    %c0_91 = arith.constant 0 : index
    %c0_92 = arith.constant 0 : index
    %c0_93 = arith.constant 0 : index
    %72 = vector.load %arg8[%c0_91, %c0_92, %c0_93] : memref<18x18x8xf32, #tpu.memory_space<vmem>>, vector<16x16x8xf32>
    %73 = vector.shape_cast %72 : vector<16x16x8xf32> to vector<256x8xf32>
    %c0_94 = arith.constant 0 : index
    %c0_95 = arith.constant 0 : index
    %c0_96 = arith.constant 0 : index
    %c0_97 = arith.constant 0 : index
    %74 = vector.load %arg4[%c0_94, %c0_95, %c0_96, %c0_97] : memref<3x3x8x16xf32, #tpu.memory_space<vmem>>, vector<1x1x8x16xf32>
    %75 = vector.shape_cast %74 : vector<1x1x8x16xf32> to vector<8x16xf32>
    %cst_98 = arith.constant dense<0.000000e+00> : vector<256x16xf32>
    %76 = tpu.matmul %73, %75, %cst_98 {dimension_numbers = #tpu.dot_dimension_numbers<[1], [0], [0], [1], [0, 0, 1, 1], [], []>} : vector<256x8xf32>, vector<8x16xf32>, vector<256x16xf32> -> vector<256x16xf32>
    %77 = arith.addf %71, %76 : vector<256x16xf32>
    %c0_99 = arith.constant 0 : index
    %c1_100 = arith.constant 1 : index
    %c0_101 = arith.constant 0 : index
    %78 = vector.load %arg8[%c0_99, %c1_100, %c0_101] : memref<18x18x8xf32, #tpu.memory_space<vmem>>, vector<16x16x8xf32>
    %79 = vector.shape_cast %78 : vector<16x16x8xf32> to vector<256x8xf32>
    %c0_102 = arith.constant 0 : index
    %c1_103 = arith.constant 1 : index
    %c0_104 = arith.constant 0 : index
    %c0_105 = arith.constant 0 : index
    %80 = vector.load %arg4[%c0_102, %c1_103, %c0_104, %c0_105] : memref<3x3x8x16xf32, #tpu.memory_space<vmem>>, vector<1x1x8x16xf32>
    %81 = vector.shape_cast %80 : vector<1x1x8x16xf32> to vector<8x16xf32>
    %cst_106 = arith.constant dense<0.000000e+00> : vector<256x16xf32>
    %82 = tpu.matmul %79, %81, %cst_106 {dimension_numbers = #tpu.dot_dimension_numbers<[1], [0], [0], [1], [0, 0, 1, 1], [], []>} : vector<256x8xf32>, vector<8x16xf32>, vector<256x16xf32> -> vector<256x16xf32>
    %83 = arith.addf %77, %82 : vector<256x16xf32>
    %c0_107 = arith.constant 0 : index
    %c2_108 = arith.constant 2 : index
    %c0_109 = arith.constant 0 : index
    %84 = vector.load %arg8[%c0_107, %c2_108, %c0_109] : memref<18x18x8xf32, #tpu.memory_space<vmem>>, vector<16x16x8xf32>
    %85 = vector.shape_cast %84 : vector<16x16x8xf32> to vector<256x8xf32>
    %c0_110 = arith.constant 0 : index
    %c2_111 = arith.constant 2 : index
    %c0_112 = arith.constant 0 : index
    %c0_113 = arith.constant 0 : index
    %86 = vector.load %arg4[%c0_110, %c2_111, %c0_112, %c0_113] : memref<3x3x8x16xf32, #tpu.memory_space<vmem>>, vector<1x1x8x16xf32>
    %87 = vector.shape_cast %86 : vector<1x1x8x16xf32> to vector<8x16xf32>
    %cst_114 = arith.constant dense<0.000000e+00> : vector<256x16xf32>
    %88 = tpu.matmul %85, %87, %cst_114 {dimension_numbers = #tpu.dot_dimension_numbers<[1], [0], [0], [1], [0, 0, 1, 1], [], []>} : vector<256x8xf32>, vector<8x16xf32>, vector<256x16xf32> -> vector<256x16xf32>
    %89 = arith.addf %83, %88 : vector<256x16xf32>
    %c1_115 = arith.constant 1 : index
    %c0_116 = arith.constant 0 : index
    %c0_117 = arith.constant 0 : index
    %90 = vector.load %arg8[%c1_115, %c0_116, %c0_117] : memref<18x18x8xf32, #tpu.memory_space<vmem>>, vector<16x16x8xf32>
    %91 = vector.shape_cast %90 : vector<16x16x8xf32> to vector<256x8xf32>
    %c1_118 = arith.constant 1 : index
    %c0_119 = arith.constant 0 : index
    %c0_120 = arith.constant 0 : index
    %c0_121 = arith.constant 0 : index
    %92 = vector.load %arg4[%c1_118, %c0_119, %c0_120, %c0_121] : memref<3x3x8x16xf32, #tpu.memory_space<vmem>>, vector<1x1x8x16xf32>
    %93 = vector.shape_cast %92 : vector<1x1x8x16xf32> to vector<8x16xf32>
    %cst_122 = arith.constant dense<0.000000e+00> : vector<256x16xf32>
    %94 = tpu.matmul %91, %93, %cst_122 {dimension_numbers = #tpu.dot_dimension_numbers<[1], [0], [0], [1], [0, 0, 1, 1], [], []>} : vector<256x8xf32>, vector<8x16xf32>, vector<256x16xf32> -> vector<256x16xf32>
    %95 = arith.addf %89, %94 : vector<256x16xf32>
    %c1_123 = arith.constant 1 : index
    %c1_124 = arith.constant 1 : index
    %c0_125 = arith.constant 0 : index
    %96 = vector.load %arg8[%c1_123, %c1_124, %c0_125] : memref<18x18x8xf32, #tpu.memory_space<vmem>>, vector<16x16x8xf32>
    %97 = vector.shape_cast %96 : vector<16x16x8xf32> to vector<256x8xf32>
    %c1_126 = arith.constant 1 : index
    %c1_127 = arith.constant 1 : index
    %c0_128 = arith.constant 0 : index
    %c0_129 = arith.constant 0 : index
    %98 = vector.load %arg4[%c1_126, %c1_127, %c0_128, %c0_129] : memref<3x3x8x16xf32, #tpu.memory_space<vmem>>, vector<1x1x8x16xf32>
    %99 = vector.shape_cast %98 : vector<1x1x8x16xf32> to vector<8x16xf32>
    %cst_130 = arith.constant dense<0.000000e+00> : vector<256x16xf32>
    %100 = tpu.matmul %97, %99, %cst_130 {dimension_numbers = #tpu.dot_dimension_numbers<[1], [0], [0], [1], [0, 0, 1, 1], [], []>} : vector<256x8xf32>, vector<8x16xf32>, vector<256x16xf32> -> vector<256x16xf32>
    %101 = arith.addf %95, %100 : vector<256x16xf32>
    %c1_131 = arith.constant 1 : index
    %c2_132 = arith.constant 2 : index
    %c0_133 = arith.constant 0 : index
    %102 = vector.load %arg8[%c1_131, %c2_132, %c0_133] : memref<18x18x8xf32, #tpu.memory_space<vmem>>, vector<16x16x8xf32>
    %103 = vector.shape_cast %102 : vector<16x16x8xf32> to vector<256x8xf32>
    %c1_134 = arith.constant 1 : index
    %c2_135 = arith.constant 2 : index
    %c0_136 = arith.constant 0 : index
    %c0_137 = arith.constant 0 : index
    %104 = vector.load %arg4[%c1_134, %c2_135, %c0_136, %c0_137] : memref<3x3x8x16xf32, #tpu.memory_space<vmem>>, vector<1x1x8x16xf32>
    %105 = vector.shape_cast %104 : vector<1x1x8x16xf32> to vector<8x16xf32>
    %cst_138 = arith.constant dense<0.000000e+00> : vector<256x16xf32>
    %106 = tpu.matmul %103, %105, %cst_138 {dimension_numbers = #tpu.dot_dimension_numbers<[1], [0], [0], [1], [0, 0, 1, 1], [], []>} : vector<256x8xf32>, vector<8x16xf32>, vector<256x16xf32> -> vector<256x16xf32>
    %107 = arith.addf %101, %106 : vector<256x16xf32>
    %c2_139 = arith.constant 2 : index
    %c0_140 = arith.constant 0 : index
    %c0_141 = arith.constant 0 : index
    %108 = vector.load %arg8[%c2_139, %c0_140, %c0_141] : memref<18x18x8xf32, #tpu.memory_space<vmem>>, vector<16x16x8xf32>
    %109 = vector.shape_cast %108 : vector<16x16x8xf32> to vector<256x8xf32>
    %c2_142 = arith.constant 2 : index
    %c0_143 = arith.constant 0 : index
    %c0_144 = arith.constant 0 : index
    %c0_145 = arith.constant 0 : index
    %110 = vector.load %arg4[%c2_142, %c0_143, %c0_144, %c0_145] : memref<3x3x8x16xf32, #tpu.memory_space<vmem>>, vector<1x1x8x16xf32>
    %111 = vector.shape_cast %110 : vector<1x1x8x16xf32> to vector<8x16xf32>
    %cst_146 = arith.constant dense<0.000000e+00> : vector<256x16xf32>
    %112 = tpu.matmul %109, %111, %cst_146 {dimension_numbers = #tpu.dot_dimension_numbers<[1], [0], [0], [1], [0, 0, 1, 1], [], []>} : vector<256x8xf32>, vector<8x16xf32>, vector<256x16xf32> -> vector<256x16xf32>
    %113 = arith.addf %107, %112 : vector<256x16xf32>
    %c2_147 = arith.constant 2 : index
    %c1_148 = arith.constant 1 : index
    %c0_149 = arith.constant 0 : index
    %114 = vector.load %arg8[%c2_147, %c1_148, %c0_149] : memref<18x18x8xf32, #tpu.memory_space<vmem>>, vector<16x16x8xf32>
    %115 = vector.shape_cast %114 : vector<16x16x8xf32> to vector<256x8xf32>
    %c2_150 = arith.constant 2 : index
    %c1_151 = arith.constant 1 : index
    %c0_152 = arith.constant 0 : index
    %c0_153 = arith.constant 0 : index
    %116 = vector.load %arg4[%c2_150, %c1_151, %c0_152, %c0_153] : memref<3x3x8x16xf32, #tpu.memory_space<vmem>>, vector<1x1x8x16xf32>
    %117 = vector.shape_cast %116 : vector<1x1x8x16xf32> to vector<8x16xf32>
    %cst_154 = arith.constant dense<0.000000e+00> : vector<256x16xf32>
    %118 = tpu.matmul %115, %117, %cst_154 {dimension_numbers = #tpu.dot_dimension_numbers<[1], [0], [0], [1], [0, 0, 1, 1], [], []>} : vector<256x8xf32>, vector<8x16xf32>, vector<256x16xf32> -> vector<256x16xf32>
    %119 = arith.addf %113, %118 : vector<256x16xf32>
    %c2_155 = arith.constant 2 : index
    %c2_156 = arith.constant 2 : index
    %c0_157 = arith.constant 0 : index
    %120 = vector.load %arg8[%c2_155, %c2_156, %c0_157] : memref<18x18x8xf32, #tpu.memory_space<vmem>>, vector<16x16x8xf32>
    %121 = vector.shape_cast %120 : vector<16x16x8xf32> to vector<256x8xf32>
    %c2_158 = arith.constant 2 : index
    %c2_159 = arith.constant 2 : index
    %c0_160 = arith.constant 0 : index
    %c0_161 = arith.constant 0 : index
    %122 = vector.load %arg4[%c2_158, %c2_159, %c0_160, %c0_161] : memref<3x3x8x16xf32, #tpu.memory_space<vmem>>, vector<1x1x8x16xf32>
    %123 = vector.shape_cast %122 : vector<1x1x8x16xf32> to vector<8x16xf32>
    %cst_162 = arith.constant dense<0.000000e+00> : vector<256x16xf32>
    %124 = tpu.matmul %121, %123, %cst_162 {dimension_numbers = #tpu.dot_dimension_numbers<[1], [0], [0], [1], [0, 0, 1, 1], [], []>} : vector<256x8xf32>, vector<8x16xf32>, vector<256x16xf32> -> vector<256x16xf32>
    %125 = arith.addf %119, %124 : vector<256x16xf32>
    %c0_163 = arith.constant 0 : index
    %c0_164 = arith.constant 0 : index
    %126 = vector.load %arg5[%c0_163, %c0_164] : memref<1x16xf32, #tpu.memory_space<vmem>>, vector<1x16xf32>
    %127 = vector.shape_cast %126 : vector<1x16xf32> to vector<16xf32>
    %128 = vector.shape_cast %127 : vector<16xf32> to vector<1x16xf32>
    %129 = vector.broadcast %128 : vector<1x16xf32> to vector<256x16xf32>
    %130 = arith.addf %125, %129 : vector<256x16xf32>
    %cst_165 = arith.constant 0.000000e+00 : f32
    %131 = vector.broadcast %cst_165 : f32 to vector<256x16xf32>
    %132 = arith.maximumf %130, %131 : vector<256x16xf32>
    %133 = vector.shape_cast %132 : vector<256x16xf32> to vector<16x16x16xf32>
    %c0_166 = arith.constant 0 : index
    %c0_167 = arith.constant 0 : index
    %c0_168 = arith.constant 0 : index
    %c0_169 = arith.constant 0 : index
    %134 = vector.load %arg6[%c0_166, %c0_167, %c0_168, %c0_169] : memref<1x16x16x16xf32, #tpu.memory_space<vmem>>, vector<1x16x16x16xf32>
    %135 = vector.shape_cast %134 : vector<1x16x16x16xf32> to vector<16x16x16xf32>
    %136 = vector.shape_cast %133 : vector<16x16x16xf32> to vector<1x16x16x16xf32>
    tpu.vector_store %arg6[%c0_166, %c0_167, %c0_168, %c0_169], %136 {strides = array<i32>} : memref<1x16x16x16xf32, #tpu.memory_space<vmem>>, vector<1x16x16x16xf32>,
    return
  }
  func.func @transform_0(%arg0: i32) -> (i32, i32, i32, i32) {
    %c0_i32 = arith.constant 0 : i32
    %c0_i32_0 = arith.constant 0 : i32
    %c0_i32_1 = arith.constant 0 : i32
    %c0_i32_2 = arith.constant 0 : i32
    return %arg0, %c0_i32, %c0_i32_0, %c0_i32_1 : i32, i32, i32, i32
  }
  func.func @transform_1(%arg0: i32) -> (i32, i32, i32, i32) {
    %c0_i32 = arith.constant 0 : i32
    %c0_i32_0 = arith.constant 0 : i32
    %c0_i32_1 = arith.constant 0 : i32
    %c0_i32_2 = arith.constant 0 : i32
    %c0_i32_3 = arith.constant 0 : i32
    return %c0_i32, %c0_i32_0, %c0_i32_1, %c0_i32_2 : i32, i32, i32, i32
  }
  func.func @transform_2(%arg0: i32) -> (i32, i32) {
    %c0_i32 = arith.constant 0 : i32
    %c0_i32_0 = arith.constant 0 : i32
    %c0_i32_1 = arith.constant 0 : i32
    return %c0_i32, %c0_i32_0 : i32, i32
  }
  func.func @transform_3(%arg0: i32) -> (i32, i32, i32, i32) {
    %c0_i32 = arith.constant 0 : i32
    %c0_i32_0 = arith.constant 0 : i32
    %c0_i32_1 = arith.constant 0 : i32
    %c0_i32_2 = arith.constant 0 : i32
    %c0_i32_3 = arith.constant 0 : i32
    return %c0_i32, %c0_i32_0, %c0_i32_1, %c0_i32_2 : i32, i32, i32, i32
  }
  func.func @transform_4(%arg0: i32) -> (i32, i32) {
    %c0_i32 = arith.constant 0 : i32
    %c0_i32_0 = arith.constant 0 : i32
    %c0_i32_1 = arith.constant 0 : i32
    return %c0_i32, %c0_i32_0 : i32, i32
  }
  func.func @transform_5(%arg0: i32) -> (i32, i32, i32, i32) {
    %c0_i32 = arith.constant 0 : i32
    %c0_i32_0 = arith.constant 0 : i32
    %c0_i32_1 = arith.constant 0 : i32
    %c0_i32_2 = arith.constant 0 : i32
    return %arg0, %c0_i32, %c0_i32_0, %c0_i32_1 : i32, i32, i32, i32
  }
}

</mosaic_0001>

<llo_original>
// kernel: tpu_custom_call.1
$region0: #{tpu_custom_call.1}
  #allocation0 [shape = 'u32[]', space=smem, size = 0x4, offset = 0x4, fixed_abs, tag = 'smem constant byte address 0x4 - core index']
  #allocation1 [shape = 'u32[144,128]{1,0:T(1,128)}', space=vmem, size = 0x12000, scoped, tag = 'internal scratch']
  #allocation2 [shape = 'f32[18,18,4]{2,1,0:T(8,128)}', space=vmem, size = 0x36000, scoped, tag = 'scratch operand']
  #allocation3 [shape = 'f32[18,18,8]{2,1,0:T(8,128)}', space=vmem, size = 0x36000, scoped, tag = 'scratch operand']
  %s0 = inlined_call_operand.vmem [shape: f32[2,16,16,4], index: 0, kind: input, shape index: {}]
  %s1 = inlined_call_operand.vmem [shape: f32[3,3,4,8], index: 1, kind: input, shape index: {}]
  %s2 = inlined_call_operand.vmem [shape: f32[1,8], index: 2, kind: input, shape index: {}]
  %s3 = inlined_call_operand.vmem [shape: f32[3,3,8,16], index: 3, kind: input, shape index: {}]
  %s4 = inlined_call_operand.vmem [shape: f32[1,16], index: 4, kind: input, shape index: {}]
  %s5 = inlined_call_operand.hbm [shape: f32[2,16,16,16], index: 5, kind: output, shape index: {}]
  %s6 = sld [smem:[#allocation0]]
  $region53: #{tpu_custom_call.1} parent=0
    _
  %s8 = ssub.s32 1, %s6
  %s9 = scalar_select 0, %s8, %s6
  $region1: #{tpu_custom_call.1} parent=0
    #allocation4 [shape = 'u8[262144]{0}', space=vmem, size = 0x40000, scoped, tag = 'output window, operand 0']
    #allocation5 [shape = 's32[2]{0}', space=sflag, size = 0x8, scoped, tag = 'scoped memory for tpu_custom_call.1']
    %10 = vsyncpa [#allocation5], 0
    %s11 = scalar_lea.sflag [#allocation5], 1
    %12 = vsyncpa %s11, 0
    loop: start=0, step=1, limit=4
    $region2: #{tpu_custom_call.1} parent=1 // loop_pre_header
      _
    $region3: #{tpu_custom_call.1} parent=1 // loop_header
      %s14 = sphi 0, %s18
      %p15 = scmp.ge.s32.totalorder %s14, 4
      %s24 = sphi 0, %s26
      %s27 = sphi 0, %s24
      %s28 = sphi 0, %s27
      %s44 = sphi 0, %s28
      %s48 = sphi 0, %s48
      %s50 = sphi 0, %s48
      %s51 = sphi 0, %s50
      %s65 = sphi 0, %s51
      %s69 = sphi 0, %s69
      %s71 = sphi 0, %s69
      %s72 = sphi 0, %s71
      %s86 = sphi 0, %s72
      %s90 = sphi 0, %s90
      %s92 = sphi 0, %s90
      %s93 = sphi 0, %s92
      %s107 = sphi 0, %s93
      %s111 = sphi 0, %s111
      %s113 = sphi 0, %s111
      %s114 = sphi 0, %s113
      %s128 = sphi 0, %s114
      %s134 = sphi 0, %s136
      %s137 = sphi 0, %s134
      %s138 = sphi 0, %s137
      %s154 = sphi 0, %s138
    $region4: #{tpu_custom_call.1} parent=1 // loop_header_branch
      %17 = sbr.rel (%p15) target = $region8
    $region5: #{tpu_custom_call.1} parent=1 // loop_body
      %s19 = ssub.s32 %s14, 1
      %s20 = ssub.s32 %s14, 2
      %s21 = sadd.s32 %s14, 1
      %s22 = ssub.s32 %s14, %s21
      %p23 = scmp.eq.s32.totalorder %s22, 0
      %s25 = sadd.s32 %s24, 1
      %s26 = scalar_select %p23, %s24, %s25
      %p29 = pneg %p23
      %p30 = scmp.eq.s32.totalorder %s14, 1
      %p31 = por %p29, %p30
      %p32 = scmp.ne.s32.totalorder %s24, %s27
      %p33 = scmp.eq.s32.totalorder %s14, 0
      %p34 = por %p32, %p33
      %p35 = scmp.ne.s32.totalorder %s24, %s27
      %p36 = scmp.eq.s32.totalorder %s19, 1
      %p37 = por %p35, %p36
      %p38 = scmp.ne.s32.totalorder %s27, %s28
      %p39 = scmp.eq.s32.totalorder %s19, 0
      %p40 = por %p38, %p39
      %p41 = scmp.ne.s32.totalorder %s27, %s28
      %p42 = scmp.eq.s32.totalorder %s20, 1
      %p43 = por %p41, %p42
      %p45 = scmp.ne.s32.totalorder %s28, %s44
      %p46 = scmp.eq.s32.totalorder %s20, 0
      %p47 = por %p45, %p46
      %s49 = sadd.s32 %s48, 1
      %p52 = scmp.eq.s32.totalorder %s14, 1
      %p53 = scmp.ne.s32.totalorder %s48, %s50
      %p54 = scmp.eq.s32.totalorder %s14, 0
      %p55 = por %p53, %p54
      %p56 = scmp.ne.s32.totalorder %s48, %s50
      %p57 = scmp.eq.s32.totalorder %s19, 1
      %p58 = por %p56, %p57
      %p59 = scmp.ne.s32.totalorder %s50, %s51
      %p60 = scmp.eq.s32.totalorder %s19, 0
      %p61 = por %p59, %p60
      %p62 = scmp.ne.s32.totalorder %s50, %s51
      %p63 = scmp.eq.s32.totalorder %s20, 1
      %p64 = por %p62, %p63
      %p66 = scmp.ne.s32.totalorder %s51, %s65
      %p67 = scmp.eq.s32.totalorder %s20, 0
      %p68 = por %p66, %p67
      %s70 = sadd.s32 %s69, 1
      %p73 = scmp.eq.s32.totalorder %s14, 1
      %p74 = scmp.ne.s32.totalorder %s69, %s71
      %p75 = scmp.eq.s32.totalorder %s14, 0
      %p76 = por %p74, %p75
      %p77 = scmp.ne.s32.totalorder %s69, %s71
      %p78 = scmp.eq.s32.totalorder %s19, 1
      %p79 = por %p77, %p78
      %p80 = scmp.ne.s32.totalorder %s71, %s72
      %p81 = scmp.eq.s32.totalorder %s19, 0
      %p82 = por %p80, %p81
      %p83 = scmp.ne.s32.totalorder %s71, %s72
      %p84 = scmp.eq.s32.totalorder %s20, 1
      %p85 = por %p83, %p84
      %p87 = scmp.ne.s32.totalorder %s72, %s86
      %p88 = scmp.eq.s32.totalorder %s20, 0
      %p89 = por %p87, %p88
      %s91 = sadd.s32 %s90, 1
      %p94 = scmp.eq.s32.totalorder %s14, 1
      %p95 = scmp.ne.s32.totalorder %s90, %s92
      %p96 = scmp.eq.s32.totalorder %s14, 0
      %p97 = por %p95, %p96
      %p98 = scmp.ne.s32.totalorder %s90, %s92
      %p99 = scmp.eq.s32.totalorder %s19, 1
      %p100 = por %p98, %p99
      %p101 = scmp.ne.s32.totalorder %s92, %s93
      %p102 = scmp.eq.s32.totalorder %s19, 0
      %p103 = por %p101, %p102
      %p104 = scmp.ne.s32.totalorder %s92, %s93
      %p105 = scmp.eq.s32.totalorder %s20, 1
      %p106 = por %p104, %p105
      %p108 = scmp.ne.s32.totalorder %s93, %s107
      %p109 = scmp.eq.s32.totalorder %s20, 0
      %p110 = por %p108, %p109
      %s112 = sadd.s32 %s111, 1
      %p115 = scmp.eq.s32.totalorder %s14, 1
      %p116 = scmp.ne.s32.totalorder %s111, %s113
      %p117 = scmp.eq.s32.totalorder %s14, 0
      %p118 = por %p116, %p117
      %p119 = scmp.ne.s32.totalorder %s111, %s113
      %p120 = scmp.eq.s32.totalorder %s19, 1
      %p121 = por %p119, %p120
      %p122 = scmp.ne.s32.totalorder %s113, %s114
      %p123 = scmp.eq.s32.totalorder %s19, 0
      %p124 = por %p122, %p123
      %p125 = scmp.ne.s32.totalorder %s113, %s114
      %p126 = scmp.eq.s32.totalorder %s20, 1
      %p127 = por %p125, %p126
      %p129 = scmp.ne.s32.totalorder %s114, %s128
      %p130 = scmp.eq.s32.totalorder %s20, 0
      %p131 = por %p129, %p130
      %s132 = ssub.s32 %s14, %s21
      %p133 = scmp.eq.s32.totalorder %s132, 0
      %s135 = sadd.s32 %s134, 1
      %s136 = scalar_select %p133, %s134, %s135
      %p139 = pneg %p133
      %p140 = scmp.eq.s32.totalorder %s14, 1
      %p141 = por %p139, %p140
      %p142 = scmp.ne.s32.totalorder %s134, %s137
      %p143 = scmp.eq.s32.totalorder %s14, 0
      %p144 = por %p142, %p143
      %p145 = scmp.ne.s32.totalorder %s134, %s137
      %p146 = scmp.eq.s32.totalorder %s19, 1
      %p147 = por %p145, %p146
      %p148 = scmp.ne.s32.totalorder %s137, %s138
      %p149 = scmp.eq.s32.totalorder %s19, 0
      %p150 = por %p148, %p149
      %p151 = scmp.ne.s32.totalorder %s137, %s138
      %p152 = scmp.eq.s32.totalorder %s20, 1
      %p153 = por %p151, %p152
      %p155 = scmp.ne.s32.totalorder %s138, %s154
      %p156 = scmp.eq.s32.totalorder %s20, 0
      %p157 = por %p155, %p156
      %p158 = scmp.le.s32.totalorder 1, %s14
      %p159 = scmp.lt.s32.totalorder %s14, 3
      %p160 = pnand %p158, %p159
      %p161 = pneg %p160
      // Predicated region
      $region9: #{tpu_custom_call.1} parent=5 // pred_check
        _
      $region10: #{tpu_custom_call.1} parent=5 // pred_check_branch
        %163 = sbr.rel (%p160) target = $region12
      $region11: #{tpu_custom_call.1} parent=5 // pred_region
        %s164 = ssub.s32 %s14, 1
        // Predicated region
        $region13: #{tpu_custom_call.1} parent=11 // pred_check
          %p165 = pneg %p61
        $region14: #{tpu_custom_call.1} parent=11 // pred_check_branch
          %167 = sbr.rel (%p165) target = $region16
        $region15: #{tpu_custom_call.1} parent=11 // pred_region
          _
        $region16: #{tpu_custom_call.1} parent=11 // pred_fallthru
          _
        // Predicated region
        $region17: #{tpu_custom_call.1} parent=11 // pred_check
          %p168 = pneg %p82
        $region18: #{tpu_custom_call.1} parent=11 // pred_check_branch
          %170 = sbr.rel (%p168) target = $region20
        $region19: #{tpu_custom_call.1} parent=11 // pred_region
          _
        $region20: #{tpu_custom_call.1} parent=11 // pred_fallthru
          _
        // Predicated region
        $region21: #{tpu_custom_call.1} parent=11 // pred_check
          %p171 = pneg %p103
        $region22: #{tpu_custom_call.1} parent=11 // pred_check_branch
          %173 = sbr.rel (%p171) target = $region24
        $region23: #{tpu_custom_call.1} parent=11 // pred_region
          _
        $region24: #{tpu_custom_call.1} parent=11 // pred_fallthru
          _
        // Predicated region
        $region25: #{tpu_custom_call.1} parent=11 // pred_check
          %p174 = pneg %p124
        $region26: #{tpu_custom_call.1} parent=11 // pred_check_branch
          %176 = sbr.rel (%p174) target = $region28
        $region27: #{tpu_custom_call.1} parent=11 // pred_region
          _
        $region28: #{tpu_custom_call.1} parent=11 // pred_fallthru
          _
      $region12: #{tpu_custom_call.1} parent=5 // pred_fallthru
        _
      %p177 = scmp.lt.s32.totalorder %s14, 2
      // Predicated region
      $region29: #{tpu_custom_call.1} parent=5 // pred_check
        %p178 = pneg %p177
      $region30: #{tpu_custom_call.1} parent=5 // pred_check_branch
        %180 = sbr.rel (%p178) target = $region32
      $region31: #{tpu_custom_call.1} parent=5 // pred_region
        // Predicated region
        $region33: #{tpu_custom_call.1} parent=31 // pred_check
          %p181 = pneg %p34
        $region34: #{tpu_custom_call.1} parent=31 // pred_check_branch
          %183 = sbr.rel (%p181) target = $region36
        $region35: #{tpu_custom_call.1} parent=31 // pred_region
          %p184 = scmp.lt.s32.totalorder %s14, 1
          %s185 = scalar_select %p184, %s14, 1
          %s186 = smul.addr %s185, 32
          %s187 = smul.addr %s186, 8
          %s188 = scalar_lea.vmem %s0, %s187
        $region36: #{tpu_custom_call.1} parent=31 // pred_fallthru
          _
      $region32: #{tpu_custom_call.1} parent=5 // pred_fallthru
        _
      %p189 = scmp.le.s32.totalorder 1, %s14
      %p190 = scmp.lt.s32.totalorder %s14, 3
      %p191 = pnand %p189, %p190
      %p192 = pneg %p191
      // Predicated region
      $region37: #{tpu_custom_call.1} parent=5 // pred_check
        _
      $region38: #{tpu_custom_call.1} parent=5 // pred_check_branch
        %194 = sbr.rel (%p191) target = $region40
      $region39: #{tpu_custom_call.1} parent=5 // pred_region
        %s195 = ssub.s32 %s14, 1
        %p196 = scmp.lt.s32.totalorder %s19, 1
        %s197 = scalar_select %p196, %s19, 1
        %s198 = smul.addr %s197, 32
        %s199 = smul.addr %s198, 8
        %s200 = scalar_lea.vmem %s0, %s199
        %p201 = pneg %p40
        %p202 = pneg %p37
        %p203 = pneg %p61
        %p204 = pneg %p58
        %p205 = pneg %p82
        %p206 = pneg %p79
        %p207 = pneg %p103
        %p208 = pneg %p100
        %p209 = pneg %p124
        %p210 = pneg %p121
        %p211 = pneg %p150
        %p212 = pneg %p147
        %s213 = sand.u32 %s137, 1
        %s214 = scalar_lea.sflag [#allocation5], %s213
        %s215 = sand.u32 %s137, 1
        %s216 = smul.addr %s215, 256
        %s217 = scalar_lea.vmem [#allocation4], %s216
        %p218 = scmp.lt.s32.totalorder %s19, 1
        %s219 = scalar_select %p218, %s19, 1
        %s220 = smul.addr %s219, 32
        %s221 = smul.addr %s220, 8
        %s222 = scalar_lea.vmem %s0, %s221
        %v223 = vld [vmem:[%s222] sm:$0xff]
        %v224 = vld [vmem:[%s222 + $0x8] sm:$0xff]
        %v225 = vld [vmem:[%s222 + $0x10] sm:$0xff]
        %v226 = vld [vmem:[%s222 + $0x18] sm:$0xff]
        %v227 = vld [vmem:[%s222 + $0x20] sm:$0xff]
        %v228 = vld [vmem:[%s222 + $0x28] sm:$0xff]
        %v229 = vld [vmem:[%s222 + $0x30] sm:$0xff]
        %v230 = vld [vmem:[%s222 + $0x38] sm:$0xff]
        %v231 = vld [vmem:[%s222 + $0x40] sm:$0xff]
        %v232 = vld [vmem:[%s222 + $0x48] sm:$0xff]
        %v233 = vld [vmem:[%s222 + $0x50] sm:$0xff]
        %v234 = vld [vmem:[%s222 + $0x58] sm:$0xff]
        %v235 = vld [vmem:[%s222 + $0x60] sm:$0xff]
        %v236 = vld [vmem:[%s222 + $0x68] sm:$0xff]
        %v237 = vld [vmem:[%s222 + $0x70] sm:$0xff]
        %v238 = vld [vmem:[%s222 + $0x78] sm:$0xff]
        %v239 = vld [vmem:[%s222 + $0x80] sm:$0xff]
        %v240 = vld [vmem:[%s222 + $0x88] sm:$0xff]
        %v241 = vld [vmem:[%s222 + $0x90] sm:$0xff]
        %v242 = vld [vmem:[%s222 + $0x98] sm:$0xff]
        %v243 = vld [vmem:[%s222 + $0xa0] sm:$0xff]
        %v244 = vld [vmem:[%s222 + $0xa8] sm:$0xff]
        %v245 = vld [vmem:[%s222 + $0xb0] sm:$0xff]
        %v246 = vld [vmem:[%s222 + $0xb8] sm:$0xff]
        %v247 = vld [vmem:[%s222 + $0xc0] sm:$0xff]
        %v248 = vld [vmem:[%s222 + $0xc8] sm:$0xff]
        %v249 = vld [vmem:[%s222 + $0xd0] sm:$0xff]
        %v250 = vld [vmem:[%s222 + $0xd8] sm:$0xff]
        %v251 = vld [vmem:[%s222 + $0xe0] sm:$0xff]
        %v252 = vld [vmem:[%s222 + $0xe8] sm:$0xff]
        %v253 = vld [vmem:[%s222 + $0xf0] sm:$0xff]
        %v254 = vld [vmem:[%s222 + $0xf8] sm:$0xff]
        %vm255 = vcmask 31744
        %256 = vst.msk [vmem:[#allocation2] sm:$0xff] %vm255, 0.0
        %257 = vst.msk [vmem:[#allocation2 + $0x8] sm:$0xff] %vm255, 0.0
        %vm258 = vcmask 25600
        %259 = vst.msk [vmem:[#allocation2 + $0x10] sm:$0x3] %vm258, 0.0
        %260 = vst.msk [vmem:[#allocation2 + $0x18] sm:$0xff] %vm255, 0.0
        %261 = vst.msk [vmem:[#allocation2 + $0x20] sm:$0xff] %vm255, 0.0
        %262 = vst.msk [vmem:[#allocation2 + $0x28] sm:$0x3] %vm258, 0.0
        %263 = vst.msk [vmem:[#allocation2 + $0x30] sm:$0xff] %vm255, 0.0
        %264 = vst.msk [vmem:[#allocation2 + $0x38] sm:$0xff] %vm255, 0.0
        %265 = vst.msk [vmem:[#allocation2 + $0x40] sm:$0x3] %vm258, 0.0
        %266 = vst.msk [vmem:[#allocation2 + $0x48] sm:$0xff] %vm255, 0.0
        %267 = vst.msk [vmem:[#allocation2 + $0x50] sm:$0xff] %vm255, 0.0
        %268 = vst.msk [vmem:[#allocation2 + $0x58] sm:$0x3] %vm258, 0.0
        %269 = vst.msk [vmem:[#allocation2 + $0x60] sm:$0xff] %vm255, 0.0
        %270 = vst.msk [vmem:[#allocation2 + $0x68] sm:$0xff] %vm255, 0.0
        %271 = vst.msk [vmem:[#allocation2 + $0x70] sm:$0x3] %vm258, 0.0
        %272 = vst.msk [vmem:[#allocation2 + $0x78] sm:$0xff] %vm255, 0.0
        %273 = vst.msk [vmem:[#allocation2 + $0x80] sm:$0xff] %vm255, 0.0
        %274 = vst.msk [vmem:[#allocation2 + $0x88] sm:$0x3] %vm258, 0.0
        %275 = vst.msk [vmem:[#allocation2 + $0x90] sm:$0xff] %vm255, 0.0
        %276 = vst.msk [vmem:[#allocation2 + $0x98] sm:$0xff] %vm255, 0.0
        %277 = vst.msk [vmem:[#allocation2 + $0xa0] sm:$0x3] %vm258, 0.0
        %278 = vst.msk [vmem:[#allocation2 + $0xa8] sm:$0xff] %vm255, 0.0
        %279 = vst.msk [vmem:[#allocation2 + $0xb0] sm:$0xff] %vm255, 0.0
        %280 = vst.msk [vmem:[#allocation2 + $0xb8] sm:$0x3] %vm258, 0.0
        %281 = vst.msk [vmem:[#allocation2 + $0xc0] sm:$0xff] %vm255, 0.0
        %282 = vst.msk [vmem:[#allocation2 + $0xc8] sm:$0xff] %vm255, 0.0
        %283 = vst.msk [vmem:[#allocation2 + $0xd0] sm:$0x3] %vm258, 0.0
        %284 = vst.msk [vmem:[#allocation2 + $0xd8] sm:$0xff] %vm255, 0.0
        %285 = vst.msk [vmem:[#allocation2 + $0xe0] sm:$0xff] %vm255, 0.0
        %286 = vst.msk [vmem:[#allocation2 + $0xe8] sm:$0x3] %vm258, 0.0
        %287 = vst.msk [vmem:[#allocation2 + $0xf0] sm:$0xff] %vm255, 0.0
        %288 = vst.msk [vmem:[#allocation2 + $0xf8] sm:$0xff] %vm255, 0.0
        %289 = vst.msk [vmem:[#allocation2 + $0x100] sm:$0x3] %vm258, 0.0
        %290 = vst.msk [vmem:[#allocation2 + $0x108] sm:$0xff] %vm255, 0.0
        %291 = vst.msk [vmem:[#allocation2 + $0x110] sm:$0xff] %vm255, 0.0
        %292 = vst.msk [vmem:[#allocation2 + $0x118] sm:$0x3] %vm258, 0.0
        %293 = vst.msk [vmem:[#allocation2 + $0x120] sm:$0xff] %vm255, 0.0
        %294 = vst.msk [vmem:[#allocation2 + $0x128] sm:$0xff] %vm255, 0.0
        %295 = vst.msk [vmem:[#allocation2 + $0x130] sm:$0x3] %vm258, 0.0
        %296 = vst.msk [vmem:[#allocation2 + $0x138] sm:$0xff] %vm255, 0.0
        %297 = vst.msk [vmem:[#allocation2 + $0x140] sm:$0xff] %vm255, 0.0
        %298 = vst.msk [vmem:[#allocation2 + $0x148] sm:$0x3] %vm258, 0.0
        %299 = vst.msk [vmem:[#allocation2 + $0x150] sm:$0xff] %vm255, 0.0
        %300 = vst.msk [vmem:[#allocation2 + $0x158] sm:$0xff] %vm255, 0.0
        %301 = vst.msk [vmem:[#allocation2 + $0x160] sm:$0x3] %vm258, 0.0
        %302 = vst.msk [vmem:[#allocation2 + $0x168] sm:$0xff] %vm255, 0.0
        %303 = vst.msk [vmem:[#allocation2 + $0x170] sm:$0xff] %vm255, 0.0
        %304 = vst.msk [vmem:[#allocation2 + $0x178] sm:$0x3] %vm258, 0.0
        %305 = vst.msk [vmem:[#allocation2 + $0x180] sm:$0xff] %vm255, 0.0
        %306 = vst.msk [vmem:[#allocation2 + $0x188] sm:$0xff] %vm255, 0.0
        %307 = vst.msk [vmem:[#allocation2 + $0x190] sm:$0x3] %vm258, 0.0
        %308 = vst.msk [vmem:[#allocation2 + $0x198] sm:$0xff] %vm255, 0.0
        %309 = vst.msk [vmem:[#allocation2 + $0x1a0] sm:$0xff] %vm255, 0.0
        %310 = vst.msk [vmem:[#allocation2 + $0x1a8] sm:$0x3] %vm258, 0.0
        %s311 = scalar_lea.vmem [#allocation2], 24
        %312 = vst.msk [vmem:[%s311 + $0x1] sm:$0xff] %vm255, %v223
        %313 = vst.msk [vmem:[%s311 + $0x9] sm:$0xff] %vm255, %v224
        %314 = vst.msk [vmem:[%s311 + $0x19] sm:$0xff] %vm255, %v225
        %315 = vst.msk [vmem:[%s311 + $0x21] sm:$0xff] %vm255, %v226
        %316 = vst.msk [vmem:[%s311 + $0x31] sm:$0xff] %vm255, %v227
        %317 = vst.msk [vmem:[%s311 + $0x39] sm:$0xff] %vm255, %v228
        %318 = vst.msk [vmem:[%s311 + $0x49] sm:$0xff] %vm255, %v229
        %319 = vst.msk [vmem:[%s311 + $0x51] sm:$0xff] %vm255, %v230
        %320 = vst.msk [vmem:[%s311 + $0x61] sm:$0xff] %vm255, %v231
        %321 = vst.msk [vmem:[%s311 + $0x69] sm:$0xff] %vm255, %v232
        %322 = vst.msk [vmem:[%s311 + $0x79] sm:$0xff] %vm255, %v233
        %323 = vst.msk [vmem:[%s311 + $0x81] sm:$0xff] %vm255, %v234
        %324 = vst.msk [vmem:[%s311 + $0x91] sm:$0xff] %vm255, %v235
        %325 = vst.msk [vmem:[%s311 + $0x99] sm:$0xff] %vm255, %v236
        %326 = vst.msk [vmem:[%s311 + $0xa9] sm:$0xff] %vm255, %v237
        %327 = vst.msk [vmem:[%s311 + $0xb1] sm:$0xff] %vm255, %v238
        %328 = vst.msk [vmem:[%s311 + $0xc1] sm:$0xff] %vm255, %v239
        %329 = vst.msk [vmem:[%s311 + $0xc9] sm:$0xff] %vm255, %v240
        %330 = vst.msk [vmem:[%s311 + $0xd9] sm:$0xff] %vm255, %v241
        %331 = vst.msk [vmem:[%s311 + $0xe1] sm:$0xff] %vm255, %v242
        %332 = vst.msk [vmem:[%s311 + $0xf1] sm:$0xff] %vm255, %v243
        %333 = vst.msk [vmem:[%s311 + $0xf9] sm:$0xff] %vm255, %v244
        %334 = vst.msk [vmem:[%s311 + $0x109] sm:$0xff] %vm255, %v245
        %335 = vst.msk [vmem:[%s311 + $0x111] sm:$0xff] %vm255, %v246
        %336 = vst.msk [vmem:[%s311 + $0x121] sm:$0xff] %vm255, %v247
        %337 = vst.msk [vmem:[%s311 + $0x129] sm:$0xff] %vm255, %v248
        %338 = vst.msk [vmem:[%s311 + $0x139] sm:$0xff] %vm255, %v249
        %339 = vst.msk [vmem:[%s311 + $0x141] sm:$0xff] %vm255, %v250
        %340 = vst.msk [vmem:[%s311 + $0x151] sm:$0xff] %vm255, %v251
        %341 = vst.msk [vmem:[%s311 + $0x159] sm:$0xff] %vm255, %v252
        %342 = vst.msk [vmem:[%s311 + $0x169] sm:$0xff] %vm255, %v253
        %343 = vst.msk [vmem:[%s311 + $0x171] sm:$0xff] %vm255, %v254
        %v344 = vld [vmem:[#allocation2] sm:$0xff]
        %v345 = vld [vmem:[#allocation2 + $0x8] sm:$0xff]
        %v346 = vld [vmem:[#allocation2 + $0x18] sm:$0xff]
        %v347 = vld [vmem:[#allocation2 + $0x20] sm:$0xff]
        %v348 = vld [vmem:[#allocation2 + $0x30] sm:$0xff]
        %v349 = vld [vmem:[#allocation2 + $0x38] sm:$0xff]
        %v350 = vld [vmem:[#allocation2 + $0x48] sm:$0xff]
        %v351 = vld [vmem:[#allocation2 + $0x50] sm:$0xff]
        %v352 = vld [vmem:[#allocation2 + $0x60] sm:$0xff]
        %v353 = vld [vmem:[#allocation2 + $0x68] sm:$0xff]
        %v354 = vld [vmem:[#allocation2 + $0x78] sm:$0xff]
        %v355 = vld [vmem:[#allocation2 + $0x80] sm:$0xff]
        %v356 = vld [vmem:[#allocation2 + $0x90] sm:$0xff]
        %v357 = vld [vmem:[#allocation2 + $0x98] sm:$0xff]
        %v358 = vld [vmem:[#allocation2 + $0xa8] sm:$0xff]
        %v359 = vld [vmem:[#allocation2 + $0xb0] sm:$0xff]
        %v360 = vld [vmem:[#allocation2 + $0xc0] sm:$0xff]
        %v361 = vld [vmem:[#allocation2 + $0xc8] sm:$0xff]
        %v362 = vld [vmem:[#allocation2 + $0xd8] sm:$0xff]
        %v363 = vld [vmem:[#allocation2 + $0xe0] sm:$0xff]
        %v364 = vld [vmem:[#allocation2 + $0xf0] sm:$0xff]
        %v365 = vld [vmem:[#allocation2 + $0xf8] sm:$0xff]
        %v366 = vld [vmem:[#allocation2 + $0x108] sm:$0xff]
        %v367 = vld [vmem:[#allocation2 + $0x110] sm:$0xff]
        %v368 = vld [vmem:[#allocation2 + $0x120] sm:$0xff]
        %v369 = vld [vmem:[#allocation2 + $0x128] sm:$0xff]
        %v370 = vld [vmem:[#allocation2 + $0x138] sm:$0xff]
        %v371 = vld [vmem:[#allocation2 + $0x140] sm:$0xff]
        %v372 = vld [vmem:[#allocation2 + $0x150] sm:$0xff]
        %v373 = vld [vmem:[#allocation2 + $0x158] sm:$0xff]
        %v374 = vld [vmem:[#allocation2 + $0x168] sm:$0xff]
        %v375 = vld [vmem:[#allocation2 + $0x170] sm:$0xff]
        %v376 = vld [vmem:[%s1] sm:$0xf]
        %v377 = vld [vmem:[#allocation2 + $0x1] sm:$0xff]
        %v378 = vld [vmem:[#allocation2 + $0x9] sm:$0xff]
        %v379 = vld [vmem:[#allocation2 + $0x19] sm:$0xff]
        %v380 = vld [vmem:[#allocation2 + $0x21] sm:$0xff]
        %v381 = vld [vmem:[#allocation2 + $0x31] sm:$0xff]
        %v382 = vld [vmem:[#allocation2 + $0x39] sm:$0xff]
        %v383 = vld [vmem:[#allocation2 + $0x49] sm:$0xff]
        %v384 = vld [vmem:[#allocation2 + $0x51] sm:$0xff]
        %v385 = vld [vmem:[#allocation2 + $0x61] sm:$0xff]
        %v386 = vld [vmem:[#allocation2 + $0x69] sm:$0xff]
        %v387 = vld [vmem:[#allocation2 + $0x79] sm:$0xff]
        %v388 = vld [vmem:[#allocation2 + $0x81] sm:$0xff]
        %v389 = vld [vmem:[#allocation2 + $0x91] sm:$0xff]
        %v390 = vld [vmem:[#allocation2 + $0x99] sm:$0xff]
        %v391 = vld [vmem:[#allocation2 + $0xa9] sm:$0xff]
        %v392 = vld [vmem:[#allocation2 + $0xb1] sm:$0xff]
        %v393 = vld [vmem:[#allocation2 + $0xc1] sm:$0xff]
        %v394 = vld [vmem:[#allocation2 + $0xc9] sm:$0xff]
        %v395 = vld [vmem:[#allocation2 + $0xd9] sm:$0xff]
        %v396 = vld [vmem:[#allocation2 + $0xe1] sm:$0xff]
        %v397 = vld [vmem:[#allocation2 + $0xf1] sm:$0xff]
        %v398 = vld [vmem:[#allocation2 + $0xf9] sm:$0xff]
        %v399 = vld [vmem:[#allocation2 + $0x109] sm:$0xff]
        %v400 = vld [vmem:[#allocation2 + $0x111] sm:$0xff]
        %v401 = vld [vmem:[#allocation2 + $0x121] sm:$0xff]
        %v402 = vld [vmem:[#allocation2 + $0x129] sm:$0xff]
        %v403 = vld [vmem:[#allocation2 + $0x139] sm:$0xff]
        %v404 = vld [vmem:[#allocation2 + $0x141] sm:$0xff]
        %v405 = vld [vmem:[#allocation2 + $0x151] sm:$0xff]
        %v406 = vld [vmem:[#allocation2 + $0x159] sm:$0xff]
        %v407 = vld [vmem:[#allocation2 + $0x169] sm:$0xff]
        %v408 = vld [vmem:[#allocation2 + $0x171] sm:$0xff]
        %s409 = scalar_lea.vmem %s1, 4
        %v410 = vld [vmem:[%s409] sm:$0xf]
        %v412 = vsel %vm255, %v377, 0
        %v415 = vsel %vm255, %v378, 0
        %v418 = vsel %vm255, %v379, 0
        %v421 = vsel %vm255, %v380, 0
        %v424 = vsel %vm255, %v381, 0
        %v427 = vsel %vm255, %v382, 0
        %v430 = vsel %vm255, %v383, 0
        %v433 = vsel %vm255, %v384, 0
        %v436 = vsel %vm255, %v385, 0
        %v439 = vsel %vm255, %v386, 0
        %v442 = vsel %vm255, %v387, 0
        %v445 = vsel %vm255, %v388, 0
        %v448 = vsel %vm255, %v389, 0
        %v451 = vsel %vm255, %v390, 0
        %v454 = vsel %vm255, %v391, 0
        %v457 = vsel %vm255, %v392, 0
        %v460 = vsel %vm255, %v393, 0
        %v463 = vsel %vm255, %v394, 0
        %v466 = vsel %vm255, %v395, 0
        %v469 = vsel %vm255, %v396, 0
        %v472 = vsel %vm255, %v397, 0
        %v475 = vsel %vm255, %v398, 0
        %v478 = vsel %vm255, %v399, 0
        %v481 = vsel %vm255, %v400, 0
        %v484 = vsel %vm255, %v401, 0
        %v487 = vsel %vm255, %v402, 0
        %v490 = vsel %vm255, %v403, 0
        %v493 = vsel %vm255, %v404, 0
        %v496 = vsel %vm255, %v405, 0
        %v499 = vsel %vm255, %v406, 0
        %v502 = vsel %vm255, %v407, 0
        %v505 = vsel %vm255, %v408, 0
        %vm507 = vcmask 1043456
        %v509 = vsel %vm507, %v410, 0
        %511 = vmatprep.subr.mxu0 0.0
        %512 = vmatpush1.msra.mxu0 0.0
        %513 = vmatprep.subr.mxu0 0.0
        %514 = vmatpush1.msra.mxu0 0.0
        %515 = vmatprep.subr.mxu0 0.0
        %516 = vmatpush1.msra.mxu0 0.0
        %517 = vmatprep.subr.mxu0 0.0
        %518 = vmatpush1.msra.mxu0 0.0
        %519 = vmatprep.subr.mxu0 0.0
        %520 = vmatpush1.msra.mxu0 0.0
        %521 = vmatprep.subr.mxu0 0.0
        %522 = vmatpush1.msra.mxu0 0.0
        %523 = vmatprep.subr.mxu0 0.0
        %524 = vmatpush1.msra.mxu0 0.0
        %525 = vmatprep.subr.mxu0 0.0
        %526 = vmatpush1.msra.mxu0 0.0
        %527 = vmatprep.subr.mxu0 0.0
        %528 = vmatpush1.msra.mxu0 0.0
        %529 = vmatprep.subr.mxu0 0.0
        %530 = vmatpush1.msra.mxu0 0.0
        %531 = vmatprep.subr.mxu0 0.0
        %532 = vmatpush1.msra.mxu0 0.0
        %533 = vmatprep.subr.mxu0 0.0
        %534 = vmatpush1.msra.mxu0 0.0
        %535 = vmatprep.subr.mxu0 0.0
        %536 = vmatpush1.msra.mxu0 0.0
        %537 = vmatprep.subr.mxu0 0.0
        %538 = vmatpush1.msra.mxu0 0.0
        %539 = vmatprep.subr.mxu0 0.0
        %540 = vmatpush1.msra.mxu0 0.0
        %541 = vmatprep.subr.mxu0 0.0
        %542 = vmatpush1.msra.mxu0 %v509
        %543 = vmatprep.subr.mxu0 0.0
        %544 = vmatpush2.msra.mxu0 0.0
        %545 = vmatprep.subr.mxu0 0.0
        %546 = vmatpush2.msra.mxu0 0.0
        %547 = vmatprep.subr.mxu0 0.0
        %548 = vmatpush2.msra.mxu0 0.0
        %549 = vmatprep.subr.mxu0 0.0
        %550 = vmatpush2.msra.mxu0 0.0
        %551 = vmatprep.subr.mxu0 0.0
        %552 = vmatpush2.msra.mxu0 0.0
        %553 = vmatprep.subr.mxu0 0.0
        %554 = vmatpush2.msra.mxu0 0.0
        %555 = vmatprep.subr.mxu0 0.0
        %556 = vmatpush2.msra.mxu0 0.0
        %557 = vmatprep.subr.mxu0 0.0
        %558 = vmatpush2.msra.mxu0 0.0
        %559 = vmatprep.subr.mxu0 0.0
        %560 = vmatpush2.msra.mxu0 0.0
        %561 = vmatprep.subr.mxu0 0.0
        %562 = vmatpush2.msra.mxu0 0.0
        %563 = vmatprep.subr.mxu0 0.0
        %564 = vmatpush2.msra.mxu0 0.0
        %565 = vmatprep.subr.mxu0 0.0
        %566 = vmatpush2.msra.mxu0 0.0
        %567 = vmatprep.subr.mxu0 0.0
        %568 = vmatpush2.msra.mxu0 0.0
        %569 = vmatprep.subr.mxu0 0.0
        %570 = vmatpush2.msra.mxu0 0.0
        %571 = vmatprep.subr.mxu0 0.0
        %572 = vmatpush2.msra.mxu0 0.0
        %573 = vmatprep.subr.mxu0 0.0
        %574 = vmatpush2.msra.mxu0 0.0
        %575 = vmatprep.mubr.f32.mxu0 0.0
        %576 = vmatmul.mubr.f32.gmra.mxu0 %v412
        %v577 = vpop.f32.mrf.mxu0
        %v578 = vadd.f32 0.0, %v577
        %v579 = vpop.f32.mrf.mxu0
        %580 = vmatprep.mubr.f32.mxu0 0.0
        %581 = vmatmul.mubr.f32.gmra.mxu0 %v415
        %v582 = vpop.f32.mrf.mxu0
        %v583 = vadd.f32 0.0, %v582
        %v584 = vpop.f32.mrf.mxu0
        %585 = vmatprep.mubr.f32.mxu0 0.0
        %586 = vmatmul.mubr.f32.gmra.mxu0 %v418
        %v587 = vpop.f32.mrf.mxu0
        %v588 = vadd.f32 0.0, %v587
        %v589 = vpop.f32.mrf.mxu0
        %590 = vmatprep.mubr.f32.mxu0 0.0
        %591 = vmatmul.mubr.f32.gmra.mxu0 %v421
        %v592 = vpop.f32.mrf.mxu0
        %v593 = vadd.f32 0.0, %v592
        %v594 = vpop.f32.mrf.mxu0
        %595 = vmatprep.mubr.f32.mxu0 0.0
        %596 = vmatmul.mubr.f32.gmra.mxu0 %v424
        %v597 = vpop.f32.mrf.mxu0
        %v598 = vadd.f32 0.0, %v597
        %v599 = vpop.f32.mrf.mxu0
        %600 = vmatprep.mubr.f32.mxu0 0.0
        %601 = vmatmul.mubr.f32.gmra.mxu0 %v427
        %v602 = vpop.f32.mrf.mxu0
        %v603 = vadd.f32 0.0, %v602
        %v604 = vpop.f32.mrf.mxu0
        %605 = vmatprep.mubr.f32.mxu0 0.0
        %606 = vmatmul.mubr.f32.gmra.mxu0 %v430
        %v607 = vpop.f32.mrf.mxu0
        %v608 = vadd.f32 0.0, %v607
        %v609 = vpop.f32.mrf.mxu0
        %610 = vmatprep.mubr.f32.mxu0 0.0
        %611 = vmatmul.mubr.f32.gmra.mxu0 %v433
        %v612 = vpop.f32.mrf.mxu0
        %v613 = vadd.f32 0.0, %v612
        %v614 = vpop.f32.mrf.mxu0
        %615 = vmatprep.mubr.f32.mxu0 0.0
        %616 = vmatmul.mubr.f32.gmra.mxu0 %v436
        %v617 = vpop.f32.mrf.mxu0
        %v618 = vadd.f32 0.0, %v617
        %v619 = vpop.f32.mrf.mxu0
        %620 = vmatprep.mubr.f32.mxu0 0.0
        %621 = vmatmul.mubr.f32.gmra.mxu0 %v439
        %v622 = vpop.f32.mrf.mxu0
        %v623 = vadd.f32 0.0, %v622
        %v624 = vpop.f32.mrf.mxu0
        %625 = vmatprep.mubr.f32.mxu0 0.0
        %626 = vmatmul.mubr.f32.gmra.mxu0 %v442
        %v627 = vpop.f32.mrf.mxu0
        %v628 = vadd.f32 0.0, %v627
        %v629 = vpop.f32.mrf.mxu0
        %630 = vmatprep.mubr.f32.mxu0 0.0
        %631 = vmatmul.mubr.f32.gmra.mxu0 %v445
        %v632 = vpop.f32.mrf.mxu0
        %v633 = vadd.f32 0.0, %v632
        %v634 = vpop.f32.mrf.mxu0
        %635 = vmatprep.mubr.f32.mxu0 0.0
        %636 = vmatmul.mubr.f32.gmra.mxu0 %v448
        %v637 = vpop.f32.mrf.mxu0
        %v638 = vadd.f32 0.0, %v637
        %v639 = vpop.f32.mrf.mxu0
        %640 = vmatprep.mubr.f32.mxu0 0.0
        %641 = vmatmul.mubr.f32.gmra.mxu0 %v451
        %v642 = vpop.f32.mrf.mxu0
        %v643 = vadd.f32 0.0, %v642
        %v644 = vpop.f32.mrf.mxu0
        %645 = vmatprep.mubr.f32.mxu0 0.0
        %646 = vmatmul.mubr.f32.gmra.mxu0 %v454
        %v647 = vpop.f32.mrf.mxu0
        %v648 = vadd.f32 0.0, %v647
        %v649 = vpop.f32.mrf.mxu0
        %650 = vmatprep.mubr.f32.mxu0 0.0
        %651 = vmatmul.mubr.f32.gmra.mxu0 %v457
        %v652 = vpop.f32.mrf.mxu0
        %v653 = vadd.f32 0.0, %v652
        %v654 = vpop.f32.mrf.mxu0
        %655 = vmatprep.mubr.f32.mxu0 0.0
        %656 = vmatmul.mubr.f32.gmra.mxu0 %v460
        %v657 = vpop.f32.mrf.mxu0
        %v658 = vadd.f32 0.0, %v657
        %v659 = vpop.f32.mrf.mxu0
        %660 = vmatprep.mubr.f32.mxu0 0.0
        %661 = vmatmul.mubr.f32.gmra.mxu0 %v463
        %v662 = vpop.f32.mrf.mxu0
        %v663 = vadd.f32 0.0, %v662
        %v664 = vpop.f32.mrf.mxu0
        %665 = vmatprep.mubr.f32.mxu0 0.0
        %666 = vmatmul.mubr.f32.gmra.mxu0 %v466
        %v667 = vpop.f32.mrf.mxu0
        %v668 = vadd.f32 0.0, %v667
        %v669 = vpop.f32.mrf.mxu0
        %670 = vmatprep.mubr.f32.mxu0 0.0
        %671 = vmatmul.mubr.f32.gmra.mxu0 %v469
        %v672 = vpop.f32.mrf.mxu0
        %v673 = vadd.f32 0.0, %v672
        %v674 = vpop.f32.mrf.mxu0
        %675 = vmatprep.mubr.f32.mxu0 0.0
        %676 = vmatmul.mubr.f32.gmra.mxu0 %v472
        %v677 = vpop.f32.mrf.mxu0
        %v678 = vadd.f32 0.0, %v677
        %v679 = vpop.f32.mrf.mxu0
        %680 = vmatprep.mubr.f32.mxu0 0.0
        %681 = vmatmul.mubr.f32.gmra.mxu0 %v475
        %v682 = vpop.f32.mrf.mxu0
        %v683 = vadd.f32 0.0, %v682
        %v684 = vpop.f32.mrf.mxu0
        %685 = vmatprep.mubr.f32.mxu0 0.0
        %686 = vmatmul.mubr.f32.gmra.mxu0 %v478
        %v687 = vpop.f32.mrf.mxu0
        %v688 = vadd.f32 0.0, %v687
        %v689 = vpop.f32.mrf.mxu0
        %690 = vmatprep.mubr.f32.mxu0 0.0
        %691 = vmatmul.mubr.f32.gmra.mxu0 %v481
        %v692 = vpop.f32.mrf.mxu0
        %v693 = vadd.f32 0.0, %v692
        %v694 = vpop.f32.mrf.mxu0
        %695 = vmatprep.mubr.f32.mxu0 0.0
        %696 = vmatmul.mubr.f32.gmra.mxu0 %v484
        %v697 = vpop.f32.mrf.mxu0
        %v698 = vadd.f32 0.0, %v697
        %v699 = vpop.f32.mrf.mxu0
        %700 = vmatprep.mubr.f32.mxu0 0.0
        %701 = vmatmul.mubr.f32.gmra.mxu0 %v487
        %v702 = vpop.f32.mrf.mxu0
        %v703 = vadd.f32 0.0, %v702
        %v704 = vpop.f32.mrf.mxu0
        %705 = vmatprep.mubr.f32.mxu0 0.0
        %706 = vmatmul.mubr.f32.gmra.mxu0 %v490
        %v707 = vpop.f32.mrf.mxu0
        %v708 = vadd.f32 0.0, %v707
        %v709 = vpop.f32.mrf.mxu0
        %710 = vmatprep.mubr.f32.mxu0 0.0
        %711 = vmatmul.mubr.f32.gmra.mxu0 %v493
        %v712 = vpop.f32.mrf.mxu0
        %v713 = vadd.f32 0.0, %v712
        %v714 = vpop.f32.mrf.mxu0
        %715 = vmatprep.mubr.f32.mxu0 0.0
        %716 = vmatmul.mubr.f32.gmra.mxu0 %v496
        %v717 = vpop.f32.mrf.mxu0
        %v718 = vadd.f32 0.0, %v717
        %v719 = vpop.f32.mrf.mxu0
        %720 = vmatprep.mubr.f32.mxu0 0.0
        %721 = vmatmul.mubr.f32.gmra.mxu0 %v499
        %v722 = vpop.f32.mrf.mxu0
        %v723 = vadd.f32 0.0, %v722
        %v724 = vpop.f32.mrf.mxu0
        %725 = vmatprep.mubr.f32.mxu0 0.0
        %726 = vmatmul.mubr.f32.gmra.mxu0 %v502
        %v727 = vpop.f32.mrf.mxu0
        %v728 = vadd.f32 0.0, %v727
        %v729 = vpop.f32.mrf.mxu0
        %730 = vmatprep.mubr.f32.mxu0 0.0
        %731 = vmatmul.mubr.f32.gmra.mxu0 %v505
        %v732 = vpop.f32.mrf.mxu0
        %v733 = vadd.f32 0.0, %v732
        %v734 = vpop.f32.mrf.mxu0
        %735 = vdwg.mxu0
        %v737 = vsel %vm255, %v344, 0
        %v740 = vsel %vm255, %v345, 0
        %v743 = vsel %vm255, %v346, 0
        %v746 = vsel %vm255, %v347, 0
        %v749 = vsel %vm255, %v348, 0
        %v752 = vsel %vm255, %v349, 0
        %v755 = vsel %vm255, %v350, 0
        %v758 = vsel %vm255, %v351, 0
        %v761 = vsel %vm255, %v352, 0
        %v764 = vsel %vm255, %v353, 0
        %v767 = vsel %vm255, %v354, 0
        %v770 = vsel %vm255, %v355, 0
        %v773 = vsel %vm255, %v356, 0
        %v776 = vsel %vm255, %v357, 0
        %v779 = vsel %vm255, %v358, 0
        %v782 = vsel %vm255, %v359, 0
        %v785 = vsel %vm255, %v360, 0
        %v788 = vsel %vm255, %v361, 0
        %v791 = vsel %vm255, %v362, 0
        %v794 = vsel %vm255, %v363, 0
        %v797 = vsel %vm255, %v364, 0
        %v800 = vsel %vm255, %v365, 0
        %v803 = vsel %vm255, %v366, 0
        %v806 = vsel %vm255, %v367, 0
        %v809 = vsel %vm255, %v368, 0
        %v812 = vsel %vm255, %v369, 0
        %v815 = vsel %vm255, %v370, 0
        %v818 = vsel %vm255, %v371, 0
        %v821 = vsel %vm255, %v372, 0
        %v824 = vsel %vm255, %v373, 0
        %v827 = vsel %vm255, %v374, 0
        %v830 = vsel %vm255, %v375, 0
        %v833 = vsel %vm507, %v376, 0
        %835 = vmatprep.subr.mxu0 0.0
        %836 = vmatpush1.msra.mxu0 0.0
        %837 = vmatprep.subr.mxu0 0.0
        %838 = vmatpush1.msra.mxu0 0.0
        %839 = vmatprep.subr.mxu0 0.0
        %840 = vmatpush1.msra.mxu0 0.0
        %841 = vmatprep.subr.mxu0 0.0
        %842 = vmatpush1.msra.mxu0 0.0
        %843 = vmatprep.subr.mxu0 0.0
        %844 = vmatpush1.msra.mxu0 0.0
        %845 = vmatprep.subr.mxu0 0.0
        %846 = vmatpush1.msra.mxu0 0.0
        %847 = vmatprep.subr.mxu0 0.0
        %848 = vmatpush1.msra.mxu0 0.0
        %849 = vmatprep.subr.mxu0 0.0
        %850 = vmatpush1.msra.mxu0 0.0
        %851 = vmatprep.subr.mxu0 0.0
        %852 = vmatpush1.msra.mxu0 0.0
        %853 = vmatprep.subr.mxu0 0.0
        %854 = vmatpush1.msra.mxu0 0.0
        %855 = vmatprep.subr.mxu0 0.0
        %856 = vmatpush1.msra.mxu0 0.0
        %857 = vmatprep.subr.mxu0 0.0
        %858 = vmatpush1.msra.mxu0 0.0
        %859 = vmatprep.subr.mxu0 0.0
        %860 = vmatpush1.msra.mxu0 0.0
        %861 = vmatprep.subr.mxu0 0.0
        %862 = vmatpush1.msra.mxu0 0.0
        %863 = vmatprep.subr.mxu0 0.0
        %864 = vmatpush1.msra.mxu0 0.0
        %865 = vmatprep.subr.mxu0 0.0
        %866 = vmatpush1.msra.mxu0 %v833
        %867 = vmatprep.subr.mxu0 0.0
        %868 = vmatpush2.msra.mxu0 0.0
        %869 = vmatprep.subr.mxu0 0.0
        %870 = vmatpush2.msra.mxu0 0.0
        %871 = vmatprep.subr.mxu0 0.0
        %872 = vmatpush2.msra.mxu0 0.0
        %873 = vmatprep.subr.mxu0 0.0
        %874 = vmatpush2.msra.mxu0 0.0
        %875 = vmatprep.subr.mxu0 0.0
        %876 = vmatpush2.msra.mxu0 0.0
        %877 = vmatprep.subr.mxu0 0.0
        %878 = vmatpush2.msra.mxu0 0.0
        %879 = vmatprep.subr.mxu0 0.0
        %880 = vmatpush2.msra.mxu0 0.0
        %881 = vmatprep.subr.mxu0 0.0
        %882 = vmatpush2.msra.mxu0 0.0
        %883 = vmatprep.subr.mxu0 0.0
        %884 = vmatpush2.msra.mxu0 0.0
        %885 = vmatprep.subr.mxu0 0.0
        %886 = vmatpush2.msra.mxu0 0.0
        %887 = vmatprep.subr.mxu0 0.0
        %888 = vmatpush2.msra.mxu0 0.0
        %889 = vmatprep.subr.mxu0 0.0
        %890 = vmatpush2.msra.mxu0 0.0
        %891 = vmatprep.subr.mxu0 0.0
        %892 = vmatpush2.msra.mxu0 0.0
        %893 = vmatprep.subr.mxu0 0.0
        %894 = vmatpush2.msra.mxu0 0.0
        %895 = vmatprep.subr.mxu0 0.0
        %896 = vmatpush2.msra.mxu0 0.0
        %897 = vmatprep.subr.mxu0 0.0
        %898 = vmatpush2.msra.mxu0 0.0
        %899 = vmatprep.mubr.f32.mxu0 0.0
        %900 = vmatmul.mubr.f32.gmra.mxu0 %v737
        %v901 = vpop.f32.mrf.mxu0
        %v902 = vadd.f32 %v578, %v901
        %v903 = vpop.f32.mrf.mxu0
        %904 = vmatprep.mubr.f32.mxu0 0.0
        %905 = vmatmul.mubr.f32.gmra.mxu0 %v740
        %v906 = vpop.f32.mrf.mxu0
        %v907 = vadd.f32 %v583, %v906
        %v908 = vpop.f32.mrf.mxu0
        %909 = vmatprep.mubr.f32.mxu0 0.0
        %910 = vmatmul.mubr.f32.gmra.mxu0 %v743
        %v911 = vpop.f32.mrf.mxu0
        %v912 = vadd.f32 %v588, %v911
        %v913 = vpop.f32.mrf.mxu0
        %914 = vmatprep.mubr.f32.mxu0 0.0
        %915 = vmatmul.mubr.f32.gmra.mxu0 %v746
        %v916 = vpop.f32.mrf.mxu0
        %v917 = vadd.f32 %v593, %v916
        %v918 = vpop.f32.mrf.mxu0
        %919 = vmatprep.mubr.f32.mxu0 0.0
        %920 = vmatmul.mubr.f32.gmra.mxu0 %v749
        %v921 = vpop.f32.mrf.mxu0
        %v922 = vadd.f32 %v598, %v921
        %v923 = vpop.f32.mrf.mxu0
        %924 = vmatprep.mubr.f32.mxu0 0.0
        %925 = vmatmul.mubr.f32.gmra.mxu0 %v752
        %v926 = vpop.f32.mrf.mxu0
        %v927 = vadd.f32 %v603, %v926
        %v928 = vpop.f32.mrf.mxu0
        %929 = vmatprep.mubr.f32.mxu0 0.0
        %930 = vmatmul.mubr.f32.gmra.mxu0 %v755
        %v931 = vpop.f32.mrf.mxu0
        %v932 = vadd.f32 %v608, %v931
        %v933 = vpop.f32.mrf.mxu0
        %934 = vmatprep.mubr.f32.mxu0 0.0
        %935 = vmatmul.mubr.f32.gmra.mxu0 %v758
        %v936 = vpop.f32.mrf.mxu0
        %v937 = vadd.f32 %v613, %v936
        %v938 = vpop.f32.mrf.mxu0
        %939 = vmatprep.mubr.f32.mxu0 0.0
        %940 = vmatmul.mubr.f32.gmra.mxu0 %v761
        %v941 = vpop.f32.mrf.mxu0
        %v942 = vadd.f32 %v618, %v941
        %v943 = vpop.f32.mrf.mxu0
        %944 = vmatprep.mubr.f32.mxu0 0.0
        %945 = vmatmul.mubr.f32.gmra.mxu0 %v764
        %v946 = vpop.f32.mrf.mxu0
        %v947 = vadd.f32 %v623, %v946
        %v948 = vpop.f32.mrf.mxu0
        %949 = vmatprep.mubr.f32.mxu0 0.0
        %950 = vmatmul.mubr.f32.gmra.mxu0 %v767
        %v951 = vpop.f32.mrf.mxu0
        %v952 = vadd.f32 %v628, %v951
        %v953 = vpop.f32.mrf.mxu0
        %954 = vmatprep.mubr.f32.mxu0 0.0
        %955 = vmatmul.mubr.f32.gmra.mxu0 %v770
        %v956 = vpop.f32.mrf.mxu0
        %v957 = vadd.f32 %v633, %v956
        %v958 = vpop.f32.mrf.mxu0
        %959 = vmatprep.mubr.f32.mxu0 0.0
        %960 = vmatmul.mubr.f32.gmra.mxu0 %v773
        %v961 = vpop.f32.mrf.mxu0
        %v962 = vadd.f32 %v638, %v961
        %v963 = vpop.f32.mrf.mxu0
        %964 = vmatprep.mubr.f32.mxu0 0.0
        %965 = vmatmul.mubr.f32.gmra.mxu0 %v776
        %v966 = vpop.f32.mrf.mxu0
        %v967 = vadd.f32 %v643, %v966
        %v968 = vpop.f32.mrf.mxu0
        %969 = vmatprep.mubr.f32.mxu0 0.0
        %970 = vmatmul.mubr.f32.gmra.mxu0 %v779
        %v971 = vpop.f32.mrf.mxu0
        %v972 = vadd.f32 %v648, %v971
        %v973 = vpop.f32.mrf.mxu0
        %974 = vmatprep.mubr.f32.mxu0 0.0
        %975 = vmatmul.mubr.f32.gmra.mxu0 %v782
        %v976 = vpop.f32.mrf.mxu0
        %v977 = vadd.f32 %v653, %v976
        %v978 = vpop.f32.mrf.mxu0
        %979 = vmatprep.mubr.f32.mxu0 0.0
        %980 = vmatmul.mubr.f32.gmra.mxu0 %v785
        %v981 = vpop.f32.mrf.mxu0
        %v982 = vadd.f32 %v658, %v981
        %v983 = vpop.f32.mrf.mxu0
        %984 = vmatprep.mubr.f32.mxu0 0.0
        %985 = vmatmul.mubr.f32.gmra.mxu0 %v788
        %v986 = vpop.f32.mrf.mxu0
        %v987 = vadd.f32 %v663, %v986
        %v988 = vpop.f32.mrf.mxu0
        %989 = vmatprep.mubr.f32.mxu0 0.0
        %990 = vmatmul.mubr.f32.gmra.mxu0 %v791
        %v991 = vpop.f32.mrf.mxu0
        %v992 = vadd.f32 %v668, %v991
        %v993 = vpop.f32.mrf.mxu0
        %994 = vmatprep.mubr.f32.mxu0 0.0
        %995 = vmatmul.mubr.f32.gmra.mxu0 %v794
        %v996 = vpop.f32.mrf.mxu0
        %v997 = vadd.f32 %v673, %v996
        %v998 = vpop.f32.mrf.mxu0
        %999 = vmatprep.mubr.f32.mxu0 0.0
        %1000 = vmatmul.mubr.f32.gmra.mxu0 %v797
        %v1001 = vpop.f32.mrf.mxu0
        %v1002 = vadd.f32 %v678, %v1001
        %v1003 = vpop.f32.mrf.mxu0
        %1004 = vmatprep.mubr.f32.mxu0 0.0
        %1005 = vmatmul.mubr.f32.gmra.mxu0 %v800
        %v1006 = vpop.f32.mrf.mxu0
        %v1007 = vadd.f32 %v683, %v1006
        %v1008 = vpop.f32.mrf.mxu0
        %1009 = vmatprep.mubr.f32.mxu0 0.0
        %1010 = vmatmul.mubr.f32.gmra.mxu0 %v803
        %v1011 = vpop.f32.mrf.mxu0
        %v1012 = vadd.f32 %v688, %v1011
        %v1013 = vpop.f32.mrf.mxu0
        %1014 = vmatprep.mubr.f32.mxu0 0.0
        %1015 = vmatmul.mubr.f32.gmra.mxu0 %v806
        %v1016 = vpop.f32.mrf.mxu0
        %v1017 = vadd.f32 %v693, %v1016
        %v1018 = vpop.f32.mrf.mxu0
        %1019 = vmatprep.mubr.f32.mxu0 0.0
        %1020 = vmatmul.mubr.f32.gmra.mxu0 %v809
        %v1021 = vpop.f32.mrf.mxu0
        %v1022 = vadd.f32 %v698, %v1021
        %v1023 = vpop.f32.mrf.mxu0
        %1024 = vmatprep.mubr.f32.mxu0 0.0
        %1025 = vmatmul.mubr.f32.gmra.mxu0 %v812
        %v1026 = vpop.f32.mrf.mxu0
        %v1027 = vadd.f32 %v703, %v1026
        %v1028 = vpop.f32.mrf.mxu0
        %1029 = vmatprep.mubr.f32.mxu0 0.0
        %1030 = vmatmul.mubr.f32.gmra.mxu0 %v815
        %v1031 = vpop.f32.mrf.mxu0
        %v1032 = vadd.f32 %v708, %v1031
        %v1033 = vpop.f32.mrf.mxu0
        %1034 = vmatprep.mubr.f32.mxu0 0.0
        %1035 = vmatmul.mubr.f32.gmra.mxu0 %v818
        %v1036 = vpop.f32.mrf.mxu0
        %v1037 = vadd.f32 %v713, %v1036
        %v1038 = vpop.f32.mrf.mxu0
        %1039 = vmatprep.mubr.f32.mxu0 0.0
        %1040 = vmatmul.mubr.f32.gmra.mxu0 %v821
        %v1041 = vpop.f32.mrf.mxu0
        %v1042 = vadd.f32 %v718, %v1041
        %v1043 = vpop.f32.mrf.mxu0
        %1044 = vmatprep.mubr.f32.mxu0 0.0
        %1045 = vmatmul.mubr.f32.gmra.mxu0 %v824
        %v1046 = vpop.f32.mrf.mxu0
        %v1047 = vadd.f32 %v723, %v1046
        %v1048 = vpop.f32.mrf.mxu0
        %1049 = vmatprep.mubr.f32.mxu0 0.0
        %1050 = vmatmul.mubr.f32.gmra.mxu0 %v827
        %v1051 = vpop.f32.mrf.mxu0
        %v1052 = vadd.f32 %v728, %v1051
        %v1053 = vpop.f32.mrf.mxu0
        %1054 = vmatprep.mubr.f32.mxu0 0.0
        %1055 = vmatmul.mubr.f32.gmra.mxu0 %v830
        %v1056 = vpop.f32.mrf.mxu0
        %v1057 = vadd.f32 %v733, %v1056
        %v1058 = vpop.f32.mrf.mxu0
        %1059 = vdwg.mxu0
        %v1060 = vld [vmem:[#allocation2 + $0x2] sm:$0xff]
        %v1061 = vld [vmem:[#allocation2 + $0xa] sm:$0xff]
        %v1062 = vld [vmem:[#allocation2 + $0x1a] sm:$0xff]
        %v1063 = vld [vmem:[#allocation2 + $0x22] sm:$0xff]
        %v1064 = vld [vmem:[#allocation2 + $0x32] sm:$0xff]
        %v1065 = vld [vmem:[#allocation2 + $0x3a] sm:$0xff]
        %v1066 = vld [vmem:[#allocation2 + $0x4a] sm:$0xff]
        %v1067 = vld [vmem:[#allocation2 + $0x52] sm:$0xff]
        %v1068 = vld [vmem:[#allocation2 + $0x62] sm:$0xff]
        %v1069 = vld [vmem:[#allocation2 + $0x6a] sm:$0xff]
        %v1070 = vld [vmem:[#allocation2 + $0x7a] sm:$0xff]
        %v1071 = vld [vmem:[#allocation2 + $0x82] sm:$0xff]
        %v1072 = vld [vmem:[#allocation2 + $0x92] sm:$0xff]
        %v1073 = vld [vmem:[#allocation2 + $0x9a] sm:$0xff]
        %v1074 = vld [vmem:[#allocation2 + $0xaa] sm:$0xff]
        %v1075 = vld [vmem:[#allocation2 + $0xb2] sm:$0xff]
        %v1076 = vld [vmem:[#allocation2 + $0xc2] sm:$0xff]
        %v1077 = vld [vmem:[#allocation2 + $0xca] sm:$0xff]
        %v1078 = vld [vmem:[#allocation2 + $0xda] sm:$0xff]
        %v1079 = vld [vmem:[#allocation2 + $0xe2] sm:$0xff]
        %v1080 = vld [vmem:[#allocation2 + $0xf2] sm:$0xff]
        %v1081 = vld [vmem:[#allocation2 + $0xfa] sm:$0xff]
        %v1082 = vld [vmem:[#allocation2 + $0x10a] sm:$0xff]
        %v1083 = vld [vmem:[#allocation2 + $0x112] sm:$0xff]
        %v1084 = vld [vmem:[#allocation2 + $0x122] sm:$0xff]
        %v1085 = vld [vmem:[#allocation2 + $0x12a] sm:$0xff]
        %v1086 = vld [vmem:[#allocation2 + $0x13a] sm:$0xff]
        %v1087 = vld [vmem:[#allocation2 + $0x142] sm:$0xff]
        %v1088 = vld [vmem:[#allocation2 + $0x152] sm:$0xff]
        %v1089 = vld [vmem:[#allocation2 + $0x15a] sm:$0xff]
        %v1090 = vld [vmem:[#allocation2 + $0x16a] sm:$0xff]
        %v1091 = vld [vmem:[#allocation2 + $0x172] sm:$0xff]
        %s1092 = scalar_lea.vmem %s1, 8
        %v1093 = vld [vmem:[%s1092] sm:$0xf]
        %v1095 = vsel %vm255, %v1060, 0
        %v1098 = vsel %vm255, %v1061, 0
        %v1101 = vsel %vm255, %v1062, 0
        %v1104 = vsel %vm255, %v1063, 0
        %v1107 = vsel %vm255, %v1064, 0
        %v1110 = vsel %vm255, %v1065, 0
        %v1113 = vsel %vm255, %v1066, 0
        %v1116 = vsel %vm255, %v1067, 0
        %v1119 = vsel %vm255, %v1068, 0
        %v1122 = vsel %vm255, %v1069, 0
        %v1125 = vsel %vm255, %v1070, 0
        %v1128 = vsel %vm255, %v1071, 0
        %v1131 = vsel %vm255, %v1072, 0
        %v1134 = vsel %vm255, %v1073, 0
        %v1137 = vsel %vm255, %v1074, 0
        %v1140 = vsel %vm255, %v1075, 0
        %v1143 = vsel %vm255, %v1076, 0
        %v1146 = vsel %vm255, %v1077, 0
        %v1149 = vsel %vm255, %v1078, 0
        %v1152 = vsel %vm255, %v1079, 0
        %v1155 = vsel %vm255, %v1080, 0
        %v1158 = vsel %vm255, %v1081, 0
        %v1161 = vsel %vm255, %v1082, 0
        %v1164 = vsel %vm255, %v1083, 0
        %v1167 = vsel %vm255, %v1084, 0
        %v1170 = vsel %vm255, %v1085, 0
        %v1173 = vsel %vm255, %v1086, 0
        %v1176 = vsel %vm255, %v1087, 0
        %v1179 = vsel %vm255, %v1088, 0
        %v1182 = vsel %vm255, %v1089, 0
        %v1185 = vsel %vm255, %v1090, 0
        %v1188 = vsel %vm255, %v1091, 0
        %v1191 = vsel %vm507, %v1093, 0
        %1193 = vmatprep.subr.mxu0 0.0
        %1194 = vmatpush1.msra.mxu0 0.0
        %1195 = vmatprep.subr.mxu0 0.0
        %1196 = vmatpush1.msra.mxu0 0.0
        %1197 = vmatprep.subr.mxu0 0.0
        %1198 = vmatpush1.msra.mxu0 0.0
        %1199 = vmatprep.subr.mxu0 0.0
        %1200 = vmatpush1.msra.mxu0 0.0
        %1201 = vmatprep.subr.mxu0 0.0
        %1202 = vmatpush1.msra.mxu0 0.0
        %1203 = vmatprep.subr.mxu0 0.0
        %1204 = vmatpush1.msra.mxu0 0.0
        %1205 = vmatprep.subr.mxu0 0.0
        %1206 = vmatpush1.msra.mxu0 0.0
        %1207 = vmatprep.subr.mxu0 0.0
        %1208 = vmatpush1.msra.mxu0 0.0
        %1209 = vmatprep.subr.mxu0 0.0
        %1210 = vmatpush1.msra.mxu0 0.0
        %1211 = vmatprep.subr.mxu0 0.0
        %1212 = vmatpush1.msra.mxu0 0.0
        %1213 = vmatprep.subr.mxu0 0.0
        %1214 = vmatpush1.msra.mxu0 0.0
        %1215 = vmatprep.subr.mxu0 0.0
        %1216 = vmatpush1.msra.mxu0 0.0
        %1217 = vmatprep.subr.mxu0 0.0
        %1218 = vmatpush1.msra.mxu0 0.0
        %1219 = vmatprep.subr.mxu0 0.0
        %1220 = vmatpush1.msra.mxu0 0.0
        %1221 = vmatprep.subr.mxu0 0.0
        %1222 = vmatpush1.msra.mxu0 0.0
        %1223 = vmatprep.subr.mxu0 0.0
        %1224 = vmatpush1.msra.mxu0 %v1191
        %1225 = vmatprep.subr.mxu0 0.0
        %1226 = vmatpush2.msra.mxu0 0.0
        %1227 = vmatprep.subr.mxu0 0.0
        %1228 = vmatpush2.msra.mxu0 0.0
        %1229 = vmatprep.subr.mxu0 0.0
        %1230 = vmatpush2.msra.mxu0 0.0
        %1231 = vmatprep.subr.mxu0 0.0
        %1232 = vmatpush2.msra.mxu0 0.0
        %1233 = vmatprep.subr.mxu0 0.0
        %1234 = vmatpush2.msra.mxu0 0.0
        %1235 = vmatprep.subr.mxu0 0.0
        %1236 = vmatpush2.msra.mxu0 0.0
        %1237 = vmatprep.subr.mxu0 0.0
        %1238 = vmatpush2.msra.mxu0 0.0
        %1239 = vmatprep.subr.mxu0 0.0
        %1240 = vmatpush2.msra.mxu0 0.0
        %1241 = vmatprep.subr.mxu0 0.0
        %1242 = vmatpush2.msra.mxu0 0.0
        %1243 = vmatprep.subr.mxu0 0.0
        %1244 = vmatpush2.msra.mxu0 0.0
        %1245 = vmatprep.subr.mxu0 0.0
        %1246 = vmatpush2.msra.mxu0 0.0
        %1247 = vmatprep.subr.mxu0 0.0
        %1248 = vmatpush2.msra.mxu0 0.0
        %1249 = vmatprep.subr.mxu0 0.0
        %1250 = vmatpush2.msra.mxu0 0.0
        %1251 = vmatprep.subr.mxu0 0.0
        %1252 = vmatpush2.msra.mxu0 0.0
        %1253 = vmatprep.subr.mxu0 0.0
        %1254 = vmatpush2.msra.mxu0 0.0
        %1255 = vmatprep.subr.mxu0 0.0
        %1256 = vmatpush2.msra.mxu0 0.0
        %1257 = vmatprep.mubr.f32.mxu0 0.0
        %1258 = vmatmul.mubr.f32.gmra.mxu0 %v1095
        %v1259 = vpop.f32.mrf.mxu0
        %v1260 = vadd.f32 0.0, %v1259
        %v1261 = vpop.f32.mrf.mxu0
        %1262 = vmatprep.mubr.f32.mxu0 0.0
        %1263 = vmatmul.mubr.f32.gmra.mxu0 %v1098
        %v1264 = vpop.f32.mrf.mxu0
        %v1265 = vadd.f32 0.0, %v1264
        %v1266 = vpop.f32.mrf.mxu0
        %1267 = vmatprep.mubr.f32.mxu0 0.0
        %1268 = vmatmul.mubr.f32.gmra.mxu0 %v1101
        %v1269 = vpop.f32.mrf.mxu0
        %v1270 = vadd.f32 0.0, %v1269
        %v1271 = vpop.f32.mrf.mxu0
        %1272 = vmatprep.mubr.f32.mxu0 0.0
        %1273 = vmatmul.mubr.f32.gmra.mxu0 %v1104
        %v1274 = vpop.f32.mrf.mxu0
        %v1275 = vadd.f32 0.0, %v1274
        %v1276 = vpop.f32.mrf.mxu0
        %1277 = vmatprep.mubr.f32.mxu0 0.0
        %1278 = vmatmul.mubr.f32.gmra.mxu0 %v1107
        %v1279 = vpop.f32.mrf.mxu0
        %v1280 = vadd.f32 0.0, %v1279
        %v1281 = vpop.f32.mrf.mxu0
        %1282 = vmatprep.mubr.f32.mxu0 0.0
        %1283 = vmatmul.mubr.f32.gmra.mxu0 %v1110
        %v1284 = vpop.f32.mrf.mxu0
        %v1285 = vadd.f32 0.0, %v1284
        %v1286 = vpop.f32.mrf.mxu0
        %1287 = vmatprep.mubr.f32.mxu0 0.0
        %1288 = vmatmul.mubr.f32.gmra.mxu0 %v1113
        %v1289 = vpop.f32.mrf.mxu0
        %v1290 = vadd.f32 0.0, %v1289
        %v1291 = vpop.f32.mrf.mxu0
        %1292 = vmatprep.mubr.f32.mxu0 0.0
        %1293 = vmatmul.mubr.f32.gmra.mxu0 %v1116
        %v1294 = vpop.f32.mrf.mxu0
        %v1295 = vadd.f32 0.0, %v1294
        %v1296 = vpop.f32.mrf.mxu0
        %1297 = vmatprep.mubr.f32.mxu0 0.0
        %1298 = vmatmul.mubr.f32.gmra.mxu0 %v1119
        %v1299 = vpop.f32.mrf.mxu0
        %v1300 = vadd.f32 0.0, %v1299
        %v1301 = vpop.f32.mrf.mxu0
        %1302 = vmatprep.mubr.f32.mxu0 0.0
        %1303 = vmatmul.mubr.f32.gmra.mxu0 %v1122
        %v1304 = vpop.f32.mrf.mxu0
        %v1305 = vadd.f32 0.0, %v1304
        %v1306 = vpop.f32.mrf.mxu0
        %1307 = vmatprep.mubr.f32.mxu0 0.0
        %1308 = vmatmul.mubr.f32.gmra.mxu0 %v1125
        %v1309 = vpop.f32.mrf.mxu0
        %v1310 = vadd.f32 0.0, %v1309
        %v1311 = vpop.f32.mrf.mxu0
        %1312 = vmatprep.mubr.f32.mxu0 0.0
        %1313 = vmatmul.mubr.f32.gmra.mxu0 %v1128
        %v1314 = vpop.f32.mrf.mxu0
        %v1315 = vadd.f32 0.0, %v1314
        %v1316 = vpop.f32.mrf.mxu0
        %1317 = vmatprep.mubr.f32.mxu0 0.0
        %1318 = vmatmul.mubr.f32.gmra.mxu0 %v1131
        %v1319 = vpop.f32.mrf.mxu0
        %v1320 = vadd.f32 0.0, %v1319
        %v1321 = vpop.f32.mrf.mxu0
        %1322 = vmatprep.mubr.f32.mxu0 0.0
        %1323 = vmatmul.mubr.f32.gmra.mxu0 %v1134
        %v1324 = vpop.f32.mrf.mxu0
        %v1325 = vadd.f32 0.0, %v1324
        %v1326 = vpop.f32.mrf.mxu0
        %1327 = vmatprep.mubr.f32.mxu0 0.0
        %1328 = vmatmul.mubr.f32.gmra.mxu0 %v1137
        %v1329 = vpop.f32.mrf.mxu0
        %v1330 = vadd.f32 0.0, %v1329
        %v1331 = vpop.f32.mrf.mxu0
        %1332 = vmatprep.mubr.f32.mxu0 0.0
        %1333 = vmatmul.mubr.f32.gmra.mxu0 %v1140
        %v1334 = vpop.f32.mrf.mxu0
        %v1335 = vadd.f32 0.0, %v1334
        %v1336 = vpop.f32.mrf.mxu0
        %1337 = vmatprep.mubr.f32.mxu0 0.0
        %1338 = vmatmul.mubr.f32.gmra.mxu0 %v1143
        %v1339 = vpop.f32.mrf.mxu0
        %v1340 = vadd.f32 0.0, %v1339
        %v1341 = vpop.f32.mrf.mxu0
        %1342 = vmatprep.mubr.f32.mxu0 0.0
        %1343 = vmatmul.mubr.f32.gmra.mxu0 %v1146
        %v1344 = vpop.f32.mrf.mxu0
        %v1345 = vadd.f32 0.0, %v1344
        %v1346 = vpop.f32.mrf.mxu0
        %1347 = vmatprep.mubr.f32.mxu0 0.0
        %1348 = vmatmul.mubr.f32.gmra.mxu0 %v1149
        %v1349 = vpop.f32.mrf.mxu0
        %v1350 = vadd.f32 0.0, %v1349
        %v1351 = vpop.f32.mrf.mxu0
        %1352 = vmatprep.mubr.f32.mxu0 0.0
        %1353 = vmatmul.mubr.f32.gmra.mxu0 %v1152
        %v1354 = vpop.f32.mrf.mxu0
        %v1355 = vadd.f32 0.0, %v1354
        %v1356 = vpop.f32.mrf.mxu0
        %1357 = vmatprep.mubr.f32.mxu0 0.0
        %1358 = vmatmul.mubr.f32.gmra.mxu0 %v1155
        %v1359 = vpop.f32.mrf.mxu0
        %v1360 = vadd.f32 0.0, %v1359
        %v1361 = vpop.f32.mrf.mxu0
        %1362 = vmatprep.mubr.f32.mxu0 0.0
        %1363 = vmatmul.mubr.f32.gmra.mxu0 %v1158
        %v1364 = vpop.f32.mrf.mxu0
        %v1365 = vadd.f32 0.0, %v1364
        %v1366 = vpop.f32.mrf.mxu0
        %1367 = vmatprep.mubr.f32.mxu0 0.0
        %1368 = vmatmul.mubr.f32.gmra.mxu0 %v1161
        %v1369 = vpop.f32.mrf.mxu0
        %v1370 = vadd.f32 0.0, %v1369
        %v1371 = vpop.f32.mrf.mxu0
        %1372 = vmatprep.mubr.f32.mxu0 0.0
        %1373 = vmatmul.mubr.f32.gmra.mxu0 %v1164
        %v1374 = vpop.f32.mrf.mxu0
        %v1375 = vadd.f32 0.0, %v1374
        %v1376 = vpop.f32.mrf.mxu0
        %1377 = vmatprep.mubr.f32.mxu0 0.0
        %1378 = vmatmul.mubr.f32.gmra.mxu0 %v1167
        %v1379 = vpop.f32.mrf.mxu0
        %v1380 = vadd.f32 0.0, %v1379
        %v1381 = vpop.f32.mrf.mxu0
        %1382 = vmatprep.mubr.f32.mxu0 0.0
        %1383 = vmatmul.mubr.f32.gmra.mxu0 %v1170
        %v1384 = vpop.f32.mrf.mxu0
        %v1385 = vadd.f32 0.0, %v1384
        %v1386 = vpop.f32.mrf.mxu0
        %1387 = vmatprep.mubr.f32.mxu0 0.0
        %1388 = vmatmul.mubr.f32.gmra.mxu0 %v1173
        %v1389 = vpop.f32.mrf.mxu0
        %v1390 = vadd.f32 0.0, %v1389
        %v1391 = vpop.f32.mrf.mxu0
        %1392 = vmatprep.mubr.f32.mxu0 0.0
        %1393 = vmatmul.mubr.f32.gmra.mxu0 %v1176
        %v1394 = vpop.f32.mrf.mxu0
        %v1395 = vadd.f32 0.0, %v1394
        %v1396 = vpop.f32.mrf.mxu0
        %1397 = vmatprep.mubr.f32.mxu0 0.0
        %1398 = vmatmul.mubr.f32.gmra.mxu0 %v1179
        %v1399 = vpop.f32.mrf.mxu0
        %v1400 = vadd.f32 0.0, %v1399
        %v1401 = vpop.f32.mrf.mxu0
        %1402 = vmatprep.mubr.f32.mxu0 0.0
        %1403 = vmatmul.mubr.f32.gmra.mxu0 %v1182
        %v1404 = vpop.f32.mrf.mxu0
        %v1405 = vadd.f32 0.0, %v1404
        %v1406 = vpop.f32.mrf.mxu0
        %1407 = vmatprep.mubr.f32.mxu0 0.0
        %1408 = vmatmul.mubr.f32.gmra.mxu0 %v1185
        %v1409 = vpop.f32.mrf.mxu0
        %v1410 = vadd.f32 0.0, %v1409
        %v1411 = vpop.f32.mrf.mxu0
        %1412 = vmatprep.mubr.f32.mxu0 0.0
        %1413 = vmatmul.mubr.f32.gmra.mxu0 %v1188
        %v1414 = vpop.f32.mrf.mxu0
        %v1415 = vadd.f32 0.0, %v1414
        %v1416 = vpop.f32.mrf.mxu0
        %1417 = vdwg.mxu0
        %v1418 = vadd.f32 %v902, %v1260
        %v1419 = vadd.f32 %v907, %v1265
        %v1420 = vadd.f32 %v912, %v1270
        %v1421 = vadd.f32 %v917, %v1275
        %v1422 = vadd.f32 %v922, %v1280
        %v1423 = vadd.f32 %v927, %v1285
        %v1424 = vadd.f32 %v932, %v1290
        %v1425 = vadd.f32 %v937, %v1295
        %v1426 = vadd.f32 %v942, %v1300
        %v1427 = vadd.f32 %v947, %v1305
        %v1428 = vadd.f32 %v952, %v1310
        %v1429 = vadd.f32 %v957, %v1315
        %v1430 = vadd.f32 %v962, %v1320
        %v1431 = vadd.f32 %v967, %v1325
        %v1432 = vadd.f32 %v972, %v1330
        %v1433 = vadd.f32 %v977, %v1335
        %v1434 = vadd.f32 %v982, %v1340
        %v1435 = vadd.f32 %v987, %v1345
        %v1436 = vadd.f32 %v992, %v1350
        %v1437 = vadd.f32 %v997, %v1355
        %v1438 = vadd.f32 %v1002, %v1360
        %v1439 = vadd.f32 %v1007, %v1365
        %v1440 = vadd.f32 %v1012, %v1370
        %v1441 = vadd.f32 %v1017, %v1375
        %v1442 = vadd.f32 %v1022, %v1380
        %v1443 = vadd.f32 %v1027, %v1385
        %v1444 = vadd.f32 %v1032, %v1390
        %v1445 = vadd.f32 %v1037, %v1395
        %v1446 = vadd.f32 %v1042, %v1400
        %v1447 = vadd.f32 %v1047, %v1405
        %v1448 = vadd.f32 %v1052, %v1410
        %v1449 = vadd.f32 %v1057, %v1415
        %v1450 = vld [vmem:[%s311] sm:$0xff]
        %v1451 = vld [vmem:[%s311 + $0x8] sm:$0xff]
        %v1452 = vld [vmem:[%s311 + $0x18] sm:$0xff]
        %v1453 = vld [vmem:[%s311 + $0x20] sm:$0xff]
        %v1454 = vld [vmem:[%s311 + $0x30] sm:$0xff]
        %v1455 = vld [vmem:[%s311 + $0x38] sm:$0xff]
        %v1456 = vld [vmem:[%s311 + $0x48] sm:$0xff]
        %v1457 = vld [vmem:[%s311 + $0x50] sm:$0xff]
        %v1458 = vld [vmem:[%s311 + $0x60] sm:$0xff]
        %v1459 = vld [vmem:[%s311 + $0x68] sm:$0xff]
        %v1460 = vld [vmem:[%s311 + $0x78] sm:$0xff]
        %v1461 = vld [vmem:[%s311 + $0x80] sm:$0xff]
        %v1462 = vld [vmem:[%s311 + $0x90] sm:$0xff]
        %v1463 = vld [vmem:[%s311 + $0x98] sm:$0xff]
        %v1464 = vld [vmem:[%s311 + $0xa8] sm:$0xff]
        %v1465 = vld [vmem:[%s311 + $0xb0] sm:$0xff]
        %v1466 = vld [vmem:[%s311 + $0xc0] sm:$0xff]
        %v1467 = vld [vmem:[%s311 + $0xc8] sm:$0xff]
        %v1468 = vld [vmem:[%s311 + $0xd8] sm:$0xff]
        %v1469 = vld [vmem:[%s311 + $0xe0] sm:$0xff]
        %v1470 = vld [vmem:[%s311 + $0xf0] sm:$0xff]
        %v1471 = vld [vmem:[%s311 + $0xf8] sm:$0xff]
        %v1472 = vld [vmem:[%s311 + $0x108] sm:$0xff]
        %v1473 = vld [vmem:[%s311 + $0x110] sm:$0xff]
        %v1474 = vld [vmem:[%s311 + $0x120] sm:$0xff]
        %v1475 = vld [vmem:[%s311 + $0x128] sm:$0xff]
        %v1476 = vld [vmem:[%s311 + $0x138] sm:$0xff]
        %v1477 = vld [vmem:[%s311 + $0x140] sm:$0xff]
        %v1478 = vld [vmem:[%s311 + $0x150] sm:$0xff]
        %v1479 = vld [vmem:[%s311 + $0x158] sm:$0xff]
        %v1480 = vld [vmem:[%s311 + $0x168] sm:$0xff]
        %v1481 = vld [vmem:[%s311 + $0x170] sm:$0xff]
        %s1482 = scalar_lea.vmem %s1, 12
        %v1483 = vld [vmem:[%s1482] sm:$0xf]
        %v1485 = vsel %vm255, %v1450, 0
        %v1488 = vsel %vm255, %v1451, 0
        %v1491 = vsel %vm255, %v1452, 0
        %v1494 = vsel %vm255, %v1453, 0
        %v1497 = vsel %vm255, %v1454, 0
        %v1500 = vsel %vm255, %v1455, 0
        %v1503 = vsel %vm255, %v1456, 0
        %v1506 = vsel %vm255, %v1457, 0
        %v1509 = vsel %vm255, %v1458, 0
        %v1512 = vsel %vm255, %v1459, 0
        %v1515 = vsel %vm255, %v1460, 0
        %v1518 = vsel %vm255, %v1461, 0
        %v1521 = vsel %vm255, %v1462, 0
        %v1524 = vsel %vm255, %v1463, 0
        %v1527 = vsel %vm255, %v1464, 0
        %v1530 = vsel %vm255, %v1465, 0
        %v1533 = vsel %vm255, %v1466, 0
        %v1536 = vsel %vm255, %v1467, 0
        %v1539 = vsel %vm255, %v1468, 0
        %v1542 = vsel %vm255, %v1469, 0
        %v1545 = vsel %vm255, %v1470, 0
        %v1548 = vsel %vm255, %v1471, 0
        %v1551 = vsel %vm255, %v1472, 0
        %v1554 = vsel %vm255, %v1473, 0
        %v1557 = vsel %vm255, %v1474, 0
        %v1560 = vsel %vm255, %v1475, 0
        %v1563 = vsel %vm255, %v1476, 0
        %v1566 = vsel %vm255, %v1477, 0
        %v1569 = vsel %vm255, %v1478, 0
        %v1572 = vsel %vm255, %v1479, 0
        %v1575 = vsel %vm255, %v1480, 0
        %v1578 = vsel %vm255, %v1481, 0
        %v1581 = vsel %vm507, %v1483, 0
        %1583 = vmatprep.subr.mxu0 0.0
        %1584 = vmatpush1.msra.mxu0 0.0
        %1585 = vmatprep.subr.mxu0 0.0
        %1586 = vmatpush1.msra.mxu0 0.0
        %1587 = vmatprep.subr.mxu0 0.0
        %1588 = vmatpush1.msra.mxu0 0.0
        %1589 = vmatprep.subr.mxu0 0.0
        %1590 = vmatpush1.msra.mxu0 0.0
        %1591 = vmatprep.subr.mxu0 0.0
        %1592 = vmatpush1.msra.mxu0 0.0
        %1593 = vmatprep.subr.mxu0 0.0
        %1594 = vmatpush1.msra.mxu0 0.0
        %1595 = vmatprep.subr.mxu0 0.0
        %1596 = vmatpush1.msra.mxu0 0.0
        %1597 = vmatprep.subr.mxu0 0.0
        %1598 = vmatpush1.msra.mxu0 0.0
        %1599 = vmatprep.subr.mxu0 0.0
        %1600 = vmatpush1.msra.mxu0 0.0
        %1601 = vmatprep.subr.mxu0 0.0
        %1602 = vmatpush1.msra.mxu0 0.0
        %1603 = vmatprep.subr.mxu0 0.0
        %1604 = vmatpush1.msra.mxu0 0.0
        %1605 = vmatprep.subr.mxu0 0.0
        %1606 = vmatpush1.msra.mxu0 0.0
        %1607 = vmatprep.subr.mxu0 0.0
        %1608 = vmatpush1.msra.mxu0 0.0
        %1609 = vmatprep.subr.mxu0 0.0
        %1610 = vmatpush1.msra.mxu0 0.0
        %1611 = vmatprep.subr.mxu0 0.0
        %1612 = vmatpush1.msra.mxu0 0.0
        %1613 = vmatprep.subr.mxu0 0.0
        %1614 = vmatpush1.msra.mxu0 %v1581
        %1615 = vmatprep.subr.mxu0 0.0
        %1616 = vmatpush2.msra.mxu0 0.0
        %1617 = vmatprep.subr.mxu0 0.0
        %1618 = vmatpush2.msra.mxu0 0.0
        %1619 = vmatprep.subr.mxu0 0.0
        %1620 = vmatpush2.msra.mxu0 0.0
        %1621 = vmatprep.subr.mxu0 0.0
        %1622 = vmatpush2.msra.mxu0 0.0
        %1623 = vmatprep.subr.mxu0 0.0
        %1624 = vmatpush2.msra.mxu0 0.0
        %1625 = vmatprep.subr.mxu0 0.0
        %1626 = vmatpush2.msra.mxu0 0.0
        %1627 = vmatprep.subr.mxu0 0.0
        %1628 = vmatpush2.msra.mxu0 0.0
        %1629 = vmatprep.subr.mxu0 0.0
        %1630 = vmatpush2.msra.mxu0 0.0
        %1631 = vmatprep.subr.mxu0 0.0
        %1632 = vmatpush2.msra.mxu0 0.0
        %1633 = vmatprep.subr.mxu0 0.0
        %1634 = vmatpush2.msra.mxu0 0.0
        %1635 = vmatprep.subr.mxu0 0.0
        %1636 = vmatpush2.msra.mxu0 0.0
        %1637 = vmatprep.subr.mxu0 0.0
        %1638 = vmatpush2.msra.mxu0 0.0
        %1639 = vmatprep.subr.mxu0 0.0
        %1640 = vmatpush2.msra.mxu0 0.0
        %1641 = vmatprep.subr.mxu0 0.0
        %1642 = vmatpush2.msra.mxu0 0.0
        %1643 = vmatprep.subr.mxu0 0.0
        %1644 = vmatpush2.msra.mxu0 0.0
        %1645 = vmatprep.subr.mxu0 0.0
        %1646 = vmatpush2.msra.mxu0 0.0
        %1647 = vmatprep.mubr.f32.mxu0 0.0
        %1648 = vmatmul.mubr.f32.gmra.mxu0 %v1485
        %v1649 = vpop.f32.mrf.mxu0
        %v1650 = vadd.f32 0.0, %v1649
        %v1651 = vpop.f32.mrf.mxu0
        %1652 = vmatprep.mubr.f32.mxu0 0.0
        %1653 = vmatmul.mubr.f32.gmra.mxu0 %v1488
        %v1654 = vpop.f32.mrf.mxu0
        %v1655 = vadd.f32 0.0, %v1654
        %v1656 = vpop.f32.mrf.mxu0
        %1657 = vmatprep.mubr.f32.mxu0 0.0
        %1658 = vmatmul.mubr.f32.gmra.mxu0 %v1491
        %v1659 = vpop.f32.mrf.mxu0
        %v1660 = vadd.f32 0.0, %v1659
        %v1661 = vpop.f32.mrf.mxu0
        %1662 = vmatprep.mubr.f32.mxu0 0.0
        %1663 = vmatmul.mubr.f32.gmra.mxu0 %v1494
        %v1664 = vpop.f32.mrf.mxu0
        %v1665 = vadd.f32 0.0, %v1664
        %v1666 = vpop.f32.mrf.mxu0
        %1667 = vmatprep.mubr.f32.mxu0 0.0
        %1668 = vmatmul.mubr.f32.gmra.mxu0 %v1497
        %v1669 = vpop.f32.mrf.mxu0
        %v1670 = vadd.f32 0.0, %v1669
        %v1671 = vpop.f32.mrf.mxu0
        %1672 = vmatprep.mubr.f32.mxu0 0.0
        %1673 = vmatmul.mubr.f32.gmra.mxu0 %v1500
        %v1674 = vpop.f32.mrf.mxu0
        %v1675 = vadd.f32 0.0, %v1674
        %v1676 = vpop.f32.mrf.mxu0
        %1677 = vmatprep.mubr.f32.mxu0 0.0
        %1678 = vmatmul.mubr.f32.gmra.mxu0 %v1503
        %v1679 = vpop.f32.mrf.mxu0
        %v1680 = vadd.f32 0.0, %v1679
        %v1681 = vpop.f32.mrf.mxu0
        %1682 = vmatprep.mubr.f32.mxu0 0.0
        %1683 = vmatmul.mubr.f32.gmra.mxu0 %v1506
        %v1684 = vpop.f32.mrf.mxu0
        %v1685 = vadd.f32 0.0, %v1684
        %v1686 = vpop.f32.mrf.mxu0
        %1687 = vmatprep.mubr.f32.mxu0 0.0
        %1688 = vmatmul.mubr.f32.gmra.mxu0 %v1509
        %v1689 = vpop.f32.mrf.mxu0
        %v1690 = vadd.f32 0.0, %v1689
        %v1691 = vpop.f32.mrf.mxu0
        %1692 = vmatprep.mubr.f32.mxu0 0.0
        %1693 = vmatmul.mubr.f32.gmra.mxu0 %v1512
        %v1694 = vpop.f32.mrf.mxu0
        %v1695 = vadd.f32 0.0, %v1694
        %v1696 = vpop.f32.mrf.mxu0
        %1697 = vmatprep.mubr.f32.mxu0 0.0
        %1698 = vmatmul.mubr.f32.gmra.mxu0 %v1515
        %v1699 = vpop.f32.mrf.mxu0
        %v1700 = vadd.f32 0.0, %v1699
        %v1701 = vpop.f32.mrf.mxu0
        %1702 = vmatprep.mubr.f32.mxu0 0.0
        %1703 = vmatmul.mubr.f32.gmra.mxu0 %v1518
        %v1704 = vpop.f32.mrf.mxu0
        %v1705 = vadd.f32 0.0, %v1704
        %v1706 = vpop.f32.mrf.mxu0
        %1707 = vmatprep.mubr.f32.mxu0 0.0
        %1708 = vmatmul.mubr.f32.gmra.mxu0 %v1521
        %v1709 = vpop.f32.mrf.mxu0
        %v1710 = vadd.f32 0.0, %v1709
        %v1711 = vpop.f32.mrf.mxu0
        %1712 = vmatprep.mubr.f32.mxu0 0.0
        %1713 = vmatmul.mubr.f32.gmra.mxu0 %v1524
        %v1714 = vpop.f32.mrf.mxu0
        %v1715 = vadd.f32 0.0, %v1714
        %v1716 = vpop.f32.mrf.mxu0
        %1717 = vmatprep.mubr.f32.mxu0 0.0
        %1718 = vmatmul.mubr.f32.gmra.mxu0 %v1527
        %v1719 = vpop.f32.mrf.mxu0
        %v1720 = vadd.f32 0.0, %v1719
        %v1721 = vpop.f32.mrf.mxu0
        %1722 = vmatprep.mubr.f32.mxu0 0.0
        %1723 = vmatmul.mubr.f32.gmra.mxu0 %v1530
        %v1724 = vpop.f32.mrf.mxu0
        %v1725 = vadd.f32 0.0, %v1724
        %v1726 = vpop.f32.mrf.mxu0
        %1727 = vmatprep.mubr.f32.mxu0 0.0
        %1728 = vmatmul.mubr.f32.gmra.mxu0 %v1533
        %v1729 = vpop.f32.mrf.mxu0
        %v1730 = vadd.f32 0.0, %v1729
        %v1731 = vpop.f32.mrf.mxu0
        %1732 = vmatprep.mubr.f32.mxu0 0.0
        %1733 = vmatmul.mubr.f32.gmra.mxu0 %v1536
        %v1734 = vpop.f32.mrf.mxu0
        %v1735 = vadd.f32 0.0, %v1734
        %v1736 = vpop.f32.mrf.mxu0
        %1737 = vmatprep.mubr.f32.mxu0 0.0
        %1738 = vmatmul.mubr.f32.gmra.mxu0 %v1539
        %v1739 = vpop.f32.mrf.mxu0
        %v1740 = vadd.f32 0.0, %v1739
        %v1741 = vpop.f32.mrf.mxu0
        %1742 = vmatprep.mubr.f32.mxu0 0.0
        %1743 = vmatmul.mubr.f32.gmra.mxu0 %v1542
        %v1744 = vpop.f32.mrf.mxu0
        %v1745 = vadd.f32 0.0, %v1744
        %v1746 = vpop.f32.mrf.mxu0
        %1747 = vmatprep.mubr.f32.mxu0 0.0
        %1748 = vmatmul.mubr.f32.gmra.mxu0 %v1545
        %v1749 = vpop.f32.mrf.mxu0
        %v1750 = vadd.f32 0.0, %v1749
        %v1751 = vpop.f32.mrf.mxu0
        %1752 = vmatprep.mubr.f32.mxu0 0.0
        %1753 = vmatmul.mubr.f32.gmra.mxu0 %v1548
        %v1754 = vpop.f32.mrf.mxu0
        %v1755 = vadd.f32 0.0, %v1754
        %v1756 = vpop.f32.mrf.mxu0
        %1757 = vmatprep.mubr.f32.mxu0 0.0
        %1758 = vmatmul.mubr.f32.gmra.mxu0 %v1551
        %v1759 = vpop.f32.mrf.mxu0
        %v1760 = vadd.f32 0.0, %v1759
        %v1761 = vpop.f32.mrf.mxu0
        %1762 = vmatprep.mubr.f32.mxu0 0.0
        %1763 = vmatmul.mubr.f32.gmra.mxu0 %v1554
        %v1764 = vpop.f32.mrf.mxu0
        %v1765 = vadd.f32 0.0, %v1764
        %v1766 = vpop.f32.mrf.mxu0
        %1767 = vmatprep.mubr.f32.mxu0 0.0
        %1768 = vmatmul.mubr.f32.gmra.mxu0 %v1557
        %v1769 = vpop.f32.mrf.mxu0
        %v1770 = vadd.f32 0.0, %v1769
        %v1771 = vpop.f32.mrf.mxu0
        %1772 = vmatprep.mubr.f32.mxu0 0.0
        %1773 = vmatmul.mubr.f32.gmra.mxu0 %v1560
        %v1774 = vpop.f32.mrf.mxu0
        %v1775 = vadd.f32 0.0, %v1774
        %v1776 = vpop.f32.mrf.mxu0
        %1777 = vmatprep.mubr.f32.mxu0 0.0
        %1778 = vmatmul.mubr.f32.gmra.mxu0 %v1563
        %v1779 = vpop.f32.mrf.mxu0
        %v1780 = vadd.f32 0.0, %v1779
        %v1781 = vpop.f32.mrf.mxu0
        %1782 = vmatprep.mubr.f32.mxu0 0.0
        %1783 = vmatmul.mubr.f32.gmra.mxu0 %v1566
        %v1784 = vpop.f32.mrf.mxu0
        %v1785 = vadd.f32 0.0, %v1784
        %v1786 = vpop.f32.mrf.mxu0
        %1787 = vmatprep.mubr.f32.mxu0 0.0
        %1788 = vmatmul.mubr.f32.gmra.mxu0 %v1569
        %v1789 = vpop.f32.mrf.mxu0
        %v1790 = vadd.f32 0.0, %v1789
        %v1791 = vpop.f32.mrf.mxu0
        %1792 = vmatprep.mubr.f32.mxu0 0.0
        %1793 = vmatmul.mubr.f32.gmra.mxu0 %v1572
        %v1794 = vpop.f32.mrf.mxu0
        %v1795 = vadd.f32 0.0, %v1794
        %v1796 = vpop.f32.mrf.mxu0
        %1797 = vmatprep.mubr.f32.mxu0 0.0
        %1798 = vmatmul.mubr.f32.gmra.mxu0 %v1575
        %v1799 = vpop.f32.mrf.mxu0
        %v1800 = vadd.f32 0.0, %v1799
        %v1801 = vpop.f32.mrf.mxu0
        %1802 = vmatprep.mubr.f32.mxu0 0.0
        %1803 = vmatmul.mubr.f32.gmra.mxu0 %v1578
        %v1804 = vpop.f32.mrf.mxu0
        %v1805 = vadd.f32 0.0, %v1804
        %v1806 = vpop.f32.mrf.mxu0
        %1807 = vdwg.mxu0
        %v1808 = vadd.f32 %v1418, %v1650
        %v1809 = vadd.f32 %v1419, %v1655
        %v1810 = vadd.f32 %v1420, %v1660
        %v1811 = vadd.f32 %v1421, %v1665
        %v1812 = vadd.f32 %v1422, %v1670
        %v1813 = vadd.f32 %v1423, %v1675
        %v1814 = vadd.f32 %v1424, %v1680
        %v1815 = vadd.f32 %v1425, %v1685
        %v1816 = vadd.f32 %v1426, %v1690
        %v1817 = vadd.f32 %v1427, %v1695
        %v1818 = vadd.f32 %v1428, %v1700
        %v1819 = vadd.f32 %v1429, %v1705
        %v1820 = vadd.f32 %v1430, %v1710
        %v1821 = vadd.f32 %v1431, %v1715
        %v1822 = vadd.f32 %v1432, %v1720
        %v1823 = vadd.f32 %v1433, %v1725
        %v1824 = vadd.f32 %v1434, %v1730
        %v1825 = vadd.f32 %v1435, %v1735
        %v1826 = vadd.f32 %v1436, %v1740
        %v1827 = vadd.f32 %v1437, %v1745
        %v1828 = vadd.f32 %v1438, %v1750
        %v1829 = vadd.f32 %v1439, %v1755
        %v1830 = vadd.f32 %v1440, %v1760
        %v1831 = vadd.f32 %v1441, %v1765
        %v1832 = vadd.f32 %v1442, %v1770
        %v1833 = vadd.f32 %v1443, %v1775
        %v1834 = vadd.f32 %v1444, %v1780
        %v1835 = vadd.f32 %v1445, %v1785
        %v1836 = vadd.f32 %v1446, %v1790
        %v1837 = vadd.f32 %v1447, %v1795
        %v1838 = vadd.f32 %v1448, %v1800
        %v1839 = vadd.f32 %v1449, %v1805
        %v1840 = vld [vmem:[%s311 + $0x1] sm:$0xff]
        %v1841 = vld [vmem:[%s311 + $0x9] sm:$0xff]
        %v1842 = vld [vmem:[%s311 + $0x19] sm:$0xff]
        %v1843 = vld [vmem:[%s311 + $0x21] sm:$0xff]
        %v1844 = vld [vmem:[%s311 + $0x31] sm:$0xff]
        %v1845 = vld [vmem:[%s311 + $0x39] sm:$0xff]
        %v1846 = vld [vmem:[%s311 + $0x49] sm:$0xff]
        %v1847 = vld [vmem:[%s311 + $0x51] sm:$0xff]
        %v1848 = vld [vmem:[%s311 + $0x61] sm:$0xff]
        %v1849 = vld [vmem:[%s311 + $0x69] sm:$0xff]
        %v1850 = vld [vmem:[%s311 + $0x79] sm:$0xff]
        %v1851 = vld [vmem:[%s311 + $0x81] sm:$0xff]
        %v1852 = vld [vmem:[%s311 + $0x91] sm:$0xff]
        %v1853 = vld [vmem:[%s311 + $0x99] sm:$0xff]
        %v1854 = vld [vmem:[%s311 + $0xa9] sm:$0xff]
        %v1855 = vld [vmem:[%s311 + $0xb1] sm:$0xff]
        %v1856 = vld [vmem:[%s311 + $0xc1] sm:$0xff]
        %v1857 = vld [vmem:[%s311 + $0xc9] sm:$0xff]
        %v1858 = vld [vmem:[%s311 + $0xd9] sm:$0xff]
        %v1859 = vld [vmem:[%s311 + $0xe1] sm:$0xff]
        %v1860 = vld [vmem:[%s311 + $0xf1] sm:$0xff]
        %v1861 = vld [vmem:[%s311 + $0xf9] sm:$0xff]
        %v1862 = vld [vmem:[%s311 + $0x109] sm:$0xff]
        %v1863 = vld [vmem:[%s311 + $0x111] sm:$0xff]
        %v1864 = vld [vmem:[%s311 + $0x121] sm:$0xff]
        %v1865 = vld [vmem:[%s311 + $0x129] sm:$0xff]
        %v1866 = vld [vmem:[%s311 + $0x139] sm:$0xff]
        %v1867 = vld [vmem:[%s311 + $0x141] sm:$0xff]
        %v1868 = vld [vmem:[%s311 + $0x151] sm:$0xff]
        %v1869 = vld [vmem:[%s311 + $0x159] sm:$0xff]
        %v1870 = vld [vmem:[%s311 + $0x169] sm:$0xff]
        %v1871 = vld [vmem:[%s311 + $0x171] sm:$0xff]
        %s1872 = scalar_lea.vmem %s1, 16
        %v1873 = vld [vmem:[%s1872] sm:$0xf]
        %v1875 = vsel %vm255, %v1840, 0
        %v1878 = vsel %vm255, %v1841, 0
        %v1881 = vsel %vm255, %v1842, 0
        %v1884 = vsel %vm255, %v1843, 0
        %v1887 = vsel %vm255, %v1844, 0
        %v1890 = vsel %vm255, %v1845, 0
        %v1893 = vsel %vm255, %v1846, 0
        %v1896 = vsel %vm255, %v1847, 0
        %v1899 = vsel %vm255, %v1848, 0
        %v1902 = vsel %vm255, %v1849, 0
        %v1905 = vsel %vm255, %v1850, 0
        %v1908 = vsel %vm255, %v1851, 0
        %v1911 = vsel %vm255, %v1852, 0
        %v1914 = vsel %vm255, %v1853, 0
        %v1917 = vsel %vm255, %v1854, 0
        %v1920 = vsel %vm255, %v1855, 0
        %v1923 = vsel %vm255, %v1856, 0
        %v1926 = vsel %vm255, %v1857, 0
        %v1929 = vsel %vm255, %v1858, 0
        %v1932 = vsel %vm255, %v1859, 0
        %v1935 = vsel %vm255, %v1860, 0
        %v1938 = vsel %vm255, %v1861, 0
        %v1941 = vsel %vm255, %v1862, 0
        %v1944 = vsel %vm255, %v1863, 0
        %v1947 = vsel %vm255, %v1864, 0
        %v1950 = vsel %vm255, %v1865, 0
        %v1953 = vsel %vm255, %v1866, 0
        %v1956 = vsel %vm255, %v1867, 0
        %v1959 = vsel %vm255, %v1868, 0
        %v1962 = vsel %vm255, %v1869, 0
        %v1965 = vsel %vm255, %v1870, 0
        %v1968 = vsel %vm255, %v1871, 0
        %v1971 = vsel %vm507, %v1873, 0
        %1973 = vmatprep.subr.mxu0 0.0
        %1974 = vmatpush1.msra.mxu0 0.0
        %1975 = vmatprep.subr.mxu0 0.0
        %1976 = vmatpush1.msra.mxu0 0.0
        %1977 = vmatprep.subr.mxu0 0.0
        %1978 = vmatpush1.msra.mxu0 0.0
        %1979 = vmatprep.subr.mxu0 0.0
        %1980 = vmatpush1.msra.mxu0 0.0
        %1981 = vmatprep.subr.mxu0 0.0
        %1982 = vmatpush1.msra.mxu0 0.0
        %1983 = vmatprep.subr.mxu0 0.0
        %1984 = vmatpush1.msra.mxu0 0.0
        %1985 = vmatprep.subr.mxu0 0.0
        %1986 = vmatpush1.msra.mxu0 0.0
        %1987 = vmatprep.subr.mxu0 0.0
        %1988 = vmatpush1.msra.mxu0 0.0
        %1989 = vmatprep.subr.mxu0 0.0
        %1990 = vmatpush1.msra.mxu0 0.0
        %1991 = vmatprep.subr.mxu0 0.0
        %1992 = vmatpush1.msra.mxu0 0.0
        %1993 = vmatprep.subr.mxu0 0.0
        %1994 = vmatpush1.msra.mxu0 0.0
        %1995 = vmatprep.subr.mxu0 0.0
        %1996 = vmatpush1.msra.mxu0 0.0
        %1997 = vmatprep.subr.mxu0 0.0
        %1998 = vmatpush1.msra.mxu0 0.0
        %1999 = vmatprep.subr.mxu0 0.0
        %2000 = vmatpush1.msra.mxu0 0.0
        %2001 = vmatprep.subr.mxu0 0.0
        %2002 = vmatpush1.msra.mxu0 0.0
        %2003 = vmatprep.subr.mxu0 0.0
        %2004 = vmatpush1.msra.mxu0 %v1971
        %2005 = vmatprep.subr.mxu0 0.0
        %2006 = vmatpush2.msra.mxu0 0.0
        %2007 = vmatprep.subr.mxu0 0.0
        %2008 = vmatpush2.msra.mxu0 0.0
        %2009 = vmatprep.subr.mxu0 0.0
        %2010 = vmatpush2.msra.mxu0 0.0
        %2011 = vmatprep.subr.mxu0 0.0
        %2012 = vmatpush2.msra.mxu0 0.0
        %2013 = vmatprep.subr.mxu0 0.0
        %2014 = vmatpush2.msra.mxu0 0.0
        %2015 = vmatprep.subr.mxu0 0.0
        %2016 = vmatpush2.msra.mxu0 0.0
        %2017 = vmatprep.subr.mxu0 0.0
        %2018 = vmatpush2.msra.mxu0 0.0
        %2019 = vmatprep.subr.mxu0 0.0
        %2020 = vmatpush2.msra.mxu0 0.0
        %2021 = vmatprep.subr.mxu0 0.0
        %2022 = vmatpush2.msra.mxu0 0.0
        %2023 = vmatprep.subr.mxu0 0.0
        %2024 = vmatpush2.msra.mxu0 0.0
        %2025 = vmatprep.subr.mxu0 0.0
        %2026 = vmatpush2.msra.mxu0 0.0
        %2027 = vmatprep.subr.mxu0 0.0
        %2028 = vmatpush2.msra.mxu0 0.0
        %2029 = vmatprep.subr.mxu0 0.0
        %2030 = vmatpush2.msra.mxu0 0.0
        %2031 = vmatprep.subr.mxu0 0.0
        %2032 = vmatpush2.msra.mxu0 0.0
        %2033 = vmatprep.subr.mxu0 0.0
        %2034 = vmatpush2.msra.mxu0 0.0
        %2035 = vmatprep.subr.mxu0 0.0
        %2036 = vmatpush2.msra.mxu0 0.0
        %2037 = vmatprep.mubr.f32.mxu0 0.0
        %2038 = vmatmul.mubr.f32.gmra.mxu0 %v1875
        %v2039 = vpop.f32.mrf.mxu0
        %v2040 = vadd.f32 0.0, %v2039
        %v2041 = vpop.f32.mrf.mxu0
        %2042 = vmatprep.mubr.f32.mxu0 0.0
        %2043 = vmatmul.mubr.f32.gmra.mxu0 %v1878
        %v2044 = vpop.f32.mrf.mxu0
        %v2045 = vadd.f32 0.0, %v2044
        %v2046 = vpop.f32.mrf.mxu0
        %2047 = vmatprep.mubr.f32.mxu0 0.0
        %2048 = vmatmul.mubr.f32.gmra.mxu0 %v1881
        %v2049 = vpop.f32.mrf.mxu0
        %v2050 = vadd.f32 0.0, %v2049
        %v2051 = vpop.f32.mrf.mxu0
        %2052 = vmatprep.mubr.f32.mxu0 0.0
        %2053 = vmatmul.mubr.f32.gmra.mxu0 %v1884
        %v2054 = vpop.f32.mrf.mxu0
        %v2055 = vadd.f32 0.0, %v2054
        %v2056 = vpop.f32.mrf.mxu0
        %2057 = vmatprep.mubr.f32.mxu0 0.0
        %2058 = vmatmul.mubr.f32.gmra.mxu0 %v1887
        %v2059 = vpop.f32.mrf.mxu0
        %v2060 = vadd.f32 0.0, %v2059
        %v2061 = vpop.f32.mrf.mxu0
        %2062 = vmatprep.mubr.f32.mxu0 0.0
        %2063 = vmatmul.mubr.f32.gmra.mxu0 %v1890
        %v2064 = vpop.f32.mrf.mxu0
        %v2065 = vadd.f32 0.0, %v2064
        %v2066 = vpop.f32.mrf.mxu0
        %2067 = vmatprep.mubr.f32.mxu0 0.0
        %2068 = vmatmul.mubr.f32.gmra.mxu0 %v1893
        %v2069 = vpop.f32.mrf.mxu0
        %v2070 = vadd.f32 0.0, %v2069
        %v2071 = vpop.f32.mrf.mxu0
        %2072 = vmatprep.mubr.f32.mxu0 0.0
        %2073 = vmatmul.mubr.f32.gmra.mxu0 %v1896
        %v2074 = vpop.f32.mrf.mxu0
        %v2075 = vadd.f32 0.0, %v2074
        %v2076 = vpop.f32.mrf.mxu0
        %2077 = vmatprep.mubr.f32.mxu0 0.0
        %2078 = vmatmul.mubr.f32.gmra.mxu0 %v1899
        %v2079 = vpop.f32.mrf.mxu0
        %v2080 = vadd.f32 0.0, %v2079
        %v2081 = vpop.f32.mrf.mxu0
        %2082 = vmatprep.mubr.f32.mxu0 0.0
        %2083 = vmatmul.mubr.f32.gmra.mxu0 %v1902
        %v2084 = vpop.f32.mrf.mxu0
        %v2085 = vadd.f32 0.0, %v2084
        %v2086 = vpop.f32.mrf.mxu0
        %2087 = vmatprep.mubr.f32.mxu0 0.0
        %2088 = vmatmul.mubr.f32.gmra.mxu0 %v1905
        %v2089 = vpop.f32.mrf.mxu0
        %v2090 = vadd.f32 0.0, %v2089
        %v2091 = vpop.f32.mrf.mxu0
        %2092 = vmatprep.mubr.f32.mxu0 0.0
        %2093 = vmatmul.mubr.f32.gmra.mxu0 %v1908
        %v2094 = vpop.f32.mrf.mxu0
        %v2095 = vadd.f32 0.0, %v2094
        %v2096 = vpop.f32.mrf.mxu0
        %2097 = vmatprep.mubr.f32.mxu0 0.0
        %2098 = vmatmul.mubr.f32.gmra.mxu0 %v1911
        %v2099 = vpop.f32.mrf.mxu0
        %v2100 = vadd.f32 0.0, %v2099
        %v2101 = vpop.f32.mrf.mxu0
        %2102 = vmatprep.mubr.f32.mxu0 0.0
        %2103 = vmatmul.mubr.f32.gmra.mxu0 %v1914
        %v2104 = vpop.f32.mrf.mxu0
        %v2105 = vadd.f32 0.0, %v2104
        %v2106 = vpop.f32.mrf.mxu0
        %2107 = vmatprep.mubr.f32.mxu0 0.0
        %2108 = vmatmul.mubr.f32.gmra.mxu0 %v1917
        %v2109 = vpop.f32.mrf.mxu0
        %v2110 = vadd.f32 0.0, %v2109
        %v2111 = vpop.f32.mrf.mxu0
        %2112 = vmatprep.mubr.f32.mxu0 0.0
        %2113 = vmatmul.mubr.f32.gmra.mxu0 %v1920
        %v2114 = vpop.f32.mrf.mxu0
        %v2115 = vadd.f32 0.0, %v2114
        %v2116 = vpop.f32.mrf.mxu0
        %2117 = vmatprep.mubr.f32.mxu0 0.0
        %2118 = vmatmul.mubr.f32.gmra.mxu0 %v1923
        %v2119 = vpop.f32.mrf.mxu0
        %v2120 = vadd.f32 0.0, %v2119
        %v2121 = vpop.f32.mrf.mxu0
        %2122 = vmatprep.mubr.f32.mxu0 0.0
        %2123 = vmatmul.mubr.f32.gmra.mxu0 %v1926
        %v2124 = vpop.f32.mrf.mxu0
        %v2125 = vadd.f32 0.0, %v2124
        %v2126 = vpop.f32.mrf.mxu0
        %2127 = vmatprep.mubr.f32.mxu0 0.0
        %2128 = vmatmul.mubr.f32.gmra.mxu0 %v1929
        %v2129 = vpop.f32.mrf.mxu0
        %v2130 = vadd.f32 0.0, %v2129
        %v2131 = vpop.f32.mrf.mxu0
        %2132 = vmatprep.mubr.f32.mxu0 0.0
        %2133 = vmatmul.mubr.f32.gmra.mxu0 %v1932
        %v2134 = vpop.f32.mrf.mxu0
        %v2135 = vadd.f32 0.0, %v2134
        %v2136 = vpop.f32.mrf.mxu0
        %2137 = vmatprep.mubr.f32.mxu0 0.0
        %2138 = vmatmul.mubr.f32.gmra.mxu0 %v1935
        %v2139 = vpop.f32.mrf.mxu0
        %v2140 = vadd.f32 0.0, %v2139
        %v2141 = vpop.f32.mrf.mxu0
        %2142 = vmatprep.mubr.f32.mxu0 0.0
        %2143 = vmatmul.mubr.f32.gmra.mxu0 %v1938
        %v2144 = vpop.f32.mrf.mxu0
        %v2145 = vadd.f32 0.0, %v2144
        %v2146 = vpop.f32.mrf.mxu0
        %2147 = vmatprep.mubr.f32.mxu0 0.0
        %2148 = vmatmul.mubr.f32.gmra.mxu0 %v1941
        %v2149 = vpop.f32.mrf.mxu0
        %v2150 = vadd.f32 0.0, %v2149
        %v2151 = vpop.f32.mrf.mxu0
        %2152 = vmatprep.mubr.f32.mxu0 0.0
        %2153 = vmatmul.mubr.f32.gmra.mxu0 %v1944
        %v2154 = vpop.f32.mrf.mxu0
        %v2155 = vadd.f32 0.0, %v2154
        %v2156 = vpop.f32.mrf.mxu0
        %2157 = vmatprep.mubr.f32.mxu0 0.0
        %2158 = vmatmul.mubr.f32.gmra.mxu0 %v1947
        %v2159 = vpop.f32.mrf.mxu0
        %v2160 = vadd.f32 0.0, %v2159
        %v2161 = vpop.f32.mrf.mxu0
        %2162 = vmatprep.mubr.f32.mxu0 0.0
        %2163 = vmatmul.mubr.f32.gmra.mxu0 %v1950
        %v2164 = vpop.f32.mrf.mxu0
        %v2165 = vadd.f32 0.0, %v2164
        %v2166 = vpop.f32.mrf.mxu0
        %2167 = vmatprep.mubr.f32.mxu0 0.0
        %2168 = vmatmul.mubr.f32.gmra.mxu0 %v1953
        %v2169 = vpop.f32.mrf.mxu0
        %v2170 = vadd.f32 0.0, %v2169
        %v2171 = vpop.f32.mrf.mxu0
        %2172 = vmatprep.mubr.f32.mxu0 0.0
        %2173 = vmatmul.mubr.f32.gmra.mxu0 %v1956
        %v2174 = vpop.f32.mrf.mxu0
        %v2175 = vadd.f32 0.0, %v2174
        %v2176 = vpop.f32.mrf.mxu0
        %2177 = vmatprep.mubr.f32.mxu0 0.0
        %2178 = vmatmul.mubr.f32.gmra.mxu0 %v1959
        %v2179 = vpop.f32.mrf.mxu0
        %v2180 = vadd.f32 0.0, %v2179
        %v2181 = vpop.f32.mrf.mxu0
        %2182 = vmatprep.mubr.f32.mxu0 0.0
        %2183 = vmatmul.mubr.f32.gmra.mxu0 %v1962
        %v2184 = vpop.f32.mrf.mxu0
        %v2185 = vadd.f32 0.0, %v2184
        %v2186 = vpop.f32.mrf.mxu0
        %2187 = vmatprep.mubr.f32.mxu0 0.0
        %2188 = vmatmul.mubr.f32.gmra.mxu0 %v1965
        %v2189 = vpop.f32.mrf.mxu0
        %v2190 = vadd.f32 0.0, %v2189
        %v2191 = vpop.f32.mrf.mxu0
        %2192 = vmatprep.mubr.f32.mxu0 0.0
        %2193 = vmatmul.mubr.f32.gmra.mxu0 %v1968
        %v2194 = vpop.f32.mrf.mxu0
        %v2195 = vadd.f32 0.0, %v2194
        %v2196 = vpop.f32.mrf.mxu0
        %2197 = vdwg.mxu0
        %v2198 = vadd.f32 %v1808, %v2040
        %v2199 = vadd.f32 %v1809, %v2045
        %v2200 = vadd.f32 %v1810, %v2050
        %v2201 = vadd.f32 %v1811, %v2055
        %v2202 = vadd.f32 %v1812, %v2060
        %v2203 = vadd.f32 %v1813, %v2065
        %v2204 = vadd.f32 %v1814, %v2070
        %v2205 = vadd.f32 %v1815, %v2075
        %v2206 = vadd.f32 %v1816, %v2080
        %v2207 = vadd.f32 %v1817, %v2085
        %v2208 = vadd.f32 %v1818, %v2090
        %v2209 = vadd.f32 %v1819, %v2095
        %v2210 = vadd.f32 %v1820, %v2100
        %v2211 = vadd.f32 %v1821, %v2105
        %v2212 = vadd.f32 %v1822, %v2110
        %v2213 = vadd.f32 %v1823, %v2115
        %v2214 = vadd.f32 %v1824, %v2120
        %v2215 = vadd.f32 %v1825, %v2125
        %v2216 = vadd.f32 %v1826, %v2130
        %v2217 = vadd.f32 %v1827, %v2135
        %v2218 = vadd.f32 %v1828, %v2140
        %v2219 = vadd.f32 %v1829, %v2145
        %v2220 = vadd.f32 %v1830, %v2150
        %v2221 = vadd.f32 %v1831, %v2155
        %v2222 = vadd.f32 %v1832, %v2160
        %v2223 = vadd.f32 %v1833, %v2165
        %v2224 = vadd.f32 %v1834, %v2170
        %v2225 = vadd.f32 %v1835, %v2175
        %v2226 = vadd.f32 %v1836, %v2180
        %v2227 = vadd.f32 %v1837, %v2185
        %v2228 = vadd.f32 %v1838, %v2190
        %v2229 = vadd.f32 %v1839, %v2195
        %v2230 = vld [vmem:[%s311 + $0x2] sm:$0xff]
        %v2231 = vld [vmem:[%s311 + $0xa] sm:$0xff]
        %v2232 = vld [vmem:[%s311 + $0x1a] sm:$0xff]
        %v2233 = vld [vmem:[%s311 + $0x22] sm:$0xff]
        %v2234 = vld [vmem:[%s311 + $0x32] sm:$0xff]
        %v2235 = vld [vmem:[%s311 + $0x3a] sm:$0xff]
        %v2236 = vld [vmem:[%s311 + $0x4a] sm:$0xff]
        %v2237 = vld [vmem:[%s311 + $0x52] sm:$0xff]
        %v2238 = vld [vmem:[%s311 + $0x62] sm:$0xff]
        %v2239 = vld [vmem:[%s311 + $0x6a] sm:$0xff]
        %v2240 = vld [vmem:[%s311 + $0x7a] sm:$0xff]
        %v2241 = vld [vmem:[%s311 + $0x82] sm:$0xff]
        %v2242 = vld [vmem:[%s311 + $0x92] sm:$0xff]
        %v2243 = vld [vmem:[%s311 + $0x9a] sm:$0xff]
        %v2244 = vld [vmem:[%s311 + $0xaa] sm:$0xff]
        %v2245 = vld [vmem:[%s311 + $0xb2] sm:$0xff]
        %v2246 = vld [vmem:[%s311 + $0xc2] sm:$0xff]
        %v2247 = vld [vmem:[%s311 + $0xca] sm:$0xff]
        %v2248 = vld [vmem:[%s311 + $0xda] sm:$0xff]
        %v2249 = vld [vmem:[%s311 + $0xe2] sm:$0xff]
        %v2250 = vld [vmem:[%s311 + $0xf2] sm:$0xff]
        %v2251 = vld [vmem:[%s311 + $0xfa] sm:$0xff]
        %v2252 = vld [vmem:[%s311 + $0x10a] sm:$0xff]
        %v2253 = vld [vmem:[%s311 + $0x112] sm:$0xff]
        %v2254 = vld [vmem:[%s311 + $0x122] sm:$0xff]
        %v2255 = vld [vmem:[%s311 + $0x12a] sm:$0xff]
        %v2256 = vld [vmem:[%s311 + $0x13a] sm:$0xff]
        %v2257 = vld [vmem:[%s311 + $0x142] sm:$0xff]
        %v2258 = vld [vmem:[%s311 + $0x152] sm:$0xff]
        %v2259 = vld [vmem:[%s311 + $0x15a] sm:$0xff]
        %v2260 = vld [vmem:[%s311 + $0x16a] sm:$0xff]
        %v2261 = vld [vmem:[%s311 + $0x172] sm:$0xff]
        %s2262 = scalar_lea.vmem %s1, 20
        %v2263 = vld [vmem:[%s2262] sm:$0xf]
        %v2265 = vsel %vm255, %v2230, 0
        %v2268 = vsel %vm255, %v2231, 0
        %v2271 = vsel %vm255, %v2232, 0
        %v2274 = vsel %vm255, %v2233, 0
        %v2277 = vsel %vm255, %v2234, 0
        %v2280 = vsel %vm255, %v2235, 0
        %v2283 = vsel %vm255, %v2236, 0
        %v2286 = vsel %vm255, %v2237, 0
        %v2289 = vsel %vm255, %v2238, 0
        %v2292 = vsel %vm255, %v2239, 0
        %v2295 = vsel %vm255, %v2240, 0
        %v2298 = vsel %vm255, %v2241, 0
        %v2301 = vsel %vm255, %v2242, 0
        %v2304 = vsel %vm255, %v2243, 0
        %v2307 = vsel %vm255, %v2244, 0
        %v2310 = vsel %vm255, %v2245, 0
        %v2313 = vsel %vm255, %v2246, 0
        %v2316 = vsel %vm255, %v2247, 0
        %v2319 = vsel %vm255, %v2248, 0
        %v2322 = vsel %vm255, %v2249, 0
        %v2325 = vsel %vm255, %v2250, 0
        %v2328 = vsel %vm255, %v2251, 0
        %v2331 = vsel %vm255, %v2252, 0
        %v2334 = vsel %vm255, %v2253, 0
        %v2337 = vsel %vm255, %v2254, 0
        %v2340 = vsel %vm255, %v2255, 0
        %v2343 = vsel %vm255, %v2256, 0
        %v2346 = vsel %vm255, %v2257, 0
        %v2349 = vsel %vm255, %v2258, 0
        %v2352 = vsel %vm255, %v2259, 0
        %v2355 = vsel %vm255, %v2260, 0
        %v2358 = vsel %vm255, %v2261, 0
        %v2361 = vsel %vm507, %v2263, 0
        %2363 = vmatprep.subr.mxu0 0.0
        %2364 = vmatpush1.msra.mxu0 0.0
        %2365 = vmatprep.subr.mxu0 0.0
        %2366 = vmatpush1.msra.mxu0 0.0
        %2367 = vmatprep.subr.mxu0 0.0
        %2368 = vmatpush1.msra.mxu0 0.0
        %2369 = vmatprep.subr.mxu0 0.0
        %2370 = vmatpush1.msra.mxu0 0.0
        %2371 = vmatprep.subr.mxu0 0.0
        %2372 = vmatpush1.msra.mxu0 0.0
        %2373 = vmatprep.subr.mxu0 0.0
        %2374 = vmatpush1.msra.mxu0 0.0
        %2375 = vmatprep.subr.mxu0 0.0
        %2376 = vmatpush1.msra.mxu0 0.0
        %2377 = vmatprep.subr.mxu0 0.0
        %2378 = vmatpush1.msra.mxu0 0.0
        %2379 = vmatprep.subr.mxu0 0.0
        %2380 = vmatpush1.msra.mxu0 0.0
        %2381 = vmatprep.subr.mxu0 0.0
        %2382 = vmatpush1.msra.mxu0 0.0
        %2383 = vmatprep.subr.mxu0 0.0
        %2384 = vmatpush1.msra.mxu0 0.0
        %2385 = vmatprep.subr.mxu0 0.0
        %2386 = vmatpush1.msra.mxu0 0.0
        %2387 = vmatprep.subr.mxu0 0.0
        %2388 = vmatpush1.msra.mxu0 0.0
        %2389 = vmatprep.subr.mxu0 0.0
        %2390 = vmatpush1.msra.mxu0 0.0
        %2391 = vmatprep.subr.mxu0 0.0
        %2392 = vmatpush1.msra.mxu0 0.0
        %2393 = vmatprep.subr.mxu0 0.0
        %2394 = vmatpush1.msra.mxu0 %v2361
        %2395 = vmatprep.subr.mxu0 0.0
        %2396 = vmatpush2.msra.mxu0 0.0
        %2397 = vmatprep.subr.mxu0 0.0
        %2398 = vmatpush2.msra.mxu0 0.0
        %2399 = vmatprep.subr.mxu0 0.0
        %2400 = vmatpush2.msra.mxu0 0.0
        %2401 = vmatprep.subr.mxu0 0.0
        %2402 = vmatpush2.msra.mxu0 0.0
        %2403 = vmatprep.subr.mxu0 0.0
        %2404 = vmatpush2.msra.mxu0 0.0
        %2405 = vmatprep.subr.mxu0 0.0
        %2406 = vmatpush2.msra.mxu0 0.0
        %2407 = vmatprep.subr.mxu0 0.0
        %2408 = vmatpush2.msra.mxu0 0.0
        %2409 = vmatprep.subr.mxu0 0.0
        %2410 = vmatpush2.msra.mxu0 0.0
        %2411 = vmatprep.subr.mxu0 0.0
        %2412 = vmatpush2.msra.mxu0 0.0
        %2413 = vmatprep.subr.mxu0 0.0
        %2414 = vmatpush2.msra.mxu0 0.0
        %2415 = vmatprep.subr.mxu0 0.0
        %2416 = vmatpush2.msra.mxu0 0.0
        %2417 = vmatprep.subr.mxu0 0.0
        %2418 = vmatpush2.msra.mxu0 0.0
        %2419 = vmatprep.subr.mxu0 0.0
        %2420 = vmatpush2.msra.mxu0 0.0
        %2421 = vmatprep.subr.mxu0 0.0
        %2422 = vmatpush2.msra.mxu0 0.0
        %2423 = vmatprep.subr.mxu0 0.0
        %2424 = vmatpush2.msra.mxu0 0.0
        %2425 = vmatprep.subr.mxu0 0.0
        %2426 = vmatpush2.msra.mxu0 0.0
        %2427 = vmatprep.mubr.f32.mxu0 0.0
        %2428 = vmatmul.mubr.f32.gmra.mxu0 %v2265
        %v2429 = vpop.f32.mrf.mxu0
        %v2430 = vadd.f32 0.0, %v2429
        %v2431 = vpop.f32.mrf.mxu0
        %2432 = vmatprep.mubr.f32.mxu0 0.0
        %2433 = vmatmul.mubr.f32.gmra.mxu0 %v2268
        %v2434 = vpop.f32.mrf.mxu0
        %v2435 = vadd.f32 0.0, %v2434
        %v2436 = vpop.f32.mrf.mxu0
        %2437 = vmatprep.mubr.f32.mxu0 0.0
        %2438 = vmatmul.mubr.f32.gmra.mxu0 %v2271
        %v2439 = vpop.f32.mrf.mxu0
        %v2440 = vadd.f32 0.0, %v2439
        %v2441 = vpop.f32.mrf.mxu0
        %2442 = vmatprep.mubr.f32.mxu0 0.0
        %2443 = vmatmul.mubr.f32.gmra.mxu0 %v2274
        %v2444 = vpop.f32.mrf.mxu0
        %v2445 = vadd.f32 0.0, %v2444
        %v2446 = vpop.f32.mrf.mxu0
        %2447 = vmatprep.mubr.f32.mxu0 0.0
        %2448 = vmatmul.mubr.f32.gmra.mxu0 %v2277
        %v2449 = vpop.f32.mrf.mxu0
        %v2450 = vadd.f32 0.0, %v2449
        %v2451 = vpop.f32.mrf.mxu0
        %2452 = vmatprep.mubr.f32.mxu0 0.0
        %2453 = vmatmul.mubr.f32.gmra.mxu0 %v2280
        %v2454 = vpop.f32.mrf.mxu0
        %v2455 = vadd.f32 0.0, %v2454
        %v2456 = vpop.f32.mrf.mxu0
        %2457 = vmatprep.mubr.f32.mxu0 0.0
        %2458 = vmatmul.mubr.f32.gmra.mxu0 %v2283
        %v2459 = vpop.f32.mrf.mxu0
        %v2460 = vadd.f32 0.0, %v2459
        %v2461 = vpop.f32.mrf.mxu0
        %2462 = vmatprep.mubr.f32.mxu0 0.0
        %2463 = vmatmul.mubr.f32.gmra.mxu0 %v2286
        %v2464 = vpop.f32.mrf.mxu0
        %v2465 = vadd.f32 0.0, %v2464
        %v2466 = vpop.f32.mrf.mxu0
        %2467 = vmatprep.mubr.f32.mxu0 0.0
        %2468 = vmatmul.mubr.f32.gmra.mxu0 %v2289
        %v2469 = vpop.f32.mrf.mxu0
        %v2470 = vadd.f32 0.0, %v2469
        %v2471 = vpop.f32.mrf.mxu0
        %2472 = vmatprep.mubr.f32.mxu0 0.0
        %2473 = vmatmul.mubr.f32.gmra.mxu0 %v2292
        %v2474 = vpop.f32.mrf.mxu0
        %v2475 = vadd.f32 0.0, %v2474
        %v2476 = vpop.f32.mrf.mxu0
        %2477 = vmatprep.mubr.f32.mxu0 0.0
        %2478 = vmatmul.mubr.f32.gmra.mxu0 %v2295
        %v2479 = vpop.f32.mrf.mxu0
        %v2480 = vadd.f32 0.0, %v2479
        %v2481 = vpop.f32.mrf.mxu0
        %2482 = vmatprep.mubr.f32.mxu0 0.0
        %2483 = vmatmul.mubr.f32.gmra.mxu0 %v2298
        %v2484 = vpop.f32.mrf.mxu0
        %v2485 = vadd.f32 0.0, %v2484
        %v2486 = vpop.f32.mrf.mxu0
        %2487 = vmatprep.mubr.f32.mxu0 0.0
        %2488 = vmatmul.mubr.f32.gmra.mxu0 %v2301
        %v2489 = vpop.f32.mrf.mxu0
        %v2490 = vadd.f32 0.0, %v2489
        %v2491 = vpop.f32.mrf.mxu0
        %2492 = vmatprep.mubr.f32.mxu0 0.0
        %2493 = vmatmul.mubr.f32.gmra.mxu0 %v2304
        %v2494 = vpop.f32.mrf.mxu0
        %v2495 = vadd.f32 0.0, %v2494
        %v2496 = vpop.f32.mrf.mxu0
        %2497 = vmatprep.mubr.f32.mxu0 0.0
        %2498 = vmatmul.mubr.f32.gmra.mxu0 %v2307
        %v2499 = vpop.f32.mrf.mxu0
        %v2500 = vadd.f32 0.0, %v2499
        %v2501 = vpop.f32.mrf.mxu0
        %2502 = vmatprep.mubr.f32.mxu0 0.0
        %2503 = vmatmul.mubr.f32.gmra.mxu0 %v2310
        %v2504 = vpop.f32.mrf.mxu0
        %v2505 = vadd.f32 0.0, %v2504
        %v2506 = vpop.f32.mrf.mxu0
        %2507 = vmatprep.mubr.f32.mxu0 0.0
        %2508 = vmatmul.mubr.f32.gmra.mxu0 %v2313
        %v2509 = vpop.f32.mrf.mxu0
        %v2510 = vadd.f32 0.0, %v2509
        %v2511 = vpop.f32.mrf.mxu0
        %2512 = vmatprep.mubr.f32.mxu0 0.0
        %2513 = vmatmul.mubr.f32.gmra.mxu0 %v2316
        %v2514 = vpop.f32.mrf.mxu0
        %v2515 = vadd.f32 0.0, %v2514
        %v2516 = vpop.f32.mrf.mxu0
        %2517 = vmatprep.mubr.f32.mxu0 0.0
        %2518 = vmatmul.mubr.f32.gmra.mxu0 %v2319
        %v2519 = vpop.f32.mrf.mxu0
        %v2520 = vadd.f32 0.0, %v2519
        %v2521 = vpop.f32.mrf.mxu0
        %2522 = vmatprep.mubr.f32.mxu0 0.0
        %2523 = vmatmul.mubr.f32.gmra.mxu0 %v2322
        %v2524 = vpop.f32.mrf.mxu0
        %v2525 = vadd.f32 0.0, %v2524
        %v2526 = vpop.f32.mrf.mxu0
        %2527 = vmatprep.mubr.f32.mxu0 0.0
        %2528 = vmatmul.mubr.f32.gmra.mxu0 %v2325
        %v2529 = vpop.f32.mrf.mxu0
        %v2530 = vadd.f32 0.0, %v2529
        %v2531 = vpop.f32.mrf.mxu0
        %2532 = vmatprep.mubr.f32.mxu0 0.0
        %2533 = vmatmul.mubr.f32.gmra.mxu0 %v2328
        %v2534 = vpop.f32.mrf.mxu0
        %v2535 = vadd.f32 0.0, %v2534
        %v2536 = vpop.f32.mrf.mxu0
        %2537 = vmatprep.mubr.f32.mxu0 0.0
        %2538 = vmatmul.mubr.f32.gmra.mxu0 %v2331
        %v2539 = vpop.f32.mrf.mxu0
        %v2540 = vadd.f32 0.0, %v2539
        %v2541 = vpop.f32.mrf.mxu0
        %2542 = vmatprep.mubr.f32.mxu0 0.0
        %2543 = vmatmul.mubr.f32.gmra.mxu0 %v2334
        %v2544 = vpop.f32.mrf.mxu0
        %v2545 = vadd.f32 0.0, %v2544
        %v2546 = vpop.f32.mrf.mxu0
        %2547 = vmatprep.mubr.f32.mxu0 0.0
        %2548 = vmatmul.mubr.f32.gmra.mxu0 %v2337
        %v2549 = vpop.f32.mrf.mxu0
        %v2550 = vadd.f32 0.0, %v2549
        %v2551 = vpop.f32.mrf.mxu0
        %2552 = vmatprep.mubr.f32.mxu0 0.0
        %2553 = vmatmul.mubr.f32.gmra.mxu0 %v2340
        %v2554 = vpop.f32.mrf.mxu0
        %v2555 = vadd.f32 0.0, %v2554
        %v2556 = vpop.f32.mrf.mxu0
        %2557 = vmatprep.mubr.f32.mxu0 0.0
        %2558 = vmatmul.mubr.f32.gmra.mxu0 %v2343
        %v2559 = vpop.f32.mrf.mxu0
        %v2560 = vadd.f32 0.0, %v2559
        %v2561 = vpop.f32.mrf.mxu0
        %2562 = vmatprep.mubr.f32.mxu0 0.0
        %2563 = vmatmul.mubr.f32.gmra.mxu0 %v2346
        %v2564 = vpop.f32.mrf.mxu0
        %v2565 = vadd.f32 0.0, %v2564
        %v2566 = vpop.f32.mrf.mxu0
        %2567 = vmatprep.mubr.f32.mxu0 0.0
        %2568 = vmatmul.mubr.f32.gmra.mxu0 %v2349
        %v2569 = vpop.f32.mrf.mxu0
        %v2570 = vadd.f32 0.0, %v2569
        %v2571 = vpop.f32.mrf.mxu0
        %2572 = vmatprep.mubr.f32.mxu0 0.0
        %2573 = vmatmul.mubr.f32.gmra.mxu0 %v2352
        %v2574 = vpop.f32.mrf.mxu0
        %v2575 = vadd.f32 0.0, %v2574
        %v2576 = vpop.f32.mrf.mxu0
        %2577 = vmatprep.mubr.f32.mxu0 0.0
        %2578 = vmatmul.mubr.f32.gmra.mxu0 %v2355
        %v2579 = vpop.f32.mrf.mxu0
        %v2580 = vadd.f32 0.0, %v2579
        %v2581 = vpop.f32.mrf.mxu0
        %2582 = vmatprep.mubr.f32.mxu0 0.0
        %2583 = vmatmul.mubr.f32.gmra.mxu0 %v2358
        %v2584 = vpop.f32.mrf.mxu0
        %v2585 = vadd.f32 0.0, %v2584
        %v2586 = vpop.f32.mrf.mxu0
        %2587 = vdwg.mxu0
        %v2588 = vadd.f32 %v2198, %v2430
        %v2589 = vadd.f32 %v2199, %v2435
        %v2590 = vadd.f32 %v2200, %v2440
        %v2591 = vadd.f32 %v2201, %v2445
        %v2592 = vadd.f32 %v2202, %v2450
        %v2593 = vadd.f32 %v2203, %v2455
        %v2594 = vadd.f32 %v2204, %v2460
        %v2595 = vadd.f32 %v2205, %v2465
        %v2596 = vadd.f32 %v2206, %v2470
        %v2597 = vadd.f32 %v2207, %v2475
        %v2598 = vadd.f32 %v2208, %v2480
        %v2599 = vadd.f32 %v2209, %v2485
        %v2600 = vadd.f32 %v2210, %v2490
        %v2601 = vadd.f32 %v2211, %v2495
        %v2602 = vadd.f32 %v2212, %v2500
        %v2603 = vadd.f32 %v2213, %v2505
        %v2604 = vadd.f32 %v2214, %v2510
        %v2605 = vadd.f32 %v2215, %v2515
        %v2606 = vadd.f32 %v2216, %v2520
        %v2607 = vadd.f32 %v2217, %v2525
        %v2608 = vadd.f32 %v2218, %v2530
        %v2609 = vadd.f32 %v2219, %v2535
        %v2610 = vadd.f32 %v2220, %v2540
        %v2611 = vadd.f32 %v2221, %v2545
        %v2612 = vadd.f32 %v2222, %v2550
        %v2613 = vadd.f32 %v2223, %v2555
        %v2614 = vadd.f32 %v2224, %v2560
        %v2615 = vadd.f32 %v2225, %v2565
        %v2616 = vadd.f32 %v2226, %v2570
        %v2617 = vadd.f32 %v2227, %v2575
        %v2618 = vadd.f32 %v2228, %v2580
        %v2619 = vadd.f32 %v2229, %v2585
        %s2620 = scalar_lea.vmem [#allocation2], 48
        %v2621 = vld [vmem:[%s2620] sm:$0xff]
        %v2622 = vld [vmem:[%s2620 + $0x8] sm:$0xff]
        %v2623 = vld [vmem:[%s2620 + $0x18] sm:$0xff]
        %v2624 = vld [vmem:[%s2620 + $0x20] sm:$0xff]
        %v2625 = vld [vmem:[%s2620 + $0x30] sm:$0xff]
        %v2626 = vld [vmem:[%s2620 + $0x38] sm:$0xff]
        %v2627 = vld [vmem:[%s2620 + $0x48] sm:$0xff]
        %v2628 = vld [vmem:[%s2620 + $0x50] sm:$0xff]
        %v2629 = vld [vmem:[%s2620 + $0x60] sm:$0xff]
        %v2630 = vld [vmem:[%s2620 + $0x68] sm:$0xff]
        %v2631 = vld [vmem:[%s2620 + $0x78] sm:$0xff]
        %v2632 = vld [vmem:[%s2620 + $0x80] sm:$0xff]
        %v2633 = vld [vmem:[%s2620 + $0x90] sm:$0xff]
        %v2634 = vld [vmem:[%s2620 + $0x98] sm:$0xff]
        %v2635 = vld [vmem:[%s2620 + $0xa8] sm:$0xff]
        %v2636 = vld [vmem:[%s2620 + $0xb0] sm:$0xff]
        %v2637 = vld [vmem:[%s2620 + $0xc0] sm:$0xff]
        %v2638 = vld [vmem:[%s2620 + $0xc8] sm:$0xff]
        %v2639 = vld [vmem:[%s2620 + $0xd8] sm:$0xff]
        %v2640 = vld [vmem:[%s2620 + $0xe0] sm:$0xff]
        %v2641 = vld [vmem:[%s2620 + $0xf0] sm:$0xff]
        %v2642 = vld [vmem:[%s2620 + $0xf8] sm:$0xff]
        %v2643 = vld [vmem:[%s2620 + $0x108] sm:$0xff]
        %v2644 = vld [vmem:[%s2620 + $0x110] sm:$0xff]
        %v2645 = vld [vmem:[%s2620 + $0x120] sm:$0xff]
        %v2646 = vld [vmem:[%s2620 + $0x128] sm:$0xff]
        %v2647 = vld [vmem:[%s2620 + $0x138] sm:$0xff]
        %v2648 = vld [vmem:[%s2620 + $0x140] sm:$0xff]
        %v2649 = vld [vmem:[%s2620 + $0x150] sm:$0xff]
        %v2650 = vld [vmem:[%s2620 + $0x158] sm:$0xff]
        %v2651 = vld [vmem:[%s2620 + $0x168] sm:$0xff]
        %v2652 = vld [vmem:[%s2620 + $0x170] sm:$0xff]
        %s2653 = scalar_lea.vmem %s1, 24
        %v2654 = vld [vmem:[%s2653] sm:$0xf]
        %v2656 = vsel %vm255, %v2621, 0
        %v2659 = vsel %vm255, %v2622, 0
        %v2662 = vsel %vm255, %v2623, 0
        %v2665 = vsel %vm255, %v2624, 0
        %v2668 = vsel %vm255, %v2625, 0
        %v2671 = vsel %vm255, %v2626, 0
        %v2674 = vsel %vm255, %v2627, 0
        %v2677 = vsel %vm255, %v2628, 0
        %v2680 = vsel %vm255, %v2629, 0
        %v2683 = vsel %vm255, %v2630, 0
        %v2686 = vsel %vm255, %v2631, 0
        %v2689 = vsel %vm255, %v2632, 0
        %v2692 = vsel %vm255, %v2633, 0
        %v2695 = vsel %vm255, %v2634, 0
        %v2698 = vsel %vm255, %v2635, 0
        %v2701 = vsel %vm255, %v2636, 0
        %v2704 = vsel %vm255, %v2637, 0
        %v2707 = vsel %vm255, %v2638, 0
        %v2710 = vsel %vm255, %v2639, 0
        %v2713 = vsel %vm255, %v2640, 0
        %v2716 = vsel %vm255, %v2641, 0
        %v2719 = vsel %vm255, %v2642, 0
        %v2722 = vsel %vm255, %v2643, 0
        %v2725 = vsel %vm255, %v2644, 0
        %v2728 = vsel %vm255, %v2645, 0
        %v2731 = vsel %vm255, %v2646, 0
        %v2734 = vsel %vm255, %v2647, 0
        %v2737 = vsel %vm255, %v2648, 0
        %v2740 = vsel %vm255, %v2649, 0
        %v2743 = vsel %vm255, %v2650, 0
        %v2746 = vsel %vm255, %v2651, 0
        %v2749 = vsel %vm255, %v2652, 0
        %v2752 = vsel %vm507, %v2654, 0
        %2754 = vmatprep.subr.mxu0 0.0
        %2755 = vmatpush1.msra.mxu0 0.0
        %2756 = vmatprep.subr.mxu0 0.0
        %2757 = vmatpush1.msra.mxu0 0.0
        %2758 = vmatprep.subr.mxu0 0.0
        %2759 = vmatpush1.msra.mxu0 0.0
        %2760 = vmatprep.subr.mxu0 0.0
        %2761 = vmatpush1.msra.mxu0 0.0
        %2762 = vmatprep.subr.mxu0 0.0
        %2763 = vmatpush1.msra.mxu0 0.0
        %2764 = vmatprep.subr.mxu0 0.0
        %2765 = vmatpush1.msra.mxu0 0.0
        %2766 = vmatprep.subr.mxu0 0.0
        %2767 = vmatpush1.msra.mxu0 0.0
        %2768 = vmatprep.subr.mxu0 0.0
        %2769 = vmatpush1.msra.mxu0 0.0
        %2770 = vmatprep.subr.mxu0 0.0
        %2771 = vmatpush1.msra.mxu0 0.0
        %2772 = vmatprep.subr.mxu0 0.0
        %2773 = vmatpush1.msra.mxu0 0.0
        %2774 = vmatprep.subr.mxu0 0.0
        %2775 = vmatpush1.msra.mxu0 0.0
        %2776 = vmatprep.subr.mxu0 0.0
        %2777 = vmatpush1.msra.mxu0 0.0
        %2778 = vmatprep.subr.mxu0 0.0
        %2779 = vmatpush1.msra.mxu0 0.0
        %2780 = vmatprep.subr.mxu0 0.0
        %2781 = vmatpush1.msra.mxu0 0.0
        %2782 = vmatprep.subr.mxu0 0.0
        %2783 = vmatpush1.msra.mxu0 0.0
        %2784 = vmatprep.subr.mxu0 0.0
        %2785 = vmatpush1.msra.mxu0 %v2752
        %2786 = vmatprep.subr.mxu0 0.0
        %2787 = vmatpush2.msra.mxu0 0.0
        %2788 = vmatprep.subr.mxu0 0.0
        %2789 = vmatpush2.msra.mxu0 0.0
        %2790 = vmatprep.subr.mxu0 0.0
        %2791 = vmatpush2.msra.mxu0 0.0
        %2792 = vmatprep.subr.mxu0 0.0
        %2793 = vmatpush2.msra.mxu0 0.0
        %2794 = vmatprep.subr.mxu0 0.0
        %2795 = vmatpush2.msra.mxu0 0.0
        %2796 = vmatprep.subr.mxu0 0.0
        %2797 = vmatpush2.msra.mxu0 0.0
        %2798 = vmatprep.subr.mxu0 0.0
        %2799 = vmatpush2.msra.mxu0 0.0
        %2800 = vmatprep.subr.mxu0 0.0
        %2801 = vmatpush2.msra.mxu0 0.0
        %2802 = vmatprep.subr.mxu0 0.0
        %2803 = vmatpush2.msra.mxu0 0.0
        %2804 = vmatprep.subr.mxu0 0.0
        %2805 = vmatpush2.msra.mxu0 0.0
        %2806 = vmatprep.subr.mxu0 0.0
        %2807 = vmatpush2.msra.mxu0 0.0
        %2808 = vmatprep.subr.mxu0 0.0
        %2809 = vmatpush2.msra.mxu0 0.0
        %2810 = vmatprep.subr.mxu0 0.0
        %2811 = vmatpush2.msra.mxu0 0.0
        %2812 = vmatprep.subr.mxu0 0.0
        %2813 = vmatpush2.msra.mxu0 0.0
        %2814 = vmatprep.subr.mxu0 0.0
        %2815 = vmatpush2.msra.mxu0 0.0
        %2816 = vmatprep.subr.mxu0 0.0
        %2817 = vmatpush2.msra.mxu0 0.0
        %2818 = vmatprep.mubr.f32.mxu0 0.0
        %2819 = vmatmul.mubr.f32.gmra.mxu0 %v2656
        %v2820 = vpop.f32.mrf.mxu0
        %v2821 = vadd.f32 0.0, %v2820
        %v2822 = vpop.f32.mrf.mxu0
        %2823 = vmatprep.mubr.f32.mxu0 0.0
        %2824 = vmatmul.mubr.f32.gmra.mxu0 %v2659
        %v2825 = vpop.f32.mrf.mxu0
        %v2826 = vadd.f32 0.0, %v2825
        %v2827 = vpop.f32.mrf.mxu0
        %2828 = vmatprep.mubr.f32.mxu0 0.0
        %2829 = vmatmul.mubr.f32.gmra.mxu0 %v2662
        %v2830 = vpop.f32.mrf.mxu0
        %v2831 = vadd.f32 0.0, %v2830
        %v2832 = vpop.f32.mrf.mxu0
        %2833 = vmatprep.mubr.f32.mxu0 0.0
        %2834 = vmatmul.mubr.f32.gmra.mxu0 %v2665
        %v2835 = vpop.f32.mrf.mxu0
        %v2836 = vadd.f32 0.0, %v2835
        %v2837 = vpop.f32.mrf.mxu0
        %2838 = vmatprep.mubr.f32.mxu0 0.0
        %2839 = vmatmul.mubr.f32.gmra.mxu0 %v2668
        %v2840 = vpop.f32.mrf.mxu0
        %v2841 = vadd.f32 0.0, %v2840
        %v2842 = vpop.f32.mrf.mxu0
        %2843 = vmatprep.mubr.f32.mxu0 0.0
        %2844 = vmatmul.mubr.f32.gmra.mxu0 %v2671
        %v2845 = vpop.f32.mrf.mxu0
        %v2846 = vadd.f32 0.0, %v2845
        %v2847 = vpop.f32.mrf.mxu0
        %2848 = vmatprep.mubr.f32.mxu0 0.0
        %2849 = vmatmul.mubr.f32.gmra.mxu0 %v2674
        %v2850 = vpop.f32.mrf.mxu0
        %v2851 = vadd.f32 0.0, %v2850
        %v2852 = vpop.f32.mrf.mxu0
        %2853 = vmatprep.mubr.f32.mxu0 0.0
        %2854 = vmatmul.mubr.f32.gmra.mxu0 %v2677
        %v2855 = vpop.f32.mrf.mxu0
        %v2856 = vadd.f32 0.0, %v2855
        %v2857 = vpop.f32.mrf.mxu0
        %2858 = vmatprep.mubr.f32.mxu0 0.0
        %2859 = vmatmul.mubr.f32.gmra.mxu0 %v2680
        %v2860 = vpop.f32.mrf.mxu0
        %v2861 = vadd.f32 0.0, %v2860
        %v2862 = vpop.f32.mrf.mxu0
        %2863 = vmatprep.mubr.f32.mxu0 0.0
        %2864 = vmatmul.mubr.f32.gmra.mxu0 %v2683
        %v2865 = vpop.f32.mrf.mxu0
        %v2866 = vadd.f32 0.0, %v2865
        %v2867 = vpop.f32.mrf.mxu0
        %2868 = vmatprep.mubr.f32.mxu0 0.0
        %2869 = vmatmul.mubr.f32.gmra.mxu0 %v2686
        %v2870 = vpop.f32.mrf.mxu0
        %v2871 = vadd.f32 0.0, %v2870
        %v2872 = vpop.f32.mrf.mxu0
        %2873 = vmatprep.mubr.f32.mxu0 0.0
        %2874 = vmatmul.mubr.f32.gmra.mxu0 %v2689
        %v2875 = vpop.f32.mrf.mxu0
        %v2876 = vadd.f32 0.0, %v2875
        %v2877 = vpop.f32.mrf.mxu0
        %2878 = vmatprep.mubr.f32.mxu0 0.0
        %2879 = vmatmul.mubr.f32.gmra.mxu0 %v2692
        %v2880 = vpop.f32.mrf.mxu0
        %v2881 = vadd.f32 0.0, %v2880
        %v2882 = vpop.f32.mrf.mxu0
        %2883 = vmatprep.mubr.f32.mxu0 0.0
        %2884 = vmatmul.mubr.f32.gmra.mxu0 %v2695
        %v2885 = vpop.f32.mrf.mxu0
        %v2886 = vadd.f32 0.0, %v2885
        %v2887 = vpop.f32.mrf.mxu0
        %2888 = vmatprep.mubr.f32.mxu0 0.0
        %2889 = vmatmul.mubr.f32.gmra.mxu0 %v2698
        %v2890 = vpop.f32.mrf.mxu0
        %v2891 = vadd.f32 0.0, %v2890
        %v2892 = vpop.f32.mrf.mxu0
        %2893 = vmatprep.mubr.f32.mxu0 0.0
        %2894 = vmatmul.mubr.f32.gmra.mxu0 %v2701
        %v2895 = vpop.f32.mrf.mxu0
        %v2896 = vadd.f32 0.0, %v2895
        %v2897 = vpop.f32.mrf.mxu0
        %2898 = vmatprep.mubr.f32.mxu0 0.0
        %2899 = vmatmul.mubr.f32.gmra.mxu0 %v2704
        %v2900 = vpop.f32.mrf.mxu0
        %v2901 = vadd.f32 0.0, %v2900
        %v2902 = vpop.f32.mrf.mxu0
        %2903 = vmatprep.mubr.f32.mxu0 0.0
        %2904 = vmatmul.mubr.f32.gmra.mxu0 %v2707
        %v2905 = vpop.f32.mrf.mxu0
        %v2906 = vadd.f32 0.0, %v2905
        %v2907 = vpop.f32.mrf.mxu0
        %2908 = vmatprep.mubr.f32.mxu0 0.0
        %2909 = vmatmul.mubr.f32.gmra.mxu0 %v2710
        %v2910 = vpop.f32.mrf.mxu0
        %v2911 = vadd.f32 0.0, %v2910
        %v2912 = vpop.f32.mrf.mxu0
        %2913 = vmatprep.mubr.f32.mxu0 0.0
        %2914 = vmatmul.mubr.f32.gmra.mxu0 %v2713
        %v2915 = vpop.f32.mrf.mxu0
        %v2916 = vadd.f32 0.0, %v2915
        %v2917 = vpop.f32.mrf.mxu0
        %2918 = vmatprep.mubr.f32.mxu0 0.0
        %2919 = vmatmul.mubr.f32.gmra.mxu0 %v2716
        %v2920 = vpop.f32.mrf.mxu0
        %v2921 = vadd.f32 0.0, %v2920
        %v2922 = vpop.f32.mrf.mxu0
        %2923 = vmatprep.mubr.f32.mxu0 0.0
        %2924 = vmatmul.mubr.f32.gmra.mxu0 %v2719
        %v2925 = vpop.f32.mrf.mxu0
        %v2926 = vadd.f32 0.0, %v2925
        %v2927 = vpop.f32.mrf.mxu0
        %2928 = vmatprep.mubr.f32.mxu0 0.0
        %2929 = vmatmul.mubr.f32.gmra.mxu0 %v2722
        %v2930 = vpop.f32.mrf.mxu0
        %v2931 = vadd.f32 0.0, %v2930
        %v2932 = vpop.f32.mrf.mxu0
        %2933 = vmatprep.mubr.f32.mxu0 0.0
        %2934 = vmatmul.mubr.f32.gmra.mxu0 %v2725
        %v2935 = vpop.f32.mrf.mxu0
        %v2936 = vadd.f32 0.0, %v2935
        %v2937 = vpop.f32.mrf.mxu0
        %2938 = vmatprep.mubr.f32.mxu0 0.0
        %2939 = vmatmul.mubr.f32.gmra.mxu0 %v2728
        %v2940 = vpop.f32.mrf.mxu0
        %v2941 = vadd.f32 0.0, %v2940
        %v2942 = vpop.f32.mrf.mxu0
        %2943 = vmatprep.mubr.f32.mxu0 0.0
        %2944 = vmatmul.mubr.f32.gmra.mxu0 %v2731
        %v2945 = vpop.f32.mrf.mxu0
        %v2946 = vadd.f32 0.0, %v2945
        %v2947 = vpop.f32.mrf.mxu0
        %2948 = vmatprep.mubr.f32.mxu0 0.0
        %2949 = vmatmul.mubr.f32.gmra.mxu0 %v2734
        %v2950 = vpop.f32.mrf.mxu0
        %v2951 = vadd.f32 0.0, %v2950
        %v2952 = vpop.f32.mrf.mxu0
        %2953 = vmatprep.mubr.f32.mxu0 0.0
        %2954 = vmatmul.mubr.f32.gmra.mxu0 %v2737
        %v2955 = vpop.f32.mrf.mxu0
        %v2956 = vadd.f32 0.0, %v2955
        %v2957 = vpop.f32.mrf.mxu0
        %2958 = vmatprep.mubr.f32.mxu0 0.0
        %2959 = vmatmul.mubr.f32.gmra.mxu0 %v2740
        %v2960 = vpop.f32.mrf.mxu0
        %v2961 = vadd.f32 0.0, %v2960
        %v2962 = vpop.f32.mrf.mxu0
        %2963 = vmatprep.mubr.f32.mxu0 0.0
        %2964 = vmatmul.mubr.f32.gmra.mxu0 %v2743
        %v2965 = vpop.f32.mrf.mxu0
        %v2966 = vadd.f32 0.0, %v2965
        %v2967 = vpop.f32.mrf.mxu0
        %2968 = vmatprep.mubr.f32.mxu0 0.0
        %2969 = vmatmul.mubr.f32.gmra.mxu0 %v2746
        %v2970 = vpop.f32.mrf.mxu0
        %v2971 = vadd.f32 0.0, %v2970
        %v2972 = vpop.f32.mrf.mxu0
        %2973 = vmatprep.mubr.f32.mxu0 0.0
        %2974 = vmatmul.mubr.f32.gmra.mxu0 %v2749
        %v2975 = vpop.f32.mrf.mxu0
        %v2976 = vadd.f32 0.0, %v2975
        %v2977 = vpop.f32.mrf.mxu0
        %2978 = vdwg.mxu0
        %v2979 = vadd.f32 %v2588, %v2821
        %v2980 = vadd.f32 %v2589, %v2826
        %v2981 = vadd.f32 %v2590, %v2831
        %v2982 = vadd.f32 %v2591, %v2836
        %v2983 = vadd.f32 %v2592, %v2841
        %v2984 = vadd.f32 %v2593, %v2846
        %v2985 = vadd.f32 %v2594, %v2851
        %v2986 = vadd.f32 %v2595, %v2856
        %v2987 = vadd.f32 %v2596, %v2861
        %v2988 = vadd.f32 %v2597, %v2866
        %v2989 = vadd.f32 %v2598, %v2871
        %v2990 = vadd.f32 %v2599, %v2876
        %v2991 = vadd.f32 %v2600, %v2881
        %v2992 = vadd.f32 %v2601, %v2886
        %v2993 = vadd.f32 %v2602, %v2891
        %v2994 = vadd.f32 %v2603, %v2896
        %v2995 = vadd.f32 %v2604, %v2901
        %v2996 = vadd.f32 %v2605, %v2906
        %v2997 = vadd.f32 %v2606, %v2911
        %v2998 = vadd.f32 %v2607, %v2916
        %v2999 = vadd.f32 %v2608, %v2921
        %v3000 = vadd.f32 %v2609, %v2926
        %v3001 = vadd.f32 %v2610, %v2931
        %v3002 = vadd.f32 %v2611, %v2936
        %v3003 = vadd.f32 %v2612, %v2941
        %v3004 = vadd.f32 %v2613, %v2946
        %v3005 = vadd.f32 %v2614, %v2951
        %v3006 = vadd.f32 %v2615, %v2956
        %v3007 = vadd.f32 %v2616, %v2961
        %v3008 = vadd.f32 %v2617, %v2966
        %v3009 = vadd.f32 %v2618, %v2971
        %v3010 = vadd.f32 %v2619, %v2976
        %v3011 = vld [vmem:[%s2620 + $0x1] sm:$0xff]
        %v3012 = vld [vmem:[%s2620 + $0x9] sm:$0xff]
        %v3013 = vld [vmem:[%s2620 + $0x19] sm:$0xff]
        %v3014 = vld [vmem:[%s2620 + $0x21] sm:$0xff]
        %v3015 = vld [vmem:[%s2620 + $0x31] sm:$0xff]
        %v3016 = vld [vmem:[%s2620 + $0x39] sm:$0xff]
        %v3017 = vld [vmem:[%s2620 + $0x49] sm:$0xff]
        %v3018 = vld [vmem:[%s2620 + $0x51] sm:$0xff]
        %v3019 = vld [vmem:[%s2620 + $0x61] sm:$0xff]
        %v3020 = vld [vmem:[%s2620 + $0x69] sm:$0xff]
        %v3021 = vld [vmem:[%s2620 + $0x79] sm:$0xff]
        %v3022 = vld [vmem:[%s2620 + $0x81] sm:$0xff]
        %v3023 = vld [vmem:[%s2620 + $0x91] sm:$0xff]
        %v3024 = vld [vmem:[%s2620 + $0x99] sm:$0xff]
        %v3025 = vld [vmem:[%s2620 + $0xa9] sm:$0xff]
        %v3026 = vld [vmem:[%s2620 + $0xb1] sm:$0xff]
        %v3027 = vld [vmem:[%s2620 + $0xc1] sm:$0xff]
        %v3028 = vld [vmem:[%s2620 + $0xc9] sm:$0xff]
        %v3029 = vld [vmem:[%s2620 + $0xd9] sm:$0xff]
        %v3030 = vld [vmem:[%s2620 + $0xe1] sm:$0xff]
        %v3031 = vld [vmem:[%s2620 + $0xf1] sm:$0xff]
        %v3032 = vld [vmem:[%s2620 + $0xf9] sm:$0xff]
        %v3033 = vld [vmem:[%s2620 + $0x109] sm:$0xff]
        %v3034 = vld [vmem:[%s2620 + $0x111] sm:$0xff]
        %v3035 = vld [vmem:[%s2620 + $0x121] sm:$0xff]
        %v3036 = vld [vmem:[%s2620 + $0x129] sm:$0xff]
        %v3037 = vld [vmem:[%s2620 + $0x139] sm:$0xff]
        %v3038 = vld [vmem:[%s2620 + $0x141] sm:$0xff]
        %v3039 = vld [vmem:[%s2620 + $0x151] sm:$0xff]
        %v3040 = vld [vmem:[%s2620 + $0x159] sm:$0xff]
        %v3041 = vld [vmem:[%s2620 + $0x169] sm:$0xff]
        %v3042 = vld [vmem:[%s2620 + $0x171] sm:$0xff]
        %s3043 = scalar_lea.vmem %s1, 28
        %v3044 = vld [vmem:[%s3043] sm:$0xf]
        %v3046 = vsel %vm255, %v3011, 0
        %v3049 = vsel %vm255, %v3012, 0
        %v3052 = vsel %vm255, %v3013, 0
        %v3055 = vsel %vm255, %v3014, 0
        %v3058 = vsel %vm255, %v3015, 0
        %v3061 = vsel %vm255, %v3016, 0
        %v3064 = vsel %vm255, %v3017, 0
        %v3067 = vsel %vm255, %v3018, 0
        %v3070 = vsel %vm255, %v3019, 0
        %v3073 = vsel %vm255, %v3020, 0
        %v3076 = vsel %vm255, %v3021, 0
        %v3079 = vsel %vm255, %v3022, 0
        %v3082 = vsel %vm255, %v3023, 0
        %v3085 = vsel %vm255, %v3024, 0
        %v3088 = vsel %vm255, %v3025, 0
        %v3091 = vsel %vm255, %v3026, 0
        %v3094 = vsel %vm255, %v3027, 0
        %v3097 = vsel %vm255, %v3028, 0
        %v3100 = vsel %vm255, %v3029, 0
        %v3103 = vsel %vm255, %v3030, 0
        %v3106 = vsel %vm255, %v3031, 0
        %v3109 = vsel %vm255, %v3032, 0
        %v3112 = vsel %vm255, %v3033, 0
        %v3115 = vsel %vm255, %v3034, 0
        %v3118 = vsel %vm255, %v3035, 0
        %v3121 = vsel %vm255, %v3036, 0
        %v3124 = vsel %vm255, %v3037, 0
        %v3127 = vsel %vm255, %v3038, 0
        %v3130 = vsel %vm255, %v3039, 0
        %v3133 = vsel %vm255, %v3040, 0
        %v3136 = vsel %vm255, %v3041, 0
        %v3139 = vsel %vm255, %v3042, 0
        %v3142 = vsel %vm507, %v3044, 0
        %3144 = vmatprep.subr.mxu0 0.0
        %3145 = vmatpush1.msra.mxu0 0.0
        %3146 = vmatprep.subr.mxu0 0.0
        %3147 = vmatpush1.msra.mxu0 0.0
        %3148 = vmatprep.subr.mxu0 0.0
        %3149 = vmatpush1.msra.mxu0 0.0
        %3150 = vmatprep.subr.mxu0 0.0
        %3151 = vmatpush1.msra.mxu0 0.0
        %3152 = vmatprep.subr.mxu0 0.0
        %3153 = vmatpush1.msra.mxu0 0.0
        %3154 = vmatprep.subr.mxu0 0.0
        %3155 = vmatpush1.msra.mxu0 0.0
        %3156 = vmatprep.subr.mxu0 0.0
        %3157 = vmatpush1.msra.mxu0 0.0
        %3158 = vmatprep.subr.mxu0 0.0
        %3159 = vmatpush1.msra.mxu0 0.0
        %3160 = vmatprep.subr.mxu0 0.0
        %3161 = vmatpush1.msra.mxu0 0.0
        %3162 = vmatprep.subr.mxu0 0.0
        %3163 = vmatpush1.msra.mxu0 0.0
        %3164 = vmatprep.subr.mxu0 0.0
        %3165 = vmatpush1.msra.mxu0 0.0
        %3166 = vmatprep.subr.mxu0 0.0
        %3167 = vmatpush1.msra.mxu0 0.0
        %3168 = vmatprep.subr.mxu0 0.0
        %3169 = vmatpush1.msra.mxu0 0.0
        %3170 = vmatprep.subr.mxu0 0.0
        %3171 = vmatpush1.msra.mxu0 0.0
        %3172 = vmatprep.subr.mxu0 0.0
        %3173 = vmatpush1.msra.mxu0 0.0
        %3174 = vmatprep.subr.mxu0 0.0
        %3175 = vmatpush1.msra.mxu0 %v3142
        %3176 = vmatprep.subr.mxu0 0.0
        %3177 = vmatpush2.msra.mxu0 0.0
        %3178 = vmatprep.subr.mxu0 0.0
        %3179 = vmatpush2.msra.mxu0 0.0
        %3180 = vmatprep.subr.mxu0 0.0
        %3181 = vmatpush2.msra.mxu0 0.0
        %3182 = vmatprep.subr.mxu0 0.0
        %3183 = vmatpush2.msra.mxu0 0.0
        %3184 = vmatprep.subr.mxu0 0.0
        %3185 = vmatpush2.msra.mxu0 0.0
        %3186 = vmatprep.subr.mxu0 0.0
        %3187 = vmatpush2.msra.mxu0 0.0
        %3188 = vmatprep.subr.mxu0 0.0
        %3189 = vmatpush2.msra.mxu0 0.0
        %3190 = vmatprep.subr.mxu0 0.0
        %3191 = vmatpush2.msra.mxu0 0.0
        %3192 = vmatprep.subr.mxu0 0.0
        %3193 = vmatpush2.msra.mxu0 0.0
        %3194 = vmatprep.subr.mxu0 0.0
        %3195 = vmatpush2.msra.mxu0 0.0
        %3196 = vmatprep.subr.mxu0 0.0
        %3197 = vmatpush2.msra.mxu0 0.0
        %3198 = vmatprep.subr.mxu0 0.0
        %3199 = vmatpush2.msra.mxu0 0.0
        %3200 = vmatprep.subr.mxu0 0.0
        %3201 = vmatpush2.msra.mxu0 0.0
        %3202 = vmatprep.subr.mxu0 0.0
        %3203 = vmatpush2.msra.mxu0 0.0
        %3204 = vmatprep.subr.mxu0 0.0
        %3205 = vmatpush2.msra.mxu0 0.0
        %3206 = vmatprep.subr.mxu0 0.0
        %3207 = vmatpush2.msra.mxu0 0.0
        %3208 = vmatprep.mubr.f32.mxu0 0.0
        %3209 = vmatmul.mubr.f32.gmra.mxu0 %v3046
        %v3210 = vpop.f32.mrf.mxu0
        %v3211 = vadd.f32 0.0, %v3210
        %v3212 = vpop.f32.mrf.mxu0
        %3213 = vmatprep.mubr.f32.mxu0 0.0
        %3214 = vmatmul.mubr.f32.gmra.mxu0 %v3049
        %v3215 = vpop.f32.mrf.mxu0
        %v3216 = vadd.f32 0.0, %v3215
        %v3217 = vpop.f32.mrf.mxu0
        %3218 = vmatprep.mubr.f32.mxu0 0.0
        %3219 = vmatmul.mubr.f32.gmra.mxu0 %v3052
        %v3220 = vpop.f32.mrf.mxu0
        %v3221 = vadd.f32 0.0, %v3220
        %v3222 = vpop.f32.mrf.mxu0
        %3223 = vmatprep.mubr.f32.mxu0 0.0
        %3224 = vmatmul.mubr.f32.gmra.mxu0 %v3055
        %v3225 = vpop.f32.mrf.mxu0
        %v3226 = vadd.f32 0.0, %v3225
        %v3227 = vpop.f32.mrf.mxu0
        %3228 = vmatprep.mubr.f32.mxu0 0.0
        %3229 = vmatmul.mubr.f32.gmra.mxu0 %v3058
        %v3230 = vpop.f32.mrf.mxu0
        %v3231 = vadd.f32 0.0, %v3230
        %v3232 = vpop.f32.mrf.mxu0
        %3233 = vmatprep.mubr.f32.mxu0 0.0
        %3234 = vmatmul.mubr.f32.gmra.mxu0 %v3061
        %v3235 = vpop.f32.mrf.mxu0
        %v3236 = vadd.f32 0.0, %v3235
        %v3237 = vpop.f32.mrf.mxu0
        %3238 = vmatprep.mubr.f32.mxu0 0.0
        %3239 = vmatmul.mubr.f32.gmra.mxu0 %v3064
        %v3240 = vpop.f32.mrf.mxu0
        %v3241 = vadd.f32 0.0, %v3240
        %v3242 = vpop.f32.mrf.mxu0
        %3243 = vmatprep.mubr.f32.mxu0 0.0
        %3244 = vmatmul.mubr.f32.gmra.mxu0 %v3067
        %v3245 = vpop.f32.mrf.mxu0
        %v3246 = vadd.f32 0.0, %v3245
        %v3247 = vpop.f32.mrf.mxu0
        %3248 = vmatprep.mubr.f32.mxu0 0.0
        %3249 = vmatmul.mubr.f32.gmra.mxu0 %v3070
        %v3250 = vpop.f32.mrf.mxu0
        %v3251 = vadd.f32 0.0, %v3250
        %v3252 = vpop.f32.mrf.mxu0
        %3253 = vmatprep.mubr.f32.mxu0 0.0
        %3254 = vmatmul.mubr.f32.gmra.mxu0 %v3073
        %v3255 = vpop.f32.mrf.mxu0
        %v3256 = vadd.f32 0.0, %v3255
        %v3257 = vpop.f32.mrf.mxu0
        %3258 = vmatprep.mubr.f32.mxu0 0.0
        %3259 = vmatmul.mubr.f32.gmra.mxu0 %v3076
        %v3260 = vpop.f32.mrf.mxu0
        %v3261 = vadd.f32 0.0, %v3260
        %v3262 = vpop.f32.mrf.mxu0
        %3263 = vmatprep.mubr.f32.mxu0 0.0
        %3264 = vmatmul.mubr.f32.gmra.mxu0 %v3079
        %v3265 = vpop.f32.mrf.mxu0
        %v3266 = vadd.f32 0.0, %v3265
        %v3267 = vpop.f32.mrf.mxu0
        %3268 = vmatprep.mubr.f32.mxu0 0.0
        %3269 = vmatmul.mubr.f32.gmra.mxu0 %v3082
        %v3270 = vpop.f32.mrf.mxu0
        %v3271 = vadd.f32 0.0, %v3270
        %v3272 = vpop.f32.mrf.mxu0
        %3273 = vmatprep.mubr.f32.mxu0 0.0
        %3274 = vmatmul.mubr.f32.gmra.mxu0 %v3085
        %v3275 = vpop.f32.mrf.mxu0
        %v3276 = vadd.f32 0.0, %v3275
        %v3277 = vpop.f32.mrf.mxu0
        %3278 = vmatprep.mubr.f32.mxu0 0.0
        %3279 = vmatmul.mubr.f32.gmra.mxu0 %v3088
        %v3280 = vpop.f32.mrf.mxu0
        %v3281 = vadd.f32 0.0, %v3280
        %v3282 = vpop.f32.mrf.mxu0
        %3283 = vmatprep.mubr.f32.mxu0 0.0
        %3284 = vmatmul.mubr.f32.gmra.mxu0 %v3091
        %v3285 = vpop.f32.mrf.mxu0
        %v3286 = vadd.f32 0.0, %v3285
        %v3287 = vpop.f32.mrf.mxu0
        %3288 = vmatprep.mubr.f32.mxu0 0.0
        %3289 = vmatmul.mubr.f32.gmra.mxu0 %v3094
        %v3290 = vpop.f32.mrf.mxu0
        %v3291 = vadd.f32 0.0, %v3290
        %v3292 = vpop.f32.mrf.mxu0
        %3293 = vmatprep.mubr.f32.mxu0 0.0
        %3294 = vmatmul.mubr.f32.gmra.mxu0 %v3097
        %v3295 = vpop.f32.mrf.mxu0
        %v3296 = vadd.f32 0.0, %v3295
        %v3297 = vpop.f32.mrf.mxu0
        %3298 = vmatprep.mubr.f32.mxu0 0.0
        %3299 = vmatmul.mubr.f32.gmra.mxu0 %v3100
        %v3300 = vpop.f32.mrf.mxu0
        %v3301 = vadd.f32 0.0, %v3300
        %v3302 = vpop.f32.mrf.mxu0
        %3303 = vmatprep.mubr.f32.mxu0 0.0
        %3304 = vmatmul.mubr.f32.gmra.mxu0 %v3103
        %v3305 = vpop.f32.mrf.mxu0
        %v3306 = vadd.f32 0.0, %v3305
        %v3307 = vpop.f32.mrf.mxu0
        %3308 = vmatprep.mubr.f32.mxu0 0.0
        %3309 = vmatmul.mubr.f32.gmra.mxu0 %v3106
        %v3310 = vpop.f32.mrf.mxu0
        %v3311 = vadd.f32 0.0, %v3310
        %v3312 = vpop.f32.mrf.mxu0
        %3313 = vmatprep.mubr.f32.mxu0 0.0
        %3314 = vmatmul.mubr.f32.gmra.mxu0 %v3109
        %v3315 = vpop.f32.mrf.mxu0
        %v3316 = vadd.f32 0.0, %v3315
        %v3317 = vpop.f32.mrf.mxu0
        %3318 = vmatprep.mubr.f32.mxu0 0.0
        %3319 = vmatmul.mubr.f32.gmra.mxu0 %v3112
        %v3320 = vpop.f32.mrf.mxu0
        %v3321 = vadd.f32 0.0, %v3320
        %v3322 = vpop.f32.mrf.mxu0
        %3323 = vmatprep.mubr.f32.mxu0 0.0
        %3324 = vmatmul.mubr.f32.gmra.mxu0 %v3115
        %v3325 = vpop.f32.mrf.mxu0
        %v3326 = vadd.f32 0.0, %v3325
        %v3327 = vpop.f32.mrf.mxu0
        %3328 = vmatprep.mubr.f32.mxu0 0.0
        %3329 = vmatmul.mubr.f32.gmra.mxu0 %v3118
        %v3330 = vpop.f32.mrf.mxu0
        %v3331 = vadd.f32 0.0, %v3330
        %v3332 = vpop.f32.mrf.mxu0
        %3333 = vmatprep.mubr.f32.mxu0 0.0
        %3334 = vmatmul.mubr.f32.gmra.mxu0 %v3121
        %v3335 = vpop.f32.mrf.mxu0
        %v3336 = vadd.f32 0.0, %v3335
        %v3337 = vpop.f32.mrf.mxu0
        %3338 = vmatprep.mubr.f32.mxu0 0.0
        %3339 = vmatmul.mubr.f32.gmra.mxu0 %v3124
        %v3340 = vpop.f32.mrf.mxu0
        %v3341 = vadd.f32 0.0, %v3340
        %v3342 = vpop.f32.mrf.mxu0
        %3343 = vmatprep.mubr.f32.mxu0 0.0
        %3344 = vmatmul.mubr.f32.gmra.mxu0 %v3127
        %v3345 = vpop.f32.mrf.mxu0
        %v3346 = vadd.f32 0.0, %v3345
        %v3347 = vpop.f32.mrf.mxu0
        %3348 = vmatprep.mubr.f32.mxu0 0.0
        %3349 = vmatmul.mubr.f32.gmra.mxu0 %v3130
        %v3350 = vpop.f32.mrf.mxu0
        %v3351 = vadd.f32 0.0, %v3350
        %v3352 = vpop.f32.mrf.mxu0
        %3353 = vmatprep.mubr.f32.mxu0 0.0
        %3354 = vmatmul.mubr.f32.gmra.mxu0 %v3133
        %v3355 = vpop.f32.mrf.mxu0
        %v3356 = vadd.f32 0.0, %v3355
        %v3357 = vpop.f32.mrf.mxu0
        %3358 = vmatprep.mubr.f32.mxu0 0.0
        %3359 = vmatmul.mubr.f32.gmra.mxu0 %v3136
        %v3360 = vpop.f32.mrf.mxu0
        %v3361 = vadd.f32 0.0, %v3360
        %v3362 = vpop.f32.mrf.mxu0
        %3363 = vmatprep.mubr.f32.mxu0 0.0
        %3364 = vmatmul.mubr.f32.gmra.mxu0 %v3139
        %v3365 = vpop.f32.mrf.mxu0
        %v3366 = vadd.f32 0.0, %v3365
        %v3367 = vpop.f32.mrf.mxu0
        %3368 = vdwg.mxu0
        %v3369 = vadd.f32 %v2979, %v3211
        %v3370 = vadd.f32 %v2980, %v3216
        %v3371 = vadd.f32 %v2981, %v3221
        %v3372 = vadd.f32 %v2982, %v3226
        %v3373 = vadd.f32 %v2983, %v3231
        %v3374 = vadd.f32 %v2984, %v3236
        %v3375 = vadd.f32 %v2985, %v3241
        %v3376 = vadd.f32 %v2986, %v3246
        %v3377 = vadd.f32 %v2987, %v3251
        %v3378 = vadd.f32 %v2988, %v3256
        %v3379 = vadd.f32 %v2989, %v3261
        %v3380 = vadd.f32 %v2990, %v3266
        %v3381 = vadd.f32 %v2991, %v3271
        %v3382 = vadd.f32 %v2992, %v3276
        %v3383 = vadd.f32 %v2993, %v3281
        %v3384 = vadd.f32 %v2994, %v3286
        %v3385 = vadd.f32 %v2995, %v3291
        %v3386 = vadd.f32 %v2996, %v3296
        %v3387 = vadd.f32 %v2997, %v3301
        %v3388 = vadd.f32 %v2998, %v3306
        %v3389 = vadd.f32 %v2999, %v3311
        %v3390 = vadd.f32 %v3000, %v3316
        %v3391 = vadd.f32 %v3001, %v3321
        %v3392 = vadd.f32 %v3002, %v3326
        %v3393 = vadd.f32 %v3003, %v3331
        %v3394 = vadd.f32 %v3004, %v3336
        %v3395 = vadd.f32 %v3005, %v3341
        %v3396 = vadd.f32 %v3006, %v3346
        %v3397 = vadd.f32 %v3007, %v3351
        %v3398 = vadd.f32 %v3008, %v3356
        %v3399 = vadd.f32 %v3009, %v3361
        %v3400 = vadd.f32 %v3010, %v3366
        %v3401 = vld [vmem:[%s2620 + $0x2] sm:$0xff]
        %v3402 = vld [vmem:[%s2620 + $0xa] sm:$0xff]
        %v3403 = vld [vmem:[%s2620 + $0x1a] sm:$0xff]
        %v3404 = vld [vmem:[%s2620 + $0x22] sm:$0xff]
        %v3405 = vld [vmem:[%s2620 + $0x32] sm:$0xff]
        %v3406 = vld [vmem:[%s2620 + $0x3a] sm:$0xff]
        %v3407 = vld [vmem:[%s2620 + $0x4a] sm:$0xff]
        %v3408 = vld [vmem:[%s2620 + $0x52] sm:$0xff]
        %v3409 = vld [vmem:[%s2620 + $0x62] sm:$0xff]
        %v3410 = vld [vmem:[%s2620 + $0x6a] sm:$0xff]
        %v3411 = vld [vmem:[%s2620 + $0x7a] sm:$0xff]
        %v3412 = vld [vmem:[%s2620 + $0x82] sm:$0xff]
        %v3413 = vld [vmem:[%s2620 + $0x92] sm:$0xff]
        %v3414 = vld [vmem:[%s2620 + $0x9a] sm:$0xff]
        %v3415 = vld [vmem:[%s2620 + $0xaa] sm:$0xff]
        %v3416 = vld [vmem:[%s2620 + $0xb2] sm:$0xff]
        %v3417 = vld [vmem:[%s2620 + $0xc2] sm:$0xff]
        %v3418 = vld [vmem:[%s2620 + $0xca] sm:$0xff]
        %v3419 = vld [vmem:[%s2620 + $0xda] sm:$0xff]
        %v3420 = vld [vmem:[%s2620 + $0xe2] sm:$0xff]
        %v3421 = vld [vmem:[%s2620 + $0xf2] sm:$0xff]
        %v3422 = vld [vmem:[%s2620 + $0xfa] sm:$0xff]
        %v3423 = vld [vmem:[%s2620 + $0x10a] sm:$0xff]
        %v3424 = vld [vmem:[%s2620 + $0x112] sm:$0xff]
        %v3425 = vld [vmem:[%s2620 + $0x122] sm:$0xff]
        %v3426 = vld [vmem:[%s2620 + $0x12a] sm:$0xff]
        %v3427 = vld [vmem:[%s2620 + $0x13a] sm:$0xff]
        %v3428 = vld [vmem:[%s2620 + $0x142] sm:$0xff]
        %v3429 = vld [vmem:[%s2620 + $0x152] sm:$0xff]
        %v3430 = vld [vmem:[%s2620 + $0x15a] sm:$0xff]
        %v3431 = vld [vmem:[%s2620 + $0x16a] sm:$0xff]
        %v3432 = vld [vmem:[%s2620 + $0x172] sm:$0xff]
        %s3433 = scalar_lea.vmem %s1, 32
        %v3434 = vld [vmem:[%s3433] sm:$0xf]
        %v3436 = vsel %vm255, %v3401, 0
        %v3439 = vsel %vm255, %v3402, 0
        %v3442 = vsel %vm255, %v3403, 0
        %v3445 = vsel %vm255, %v3404, 0
        %v3448 = vsel %vm255, %v3405, 0
        %v3451 = vsel %vm255, %v3406, 0
        %v3454 = vsel %vm255, %v3407, 0
        %v3457 = vsel %vm255, %v3408, 0
        %v3460 = vsel %vm255, %v3409, 0
        %v3463 = vsel %vm255, %v3410, 0
        %v3466 = vsel %vm255, %v3411, 0
        %v3469 = vsel %vm255, %v3412, 0
        %v3472 = vsel %vm255, %v3413, 0
        %v3475 = vsel %vm255, %v3414, 0
        %v3478 = vsel %vm255, %v3415, 0
        %v3481 = vsel %vm255, %v3416, 0
        %v3484 = vsel %vm255, %v3417, 0
        %v3487 = vsel %vm255, %v3418, 0
        %v3490 = vsel %vm255, %v3419, 0
        %v3493 = vsel %vm255, %v3420, 0
        %v3496 = vsel %vm255, %v3421, 0
        %v3499 = vsel %vm255, %v3422, 0
        %v3502 = vsel %vm255, %v3423, 0
        %v3505 = vsel %vm255, %v3424, 0
        %v3508 = vsel %vm255, %v3425, 0
        %v3511 = vsel %vm255, %v3426, 0
        %v3514 = vsel %vm255, %v3427, 0
        %v3517 = vsel %vm255, %v3428, 0
        %v3520 = vsel %vm255, %v3429, 0
        %v3523 = vsel %vm255, %v3430, 0
        %v3526 = vsel %vm255, %v3431, 0
        %v3529 = vsel %vm255, %v3432, 0
        %v3532 = vsel %vm507, %v3434, 0
        %3534 = vmatprep.subr.mxu0 0.0
        %3535 = vmatpush1.msra.mxu0 0.0
        %3536 = vmatprep.subr.mxu0 0.0
        %3537 = vmatpush1.msra.mxu0 0.0
        %3538 = vmatprep.subr.mxu0 0.0
        %3539 = vmatpush1.msra.mxu0 0.0
        %3540 = vmatprep.subr.mxu0 0.0
        %3541 = vmatpush1.msra.mxu0 0.0
        %3542 = vmatprep.subr.mxu0 0.0
        %3543 = vmatpush1.msra.mxu0 0.0
        %3544 = vmatprep.subr.mxu0 0.0
        %3545 = vmatpush1.msra.mxu0 0.0
        %3546 = vmatprep.subr.mxu0 0.0
        %3547 = vmatpush1.msra.mxu0 0.0
        %3548 = vmatprep.subr.mxu0 0.0
        %3549 = vmatpush1.msra.mxu0 0.0
        %3550 = vmatprep.subr.mxu0 0.0
        %3551 = vmatpush1.msra.mxu0 0.0
        %3552 = vmatprep.subr.mxu0 0.0
        %3553 = vmatpush1.msra.mxu0 0.0
        %3554 = vmatprep.subr.mxu0 0.0
        %3555 = vmatpush1.msra.mxu0 0.0
        %3556 = vmatprep.subr.mxu0 0.0
        %3557 = vmatpush1.msra.mxu0 0.0
        %3558 = vmatprep.subr.mxu0 0.0
        %3559 = vmatpush1.msra.mxu0 0.0
        %3560 = vmatprep.subr.mxu0 0.0
        %3561 = vmatpush1.msra.mxu0 0.0
        %3562 = vmatprep.subr.mxu0 0.0
        %3563 = vmatpush1.msra.mxu0 0.0
        %3564 = vmatprep.subr.mxu0 0.0
        %3565 = vmatpush1.msra.mxu0 %v3532
        %3566 = vmatprep.subr.mxu0 0.0
        %3567 = vmatpush2.msra.mxu0 0.0
        %3568 = vmatprep.subr.mxu0 0.0
        %3569 = vmatpush2.msra.mxu0 0.0
        %3570 = vmatprep.subr.mxu0 0.0
        %3571 = vmatpush2.msra.mxu0 0.0
        %3572 = vmatprep.subr.mxu0 0.0
        %3573 = vmatpush2.msra.mxu0 0.0
        %3574 = vmatprep.subr.mxu0 0.0
        %3575 = vmatpush2.msra.mxu0 0.0
        %3576 = vmatprep.subr.mxu0 0.0
        %3577 = vmatpush2.msra.mxu0 0.0
        %3578 = vmatprep.subr.mxu0 0.0
        %3579 = vmatpush2.msra.mxu0 0.0
        %3580 = vmatprep.subr.mxu0 0.0
        %3581 = vmatpush2.msra.mxu0 0.0
        %3582 = vmatprep.subr.mxu0 0.0
        %3583 = vmatpush2.msra.mxu0 0.0
        %3584 = vmatprep.subr.mxu0 0.0
        %3585 = vmatpush2.msra.mxu0 0.0
        %3586 = vmatprep.subr.mxu0 0.0
        %3587 = vmatpush2.msra.mxu0 0.0
        %3588 = vmatprep.subr.mxu0 0.0
        %3589 = vmatpush2.msra.mxu0 0.0
        %3590 = vmatprep.subr.mxu0 0.0
        %3591 = vmatpush2.msra.mxu0 0.0
        %3592 = vmatprep.subr.mxu0 0.0
        %3593 = vmatpush2.msra.mxu0 0.0
        %3594 = vmatprep.subr.mxu0 0.0
        %3595 = vmatpush2.msra.mxu0 0.0
        %3596 = vmatprep.subr.mxu0 0.0
        %3597 = vmatpush2.msra.mxu0 0.0
        %3598 = vmatprep.mubr.f32.mxu0 0.0
        %3599 = vmatmul.mubr.f32.gmra.mxu0 %v3436
        %v3600 = vpop.f32.mrf.mxu0
        %v3601 = vadd.f32 0.0, %v3600
        %v3602 = vpop.f32.mrf.mxu0
        %3603 = vmatprep.mubr.f32.mxu0 0.0
        %3604 = vmatmul.mubr.f32.gmra.mxu0 %v3439
        %v3605 = vpop.f32.mrf.mxu0
        %v3606 = vadd.f32 0.0, %v3605
        %v3607 = vpop.f32.mrf.mxu0
        %3608 = vmatprep.mubr.f32.mxu0 0.0
        %3609 = vmatmul.mubr.f32.gmra.mxu0 %v3442
        %v3610 = vpop.f32.mrf.mxu0
        %v3611 = vadd.f32 0.0, %v3610
        %v3612 = vpop.f32.mrf.mxu0
        %3613 = vmatprep.mubr.f32.mxu0 0.0
        %3614 = vmatmul.mubr.f32.gmra.mxu0 %v3445
        %v3615 = vpop.f32.mrf.mxu0
        %v3616 = vadd.f32 0.0, %v3615
        %v3617 = vpop.f32.mrf.mxu0
        %3618 = vmatprep.mubr.f32.mxu0 0.0
        %3619 = vmatmul.mubr.f32.gmra.mxu0 %v3448
        %v3620 = vpop.f32.mrf.mxu0
        %v3621 = vadd.f32 0.0, %v3620
        %v3622 = vpop.f32.mrf.mxu0
        %3623 = vmatprep.mubr.f32.mxu0 0.0
        %3624 = vmatmul.mubr.f32.gmra.mxu0 %v3451
        %v3625 = vpop.f32.mrf.mxu0
        %v3626 = vadd.f32 0.0, %v3625
        %v3627 = vpop.f32.mrf.mxu0
        %3628 = vmatprep.mubr.f32.mxu0 0.0
        %3629 = vmatmul.mubr.f32.gmra.mxu0 %v3454
        %v3630 = vpop.f32.mrf.mxu0
        %v3631 = vadd.f32 0.0, %v3630
        %v3632 = vpop.f32.mrf.mxu0
        %3633 = vmatprep.mubr.f32.mxu0 0.0
        %3634 = vmatmul.mubr.f32.gmra.mxu0 %v3457
        %v3635 = vpop.f32.mrf.mxu0
        %v3636 = vadd.f32 0.0, %v3635
        %v3637 = vpop.f32.mrf.mxu0
        %3638 = vmatprep.mubr.f32.mxu0 0.0
        %3639 = vmatmul.mubr.f32.gmra.mxu0 %v3460
        %v3640 = vpop.f32.mrf.mxu0
        %v3641 = vadd.f32 0.0, %v3640
        %v3642 = vpop.f32.mrf.mxu0
        %3643 = vmatprep.mubr.f32.mxu0 0.0
        %3644 = vmatmul.mubr.f32.gmra.mxu0 %v3463
        %v3645 = vpop.f32.mrf.mxu0
        %v3646 = vadd.f32 0.0, %v3645
        %v3647 = vpop.f32.mrf.mxu0
        %3648 = vmatprep.mubr.f32.mxu0 0.0
        %3649 = vmatmul.mubr.f32.gmra.mxu0 %v3466
        %v3650 = vpop.f32.mrf.mxu0
        %v3651 = vadd.f32 0.0, %v3650
        %v3652 = vpop.f32.mrf.mxu0
        %3653 = vmatprep.mubr.f32.mxu0 0.0
        %3654 = vmatmul.mubr.f32.gmra.mxu0 %v3469
        %v3655 = vpop.f32.mrf.mxu0
        %v3656 = vadd.f32 0.0, %v3655
        %v3657 = vpop.f32.mrf.mxu0
        %3658 = vmatprep.mubr.f32.mxu0 0.0
        %3659 = vmatmul.mubr.f32.gmra.mxu0 %v3472
        %v3660 = vpop.f32.mrf.mxu0
        %v3661 = vadd.f32 0.0, %v3660
        %v3662 = vpop.f32.mrf.mxu0
        %3663 = vmatprep.mubr.f32.mxu0 0.0
        %3664 = vmatmul.mubr.f32.gmra.mxu0 %v3475
        %v3665 = vpop.f32.mrf.mxu0
        %v3666 = vadd.f32 0.0, %v3665
        %v3667 = vpop.f32.mrf.mxu0
        %3668 = vmatprep.mubr.f32.mxu0 0.0
        %3669 = vmatmul.mubr.f32.gmra.mxu0 %v3478
        %v3670 = vpop.f32.mrf.mxu0
        %v3671 = vadd.f32 0.0, %v3670
        %v3672 = vpop.f32.mrf.mxu0
        %3673 = vmatprep.mubr.f32.mxu0 0.0
        %3674 = vmatmul.mubr.f32.gmra.mxu0 %v3481
        %v3675 = vpop.f32.mrf.mxu0
        %v3676 = vadd.f32 0.0, %v3675
        %v3677 = vpop.f32.mrf.mxu0
        %3678 = vmatprep.mubr.f32.mxu0 0.0
        %3679 = vmatmul.mubr.f32.gmra.mxu0 %v3484
        %v3680 = vpop.f32.mrf.mxu0
        %v3681 = vadd.f32 0.0, %v3680
        %v3682 = vpop.f32.mrf.mxu0
        %3683 = vmatprep.mubr.f32.mxu0 0.0
        %3684 = vmatmul.mubr.f32.gmra.mxu0 %v3487
        %v3685 = vpop.f32.mrf.mxu0
        %v3686 = vadd.f32 0.0, %v3685
        %v3687 = vpop.f32.mrf.mxu0
        %3688 = vmatprep.mubr.f32.mxu0 0.0
        %3689 = vmatmul.mubr.f32.gmra.mxu0 %v3490
        %v3690 = vpop.f32.mrf.mxu0
        %v3691 = vadd.f32 0.0, %v3690
        %v3692 = vpop.f32.mrf.mxu0
        %3693 = vmatprep.mubr.f32.mxu0 0.0
        %3694 = vmatmul.mubr.f32.gmra.mxu0 %v3493
        %v3695 = vpop.f32.mrf.mxu0
        %v3696 = vadd.f32 0.0, %v3695
        %v3697 = vpop.f32.mrf.mxu0
        %3698 = vmatprep.mubr.f32.mxu0 0.0
        %3699 = vmatmul.mubr.f32.gmra.mxu0 %v3496
        %v3700 = vpop.f32.mrf.mxu0
        %v3701 = vadd.f32 0.0, %v3700
        %v3702 = vpop.f32.mrf.mxu0
        %3703 = vmatprep.mubr.f32.mxu0 0.0
        %3704 = vmatmul.mubr.f32.gmra.mxu0 %v3499
        %v3705 = vpop.f32.mrf.mxu0
        %v3706 = vadd.f32 0.0, %v3705
        %v3707 = vpop.f32.mrf.mxu0
        %3708 = vmatprep.mubr.f32.mxu0 0.0
        %3709 = vmatmul.mubr.f32.gmra.mxu0 %v3502
        %v3710 = vpop.f32.mrf.mxu0
        %v3711 = vadd.f32 0.0, %v3710
        %v3712 = vpop.f32.mrf.mxu0
        %3713 = vmatprep.mubr.f32.mxu0 0.0
        %3714 = vmatmul.mubr.f32.gmra.mxu0 %v3505
        %v3715 = vpop.f32.mrf.mxu0
        %v3716 = vadd.f32 0.0, %v3715
        %v3717 = vpop.f32.mrf.mxu0
        %3718 = vmatprep.mubr.f32.mxu0 0.0
        %3719 = vmatmul.mubr.f32.gmra.mxu0 %v3508
        %v3720 = vpop.f32.mrf.mxu0
        %v3721 = vadd.f32 0.0, %v3720
        %v3722 = vpop.f32.mrf.mxu0
        %3723 = vmatprep.mubr.f32.mxu0 0.0
        %3724 = vmatmul.mubr.f32.gmra.mxu0 %v3511
        %v3725 = vpop.f32.mrf.mxu0
        %v3726 = vadd.f32 0.0, %v3725
        %v3727 = vpop.f32.mrf.mxu0
        %3728 = vmatprep.mubr.f32.mxu0 0.0
        %3729 = vmatmul.mubr.f32.gmra.mxu0 %v3514
        %v3730 = vpop.f32.mrf.mxu0
        %v3731 = vadd.f32 0.0, %v3730
        %v3732 = vpop.f32.mrf.mxu0
        %3733 = vmatprep.mubr.f32.mxu0 0.0
        %3734 = vmatmul.mubr.f32.gmra.mxu0 %v3517
        %v3735 = vpop.f32.mrf.mxu0
        %v3736 = vadd.f32 0.0, %v3735
        %v3737 = vpop.f32.mrf.mxu0
        %3738 = vmatprep.mubr.f32.mxu0 0.0
        %3739 = vmatmul.mubr.f32.gmra.mxu0 %v3520
        %v3740 = vpop.f32.mrf.mxu0
        %v3741 = vadd.f32 0.0, %v3740
        %v3742 = vpop.f32.mrf.mxu0
        %3743 = vmatprep.mubr.f32.mxu0 0.0
        %3744 = vmatmul.mubr.f32.gmra.mxu0 %v3523
        %v3745 = vpop.f32.mrf.mxu0
        %v3746 = vadd.f32 0.0, %v3745
        %v3747 = vpop.f32.mrf.mxu0
        %3748 = vmatprep.mubr.f32.mxu0 0.0
        %3749 = vmatmul.mubr.f32.gmra.mxu0 %v3526
        %v3750 = vpop.f32.mrf.mxu0
        %v3751 = vadd.f32 0.0, %v3750
        %v3752 = vpop.f32.mrf.mxu0
        %3753 = vmatprep.mubr.f32.mxu0 0.0
        %3754 = vmatmul.mubr.f32.gmra.mxu0 %v3529
        %v3755 = vpop.f32.mrf.mxu0
        %v3756 = vadd.f32 0.0, %v3755
        %v3757 = vpop.f32.mrf.mxu0
        %3758 = vdwg.mxu0
        %v3759 = vadd.f32 %v3369, %v3601
        %v3760 = vadd.f32 %v3370, %v3606
        %v3761 = vadd.f32 %v3371, %v3611
        %v3762 = vadd.f32 %v3372, %v3616
        %v3763 = vadd.f32 %v3373, %v3621
        %v3764 = vadd.f32 %v3374, %v3626
        %v3765 = vadd.f32 %v3375, %v3631
        %v3766 = vadd.f32 %v3376, %v3636
        %v3767 = vadd.f32 %v3377, %v3641
        %v3768 = vadd.f32 %v3378, %v3646
        %v3769 = vadd.f32 %v3379, %v3651
        %v3770 = vadd.f32 %v3380, %v3656
        %v3771 = vadd.f32 %v3381, %v3661
        %v3772 = vadd.f32 %v3382, %v3666
        %v3773 = vadd.f32 %v3383, %v3671
        %v3774 = vadd.f32 %v3384, %v3676
        %v3775 = vadd.f32 %v3385, %v3681
        %v3776 = vadd.f32 %v3386, %v3686
        %v3777 = vadd.f32 %v3387, %v3691
        %v3778 = vadd.f32 %v3388, %v3696
        %v3779 = vadd.f32 %v3389, %v3701
        %v3780 = vadd.f32 %v3390, %v3706
        %v3781 = vadd.f32 %v3391, %v3711
        %v3782 = vadd.f32 %v3392, %v3716
        %v3783 = vadd.f32 %v3393, %v3721
        %v3784 = vadd.f32 %v3394, %v3726
        %v3785 = vadd.f32 %v3395, %v3731
        %v3786 = vadd.f32 %v3396, %v3736
        %v3787 = vadd.f32 %v3397, %v3741
        %v3788 = vadd.f32 %v3398, %v3746
        %v3789 = vadd.f32 %v3399, %v3751
        %v3790 = vadd.f32 %v3400, %v3756
        %v3791 = vld [vmem:[%s2] sm:$0x1]
        %v3793 = vlaneseq
        %v3794 = vshrl.u32 %v3793, 7
        %v3795 = vsub.s32 0, %v3794
        %v3796 = vrot.slane %v3791, %v3795
        %v3798 = vadd.f32 %v3759, %v3796
        %v3799 = vadd.f32 %v3760, %v3796
        %v3800 = vadd.f32 %v3761, %v3796
        %v3801 = vadd.f32 %v3762, %v3796
        %v3802 = vadd.f32 %v3763, %v3796
        %v3803 = vadd.f32 %v3764, %v3796
        %v3804 = vadd.f32 %v3765, %v3796
        %v3805 = vadd.f32 %v3766, %v3796
        %v3806 = vadd.f32 %v3767, %v3796
        %v3807 = vadd.f32 %v3768, %v3796
        %v3808 = vadd.f32 %v3769, %v3796
        %v3809 = vadd.f32 %v3770, %v3796
        %v3810 = vadd.f32 %v3771, %v3796
        %v3811 = vadd.f32 %v3772, %v3796
        %v3812 = vadd.f32 %v3773, %v3796
        %v3813 = vadd.f32 %v3774, %v3796
        %v3814 = vadd.f32 %v3775, %v3796
        %v3815 = vadd.f32 %v3776, %v3796
        %v3816 = vadd.f32 %v3777, %v3796
        %v3817 = vadd.f32 %v3778, %v3796
        %v3818 = vadd.f32 %v3779, %v3796
        %v3819 = vadd.f32 %v3780, %v3796
        %v3820 = vadd.f32 %v3781, %v3796
        %v3821 = vadd.f32 %v3782, %v3796
        %v3822 = vadd.f32 %v3783, %v3796
        %v3823 = vadd.f32 %v3784, %v3796
        %v3824 = vadd.f32 %v3785, %v3796
        %v3825 = vadd.f32 %v3786, %v3796
        %v3826 = vadd.f32 %v3787, %v3796
        %v3827 = vadd.f32 %v3788, %v3796
        %v3828 = vadd.f32 %v3789, %v3796
        %v3829 = vadd.f32 %v3790, %v3796
        %v3830 = vmax.f32 %v3798, 0.0
        %v3831 = vmax.f32 %v3799, 0.0
        %v3832 = vmax.f32 %v3800, 0.0
        %v3833 = vmax.f32 %v3801, 0.0
        %v3834 = vmax.f32 %v3802, 0.0
        %v3835 = vmax.f32 %v3803, 0.0
        %v3836 = vmax.f32 %v3804, 0.0
        %v3837 = vmax.f32 %v3805, 0.0
        %v3838 = vmax.f32 %v3806, 0.0
        %v3839 = vmax.f32 %v3807, 0.0
        %v3840 = vmax.f32 %v3808, 0.0
        %v3841 = vmax.f32 %v3809, 0.0
        %v3842 = vmax.f32 %v3810, 0.0
        %v3843 = vmax.f32 %v3811, 0.0
        %v3844 = vmax.f32 %v3812, 0.0
        %v3845 = vmax.f32 %v3813, 0.0
        %v3846 = vmax.f32 %v3814, 0.0
        %v3847 = vmax.f32 %v3815, 0.0
        %v3848 = vmax.f32 %v3816, 0.0
        %v3849 = vmax.f32 %v3817, 0.0
        %v3850 = vmax.f32 %v3818, 0.0
        %v3851 = vmax.f32 %v3819, 0.0
        %v3852 = vmax.f32 %v3820, 0.0
        %v3853 = vmax.f32 %v3821, 0.0
        %v3854 = vmax.f32 %v3822, 0.0
        %v3855 = vmax.f32 %v3823, 0.0
        %v3856 = vmax.f32 %v3824, 0.0
        %v3857 = vmax.f32 %v3825, 0.0
        %v3858 = vmax.f32 %v3826, 0.0
        %v3859 = vmax.f32 %v3827, 0.0
        %v3860 = vmax.f32 %v3828, 0.0
        %v3861 = vmax.f32 %v3829, 0.0
        %vm3862 = vcmask 64512
        %3863 = vst.msk [vmem:[#allocation3] sm:$0xff] %vm3862, 0.0
        %3864 = vst.msk [vmem:[#allocation3 + $0x8] sm:$0xff] %vm3862, 0.0
        %vm3865 = vcmask 58368
        %3866 = vst.msk [vmem:[#allocation3 + $0x10] sm:$0x3] %vm3865, 0.0
        %3867 = vst.msk [vmem:[#allocation3 + $0x18] sm:$0xff] %vm3862, 0.0
        %3868 = vst.msk [vmem:[#allocation3 + $0x20] sm:$0xff] %vm3862, 0.0
        %3869 = vst.msk [vmem:[#allocation3 + $0x28] sm:$0x3] %vm3865, 0.0
        %3870 = vst.msk [vmem:[#allocation3 + $0x30] sm:$0xff] %vm3862, 0.0
        %3871 = vst.msk [vmem:[#allocation3 + $0x38] sm:$0xff] %vm3862, 0.0
        %3872 = vst.msk [vmem:[#allocation3 + $0x40] sm:$0x3] %vm3865, 0.0
        %3873 = vst.msk [vmem:[#allocation3 + $0x48] sm:$0xff] %vm3862, 0.0
        %3874 = vst.msk [vmem:[#allocation3 + $0x50] sm:$0xff] %vm3862, 0.0
        %3875 = vst.msk [vmem:[#allocation3 + $0x58] sm:$0x3] %vm3865, 0.0
        %3876 = vst.msk [vmem:[#allocation3 + $0x60] sm:$0xff] %vm3862, 0.0
        %3877 = vst.msk [vmem:[#allocation3 + $0x68] sm:$0xff] %vm3862, 0.0
        %3878 = vst.msk [vmem:[#allocation3 + $0x70] sm:$0x3] %vm3865, 0.0
        %3879 = vst.msk [vmem:[#allocation3 + $0x78] sm:$0xff] %vm3862, 0.0
        %3880 = vst.msk [vmem:[#allocation3 + $0x80] sm:$0xff] %vm3862, 0.0
        %3881 = vst.msk [vmem:[#allocation3 + $0x88] sm:$0x3] %vm3865, 0.0
        %3882 = vst.msk [vmem:[#allocation3 + $0x90] sm:$0xff] %vm3862, 0.0
        %3883 = vst.msk [vmem:[#allocation3 + $0x98] sm:$0xff] %vm3862, 0.0
        %3884 = vst.msk [vmem:[#allocation3 + $0xa0] sm:$0x3] %vm3865, 0.0
        %3885 = vst.msk [vmem:[#allocation3 + $0xa8] sm:$0xff] %vm3862, 0.0
        %3886 = vst.msk [vmem:[#allocation3 + $0xb0] sm:$0xff] %vm3862, 0.0
        %3887 = vst.msk [vmem:[#allocation3 + $0xb8] sm:$0x3] %vm3865, 0.0
        %3888 = vst.msk [vmem:[#allocation3 + $0xc0] sm:$0xff] %vm3862, 0.0
        %3889 = vst.msk [vmem:[#allocation3 + $0xc8] sm:$0xff] %vm3862, 0.0
        %3890 = vst.msk [vmem:[#allocation3 + $0xd0] sm:$0x3] %vm3865, 0.0
        %3891 = vst.msk [vmem:[#allocation3 + $0xd8] sm:$0xff] %vm3862, 0.0
        %3892 = vst.msk [vmem:[#allocation3 + $0xe0] sm:$0xff] %vm3862, 0.0
        %3893 = vst.msk [vmem:[#allocation3 + $0xe8] sm:$0x3] %vm3865, 0.0
        %3894 = vst.msk [vmem:[#allocation3 + $0xf0] sm:$0xff] %vm3862, 0.0
        %3895 = vst.msk [vmem:[#allocation3 + $0xf8] sm:$0xff] %vm3862, 0.0
        %3896 = vst.msk [vmem:[#allocation3 + $0x100] sm:$0x3] %vm3865, 0.0
        %3897 = vst.msk [vmem:[#allocation3 + $0x108] sm:$0xff] %vm3862, 0.0
        %3898 = vst.msk [vmem:[#allocation3 + $0x110] sm:$0xff] %vm3862, 0.0
        %3899 = vst.msk [vmem:[#allocation3 + $0x118] sm:$0x3] %vm3865, 0.0
        %3900 = vst.msk [vmem:[#allocation3 + $0x120] sm:$0xff] %vm3862, 0.0
        %3901 = vst.msk [vmem:[#allocation3 + $0x128] sm:$0xff] %vm3862, 0.0
        %3902 = vst.msk [vmem:[#allocation3 + $0x130] sm:$0x3] %vm3865, 0.0
        %3903 = vst.msk [vmem:[#allocation3 + $0x138] sm:$0xff] %vm3862, 0.0
        %3904 = vst.msk [vmem:[#allocation3 + $0x140] sm:$0xff] %vm3862, 0.0
        %3905 = vst.msk [vmem:[#allocation3 + $0x148] sm:$0x3] %vm3865, 0.0
        %3906 = vst.msk [vmem:[#allocation3 + $0x150] sm:$0xff] %vm3862, 0.0
        %3907 = vst.msk [vmem:[#allocation3 + $0x158] sm:$0xff] %vm3862, 0.0
        %3908 = vst.msk [vmem:[#allocation3 + $0x160] sm:$0x3] %vm3865, 0.0
        %3909 = vst.msk [vmem:[#allocation3 + $0x168] sm:$0xff] %vm3862, 0.0
        %3910 = vst.msk [vmem:[#allocation3 + $0x170] sm:$0xff] %vm3862, 0.0
        %3911 = vst.msk [vmem:[#allocation3 + $0x178] sm:$0x3] %vm3865, 0.0
        %3912 = vst.msk [vmem:[#allocation3 + $0x180] sm:$0xff] %vm3862, 0.0
        %3913 = vst.msk [vmem:[#allocation3 + $0x188] sm:$0xff] %vm3862, 0.0
        %3914 = vst.msk [vmem:[#allocation3 + $0x190] sm:$0x3] %vm3865, 0.0
        %3915 = vst.msk [vmem:[#allocation3 + $0x198] sm:$0xff] %vm3862, 0.0
        %3916 = vst.msk [vmem:[#allocation3 + $0x1a0] sm:$0xff] %vm3862, 0.0
        %3917 = vst.msk [vmem:[#allocation3 + $0x1a8] sm:$0x3] %vm3865, 0.0
        %s3918 = scalar_lea.vmem [#allocation3], 24
        %3919 = vst.msk [vmem:[%s3918 + $0x1] sm:$0xff] %vm3862, %v3830
        %3920 = vst.msk [vmem:[%s3918 + $0x9] sm:$0xff] %vm3862, %v3831
        %3921 = vst.msk [vmem:[%s3918 + $0x19] sm:$0xff] %vm3862, %v3832
        %3922 = vst.msk [vmem:[%s3918 + $0x21] sm:$0xff] %vm3862, %v3833
        %3923 = vst.msk [vmem:[%s3918 + $0x31] sm:$0xff] %vm3862, %v3834
        %3924 = vst.msk [vmem:[%s3918 + $0x39] sm:$0xff] %vm3862, %v3835
        %3925 = vst.msk [vmem:[%s3918 + $0x49] sm:$0xff] %vm3862, %v3836
        %3926 = vst.msk [vmem:[%s3918 + $0x51] sm:$0xff] %vm3862, %v3837
        %3927 = vst.msk [vmem:[%s3918 + $0x61] sm:$0xff] %vm3862, %v3838
        %3928 = vst.msk [vmem:[%s3918 + $0x69] sm:$0xff] %vm3862, %v3839
        %3929 = vst.msk [vmem:[%s3918 + $0x79] sm:$0xff] %vm3862, %v3840
        %3930 = vst.msk [vmem:[%s3918 + $0x81] sm:$0xff] %vm3862, %v3841
        %3931 = vst.msk [vmem:[%s3918 + $0x91] sm:$0xff] %vm3862, %v3842
        %3932 = vst.msk [vmem:[%s3918 + $0x99] sm:$0xff] %vm3862, %v3843
        %3933 = vst.msk [vmem:[%s3918 + $0xa9] sm:$0xff] %vm3862, %v3844
        %3934 = vst.msk [vmem:[%s3918 + $0xb1] sm:$0xff] %vm3862, %v3845
        %3935 = vst.msk [vmem:[%s3918 + $0xc1] sm:$0xff] %vm3862, %v3846
        %3936 = vst.msk [vmem:[%s3918 + $0xc9] sm:$0xff] %vm3862, %v3847
        %3937 = vst.msk [vmem:[%s3918 + $0xd9] sm:$0xff] %vm3862, %v3848
        %3938 = vst.msk [vmem:[%s3918 + $0xe1] sm:$0xff] %vm3862, %v3849
        %3939 = vst.msk [vmem:[%s3918 + $0xf1] sm:$0xff] %vm3862, %v3850
        %3940 = vst.msk [vmem:[%s3918 + $0xf9] sm:$0xff] %vm3862, %v3851
        %3941 = vst.msk [vmem:[%s3918 + $0x109] sm:$0xff] %vm3862, %v3852
        %3942 = vst.msk [vmem:[%s3918 + $0x111] sm:$0xff] %vm3862, %v3853
        %3943 = vst.msk [vmem:[%s3918 + $0x121] sm:$0xff] %vm3862, %v3854
        %3944 = vst.msk [vmem:[%s3918 + $0x129] sm:$0xff] %vm3862, %v3855
        %3945 = vst.msk [vmem:[%s3918 + $0x139] sm:$0xff] %vm3862, %v3856
        %3946 = vst.msk [vmem:[%s3918 + $0x141] sm:$0xff] %vm3862, %v3857
        %3947 = vst.msk [vmem:[%s3918 + $0x151] sm:$0xff] %vm3862, %v3858
        %3948 = vst.msk [vmem:[%s3918 + $0x159] sm:$0xff] %vm3862, %v3859
        %3949 = vst.msk [vmem:[%s3918 + $0x169] sm:$0xff] %vm3862, %v3860
        %3950 = vst.msk [vmem:[%s3918 + $0x171] sm:$0xff] %vm3862, %v3861
        %v3951 = vld [vmem:[#allocation3] sm:$0xff]
        %v3952 = vld [vmem:[#allocation3 + $0x8] sm:$0xff]
        %v3953 = vld [vmem:[#allocation3 + $0x18] sm:$0xff]
        %v3954 = vld [vmem:[#allocation3 + $0x20] sm:$0xff]
        %v3955 = vld [vmem:[#allocation3 + $0x30] sm:$0xff]
        %v3956 = vld [vmem:[#allocation3 + $0x38] sm:$0xff]
        %v3957 = vld [vmem:[#allocation3 + $0x48] sm:$0xff]
        %v3958 = vld [vmem:[#allocation3 + $0x50] sm:$0xff]
        %v3959 = vld [vmem:[#allocation3 + $0x60] sm:$0xff]
        %v3960 = vld [vmem:[#allocation3 + $0x68] sm:$0xff]
        %v3961 = vld [vmem:[#allocation3 + $0x78] sm:$0xff]
        %v3962 = vld [vmem:[#allocation3 + $0x80] sm:$0xff]
        %v3963 = vld [vmem:[#allocation3 + $0x90] sm:$0xff]
        %v3964 = vld [vmem:[#allocation3 + $0x98] sm:$0xff]
        %v3965 = vld [vmem:[#allocation3 + $0xa8] sm:$0xff]
        %v3966 = vld [vmem:[#allocation3 + $0xb0] sm:$0xff]
        %v3967 = vld [vmem:[#allocation3 + $0xc0] sm:$0xff]
        %v3968 = vld [vmem:[#allocation3 + $0xc8] sm:$0xff]
        %v3969 = vld [vmem:[#allocation3 + $0xd8] sm:$0xff]
        %v3970 = vld [vmem:[#allocation3 + $0xe0] sm:$0xff]
        %v3971 = vld [vmem:[#allocation3 + $0xf0] sm:$0xff]
        %v3972 = vld [vmem:[#allocation3 + $0xf8] sm:$0xff]
        %v3973 = vld [vmem:[#allocation3 + $0x108] sm:$0xff]
        %v3974 = vld [vmem:[#allocation3 + $0x110] sm:$0xff]
        %v3975 = vld [vmem:[#allocation3 + $0x120] sm:$0xff]
        %v3976 = vld [vmem:[#allocation3 + $0x128] sm:$0xff]
        %v3977 = vld [vmem:[#allocation3 + $0x138] sm:$0xff]
        %v3978 = vld [vmem:[#allocation3 + $0x140] sm:$0xff]
        %v3979 = vld [vmem:[#allocation3 + $0x150] sm:$0xff]
        %v3980 = vld [vmem:[#allocation3 + $0x158] sm:$0xff]
        %v3981 = vld [vmem:[#allocation3 + $0x168] sm:$0xff]
        %v3982 = vld [vmem:[#allocation3 + $0x170] sm:$0xff]
        %v3983 = vld [vmem:[%s3] sm:$0xff]
        %v3984 = vld [vmem:[#allocation3 + $0x1] sm:$0xff]
        %v3985 = vld [vmem:[#allocation3 + $0x9] sm:$0xff]
        %v3986 = vld [vmem:[#allocation3 + $0x19] sm:$0xff]
        %v3987 = vld [vmem:[#allocation3 + $0x21] sm:$0xff]
        %v3988 = vld [vmem:[#allocation3 + $0x31] sm:$0xff]
        %v3989 = vld [vmem:[#allocation3 + $0x39] sm:$0xff]
        %v3990 = vld [vmem:[#allocation3 + $0x49] sm:$0xff]
        %v3991 = vld [vmem:[#allocation3 + $0x51] sm:$0xff]
        %v3992 = vld [vmem:[#allocation3 + $0x61] sm:$0xff]
        %v3993 = vld [vmem:[#allocation3 + $0x69] sm:$0xff]
        %v3994 = vld [vmem:[#allocation3 + $0x79] sm:$0xff]
        %v3995 = vld [vmem:[#allocation3 + $0x81] sm:$0xff]
        %v3996 = vld [vmem:[#allocation3 + $0x91] sm:$0xff]
        %v3997 = vld [vmem:[#allocation3 + $0x99] sm:$0xff]
        %v3998 = vld [vmem:[#allocation3 + $0xa9] sm:$0xff]
        %v3999 = vld [vmem:[#allocation3 + $0xb1] sm:$0xff]
        %v4000 = vld [vmem:[#allocation3 + $0xc1] sm:$0xff]
        %v4001 = vld [vmem:[#allocation3 + $0xc9] sm:$0xff]
        %v4002 = vld [vmem:[#allocation3 + $0xd9] sm:$0xff]
        %v4003 = vld [vmem:[#allocation3 + $0xe1] sm:$0xff]
        %v4004 = vld [vmem:[#allocation3 + $0xf1] sm:$0xff]
        %v4005 = vld [vmem:[#allocation3 + $0xf9] sm:$0xff]
        %v4006 = vld [vmem:[#allocation3 + $0x109] sm:$0xff]
        %v4007 = vld [vmem:[#allocation3 + $0x111] sm:$0xff]
        %v4008 = vld [vmem:[#allocation3 + $0x121] sm:$0xff]
        %v4009 = vld [vmem:[#allocation3 + $0x129] sm:$0xff]
        %v4010 = vld [vmem:[#allocation3 + $0x139] sm:$0xff]
        %v4011 = vld [vmem:[#allocation3 + $0x141] sm:$0xff]
        %v4012 = vld [vmem:[#allocation3 + $0x151] sm:$0xff]
        %v4013 = vld [vmem:[#allocation3 + $0x159] sm:$0xff]
        %v4014 = vld [vmem:[#allocation3 + $0x169] sm:$0xff]
        %v4015 = vld [vmem:[#allocation3 + $0x171] sm:$0xff]
        %s4016 = scalar_lea.vmem %s3, 8
        %v4017 = vld [vmem:[%s4016] sm:$0xff]
        %v4019 = vsel %vm3862, %v3984, 0
        %v4022 = vsel %vm3862, %v3985, 0
        %v4025 = vsel %vm3862, %v3986, 0
        %v4028 = vsel %vm3862, %v3987, 0
        %v4031 = vsel %vm3862, %v3988, 0
        %v4034 = vsel %vm3862, %v3989, 0
        %v4037 = vsel %vm3862, %v3990, 0
        %v4040 = vsel %vm3862, %v3991, 0
        %v4043 = vsel %vm3862, %v3992, 0
        %v4046 = vsel %vm3862, %v3993, 0
        %v4049 = vsel %vm3862, %v3994, 0
        %v4052 = vsel %vm3862, %v3995, 0
        %v4055 = vsel %vm3862, %v3996, 0
        %v4058 = vsel %vm3862, %v3997, 0
        %v4061 = vsel %vm3862, %v3998, 0
        %v4064 = vsel %vm3862, %v3999, 0
        %v4067 = vsel %vm3862, %v4000, 0
        %v4070 = vsel %vm3862, %v4001, 0
        %v4073 = vsel %vm3862, %v4002, 0
        %v4076 = vsel %vm3862, %v4003, 0
        %v4079 = vsel %vm3862, %v4004, 0
        %v4082 = vsel %vm3862, %v4005, 0
        %v4085 = vsel %vm3862, %v4006, 0
        %v4088 = vsel %vm3862, %v4007, 0
        %v4091 = vsel %vm3862, %v4008, 0
        %v4094 = vsel %vm3862, %v4009, 0
        %v4097 = vsel %vm3862, %v4010, 0
        %v4100 = vsel %vm3862, %v4011, 0
        %v4103 = vsel %vm3862, %v4012, 0
        %v4106 = vsel %vm3862, %v4013, 0
        %v4109 = vsel %vm3862, %v4014, 0
        %v4112 = vsel %vm3862, %v4015, 0
        %4114 = vmatprep.subr.mxu0 0.0
        %4115 = vmatpush1.msra.mxu0 0.0
        %4116 = vmatprep.subr.mxu0 0.0
        %4117 = vmatpush1.msra.mxu0 0.0
        %4118 = vmatprep.subr.mxu0 0.0
        %4119 = vmatpush1.msra.mxu0 0.0
        %4120 = vmatprep.subr.mxu0 0.0
        %4121 = vmatpush1.msra.mxu0 0.0
        %4122 = vmatprep.subr.mxu0 0.0
        %4123 = vmatpush1.msra.mxu0 0.0
        %4124 = vmatprep.subr.mxu0 0.0
        %4125 = vmatpush1.msra.mxu0 0.0
        %4126 = vmatprep.subr.mxu0 0.0
        %4127 = vmatpush1.msra.mxu0 0.0
        %4128 = vmatprep.subr.mxu0 0.0
        %4129 = vmatpush1.msra.mxu0 0.0
        %4130 = vmatprep.subr.mxu0 0.0
        %4131 = vmatpush1.msra.mxu0 0.0
        %4132 = vmatprep.subr.mxu0 0.0
        %4133 = vmatpush1.msra.mxu0 0.0
        %4134 = vmatprep.subr.mxu0 0.0
        %4135 = vmatpush1.msra.mxu0 0.0
        %4136 = vmatprep.subr.mxu0 0.0
        %4137 = vmatpush1.msra.mxu0 0.0
        %4138 = vmatprep.subr.mxu0 0.0
        %4139 = vmatpush1.msra.mxu0 0.0
        %4140 = vmatprep.subr.mxu0 0.0
        %4141 = vmatpush1.msra.mxu0 0.0
        %4142 = vmatprep.subr.mxu0 0.0
        %4143 = vmatpush1.msra.mxu0 0.0
        %4144 = vmatprep.subr.mxu0 0.0
        %4145 = vmatpush1.msra.mxu0 %v4017
        %4146 = vmatprep.subr.mxu0 0.0
        %4147 = vmatpush2.msra.mxu0 0.0
        %4148 = vmatprep.subr.mxu0 0.0
        %4149 = vmatpush2.msra.mxu0 0.0
        %4150 = vmatprep.subr.mxu0 0.0
        %4151 = vmatpush2.msra.mxu0 0.0
        %4152 = vmatprep.subr.mxu0 0.0
        %4153 = vmatpush2.msra.mxu0 0.0
        %4154 = vmatprep.subr.mxu0 0.0
        %4155 = vmatpush2.msra.mxu0 0.0
        %4156 = vmatprep.subr.mxu0 0.0
        %4157 = vmatpush2.msra.mxu0 0.0
        %4158 = vmatprep.subr.mxu0 0.0
        %4159 = vmatpush2.msra.mxu0 0.0
        %4160 = vmatprep.subr.mxu0 0.0
        %4161 = vmatpush2.msra.mxu0 0.0
        %4162 = vmatprep.subr.mxu0 0.0
        %4163 = vmatpush2.msra.mxu0 0.0
        %4164 = vmatprep.subr.mxu0 0.0
        %4165 = vmatpush2.msra.mxu0 0.0
        %4166 = vmatprep.subr.mxu0 0.0
        %4167 = vmatpush2.msra.mxu0 0.0
        %4168 = vmatprep.subr.mxu0 0.0
        %4169 = vmatpush2.msra.mxu0 0.0
        %4170 = vmatprep.subr.mxu0 0.0
        %4171 = vmatpush2.msra.mxu0 0.0
        %4172 = vmatprep.subr.mxu0 0.0
        %4173 = vmatpush2.msra.mxu0 0.0
        %4174 = vmatprep.subr.mxu0 0.0
        %4175 = vmatpush2.msra.mxu0 0.0
        %4176 = vmatprep.subr.mxu0 0.0
        %4177 = vmatpush2.msra.mxu0 0.0
        %4178 = vmatprep.mubr.f32.mxu0 0.0
        %4179 = vmatmul.mubr.f32.gmra.mxu0 %v4019
        %v4180 = vpop.f32.mrf.mxu0
        %v4181 = vadd.f32 0.0, %v4180
        %v4182 = vpop.f32.mrf.mxu0
        %4183 = vmatprep.mubr.f32.mxu0 0.0
        %4184 = vmatmul.mubr.f32.gmra.mxu0 %v4022
        %v4185 = vpop.f32.mrf.mxu0
        %v4186 = vadd.f32 0.0, %v4185
        %v4187 = vpop.f32.mrf.mxu0
        %4188 = vmatprep.mubr.f32.mxu0 0.0
        %4189 = vmatmul.mubr.f32.gmra.mxu0 %v4025
        %v4190 = vpop.f32.mrf.mxu0
        %v4191 = vadd.f32 0.0, %v4190
        %v4192 = vpop.f32.mrf.mxu0
        %4193 = vmatprep.mubr.f32.mxu0 0.0
        %4194 = vmatmul.mubr.f32.gmra.mxu0 %v4028
        %v4195 = vpop.f32.mrf.mxu0
        %v4196 = vadd.f32 0.0, %v4195
        %v4197 = vpop.f32.mrf.mxu0
        %4198 = vmatprep.mubr.f32.mxu0 0.0
        %4199 = vmatmul.mubr.f32.gmra.mxu0 %v4031
        %v4200 = vpop.f32.mrf.mxu0
        %v4201 = vadd.f32 0.0, %v4200
        %v4202 = vpop.f32.mrf.mxu0
        %4203 = vmatprep.mubr.f32.mxu0 0.0
        %4204 = vmatmul.mubr.f32.gmra.mxu0 %v4034
        %v4205 = vpop.f32.mrf.mxu0
        %v4206 = vadd.f32 0.0, %v4205
        %v4207 = vpop.f32.mrf.mxu0
        %4208 = vmatprep.mubr.f32.mxu0 0.0
        %4209 = vmatmul.mubr.f32.gmra.mxu0 %v4037
        %v4210 = vpop.f32.mrf.mxu0
        %v4211 = vadd.f32 0.0, %v4210
        %v4212 = vpop.f32.mrf.mxu0
        %4213 = vmatprep.mubr.f32.mxu0 0.0
        %4214 = vmatmul.mubr.f32.gmra.mxu0 %v4040
        %v4215 = vpop.f32.mrf.mxu0
        %v4216 = vadd.f32 0.0, %v4215
        %v4217 = vpop.f32.mrf.mxu0
        %4218 = vmatprep.mubr.f32.mxu0 0.0
        %4219 = vmatmul.mubr.f32.gmra.mxu0 %v4043
        %v4220 = vpop.f32.mrf.mxu0
        %v4221 = vadd.f32 0.0, %v4220
        %v4222 = vpop.f32.mrf.mxu0
        %4223 = vmatprep.mubr.f32.mxu0 0.0
        %4224 = vmatmul.mubr.f32.gmra.mxu0 %v4046
        %v4225 = vpop.f32.mrf.mxu0
        %v4226 = vadd.f32 0.0, %v4225
        %v4227 = vpop.f32.mrf.mxu0
        %4228 = vmatprep.mubr.f32.mxu0 0.0
        %4229 = vmatmul.mubr.f32.gmra.mxu0 %v4049
        %v4230 = vpop.f32.mrf.mxu0
        %v4231 = vadd.f32 0.0, %v4230
        %v4232 = vpop.f32.mrf.mxu0
        %4233 = vmatprep.mubr.f32.mxu0 0.0
        %4234 = vmatmul.mubr.f32.gmra.mxu0 %v4052
        %v4235 = vpop.f32.mrf.mxu0
        %v4236 = vadd.f32 0.0, %v4235
        %v4237 = vpop.f32.mrf.mxu0
        %4238 = vmatprep.mubr.f32.mxu0 0.0
        %4239 = vmatmul.mubr.f32.gmra.mxu0 %v4055
        %v4240 = vpop.f32.mrf.mxu0
        %v4241 = vadd.f32 0.0, %v4240
        %v4242 = vpop.f32.mrf.mxu0
        %4243 = vmatprep.mubr.f32.mxu0 0.0
        %4244 = vmatmul.mubr.f32.gmra.mxu0 %v4058
        %v4245 = vpop.f32.mrf.mxu0
        %v4246 = vadd.f32 0.0, %v4245
        %v4247 = vpop.f32.mrf.mxu0
        %4248 = vmatprep.mubr.f32.mxu0 0.0
        %4249 = vmatmul.mubr.f32.gmra.mxu0 %v4061
        %v4250 = vpop.f32.mrf.mxu0
        %v4251 = vadd.f32 0.0, %v4250
        %v4252 = vpop.f32.mrf.mxu0
        %4253 = vmatprep.mubr.f32.mxu0 0.0
        %4254 = vmatmul.mubr.f32.gmra.mxu0 %v4064
        %v4255 = vpop.f32.mrf.mxu0
        %v4256 = vadd.f32 0.0, %v4255
        %v4257 = vpop.f32.mrf.mxu0
        %4258 = vmatprep.mubr.f32.mxu0 0.0
        %4259 = vmatmul.mubr.f32.gmra.mxu0 %v4067
        %v4260 = vpop.f32.mrf.mxu0
        %v4261 = vadd.f32 0.0, %v4260
        %v4262 = vpop.f32.mrf.mxu0
        %4263 = vmatprep.mubr.f32.mxu0 0.0
        %4264 = vmatmul.mubr.f32.gmra.mxu0 %v4070
        %v4265 = vpop.f32.mrf.mxu0
        %v4266 = vadd.f32 0.0, %v4265
        %v4267 = vpop.f32.mrf.mxu0
        %4268 = vmatprep.mubr.f32.mxu0 0.0
        %4269 = vmatmul.mubr.f32.gmra.mxu0 %v4073
        %v4270 = vpop.f32.mrf.mxu0
        %v4271 = vadd.f32 0.0, %v4270
        %v4272 = vpop.f32.mrf.mxu0
        %4273 = vmatprep.mubr.f32.mxu0 0.0
        %4274 = vmatmul.mubr.f32.gmra.mxu0 %v4076
        %v4275 = vpop.f32.mrf.mxu0
        %v4276 = vadd.f32 0.0, %v4275
        %v4277 = vpop.f32.mrf.mxu0
        %4278 = vmatprep.mubr.f32.mxu0 0.0
        %4279 = vmatmul.mubr.f32.gmra.mxu0 %v4079
        %v4280 = vpop.f32.mrf.mxu0
        %v4281 = vadd.f32 0.0, %v4280
        %v4282 = vpop.f32.mrf.mxu0
        %4283 = vmatprep.mubr.f32.mxu0 0.0
        %4284 = vmatmul.mubr.f32.gmra.mxu0 %v4082
        %v4285 = vpop.f32.mrf.mxu0
        %v4286 = vadd.f32 0.0, %v4285
        %v4287 = vpop.f32.mrf.mxu0
        %4288 = vmatprep.mubr.f32.mxu0 0.0
        %4289 = vmatmul.mubr.f32.gmra.mxu0 %v4085
        %v4290 = vpop.f32.mrf.mxu0
        %v4291 = vadd.f32 0.0, %v4290
        %v4292 = vpop.f32.mrf.mxu0
        %4293 = vmatprep.mubr.f32.mxu0 0.0
        %4294 = vmatmul.mubr.f32.gmra.mxu0 %v4088
        %v4295 = vpop.f32.mrf.mxu0
        %v4296 = vadd.f32 0.0, %v4295
        %v4297 = vpop.f32.mrf.mxu0
        %4298 = vmatprep.mubr.f32.mxu0 0.0
        %4299 = vmatmul.mubr.f32.gmra.mxu0 %v4091
        %v4300 = vpop.f32.mrf.mxu0
        %v4301 = vadd.f32 0.0, %v4300
        %v4302 = vpop.f32.mrf.mxu0
        %4303 = vmatprep.mubr.f32.mxu0 0.0
        %4304 = vmatmul.mubr.f32.gmra.mxu0 %v4094
        %v4305 = vpop.f32.mrf.mxu0
        %v4306 = vadd.f32 0.0, %v4305
        %v4307 = vpop.f32.mrf.mxu0
        %4308 = vmatprep.mubr.f32.mxu0 0.0
        %4309 = vmatmul.mubr.f32.gmra.mxu0 %v4097
        %v4310 = vpop.f32.mrf.mxu0
        %v4311 = vadd.f32 0.0, %v4310
        %v4312 = vpop.f32.mrf.mxu0
        %4313 = vmatprep.mubr.f32.mxu0 0.0
        %4314 = vmatmul.mubr.f32.gmra.mxu0 %v4100
        %v4315 = vpop.f32.mrf.mxu0
        %v4316 = vadd.f32 0.0, %v4315
        %v4317 = vpop.f32.mrf.mxu0
        %4318 = vmatprep.mubr.f32.mxu0 0.0
        %4319 = vmatmul.mubr.f32.gmra.mxu0 %v4103
        %v4320 = vpop.f32.mrf.mxu0
        %v4321 = vadd.f32 0.0, %v4320
        %v4322 = vpop.f32.mrf.mxu0
        %4323 = vmatprep.mubr.f32.mxu0 0.0
        %4324 = vmatmul.mubr.f32.gmra.mxu0 %v4106
        %v4325 = vpop.f32.mrf.mxu0
        %v4326 = vadd.f32 0.0, %v4325
        %v4327 = vpop.f32.mrf.mxu0
        %4328 = vmatprep.mubr.f32.mxu0 0.0
        %4329 = vmatmul.mubr.f32.gmra.mxu0 %v4109
        %v4330 = vpop.f32.mrf.mxu0
        %v4331 = vadd.f32 0.0, %v4330
        %v4332 = vpop.f32.mrf.mxu0
        %4333 = vmatprep.mubr.f32.mxu0 0.0
        %4334 = vmatmul.mubr.f32.gmra.mxu0 %v4112
        %v4335 = vpop.f32.mrf.mxu0
        %v4336 = vadd.f32 0.0, %v4335
        %v4337 = vpop.f32.mrf.mxu0
        %4338 = vdwg.mxu0
        %v4340 = vsel %vm3862, %v3951, 0
        %v4343 = vsel %vm3862, %v3952, 0
        %v4346 = vsel %vm3862, %v3953, 0
        %v4349 = vsel %vm3862, %v3954, 0
        %v4352 = vsel %vm3862, %v3955, 0
        %v4355 = vsel %vm3862, %v3956, 0
        %v4358 = vsel %vm3862, %v3957, 0
        %v4361 = vsel %vm3862, %v3958, 0
        %v4364 = vsel %vm3862, %v3959, 0
        %v4367 = vsel %vm3862, %v3960, 0
        %v4370 = vsel %vm3862, %v3961, 0
        %v4373 = vsel %vm3862, %v3962, 0
        %v4376 = vsel %vm3862, %v3963, 0
        %v4379 = vsel %vm3862, %v3964, 0
        %v4382 = vsel %vm3862, %v3965, 0
        %v4385 = vsel %vm3862, %v3966, 0
        %v4388 = vsel %vm3862, %v3967, 0
        %v4391 = vsel %vm3862, %v3968, 0
        %v4394 = vsel %vm3862, %v3969, 0
        %v4397 = vsel %vm3862, %v3970, 0
        %v4400 = vsel %vm3862, %v3971, 0
        %v4403 = vsel %vm3862, %v3972, 0
        %v4406 = vsel %vm3862, %v3973, 0
        %v4409 = vsel %vm3862, %v3974, 0
        %v4412 = vsel %vm3862, %v3975, 0
        %v4415 = vsel %vm3862, %v3976, 0
        %v4418 = vsel %vm3862, %v3977, 0
        %v4421 = vsel %vm3862, %v3978, 0
        %v4424 = vsel %vm3862, %v3979, 0
        %v4427 = vsel %vm3862, %v3980, 0
        %v4430 = vsel %vm3862, %v3981, 0
        %v4433 = vsel %vm3862, %v3982, 0
        %4435 = vmatprep.subr.mxu0 0.0
        %4436 = vmatpush1.msra.mxu0 0.0
        %4437 = vmatprep.subr.mxu0 0.0
        %4438 = vmatpush1.msra.mxu0 0.0
        %4439 = vmatprep.subr.mxu0 0.0
        %4440 = vmatpush1.msra.mxu0 0.0
        %4441 = vmatprep.subr.mxu0 0.0
        %4442 = vmatpush1.msra.mxu0 0.0
        %4443 = vmatprep.subr.mxu0 0.0
        %4444 = vmatpush1.msra.mxu0 0.0
        %4445 = vmatprep.subr.mxu0 0.0
        %4446 = vmatpush1.msra.mxu0 0.0
        %4447 = vmatprep.subr.mxu0 0.0
        %4448 = vmatpush1.msra.mxu0 0.0
        %4449 = vmatprep.subr.mxu0 0.0
        %4450 = vmatpush1.msra.mxu0 0.0
        %4451 = vmatprep.subr.mxu0 0.0
        %4452 = vmatpush1.msra.mxu0 0.0
        %4453 = vmatprep.subr.mxu0 0.0
        %4454 = vmatpush1.msra.mxu0 0.0
        %4455 = vmatprep.subr.mxu0 0.0
        %4456 = vmatpush1.msra.mxu0 0.0
        %4457 = vmatprep.subr.mxu0 0.0
        %4458 = vmatpush1.msra.mxu0 0.0
        %4459 = vmatprep.subr.mxu0 0.0
        %4460 = vmatpush1.msra.mxu0 0.0
        %4461 = vmatprep.subr.mxu0 0.0
        %4462 = vmatpush1.msra.mxu0 0.0
        %4463 = vmatprep.subr.mxu0 0.0
        %4464 = vmatpush1.msra.mxu0 0.0
        %4465 = vmatprep.subr.mxu0 0.0
        %4466 = vmatpush1.msra.mxu0 %v3983
        %4467 = vmatprep.subr.mxu0 0.0
        %4468 = vmatpush2.msra.mxu0 0.0
        %4469 = vmatprep.subr.mxu0 0.0
        %4470 = vmatpush2.msra.mxu0 0.0
        %4471 = vmatprep.subr.mxu0 0.0
        %4472 = vmatpush2.msra.mxu0 0.0
        %4473 = vmatprep.subr.mxu0 0.0
        %4474 = vmatpush2.msra.mxu0 0.0
        %4475 = vmatprep.subr.mxu0 0.0
        %4476 = vmatpush2.msra.mxu0 0.0
        %4477 = vmatprep.subr.mxu0 0.0
        %4478 = vmatpush2.msra.mxu0 0.0
        %4479 = vmatprep.subr.mxu0 0.0
        %4480 = vmatpush2.msra.mxu0 0.0
        %4481 = vmatprep.subr.mxu0 0.0
        %4482 = vmatpush2.msra.mxu0 0.0
        %4483 = vmatprep.subr.mxu0 0.0
        %4484 = vmatpush2.msra.mxu0 0.0
        %4485 = vmatprep.subr.mxu0 0.0
        %4486 = vmatpush2.msra.mxu0 0.0
        %4487 = vmatprep.subr.mxu0 0.0
        %4488 = vmatpush2.msra.mxu0 0.0
        %4489 = vmatprep.subr.mxu0 0.0
        %4490 = vmatpush2.msra.mxu0 0.0
        %4491 = vmatprep.subr.mxu0 0.0
        %4492 = vmatpush2.msra.mxu0 0.0
        %4493 = vmatprep.subr.mxu0 0.0
        %4494 = vmatpush2.msra.mxu0 0.0
        %4495 = vmatprep.subr.mxu0 0.0
        %4496 = vmatpush2.msra.mxu0 0.0
        %4497 = vmatprep.subr.mxu0 0.0
        %4498 = vmatpush2.msra.mxu0 0.0
        %4499 = vmatprep.mubr.f32.mxu0 0.0
        %4500 = vmatmul.mubr.f32.gmra.mxu0 %v4340
        %v4501 = vpop.f32.mrf.mxu0
        %v4502 = vadd.f32 %v4181, %v4501
        %v4503 = vpop.f32.mrf.mxu0
        %4504 = vmatprep.mubr.f32.mxu0 0.0
        %4505 = vmatmul.mubr.f32.gmra.mxu0 %v4343
        %v4506 = vpop.f32.mrf.mxu0
        %v4507 = vadd.f32 %v4186, %v4506
        %v4508 = vpop.f32.mrf.mxu0
        %4509 = vmatprep.mubr.f32.mxu0 0.0
        %4510 = vmatmul.mubr.f32.gmra.mxu0 %v4346
        %v4511 = vpop.f32.mrf.mxu0
        %v4512 = vadd.f32 %v4191, %v4511
        %v4513 = vpop.f32.mrf.mxu0
        %4514 = vmatprep.mubr.f32.mxu0 0.0
        %4515 = vmatmul.mubr.f32.gmra.mxu0 %v4349
        %v4516 = vpop.f32.mrf.mxu0
        %v4517 = vadd.f32 %v4196, %v4516
        %v4518 = vpop.f32.mrf.mxu0
        %4519 = vmatprep.mubr.f32.mxu0 0.0
        %4520 = vmatmul.mubr.f32.gmra.mxu0 %v4352
        %v4521 = vpop.f32.mrf.mxu0
        %v4522 = vadd.f32 %v4201, %v4521
        %v4523 = vpop.f32.mrf.mxu0
        %4524 = vmatprep.mubr.f32.mxu0 0.0
        %4525 = vmatmul.mubr.f32.gmra.mxu0 %v4355
        %v4526 = vpop.f32.mrf.mxu0
        %v4527 = vadd.f32 %v4206, %v4526
        %v4528 = vpop.f32.mrf.mxu0
        %4529 = vmatprep.mubr.f32.mxu0 0.0
        %4530 = vmatmul.mubr.f32.gmra.mxu0 %v4358
        %v4531 = vpop.f32.mrf.mxu0
        %v4532 = vadd.f32 %v4211, %v4531
        %v4533 = vpop.f32.mrf.mxu0
        %4534 = vmatprep.mubr.f32.mxu0 0.0
        %4535 = vmatmul.mubr.f32.gmra.mxu0 %v4361
        %v4536 = vpop.f32.mrf.mxu0
        %v4537 = vadd.f32 %v4216, %v4536
        %v4538 = vpop.f32.mrf.mxu0
        %4539 = vmatprep.mubr.f32.mxu0 0.0
        %4540 = vmatmul.mubr.f32.gmra.mxu0 %v4364
        %v4541 = vpop.f32.mrf.mxu0
        %v4542 = vadd.f32 %v4221, %v4541
        %v4543 = vpop.f32.mrf.mxu0
        %4544 = vmatprep.mubr.f32.mxu0 0.0
        %4545 = vmatmul.mubr.f32.gmra.mxu0 %v4367
        %v4546 = vpop.f32.mrf.mxu0
        %v4547 = vadd.f32 %v4226, %v4546
        %v4548 = vpop.f32.mrf.mxu0
        %4549 = vmatprep.mubr.f32.mxu0 0.0
        %4550 = vmatmul.mubr.f32.gmra.mxu0 %v4370
        %v4551 = vpop.f32.mrf.mxu0
        %v4552 = vadd.f32 %v4231, %v4551
        %v4553 = vpop.f32.mrf.mxu0
        %4554 = vmatprep.mubr.f32.mxu0 0.0
        %4555 = vmatmul.mubr.f32.gmra.mxu0 %v4373
        %v4556 = vpop.f32.mrf.mxu0
        %v4557 = vadd.f32 %v4236, %v4556
        %v4558 = vpop.f32.mrf.mxu0
        %4559 = vmatprep.mubr.f32.mxu0 0.0
        %4560 = vmatmul.mubr.f32.gmra.mxu0 %v4376
        %v4561 = vpop.f32.mrf.mxu0
        %v4562 = vadd.f32 %v4241, %v4561
        %v4563 = vpop.f32.mrf.mxu0
        %4564 = vmatprep.mubr.f32.mxu0 0.0
        %4565 = vmatmul.mubr.f32.gmra.mxu0 %v4379
        %v4566 = vpop.f32.mrf.mxu0
        %v4567 = vadd.f32 %v4246, %v4566
        %v4568 = vpop.f32.mrf.mxu0
        %4569 = vmatprep.mubr.f32.mxu0 0.0
        %4570 = vmatmul.mubr.f32.gmra.mxu0 %v4382
        %v4571 = vpop.f32.mrf.mxu0
        %v4572 = vadd.f32 %v4251, %v4571
        %v4573 = vpop.f32.mrf.mxu0
        %4574 = vmatprep.mubr.f32.mxu0 0.0
        %4575 = vmatmul.mubr.f32.gmra.mxu0 %v4385
        %v4576 = vpop.f32.mrf.mxu0
        %v4577 = vadd.f32 %v4256, %v4576
        %v4578 = vpop.f32.mrf.mxu0
        %4579 = vmatprep.mubr.f32.mxu0 0.0
        %4580 = vmatmul.mubr.f32.gmra.mxu0 %v4388
        %v4581 = vpop.f32.mrf.mxu0
        %v4582 = vadd.f32 %v4261, %v4581
        %v4583 = vpop.f32.mrf.mxu0
        %4584 = vmatprep.mubr.f32.mxu0 0.0
        %4585 = vmatmul.mubr.f32.gmra.mxu0 %v4391
        %v4586 = vpop.f32.mrf.mxu0
        %v4587 = vadd.f32 %v4266, %v4586
        %v4588 = vpop.f32.mrf.mxu0
        %4589 = vmatprep.mubr.f32.mxu0 0.0
        %4590 = vmatmul.mubr.f32.gmra.mxu0 %v4394
        %v4591 = vpop.f32.mrf.mxu0
        %v4592 = vadd.f32 %v4271, %v4591
        %v4593 = vpop.f32.mrf.mxu0
        %4594 = vmatprep.mubr.f32.mxu0 0.0
        %4595 = vmatmul.mubr.f32.gmra.mxu0 %v4397
        %v4596 = vpop.f32.mrf.mxu0
        %v4597 = vadd.f32 %v4276, %v4596
        %v4598 = vpop.f32.mrf.mxu0
        %4599 = vmatprep.mubr.f32.mxu0 0.0
        %4600 = vmatmul.mubr.f32.gmra.mxu0 %v4400
        %v4601 = vpop.f32.mrf.mxu0
        %v4602 = vadd.f32 %v4281, %v4601
        %v4603 = vpop.f32.mrf.mxu0
        %4604 = vmatprep.mubr.f32.mxu0 0.0
        %4605 = vmatmul.mubr.f32.gmra.mxu0 %v4403
        %v4606 = vpop.f32.mrf.mxu0
        %v4607 = vadd.f32 %v4286, %v4606
        %v4608 = vpop.f32.mrf.mxu0
        %4609 = vmatprep.mubr.f32.mxu0 0.0
        %4610 = vmatmul.mubr.f32.gmra.mxu0 %v4406
        %v4611 = vpop.f32.mrf.mxu0
        %v4612 = vadd.f32 %v4291, %v4611
        %v4613 = vpop.f32.mrf.mxu0
        %4614 = vmatprep.mubr.f32.mxu0 0.0
        %4615 = vmatmul.mubr.f32.gmra.mxu0 %v4409
        %v4616 = vpop.f32.mrf.mxu0
        %v4617 = vadd.f32 %v4296, %v4616
        %v4618 = vpop.f32.mrf.mxu0
        %4619 = vmatprep.mubr.f32.mxu0 0.0
        %4620 = vmatmul.mubr.f32.gmra.mxu0 %v4412
        %v4621 = vpop.f32.mrf.mxu0
        %v4622 = vadd.f32 %v4301, %v4621
        %v4623 = vpop.f32.mrf.mxu0
        %4624 = vmatprep.mubr.f32.mxu0 0.0
        %4625 = vmatmul.mubr.f32.gmra.mxu0 %v4415
        %v4626 = vpop.f32.mrf.mxu0
        %v4627 = vadd.f32 %v4306, %v4626
        %v4628 = vpop.f32.mrf.mxu0
        %4629 = vmatprep.mubr.f32.mxu0 0.0
        %4630 = vmatmul.mubr.f32.gmra.mxu0 %v4418
        %v4631 = vpop.f32.mrf.mxu0
        %v4632 = vadd.f32 %v4311, %v4631
        %v4633 = vpop.f32.mrf.mxu0
        %4634 = vmatprep.mubr.f32.mxu0 0.0
        %4635 = vmatmul.mubr.f32.gmra.mxu0 %v4421
        %v4636 = vpop.f32.mrf.mxu0
        %v4637 = vadd.f32 %v4316, %v4636
        %v4638 = vpop.f32.mrf.mxu0
        %4639 = vmatprep.mubr.f32.mxu0 0.0
        %4640 = vmatmul.mubr.f32.gmra.mxu0 %v4424
        %v4641 = vpop.f32.mrf.mxu0
        %v4642 = vadd.f32 %v4321, %v4641
        %v4643 = vpop.f32.mrf.mxu0
        %4644 = vmatprep.mubr.f32.mxu0 0.0
        %4645 = vmatmul.mubr.f32.gmra.mxu0 %v4427
        %v4646 = vpop.f32.mrf.mxu0
        %v4647 = vadd.f32 %v4326, %v4646
        %v4648 = vpop.f32.mrf.mxu0
        %4649 = vmatprep.mubr.f32.mxu0 0.0
        %4650 = vmatmul.mubr.f32.gmra.mxu0 %v4430
        %v4651 = vpop.f32.mrf.mxu0
        %v4652 = vadd.f32 %v4331, %v4651
        %v4653 = vpop.f32.mrf.mxu0
        %4654 = vmatprep.mubr.f32.mxu0 0.0
        %4655 = vmatmul.mubr.f32.gmra.mxu0 %v4433
        %v4656 = vpop.f32.mrf.mxu0
        %v4657 = vadd.f32 %v4336, %v4656
        %v4658 = vpop.f32.mrf.mxu0
        %4659 = vdwg.mxu0
        %v4660 = vld [vmem:[#allocation3 + $0x2] sm:$0xff]
        %v4661 = vld [vmem:[#allocation3 + $0xa] sm:$0xff]
        %v4662 = vld [vmem:[#allocation3 + $0x1a] sm:$0xff]
        %v4663 = vld [vmem:[#allocation3 + $0x22] sm:$0xff]
        %v4664 = vld [vmem:[#allocation3 + $0x32] sm:$0xff]
        %v4665 = vld [vmem:[#allocation3 + $0x3a] sm:$0xff]
        %v4666 = vld [vmem:[#allocation3 + $0x4a] sm:$0xff]
        %v4667 = vld [vmem:[#allocation3 + $0x52] sm:$0xff]
        %v4668 = vld [vmem:[#allocation3 + $0x62] sm:$0xff]
        %v4669 = vld [vmem:[#allocation3 + $0x6a] sm:$0xff]
        %v4670 = vld [vmem:[#allocation3 + $0x7a] sm:$0xff]
        %v4671 = vld [vmem:[#allocation3 + $0x82] sm:$0xff]
        %v4672 = vld [vmem:[#allocation3 + $0x92] sm:$0xff]
        %v4673 = vld [vmem:[#allocation3 + $0x9a] sm:$0xff]
        %v4674 = vld [vmem:[#allocation3 + $0xaa] sm:$0xff]
        %v4675 = vld [vmem:[#allocation3 + $0xb2] sm:$0xff]
        %v4676 = vld [vmem:[#allocation3 + $0xc2] sm:$0xff]
        %v4677 = vld [vmem:[#allocation3 + $0xca] sm:$0xff]
        %v4678 = vld [vmem:[#allocation3 + $0xda] sm:$0xff]
        %v4679 = vld [vmem:[#allocation3 + $0xe2] sm:$0xff]
        %v4680 = vld [vmem:[#allocation3 + $0xf2] sm:$0xff]
        %v4681 = vld [vmem:[#allocation3 + $0xfa] sm:$0xff]
        %v4682 = vld [vmem:[#allocation3 + $0x10a] sm:$0xff]
        %v4683 = vld [vmem:[#allocation3 + $0x112] sm:$0xff]
        %v4684 = vld [vmem:[#allocation3 + $0x122] sm:$0xff]
        %v4685 = vld [vmem:[#allocation3 + $0x12a] sm:$0xff]
        %v4686 = vld [vmem:[#allocation3 + $0x13a] sm:$0xff]
        %v4687 = vld [vmem:[#allocation3 + $0x142] sm:$0xff]
        %v4688 = vld [vmem:[#allocation3 + $0x152] sm:$0xff]
        %v4689 = vld [vmem:[#allocation3 + $0x15a] sm:$0xff]
        %v4690 = vld [vmem:[#allocation3 + $0x16a] sm:$0xff]
        %v4691 = vld [vmem:[#allocation3 + $0x172] sm:$0xff]
        %s4692 = scalar_lea.vmem %s3, 16
        %v4693 = vld [vmem:[%s4692] sm:$0xff]
        %v4695 = vsel %vm3862, %v4660, 0
        %v4698 = vsel %vm3862, %v4661, 0
        %v4701 = vsel %vm3862, %v4662, 0
        %v4704 = vsel %vm3862, %v4663, 0
        %v4707 = vsel %vm3862, %v4664, 0
        %v4710 = vsel %vm3862, %v4665, 0
        %v4713 = vsel %vm3862, %v4666, 0
        %v4716 = vsel %vm3862, %v4667, 0
        %v4719 = vsel %vm3862, %v4668, 0
        %v4722 = vsel %vm3862, %v4669, 0
        %v4725 = vsel %vm3862, %v4670, 0
        %v4728 = vsel %vm3862, %v4671, 0
        %v4731 = vsel %vm3862, %v4672, 0
        %v4734 = vsel %vm3862, %v4673, 0
        %v4737 = vsel %vm3862, %v4674, 0
        %v4740 = vsel %vm3862, %v4675, 0
        %v4743 = vsel %vm3862, %v4676, 0
        %v4746 = vsel %vm3862, %v4677, 0
        %v4749 = vsel %vm3862, %v4678, 0
        %v4752 = vsel %vm3862, %v4679, 0
        %v4755 = vsel %vm3862, %v4680, 0
        %v4758 = vsel %vm3862, %v4681, 0
        %v4761 = vsel %vm3862, %v4682, 0
        %v4764 = vsel %vm3862, %v4683, 0
        %v4767 = vsel %vm3862, %v4684, 0
        %v4770 = vsel %vm3862, %v4685, 0
        %v4773 = vsel %vm3862, %v4686, 0
        %v4776 = vsel %vm3862, %v4687, 0
        %v4779 = vsel %vm3862, %v4688, 0
        %v4782 = vsel %vm3862, %v4689, 0
        %v4785 = vsel %vm3862, %v4690, 0
        %v4788 = vsel %vm3862, %v4691, 0
        %4790 = vmatprep.subr.mxu0 0.0
        %4791 = vmatpush1.msra.mxu0 0.0
        %4792 = vmatprep.subr.mxu0 0.0
        %4793 = vmatpush1.msra.mxu0 0.0
        %4794 = vmatprep.subr.mxu0 0.0
        %4795 = vmatpush1.msra.mxu0 0.0
        %4796 = vmatprep.subr.mxu0 0.0
        %4797 = vmatpush1.msra.mxu0 0.0
        %4798 = vmatprep.subr.mxu0 0.0
        %4799 = vmatpush1.msra.mxu0 0.0
        %4800 = vmatprep.subr.mxu0 0.0
        %4801 = vmatpush1.msra.mxu0 0.0
        %4802 = vmatprep.subr.mxu0 0.0
        %4803 = vmatpush1.msra.mxu0 0.0
        %4804 = vmatprep.subr.mxu0 0.0
        %4805 = vmatpush1.msra.mxu0 0.0
        %4806 = vmatprep.subr.mxu0 0.0
        %4807 = vmatpush1.msra.mxu0 0.0
        %4808 = vmatprep.subr.mxu0 0.0
        %4809 = vmatpush1.msra.mxu0 0.0
        %4810 = vmatprep.subr.mxu0 0.0
        %4811 = vmatpush1.msra.mxu0 0.0
        %4812 = vmatprep.subr.mxu0 0.0
        %4813 = vmatpush1.msra.mxu0 0.0
        %4814 = vmatprep.subr.mxu0 0.0
        %4815 = vmatpush1.msra.mxu0 0.0
        %4816 = vmatprep.subr.mxu0 0.0
        %4817 = vmatpush1.msra.mxu0 0.0
        %4818 = vmatprep.subr.mxu0 0.0
        %4819 = vmatpush1.msra.mxu0 0.0
        %4820 = vmatprep.subr.mxu0 0.0
        %4821 = vmatpush1.msra.mxu0 %v4693
        %4822 = vmatprep.subr.mxu0 0.0
        %4823 = vmatpush2.msra.mxu0 0.0
        %4824 = vmatprep.subr.mxu0 0.0
        %4825 = vmatpush2.msra.mxu0 0.0
        %4826 = vmatprep.subr.mxu0 0.0
        %4827 = vmatpush2.msra.mxu0 0.0
        %4828 = vmatprep.subr.mxu0 0.0
        %4829 = vmatpush2.msra.mxu0 0.0
        %4830 = vmatprep.subr.mxu0 0.0
        %4831 = vmatpush2.msra.mxu0 0.0
        %4832 = vmatprep.subr.mxu0 0.0
        %4833 = vmatpush2.msra.mxu0 0.0
        %4834 = vmatprep.subr.mxu0 0.0
        %4835 = vmatpush2.msra.mxu0 0.0
        %4836 = vmatprep.subr.mxu0 0.0
        %4837 = vmatpush2.msra.mxu0 0.0
        %4838 = vmatprep.subr.mxu0 0.0
        %4839 = vmatpush2.msra.mxu0 0.0
        %4840 = vmatprep.subr.mxu0 0.0
        %4841 = vmatpush2.msra.mxu0 0.0
        %4842 = vmatprep.subr.mxu0 0.0
        %4843 = vmatpush2.msra.mxu0 0.0
        %4844 = vmatprep.subr.mxu0 0.0
        %4845 = vmatpush2.msra.mxu0 0.0
        %4846 = vmatprep.subr.mxu0 0.0
        %4847 = vmatpush2.msra.mxu0 0.0
        %4848 = vmatprep.subr.mxu0 0.0
        %4849 = vmatpush2.msra.mxu0 0.0
        %4850 = vmatprep.subr.mxu0 0.0
        %4851 = vmatpush2.msra.mxu0 0.0
        %4852 = vmatprep.subr.mxu0 0.0
        %4853 = vmatpush2.msra.mxu0 0.0
        %4854 = vmatprep.mubr.f32.mxu0 0.0
        %4855 = vmatmul.mubr.f32.gmra.mxu0 %v4695
        %v4856 = vpop.f32.mrf.mxu0
        %v4857 = vadd.f32 0.0, %v4856
        %v4858 = vpop.f32.mrf.mxu0
        %4859 = vmatprep.mubr.f32.mxu0 0.0
        %4860 = vmatmul.mubr.f32.gmra.mxu0 %v4698
        %v4861 = vpop.f32.mrf.mxu0
        %v4862 = vadd.f32 0.0, %v4861
        %v4863 = vpop.f32.mrf.mxu0
        %4864 = vmatprep.mubr.f32.mxu0 0.0
        %4865 = vmatmul.mubr.f32.gmra.mxu0 %v4701
        %v4866 = vpop.f32.mrf.mxu0
        %v4867 = vadd.f32 0.0, %v4866
        %v4868 = vpop.f32.mrf.mxu0
        %4869 = vmatprep.mubr.f32.mxu0 0.0
        %4870 = vmatmul.mubr.f32.gmra.mxu0 %v4704
        %v4871 = vpop.f32.mrf.mxu0
        %v4872 = vadd.f32 0.0, %v4871
        %v4873 = vpop.f32.mrf.mxu0
        %4874 = vmatprep.mubr.f32.mxu0 0.0
        %4875 = vmatmul.mubr.f32.gmra.mxu0 %v4707
        %v4876 = vpop.f32.mrf.mxu0
        %v4877 = vadd.f32 0.0, %v4876
        %v4878 = vpop.f32.mrf.mxu0
        %4879 = vmatprep.mubr.f32.mxu0 0.0
        %4880 = vmatmul.mubr.f32.gmra.mxu0 %v4710
        %v4881 = vpop.f32.mrf.mxu0
        %v4882 = vadd.f32 0.0, %v4881
        %v4883 = vpop.f32.mrf.mxu0
        %4884 = vmatprep.mubr.f32.mxu0 0.0
        %4885 = vmatmul.mubr.f32.gmra.mxu0 %v4713
        %v4886 = vpop.f32.mrf.mxu0
        %v4887 = vadd.f32 0.0, %v4886
        %v4888 = vpop.f32.mrf.mxu0
        %4889 = vmatprep.mubr.f32.mxu0 0.0
        %4890 = vmatmul.mubr.f32.gmra.mxu0 %v4716
        %v4891 = vpop.f32.mrf.mxu0
        %v4892 = vadd.f32 0.0, %v4891
        %v4893 = vpop.f32.mrf.mxu0
        %4894 = vmatprep.mubr.f32.mxu0 0.0
        %4895 = vmatmul.mubr.f32.gmra.mxu0 %v4719
        %v4896 = vpop.f32.mrf.mxu0
        %v4897 = vadd.f32 0.0, %v4896
        %v4898 = vpop.f32.mrf.mxu0
        %4899 = vmatprep.mubr.f32.mxu0 0.0
        %4900 = vmatmul.mubr.f32.gmra.mxu0 %v4722
        %v4901 = vpop.f32.mrf.mxu0
        %v4902 = vadd.f32 0.0, %v4901
        %v4903 = vpop.f32.mrf.mxu0
        %4904 = vmatprep.mubr.f32.mxu0 0.0
        %4905 = vmatmul.mubr.f32.gmra.mxu0 %v4725
        %v4906 = vpop.f32.mrf.mxu0
        %v4907 = vadd.f32 0.0, %v4906
        %v4908 = vpop.f32.mrf.mxu0
        %4909 = vmatprep.mubr.f32.mxu0 0.0
        %4910 = vmatmul.mubr.f32.gmra.mxu0 %v4728
        %v4911 = vpop.f32.mrf.mxu0
        %v4912 = vadd.f32 0.0, %v4911
        %v4913 = vpop.f32.mrf.mxu0
        %4914 = vmatprep.mubr.f32.mxu0 0.0
        %4915 = vmatmul.mubr.f32.gmra.mxu0 %v4731
        %v4916 = vpop.f32.mrf.mxu0
        %v4917 = vadd.f32 0.0, %v4916
        %v4918 = vpop.f32.mrf.mxu0
        %4919 = vmatprep.mubr.f32.mxu0 0.0
        %4920 = vmatmul.mubr.f32.gmra.mxu0 %v4734
        %v4921 = vpop.f32.mrf.mxu0
        %v4922 = vadd.f32 0.0, %v4921
        %v4923 = vpop.f32.mrf.mxu0
        %4924 = vmatprep.mubr.f32.mxu0 0.0
        %4925 = vmatmul.mubr.f32.gmra.mxu0 %v4737
        %v4926 = vpop.f32.mrf.mxu0
        %v4927 = vadd.f32 0.0, %v4926
        %v4928 = vpop.f32.mrf.mxu0
        %4929 = vmatprep.mubr.f32.mxu0 0.0
        %4930 = vmatmul.mubr.f32.gmra.mxu0 %v4740
        %v4931 = vpop.f32.mrf.mxu0
        %v4932 = vadd.f32 0.0, %v4931
        %v4933 = vpop.f32.mrf.mxu0
        %4934 = vmatprep.mubr.f32.mxu0 0.0
        %4935 = vmatmul.mubr.f32.gmra.mxu0 %v4743
        %v4936 = vpop.f32.mrf.mxu0
        %v4937 = vadd.f32 0.0, %v4936
        %v4938 = vpop.f32.mrf.mxu0
        %4939 = vmatprep.mubr.f32.mxu0 0.0
        %4940 = vmatmul.mubr.f32.gmra.mxu0 %v4746
        %v4941 = vpop.f32.mrf.mxu0
        %v4942 = vadd.f32 0.0, %v4941
        %v4943 = vpop.f32.mrf.mxu0
        %4944 = vmatprep.mubr.f32.mxu0 0.0
        %4945 = vmatmul.mubr.f32.gmra.mxu0 %v4749
        %v4946 = vpop.f32.mrf.mxu0
        %v4947 = vadd.f32 0.0, %v4946
        %v4948 = vpop.f32.mrf.mxu0
        %4949 = vmatprep.mubr.f32.mxu0 0.0
        %4950 = vmatmul.mubr.f32.gmra.mxu0 %v4752
        %v4951 = vpop.f32.mrf.mxu0
        %v4952 = vadd.f32 0.0, %v4951
        %v4953 = vpop.f32.mrf.mxu0
        %4954 = vmatprep.mubr.f32.mxu0 0.0
        %4955 = vmatmul.mubr.f32.gmra.mxu0 %v4755
        %v4956 = vpop.f32.mrf.mxu0
        %v4957 = vadd.f32 0.0, %v4956
        %v4958 = vpop.f32.mrf.mxu0
        %4959 = vmatprep.mubr.f32.mxu0 0.0
        %4960 = vmatmul.mubr.f32.gmra.mxu0 %v4758
        %v4961 = vpop.f32.mrf.mxu0
        %v4962 = vadd.f32 0.0, %v4961
        %v4963 = vpop.f32.mrf.mxu0
        %4964 = vmatprep.mubr.f32.mxu0 0.0
        %4965 = vmatmul.mubr.f32.gmra.mxu0 %v4761
        %v4966 = vpop.f32.mrf.mxu0
        %v4967 = vadd.f32 0.0, %v4966
        %v4968 = vpop.f32.mrf.mxu0
        %4969 = vmatprep.mubr.f32.mxu0 0.0
        %4970 = vmatmul.mubr.f32.gmra.mxu0 %v4764
        %v4971 = vpop.f32.mrf.mxu0
        %v4972 = vadd.f32 0.0, %v4971
        %v4973 = vpop.f32.mrf.mxu0
        %4974 = vmatprep.mubr.f32.mxu0 0.0
        %4975 = vmatmul.mubr.f32.gmra.mxu0 %v4767
        %v4976 = vpop.f32.mrf.mxu0
        %v4977 = vadd.f32 0.0, %v4976
        %v4978 = vpop.f32.mrf.mxu0
        %4979 = vmatprep.mubr.f32.mxu0 0.0
        %4980 = vmatmul.mubr.f32.gmra.mxu0 %v4770
        %v4981 = vpop.f32.mrf.mxu0
        %v4982 = vadd.f32 0.0, %v4981
        %v4983 = vpop.f32.mrf.mxu0
        %4984 = vmatprep.mubr.f32.mxu0 0.0
        %4985 = vmatmul.mubr.f32.gmra.mxu0 %v4773
        %v4986 = vpop.f32.mrf.mxu0
        %v4987 = vadd.f32 0.0, %v4986
        %v4988 = vpop.f32.mrf.mxu0
        %4989 = vmatprep.mubr.f32.mxu0 0.0
        %4990 = vmatmul.mubr.f32.gmra.mxu0 %v4776
        %v4991 = vpop.f32.mrf.mxu0
        %v4992 = vadd.f32 0.0, %v4991
        %v4993 = vpop.f32.mrf.mxu0
        %4994 = vmatprep.mubr.f32.mxu0 0.0
        %4995 = vmatmul.mubr.f32.gmra.mxu0 %v4779
        %v4996 = vpop.f32.mrf.mxu0
        %v4997 = vadd.f32 0.0, %v4996
        %v4998 = vpop.f32.mrf.mxu0
        %4999 = vmatprep.mubr.f32.mxu0 0.0
        %5000 = vmatmul.mubr.f32.gmra.mxu0 %v4782
        %v5001 = vpop.f32.mrf.mxu0
        %v5002 = vadd.f32 0.0, %v5001
        %v5003 = vpop.f32.mrf.mxu0
        %5004 = vmatprep.mubr.f32.mxu0 0.0
        %5005 = vmatmul.mubr.f32.gmra.mxu0 %v4785
        %v5006 = vpop.f32.mrf.mxu0
        %v5007 = vadd.f32 0.0, %v5006
        %v5008 = vpop.f32.mrf.mxu0
        %5009 = vmatprep.mubr.f32.mxu0 0.0
        %5010 = vmatmul.mubr.f32.gmra.mxu0 %v4788
        %v5011 = vpop.f32.mrf.mxu0
        %v5012 = vadd.f32 0.0, %v5011
        %v5013 = vpop.f32.mrf.mxu0
        %5014 = vdwg.mxu0
        %v5015 = vadd.f32 %v4502, %v4857
        %v5016 = vadd.f32 %v4507, %v4862
        %v5017 = vadd.f32 %v4512, %v4867
        %v5018 = vadd.f32 %v4517, %v4872
        %v5019 = vadd.f32 %v4522, %v4877
        %v5020 = vadd.f32 %v4527, %v4882
        %v5021 = vadd.f32 %v4532, %v4887
        %v5022 = vadd.f32 %v4537, %v4892
        %v5023 = vadd.f32 %v4542, %v4897
        %v5024 = vadd.f32 %v4547, %v4902
        %v5025 = vadd.f32 %v4552, %v4907
        %v5026 = vadd.f32 %v4557, %v4912
        %v5027 = vadd.f32 %v4562, %v4917
        %v5028 = vadd.f32 %v4567, %v4922
        %v5029 = vadd.f32 %v4572, %v4927
        %v5030 = vadd.f32 %v4577, %v4932
        %v5031 = vadd.f32 %v4582, %v4937
        %v5032 = vadd.f32 %v4587, %v4942
        %v5033 = vadd.f32 %v4592, %v4947
        %v5034 = vadd.f32 %v4597, %v4952
        %v5035 = vadd.f32 %v4602, %v4957
        %v5036 = vadd.f32 %v4607, %v4962
        %v5037 = vadd.f32 %v4612, %v4967
        %v5038 = vadd.f32 %v4617, %v4972
        %v5039 = vadd.f32 %v4622, %v4977
        %v5040 = vadd.f32 %v4627, %v4982
        %v5041 = vadd.f32 %v4632, %v4987
        %v5042 = vadd.f32 %v4637, %v4992
        %v5043 = vadd.f32 %v4642, %v4997
        %v5044 = vadd.f32 %v4647, %v5002
        %v5045 = vadd.f32 %v4652, %v5007
        %v5046 = vadd.f32 %v4657, %v5012
        %v5047 = vld [vmem:[%s3918] sm:$0xff]
        %v5048 = vld [vmem:[%s3918 + $0x8] sm:$0xff]
        %v5049 = vld [vmem:[%s3918 + $0x18] sm:$0xff]
        %v5050 = vld [vmem:[%s3918 + $0x20] sm:$0xff]
        %v5051 = vld [vmem:[%s3918 + $0x30] sm:$0xff]
        %v5052 = vld [vmem:[%s3918 + $0x38] sm:$0xff]
        %v5053 = vld [vmem:[%s3918 + $0x48] sm:$0xff]
        %v5054 = vld [vmem:[%s3918 + $0x50] sm:$0xff]
        %v5055 = vld [vmem:[%s3918 + $0x60] sm:$0xff]
        %v5056 = vld [vmem:[%s3918 + $0x68] sm:$0xff]
        %v5057 = vld [vmem:[%s3918 + $0x78] sm:$0xff]
        %v5058 = vld [vmem:[%s3918 + $0x80] sm:$0xff]
        %v5059 = vld [vmem:[%s3918 + $0x90] sm:$0xff]
        %v5060 = vld [vmem:[%s3918 + $0x98] sm:$0xff]
        %v5061 = vld [vmem:[%s3918 + $0xa8] sm:$0xff]
        %v5062 = vld [vmem:[%s3918 + $0xb0] sm:$0xff]
        %v5063 = vld [vmem:[%s3918 + $0xc0] sm:$0xff]
        %v5064 = vld [vmem:[%s3918 + $0xc8] sm:$0xff]
        %v5065 = vld [vmem:[%s3918 + $0xd8] sm:$0xff]
        %v5066 = vld [vmem:[%s3918 + $0xe0] sm:$0xff]
        %v5067 = vld [vmem:[%s3918 + $0xf0] sm:$0xff]
        %v5068 = vld [vmem:[%s3918 + $0xf8] sm:$0xff]
        %v5069 = vld [vmem:[%s3918 + $0x108] sm:$0xff]
        %v5070 = vld [vmem:[%s3918 + $0x110] sm:$0xff]
        %v5071 = vld [vmem:[%s3918 + $0x120] sm:$0xff]
        %v5072 = vld [vmem:[%s3918 + $0x128] sm:$0xff]
        %v5073 = vld [vmem:[%s3918 + $0x138] sm:$0xff]
        %v5074 = vld [vmem:[%s3918 + $0x140] sm:$0xff]
        %v5075 = vld [vmem:[%s3918 + $0x150] sm:$0xff]
        %v5076 = vld [vmem:[%s3918 + $0x158] sm:$0xff]
        %v5077 = vld [vmem:[%s3918 + $0x168] sm:$0xff]
        %v5078 = vld [vmem:[%s3918 + $0x170] sm:$0xff]
        %s5079 = scalar_lea.vmem %s3, 24
        %v5080 = vld [vmem:[%s5079] sm:$0xff]
        %v5082 = vsel %vm3862, %v5047, 0
        %v5085 = vsel %vm3862, %v5048, 0
        %v5088 = vsel %vm3862, %v5049, 0
        %v5091 = vsel %vm3862, %v5050, 0
        %v5094 = vsel %vm3862, %v5051, 0
        %v5097 = vsel %vm3862, %v5052, 0
        %v5100 = vsel %vm3862, %v5053, 0
        %v5103 = vsel %vm3862, %v5054, 0
        %v5106 = vsel %vm3862, %v5055, 0
        %v5109 = vsel %vm3862, %v5056, 0
        %v5112 = vsel %vm3862, %v5057, 0
        %v5115 = vsel %vm3862, %v5058, 0
        %v5118 = vsel %vm3862, %v5059, 0
        %v5121 = vsel %vm3862, %v5060, 0
        %v5124 = vsel %vm3862, %v5061, 0
        %v5127 = vsel %vm3862, %v5062, 0
        %v5130 = vsel %vm3862, %v5063, 0
        %v5133 = vsel %vm3862, %v5064, 0
        %v5136 = vsel %vm3862, %v5065, 0
        %v5139 = vsel %vm3862, %v5066, 0
        %v5142 = vsel %vm3862, %v5067, 0
        %v5145 = vsel %vm3862, %v5068, 0
        %v5148 = vsel %vm3862, %v5069, 0
        %v5151 = vsel %vm3862, %v5070, 0
        %v5154 = vsel %vm3862, %v5071, 0
        %v5157 = vsel %vm3862, %v5072, 0
        %v5160 = vsel %vm3862, %v5073, 0
        %v5163 = vsel %vm3862, %v5074, 0
        %v5166 = vsel %vm3862, %v5075, 0
        %v5169 = vsel %vm3862, %v5076, 0
        %v5172 = vsel %vm3862, %v5077, 0
        %v5175 = vsel %vm3862, %v5078, 0
        %5177 = vmatprep.subr.mxu0 0.0
        %5178 = vmatpush1.msra.mxu0 0.0
        %5179 = vmatprep.subr.mxu0 0.0
        %5180 = vmatpush1.msra.mxu0 0.0
        %5181 = vmatprep.subr.mxu0 0.0
        %5182 = vmatpush1.msra.mxu0 0.0
        %5183 = vmatprep.subr.mxu0 0.0
        %5184 = vmatpush1.msra.mxu0 0.0
        %5185 = vmatprep.subr.mxu0 0.0
        %5186 = vmatpush1.msra.mxu0 0.0
        %5187 = vmatprep.subr.mxu0 0.0
        %5188 = vmatpush1.msra.mxu0 0.0
        %5189 = vmatprep.subr.mxu0 0.0
        %5190 = vmatpush1.msra.mxu0 0.0
        %5191 = vmatprep.subr.mxu0 0.0
        %5192 = vmatpush1.msra.mxu0 0.0
        %5193 = vmatprep.subr.mxu0 0.0
        %5194 = vmatpush1.msra.mxu0 0.0
        %5195 = vmatprep.subr.mxu0 0.0
        %5196 = vmatpush1.msra.mxu0 0.0
        %5197 = vmatprep.subr.mxu0 0.0
        %5198 = vmatpush1.msra.mxu0 0.0
        %5199 = vmatprep.subr.mxu0 0.0
        %5200 = vmatpush1.msra.mxu0 0.0
        %5201 = vmatprep.subr.mxu0 0.0
        %5202 = vmatpush1.msra.mxu0 0.0
        %5203 = vmatprep.subr.mxu0 0.0
        %5204 = vmatpush1.msra.mxu0 0.0
        %5205 = vmatprep.subr.mxu0 0.0
        %5206 = vmatpush1.msra.mxu0 0.0
        %5207 = vmatprep.subr.mxu0 0.0
        %5208 = vmatpush1.msra.mxu0 %v5080
        %5209 = vmatprep.subr.mxu0 0.0
        %5210 = vmatpush2.msra.mxu0 0.0
        %5211 = vmatprep.subr.mxu0 0.0
        %5212 = vmatpush2.msra.mxu0 0.0
        %5213 = vmatprep.subr.mxu0 0.0
        %5214 = vmatpush2.msra.mxu0 0.0
        %5215 = vmatprep.subr.mxu0 0.0
        %5216 = vmatpush2.msra.mxu0 0.0
        %5217 = vmatprep.subr.mxu0 0.0
        %5218 = vmatpush2.msra.mxu0 0.0
        %5219 = vmatprep.subr.mxu0 0.0
        %5220 = vmatpush2.msra.mxu0 0.0
        %5221 = vmatprep.subr.mxu0 0.0
        %5222 = vmatpush2.msra.mxu0 0.0
        %5223 = vmatprep.subr.mxu0 0.0
        %5224 = vmatpush2.msra.mxu0 0.0
        %5225 = vmatprep.subr.mxu0 0.0
        %5226 = vmatpush2.msra.mxu0 0.0
        %5227 = vmatprep.subr.mxu0 0.0
        %5228 = vmatpush2.msra.mxu0 0.0
        %5229 = vmatprep.subr.mxu0 0.0
        %5230 = vmatpush2.msra.mxu0 0.0
        %5231 = vmatprep.subr.mxu0 0.0
        %5232 = vmatpush2.msra.mxu0 0.0
        %5233 = vmatprep.subr.mxu0 0.0
        %5234 = vmatpush2.msra.mxu0 0.0
        %5235 = vmatprep.subr.mxu0 0.0
        %5236 = vmatpush2.msra.mxu0 0.0
        %5237 = vmatprep.subr.mxu0 0.0
        %5238 = vmatpush2.msra.mxu0 0.0
        %5239 = vmatprep.subr.mxu0 0.0
        %5240 = vmatpush2.msra.mxu0 0.0
        %5241 = vmatprep.mubr.f32.mxu0 0.0
        %5242 = vmatmul.mubr.f32.gmra.mxu0 %v5082
        %v5243 = vpop.f32.mrf.mxu0
        %v5244 = vadd.f32 0.0, %v5243
        %v5245 = vpop.f32.mrf.mxu0
        %5246 = vmatprep.mubr.f32.mxu0 0.0
        %5247 = vmatmul.mubr.f32.gmra.mxu0 %v5085
        %v5248 = vpop.f32.mrf.mxu0
        %v5249 = vadd.f32 0.0, %v5248
        %v5250 = vpop.f32.mrf.mxu0
        %5251 = vmatprep.mubr.f32.mxu0 0.0
        %5252 = vmatmul.mubr.f32.gmra.mxu0 %v5088
        %v5253 = vpop.f32.mrf.mxu0
        %v5254 = vadd.f32 0.0, %v5253
        %v5255 = vpop.f32.mrf.mxu0
        %5256 = vmatprep.mubr.f32.mxu0 0.0
        %5257 = vmatmul.mubr.f32.gmra.mxu0 %v5091
        %v5258 = vpop.f32.mrf.mxu0
        %v5259 = vadd.f32 0.0, %v5258
        %v5260 = vpop.f32.mrf.mxu0
        %5261 = vmatprep.mubr.f32.mxu0 0.0
        %5262 = vmatmul.mubr.f32.gmra.mxu0 %v5094
        %v5263 = vpop.f32.mrf.mxu0
        %v5264 = vadd.f32 0.0, %v5263
        %v5265 = vpop.f32.mrf.mxu0
        %5266 = vmatprep.mubr.f32.mxu0 0.0
        %5267 = vmatmul.mubr.f32.gmra.mxu0 %v5097
        %v5268 = vpop.f32.mrf.mxu0
        %v5269 = vadd.f32 0.0, %v5268
        %v5270 = vpop.f32.mrf.mxu0
        %5271 = vmatprep.mubr.f32.mxu0 0.0
        %5272 = vmatmul.mubr.f32.gmra.mxu0 %v5100
        %v5273 = vpop.f32.mrf.mxu0
        %v5274 = vadd.f32 0.0, %v5273
        %v5275 = vpop.f32.mrf.mxu0
        %5276 = vmatprep.mubr.f32.mxu0 0.0
        %5277 = vmatmul.mubr.f32.gmra.mxu0 %v5103
        %v5278 = vpop.f32.mrf.mxu0
        %v5279 = vadd.f32 0.0, %v5278
        %v5280 = vpop.f32.mrf.mxu0
        %5281 = vmatprep.mubr.f32.mxu0 0.0
        %5282 = vmatmul.mubr.f32.gmra.mxu0 %v5106
        %v5283 = vpop.f32.mrf.mxu0
        %v5284 = vadd.f32 0.0, %v5283
        %v5285 = vpop.f32.mrf.mxu0
        %5286 = vmatprep.mubr.f32.mxu0 0.0
        %5287 = vmatmul.mubr.f32.gmra.mxu0 %v5109
        %v5288 = vpop.f32.mrf.mxu0
        %v5289 = vadd.f32 0.0, %v5288
        %v5290 = vpop.f32.mrf.mxu0
        %5291 = vmatprep.mubr.f32.mxu0 0.0
        %5292 = vmatmul.mubr.f32.gmra.mxu0 %v5112
        %v5293 = vpop.f32.mrf.mxu0
        %v5294 = vadd.f32 0.0, %v5293
        %v5295 = vpop.f32.mrf.mxu0
        %5296 = vmatprep.mubr.f32.mxu0 0.0
        %5297 = vmatmul.mubr.f32.gmra.mxu0 %v5115
        %v5298 = vpop.f32.mrf.mxu0
        %v5299 = vadd.f32 0.0, %v5298
        %v5300 = vpop.f32.mrf.mxu0
        %5301 = vmatprep.mubr.f32.mxu0 0.0
        %5302 = vmatmul.mubr.f32.gmra.mxu0 %v5118
        %v5303 = vpop.f32.mrf.mxu0
        %v5304 = vadd.f32 0.0, %v5303
        %v5305 = vpop.f32.mrf.mxu0
        %5306 = vmatprep.mubr.f32.mxu0 0.0
        %5307 = vmatmul.mubr.f32.gmra.mxu0 %v5121
        %v5308 = vpop.f32.mrf.mxu0
        %v5309 = vadd.f32 0.0, %v5308
        %v5310 = vpop.f32.mrf.mxu0
        %5311 = vmatprep.mubr.f32.mxu0 0.0
        %5312 = vmatmul.mubr.f32.gmra.mxu0 %v5124
        %v5313 = vpop.f32.mrf.mxu0
        %v5314 = vadd.f32 0.0, %v5313
        %v5315 = vpop.f32.mrf.mxu0
        %5316 = vmatprep.mubr.f32.mxu0 0.0
        %5317 = vmatmul.mubr.f32.gmra.mxu0 %v5127
        %v5318 = vpop.f32.mrf.mxu0
        %v5319 = vadd.f32 0.0, %v5318
        %v5320 = vpop.f32.mrf.mxu0
        %5321 = vmatprep.mubr.f32.mxu0 0.0
        %5322 = vmatmul.mubr.f32.gmra.mxu0 %v5130
        %v5323 = vpop.f32.mrf.mxu0
        %v5324 = vadd.f32 0.0, %v5323
        %v5325 = vpop.f32.mrf.mxu0
        %5326 = vmatprep.mubr.f32.mxu0 0.0
        %5327 = vmatmul.mubr.f32.gmra.mxu0 %v5133
        %v5328 = vpop.f32.mrf.mxu0
        %v5329 = vadd.f32 0.0, %v5328
        %v5330 = vpop.f32.mrf.mxu0
        %5331 = vmatprep.mubr.f32.mxu0 0.0
        %5332 = vmatmul.mubr.f32.gmra.mxu0 %v5136
        %v5333 = vpop.f32.mrf.mxu0
        %v5334 = vadd.f32 0.0, %v5333
        %v5335 = vpop.f32.mrf.mxu0
        %5336 = vmatprep.mubr.f32.mxu0 0.0
        %5337 = vmatmul.mubr.f32.gmra.mxu0 %v5139
        %v5338 = vpop.f32.mrf.mxu0
        %v5339 = vadd.f32 0.0, %v5338
        %v5340 = vpop.f32.mrf.mxu0
        %5341 = vmatprep.mubr.f32.mxu0 0.0
        %5342 = vmatmul.mubr.f32.gmra.mxu0 %v5142
        %v5343 = vpop.f32.mrf.mxu0
        %v5344 = vadd.f32 0.0, %v5343
        %v5345 = vpop.f32.mrf.mxu0
        %5346 = vmatprep.mubr.f32.mxu0 0.0
        %5347 = vmatmul.mubr.f32.gmra.mxu0 %v5145
        %v5348 = vpop.f32.mrf.mxu0
        %v5349 = vadd.f32 0.0, %v5348
        %v5350 = vpop.f32.mrf.mxu0
        %5351 = vmatprep.mubr.f32.mxu0 0.0
        %5352 = vmatmul.mubr.f32.gmra.mxu0 %v5148
        %v5353 = vpop.f32.mrf.mxu0
        %v5354 = vadd.f32 0.0, %v5353
        %v5355 = vpop.f32.mrf.mxu0
        %5356 = vmatprep.mubr.f32.mxu0 0.0
        %5357 = vmatmul.mubr.f32.gmra.mxu0 %v5151
        %v5358 = vpop.f32.mrf.mxu0
        %v5359 = vadd.f32 0.0, %v5358
        %v5360 = vpop.f32.mrf.mxu0
        %5361 = vmatprep.mubr.f32.mxu0 0.0
        %5362 = vmatmul.mubr.f32.gmra.mxu0 %v5154
        %v5363 = vpop.f32.mrf.mxu0
        %v5364 = vadd.f32 0.0, %v5363
        %v5365 = vpop.f32.mrf.mxu0
        %5366 = vmatprep.mubr.f32.mxu0 0.0
        %5367 = vmatmul.mubr.f32.gmra.mxu0 %v5157
        %v5368 = vpop.f32.mrf.mxu0
        %v5369 = vadd.f32 0.0, %v5368
        %v5370 = vpop.f32.mrf.mxu0
        %5371 = vmatprep.mubr.f32.mxu0 0.0
        %5372 = vmatmul.mubr.f32.gmra.mxu0 %v5160
        %v5373 = vpop.f32.mrf.mxu0
        %v5374 = vadd.f32 0.0, %v5373
        %v5375 = vpop.f32.mrf.mxu0
        %5376 = vmatprep.mubr.f32.mxu0 0.0
        %5377 = vmatmul.mubr.f32.gmra.mxu0 %v5163
        %v5378 = vpop.f32.mrf.mxu0
        %v5379 = vadd.f32 0.0, %v5378
        %v5380 = vpop.f32.mrf.mxu0
        %5381 = vmatprep.mubr.f32.mxu0 0.0
        %5382 = vmatmul.mubr.f32.gmra.mxu0 %v5166
        %v5383 = vpop.f32.mrf.mxu0
        %v5384 = vadd.f32 0.0, %v5383
        %v5385 = vpop.f32.mrf.mxu0
        %5386 = vmatprep.mubr.f32.mxu0 0.0
        %5387 = vmatmul.mubr.f32.gmra.mxu0 %v5169
        %v5388 = vpop.f32.mrf.mxu0
        %v5389 = vadd.f32 0.0, %v5388
        %v5390 = vpop.f32.mrf.mxu0
        %5391 = vmatprep.mubr.f32.mxu0 0.0
        %5392 = vmatmul.mubr.f32.gmra.mxu0 %v5172
        %v5393 = vpop.f32.mrf.mxu0
        %v5394 = vadd.f32 0.0, %v5393
        %v5395 = vpop.f32.mrf.mxu0
        %5396 = vmatprep.mubr.f32.mxu0 0.0
        %5397 = vmatmul.mubr.f32.gmra.mxu0 %v5175
        %v5398 = vpop.f32.mrf.mxu0
        %v5399 = vadd.f32 0.0, %v5398
        %v5400 = vpop.f32.mrf.mxu0
        %5401 = vdwg.mxu0
        %v5402 = vadd.f32 %v5015, %v5244
        %v5403 = vadd.f32 %v5016, %v5249
        %v5404 = vadd.f32 %v5017, %v5254
        %v5405 = vadd.f32 %v5018, %v5259
        %v5406 = vadd.f32 %v5019, %v5264
        %v5407 = vadd.f32 %v5020, %v5269
        %v5408 = vadd.f32 %v5021, %v5274
        %v5409 = vadd.f32 %v5022, %v5279
        %v5410 = vadd.f32 %v5023, %v5284
        %v5411 = vadd.f32 %v5024, %v5289
        %v5412 = vadd.f32 %v5025, %v5294
        %v5413 = vadd.f32 %v5026, %v5299
        %v5414 = vadd.f32 %v5027, %v5304
        %v5415 = vadd.f32 %v5028, %v5309
        %v5416 = vadd.f32 %v5029, %v5314
        %v5417 = vadd.f32 %v5030, %v5319
        %v5418 = vadd.f32 %v5031, %v5324
        %v5419 = vadd.f32 %v5032, %v5329
        %v5420 = vadd.f32 %v5033, %v5334
        %v5421 = vadd.f32 %v5034, %v5339
        %v5422 = vadd.f32 %v5035, %v5344
        %v5423 = vadd.f32 %v5036, %v5349
        %v5424 = vadd.f32 %v5037, %v5354
        %v5425 = vadd.f32 %v5038, %v5359
        %v5426 = vadd.f32 %v5039, %v5364
        %v5427 = vadd.f32 %v5040, %v5369
        %v5428 = vadd.f32 %v5041, %v5374
        %v5429 = vadd.f32 %v5042, %v5379
        %v5430 = vadd.f32 %v5043, %v5384
        %v5431 = vadd.f32 %v5044, %v5389
        %v5432 = vadd.f32 %v5045, %v5394
        %v5433 = vadd.f32 %v5046, %v5399
        %v5434 = vld [vmem:[%s3918 + $0x1] sm:$0xff]
        %v5435 = vld [vmem:[%s3918 + $0x9] sm:$0xff]
        %v5436 = vld [vmem:[%s3918 + $0x19] sm:$0xff]
        %v5437 = vld [vmem:[%s3918 + $0x21] sm:$0xff]
        %v5438 = vld [vmem:[%s3918 + $0x31] sm:$0xff]
        %v5439 = vld [vmem:[%s3918 + $0x39] sm:$0xff]
        %v5440 = vld [vmem:[%s3918 + $0x49] sm:$0xff]
        %v5441 = vld [vmem:[%s3918 + $0x51] sm:$0xff]
        %v5442 = vld [vmem:[%s3918 + $0x61] sm:$0xff]
        %v5443 = vld [vmem:[%s3918 + $0x69] sm:$0xff]
        %v5444 = vld [vmem:[%s3918 + $0x79] sm:$0xff]
        %v5445 = vld [vmem:[%s3918 + $0x81] sm:$0xff]
        %v5446 = vld [vmem:[%s3918 + $0x91] sm:$0xff]
        %v5447 = vld [vmem:[%s3918 + $0x99] sm:$0xff]
        %v5448 = vld [vmem:[%s3918 + $0xa9] sm:$0xff]
        %v5449 = vld [vmem:[%s3918 + $0xb1] sm:$0xff]
        %v5450 = vld [vmem:[%s3918 + $0xc1] sm:$0xff]
        %v5451 = vld [vmem:[%s3918 + $0xc9] sm:$0xff]
        %v5452 = vld [vmem:[%s3918 + $0xd9] sm:$0xff]
        %v5453 = vld [vmem:[%s3918 + $0xe1] sm:$0xff]
        %v5454 = vld [vmem:[%s3918 + $0xf1] sm:$0xff]
        %v5455 = vld [vmem:[%s3918 + $0xf9] sm:$0xff]
        %v5456 = vld [vmem:[%s3918 + $0x109] sm:$0xff]
        %v5457 = vld [vmem:[%s3918 + $0x111] sm:$0xff]
        %v5458 = vld [vmem:[%s3918 + $0x121] sm:$0xff]
        %v5459 = vld [vmem:[%s3918 + $0x129] sm:$0xff]
        %v5460 = vld [vmem:[%s3918 + $0x139] sm:$0xff]
        %v5461 = vld [vmem:[%s3918 + $0x141] sm:$0xff]
        %v5462 = vld [vmem:[%s3918 + $0x151] sm:$0xff]
        %v5463 = vld [vmem:[%s3918 + $0x159] sm:$0xff]
        %v5464 = vld [vmem:[%s3918 + $0x169] sm:$0xff]
        %v5465 = vld [vmem:[%s3918 + $0x171] sm:$0xff]
        %s5466 = scalar_lea.vmem %s3, 32
        %v5467 = vld [vmem:[%s5466] sm:$0xff]
        %v5469 = vsel %vm3862, %v5434, 0
        %v5472 = vsel %vm3862, %v5435, 0
        %v5475 = vsel %vm3862, %v5436, 0
        %v5478 = vsel %vm3862, %v5437, 0
        %v5481 = vsel %vm3862, %v5438, 0
        %v5484 = vsel %vm3862, %v5439, 0
        %v5487 = vsel %vm3862, %v5440, 0
        %v5490 = vsel %vm3862, %v5441, 0
        %v5493 = vsel %vm3862, %v5442, 0
        %v5496 = vsel %vm3862, %v5443, 0
        %v5499 = vsel %vm3862, %v5444, 0
        %v5502 = vsel %vm3862, %v5445, 0
        %v5505 = vsel %vm3862, %v5446, 0
        %v5508 = vsel %vm3862, %v5447, 0
        %v5511 = vsel %vm3862, %v5448, 0
        %v5514 = vsel %vm3862, %v5449, 0
        %v5517 = vsel %vm3862, %v5450, 0
        %v5520 = vsel %vm3862, %v5451, 0
        %v5523 = vsel %vm3862, %v5452, 0
        %v5526 = vsel %vm3862, %v5453, 0
        %v5529 = vsel %vm3862, %v5454, 0
        %v5532 = vsel %vm3862, %v5455, 0
        %v5535 = vsel %vm3862, %v5456, 0
        %v5538 = vsel %vm3862, %v5457, 0
        %v5541 = vsel %vm3862, %v5458, 0
        %v5544 = vsel %vm3862, %v5459, 0
        %v5547 = vsel %vm3862, %v5460, 0
        %v5550 = vsel %vm3862, %v5461, 0
        %v5553 = vsel %vm3862, %v5462, 0
        %v5556 = vsel %vm3862, %v5463, 0
        %v5559 = vsel %vm3862, %v5464, 0
        %v5562 = vsel %vm3862, %v5465, 0
        %5564 = vmatprep.subr.mxu0 0.0
        %5565 = vmatpush1.msra.mxu0 0.0
        %5566 = vmatprep.subr.mxu0 0.0
        %5567 = vmatpush1.msra.mxu0 0.0
        %5568 = vmatprep.subr.mxu0 0.0
        %5569 = vmatpush1.msra.mxu0 0.0
        %5570 = vmatprep.subr.mxu0 0.0
        %5571 = vmatpush1.msra.mxu0 0.0
        %5572 = vmatprep.subr.mxu0 0.0
        %5573 = vmatpush1.msra.mxu0 0.0
        %5574 = vmatprep.subr.mxu0 0.0
        %5575 = vmatpush1.msra.mxu0 0.0
        %5576 = vmatprep.subr.mxu0 0.0
        %5577 = vmatpush1.msra.mxu0 0.0
        %5578 = vmatprep.subr.mxu0 0.0
        %5579 = vmatpush1.msra.mxu0 0.0
        %5580 = vmatprep.subr.mxu0 0.0
        %5581 = vmatpush1.msra.mxu0 0.0
        %5582 = vmatprep.subr.mxu0 0.0
        %5583 = vmatpush1.msra.mxu0 0.0
        %5584 = vmatprep.subr.mxu0 0.0
        %5585 = vmatpush1.msra.mxu0 0.0
        %5586 = vmatprep.subr.mxu0 0.0
        %5587 = vmatpush1.msra.mxu0 0.0
        %5588 = vmatprep.subr.mxu0 0.0
        %5589 = vmatpush1.msra.mxu0 0.0
        %5590 = vmatprep.subr.mxu0 0.0
        %5591 = vmatpush1.msra.mxu0 0.0
        %5592 = vmatprep.subr.mxu0 0.0
        %5593 = vmatpush1.msra.mxu0 0.0
        %5594 = vmatprep.subr.mxu0 0.0
        %5595 = vmatpush1.msra.mxu0 %v5467
        %5596 = vmatprep.subr.mxu0 0.0
        %5597 = vmatpush2.msra.mxu0 0.0
        %5598 = vmatprep.subr.mxu0 0.0
        %5599 = vmatpush2.msra.mxu0 0.0
        %5600 = vmatprep.subr.mxu0 0.0
        %5601 = vmatpush2.msra.mxu0 0.0
        %5602 = vmatprep.subr.mxu0 0.0
        %5603 = vmatpush2.msra.mxu0 0.0
        %5604 = vmatprep.subr.mxu0 0.0
        %5605 = vmatpush2.msra.mxu0 0.0
        %5606 = vmatprep.subr.mxu0 0.0
        %5607 = vmatpush2.msra.mxu0 0.0
        %5608 = vmatprep.subr.mxu0 0.0
        %5609 = vmatpush2.msra.mxu0 0.0
        %5610 = vmatprep.subr.mxu0 0.0
        %5611 = vmatpush2.msra.mxu0 0.0
        %5612 = vmatprep.subr.mxu0 0.0
        %5613 = vmatpush2.msra.mxu0 0.0
        %5614 = vmatprep.subr.mxu0 0.0
        %5615 = vmatpush2.msra.mxu0 0.0
        %5616 = vmatprep.subr.mxu0 0.0
        %5617 = vmatpush2.msra.mxu0 0.0
        %5618 = vmatprep.subr.mxu0 0.0
        %5619 = vmatpush2.msra.mxu0 0.0
        %5620 = vmatprep.subr.mxu0 0.0
        %5621 = vmatpush2.msra.mxu0 0.0
        %5622 = vmatprep.subr.mxu0 0.0
        %5623 = vmatpush2.msra.mxu0 0.0
        %5624 = vmatprep.subr.mxu0 0.0
        %5625 = vmatpush2.msra.mxu0 0.0
        %5626 = vmatprep.subr.mxu0 0.0
        %5627 = vmatpush2.msra.mxu0 0.0
        %5628 = vmatprep.mubr.f32.mxu0 0.0
        %5629 = vmatmul.mubr.f32.gmra.mxu0 %v5469
        %v5630 = vpop.f32.mrf.mxu0
        %v5631 = vadd.f32 0.0, %v5630
        %v5632 = vpop.f32.mrf.mxu0
        %5633 = vmatprep.mubr.f32.mxu0 0.0
        %5634 = vmatmul.mubr.f32.gmra.mxu0 %v5472
        %v5635 = vpop.f32.mrf.mxu0
        %v5636 = vadd.f32 0.0, %v5635
        %v5637 = vpop.f32.mrf.mxu0
        %5638 = vmatprep.mubr.f32.mxu0 0.0
        %5639 = vmatmul.mubr.f32.gmra.mxu0 %v5475
        %v5640 = vpop.f32.mrf.mxu0
        %v5641 = vadd.f32 0.0, %v5640
        %v5642 = vpop.f32.mrf.mxu0
        %5643 = vmatprep.mubr.f32.mxu0 0.0
        %5644 = vmatmul.mubr.f32.gmra.mxu0 %v5478
        %v5645 = vpop.f32.mrf.mxu0
        %v5646 = vadd.f32 0.0, %v5645
        %v5647 = vpop.f32.mrf.mxu0
        %5648 = vmatprep.mubr.f32.mxu0 0.0
        %5649 = vmatmul.mubr.f32.gmra.mxu0 %v5481
        %v5650 = vpop.f32.mrf.mxu0
        %v5651 = vadd.f32 0.0, %v5650
        %v5652 = vpop.f32.mrf.mxu0
        %5653 = vmatprep.mubr.f32.mxu0 0.0
        %5654 = vmatmul.mubr.f32.gmra.mxu0 %v5484
        %v5655 = vpop.f32.mrf.mxu0
        %v5656 = vadd.f32 0.0, %v5655
        %v5657 = vpop.f32.mrf.mxu0
        %5658 = vmatprep.mubr.f32.mxu0 0.0
        %5659 = vmatmul.mubr.f32.gmra.mxu0 %v5487
        %v5660 = vpop.f32.mrf.mxu0
        %v5661 = vadd.f32 0.0, %v5660
        %v5662 = vpop.f32.mrf.mxu0
        %5663 = vmatprep.mubr.f32.mxu0 0.0
        %5664 = vmatmul.mubr.f32.gmra.mxu0 %v5490
        %v5665 = vpop.f32.mrf.mxu0
        %v5666 = vadd.f32 0.0, %v5665
        %v5667 = vpop.f32.mrf.mxu0
        %5668 = vmatprep.mubr.f32.mxu0 0.0
        %5669 = vmatmul.mubr.f32.gmra.mxu0 %v5493
        %v5670 = vpop.f32.mrf.mxu0
        %v5671 = vadd.f32 0.0, %v5670
        %v5672 = vpop.f32.mrf.mxu0
        %5673 = vmatprep.mubr.f32.mxu0 0.0
        %5674 = vmatmul.mubr.f32.gmra.mxu0 %v5496
        %v5675 = vpop.f32.mrf.mxu0
        %v5676 = vadd.f32 0.0, %v5675
        %v5677 = vpop.f32.mrf.mxu0
        %5678 = vmatprep.mubr.f32.mxu0 0.0
        %5679 = vmatmul.mubr.f32.gmra.mxu0 %v5499
        %v5680 = vpop.f32.mrf.mxu0
        %v5681 = vadd.f32 0.0, %v5680
        %v5682 = vpop.f32.mrf.mxu0
        %5683 = vmatprep.mubr.f32.mxu0 0.0
        %5684 = vmatmul.mubr.f32.gmra.mxu0 %v5502
        %v5685 = vpop.f32.mrf.mxu0
        %v5686 = vadd.f32 0.0, %v5685
        %v5687 = vpop.f32.mrf.mxu0
        %5688 = vmatprep.mubr.f32.mxu0 0.0
        %5689 = vmatmul.mubr.f32.gmra.mxu0 %v5505
        %v5690 = vpop.f32.mrf.mxu0
        %v5691 = vadd.f32 0.0, %v5690
        %v5692 = vpop.f32.mrf.mxu0
        %5693 = vmatprep.mubr.f32.mxu0 0.0
        %5694 = vmatmul.mubr.f32.gmra.mxu0 %v5508
        %v5695 = vpop.f32.mrf.mxu0
        %v5696 = vadd.f32 0.0, %v5695
        %v5697 = vpop.f32.mrf.mxu0
        %5698 = vmatprep.mubr.f32.mxu0 0.0
        %5699 = vmatmul.mubr.f32.gmra.mxu0 %v5511
        %v5700 = vpop.f32.mrf.mxu0
        %v5701 = vadd.f32 0.0, %v5700
        %v5702 = vpop.f32.mrf.mxu0
        %5703 = vmatprep.mubr.f32.mxu0 0.0
        %5704 = vmatmul.mubr.f32.gmra.mxu0 %v5514
        %v5705 = vpop.f32.mrf.mxu0
        %v5706 = vadd.f32 0.0, %v5705
        %v5707 = vpop.f32.mrf.mxu0
        %5708 = vmatprep.mubr.f32.mxu0 0.0
        %5709 = vmatmul.mubr.f32.gmra.mxu0 %v5517
        %v5710 = vpop.f32.mrf.mxu0
        %v5711 = vadd.f32 0.0, %v5710
        %v5712 = vpop.f32.mrf.mxu0
        %5713 = vmatprep.mubr.f32.mxu0 0.0
        %5714 = vmatmul.mubr.f32.gmra.mxu0 %v5520
        %v5715 = vpop.f32.mrf.mxu0
        %v5716 = vadd.f32 0.0, %v5715
        %v5717 = vpop.f32.mrf.mxu0
        %5718 = vmatprep.mubr.f32.mxu0 0.0
        %5719 = vmatmul.mubr.f32.gmra.mxu0 %v5523
        %v5720 = vpop.f32.mrf.mxu0
        %v5721 = vadd.f32 0.0, %v5720
        %v5722 = vpop.f32.mrf.mxu0
        %5723 = vmatprep.mubr.f32.mxu0 0.0
        %5724 = vmatmul.mubr.f32.gmra.mxu0 %v5526
        %v5725 = vpop.f32.mrf.mxu0
        %v5726 = vadd.f32 0.0, %v5725
        %v5727 = vpop.f32.mrf.mxu0
        %5728 = vmatprep.mubr.f32.mxu0 0.0
        %5729 = vmatmul.mubr.f32.gmra.mxu0 %v5529
        %v5730 = vpop.f32.mrf.mxu0
        %v5731 = vadd.f32 0.0, %v5730
        %v5732 = vpop.f32.mrf.mxu0
        %5733 = vmatprep.mubr.f32.mxu0 0.0
        %5734 = vmatmul.mubr.f32.gmra.mxu0 %v5532
        %v5735 = vpop.f32.mrf.mxu0
        %v5736 = vadd.f32 0.0, %v5735
        %v5737 = vpop.f32.mrf.mxu0
        %5738 = vmatprep.mubr.f32.mxu0 0.0
        %5739 = vmatmul.mubr.f32.gmra.mxu0 %v5535
        %v5740 = vpop.f32.mrf.mxu0
        %v5741 = vadd.f32 0.0, %v5740
        %v5742 = vpop.f32.mrf.mxu0
        %5743 = vmatprep.mubr.f32.mxu0 0.0
        %5744 = vmatmul.mubr.f32.gmra.mxu0 %v5538
        %v5745 = vpop.f32.mrf.mxu0
        %v5746 = vadd.f32 0.0, %v5745
        %v5747 = vpop.f32.mrf.mxu0
        %5748 = vmatprep.mubr.f32.mxu0 0.0
        %5749 = vmatmul.mubr.f32.gmra.mxu0 %v5541
        %v5750 = vpop.f32.mrf.mxu0
        %v5751 = vadd.f32 0.0, %v5750
        %v5752 = vpop.f32.mrf.mxu0
        %5753 = vmatprep.mubr.f32.mxu0 0.0
        %5754 = vmatmul.mubr.f32.gmra.mxu0 %v5544
        %v5755 = vpop.f32.mrf.mxu0
        %v5756 = vadd.f32 0.0, %v5755
        %v5757 = vpop.f32.mrf.mxu0
        %5758 = vmatprep.mubr.f32.mxu0 0.0
        %5759 = vmatmul.mubr.f32.gmra.mxu0 %v5547
        %v5760 = vpop.f32.mrf.mxu0
        %v5761 = vadd.f32 0.0, %v5760
        %v5762 = vpop.f32.mrf.mxu0
        %5763 = vmatprep.mubr.f32.mxu0 0.0
        %5764 = vmatmul.mubr.f32.gmra.mxu0 %v5550
        %v5765 = vpop.f32.mrf.mxu0
        %v5766 = vadd.f32 0.0, %v5765
        %v5767 = vpop.f32.mrf.mxu0
        %5768 = vmatprep.mubr.f32.mxu0 0.0
        %5769 = vmatmul.mubr.f32.gmra.mxu0 %v5553
        %v5770 = vpop.f32.mrf.mxu0
        %v5771 = vadd.f32 0.0, %v5770
        %v5772 = vpop.f32.mrf.mxu0
        %5773 = vmatprep.mubr.f32.mxu0 0.0
        %5774 = vmatmul.mubr.f32.gmra.mxu0 %v5556
        %v5775 = vpop.f32.mrf.mxu0
        %v5776 = vadd.f32 0.0, %v5775
        %v5777 = vpop.f32.mrf.mxu0
        %5778 = vmatprep.mubr.f32.mxu0 0.0
        %5779 = vmatmul.mubr.f32.gmra.mxu0 %v5559
        %v5780 = vpop.f32.mrf.mxu0
        %v5781 = vadd.f32 0.0, %v5780
        %v5782 = vpop.f32.mrf.mxu0
        %5783 = vmatprep.mubr.f32.mxu0 0.0
        %5784 = vmatmul.mubr.f32.gmra.mxu0 %v5562
        %v5785 = vpop.f32.mrf.mxu0
        %v5786 = vadd.f32 0.0, %v5785
        %v5787 = vpop.f32.mrf.mxu0
        %5788 = vdwg.mxu0
        %v5789 = vadd.f32 %v5402, %v5631
        %v5790 = vadd.f32 %v5403, %v5636
        %v5791 = vadd.f32 %v5404, %v5641
        %v5792 = vadd.f32 %v5405, %v5646
        %v5793 = vadd.f32 %v5406, %v5651
        %v5794 = vadd.f32 %v5407, %v5656
        %v5795 = vadd.f32 %v5408, %v5661
        %v5796 = vadd.f32 %v5409, %v5666
        %v5797 = vadd.f32 %v5410, %v5671
        %v5798 = vadd.f32 %v5411, %v5676
        %v5799 = vadd.f32 %v5412, %v5681
        %v5800 = vadd.f32 %v5413, %v5686
        %v5801 = vadd.f32 %v5414, %v5691
        %v5802 = vadd.f32 %v5415, %v5696
        %v5803 = vadd.f32 %v5416, %v5701
        %v5804 = vadd.f32 %v5417, %v5706
        %v5805 = vadd.f32 %v5418, %v5711
        %v5806 = vadd.f32 %v5419, %v5716
        %v5807 = vadd.f32 %v5420, %v5721
        %v5808 = vadd.f32 %v5421, %v5726
        %v5809 = vadd.f32 %v5422, %v5731
        %v5810 = vadd.f32 %v5423, %v5736
        %v5811 = vadd.f32 %v5424, %v5741
        %v5812 = vadd.f32 %v5425, %v5746
        %v5813 = vadd.f32 %v5426, %v5751
        %v5814 = vadd.f32 %v5427, %v5756
        %v5815 = vadd.f32 %v5428, %v5761
        %v5816 = vadd.f32 %v5429, %v5766
        %v5817 = vadd.f32 %v5430, %v5771
        %v5818 = vadd.f32 %v5431, %v5776
        %v5819 = vadd.f32 %v5432, %v5781
        %v5820 = vadd.f32 %v5433, %v5786
        %v5821 = vld [vmem:[%s3918 + $0x2] sm:$0xff]
        %v5822 = vld [vmem:[%s3918 + $0xa] sm:$0xff]
        %v5823 = vld [vmem:[%s3918 + $0x1a] sm:$0xff]
        %v5824 = vld [vmem:[%s3918 + $0x22] sm:$0xff]
        %v5825 = vld [vmem:[%s3918 + $0x32] sm:$0xff]
        %v5826 = vld [vmem:[%s3918 + $0x3a] sm:$0xff]
        %v5827 = vld [vmem:[%s3918 + $0x4a] sm:$0xff]
        %v5828 = vld [vmem:[%s3918 + $0x52] sm:$0xff]
        %v5829 = vld [vmem:[%s3918 + $0x62] sm:$0xff]
        %v5830 = vld [vmem:[%s3918 + $0x6a] sm:$0xff]
        %v5831 = vld [vmem:[%s3918 + $0x7a] sm:$0xff]
        %v5832 = vld [vmem:[%s3918 + $0x82] sm:$0xff]
        %v5833 = vld [vmem:[%s3918 + $0x92] sm:$0xff]
        %v5834 = vld [vmem:[%s3918 + $0x9a] sm:$0xff]
        %v5835 = vld [vmem:[%s3918 + $0xaa] sm:$0xff]
        %v5836 = vld [vmem:[%s3918 + $0xb2] sm:$0xff]
        %v5837 = vld [vmem:[%s3918 + $0xc2] sm:$0xff]
        %v5838 = vld [vmem:[%s3918 + $0xca] sm:$0xff]
        %v5839 = vld [vmem:[%s3918 + $0xda] sm:$0xff]
        %v5840 = vld [vmem:[%s3918 + $0xe2] sm:$0xff]
        %v5841 = vld [vmem:[%s3918 + $0xf2] sm:$0xff]
        %v5842 = vld [vmem:[%s3918 + $0xfa] sm:$0xff]
        %v5843 = vld [vmem:[%s3918 + $0x10a] sm:$0xff]
        %v5844 = vld [vmem:[%s3918 + $0x112] sm:$0xff]
        %v5845 = vld [vmem:[%s3918 + $0x122] sm:$0xff]
        %v5846 = vld [vmem:[%s3918 + $0x12a] sm:$0xff]
        %v5847 = vld [vmem:[%s3918 + $0x13a] sm:$0xff]
        %v5848 = vld [vmem:[%s3918 + $0x142] sm:$0xff]
        %v5849 = vld [vmem:[%s3918 + $0x152] sm:$0xff]
        %v5850 = vld [vmem:[%s3918 + $0x15a] sm:$0xff]
        %v5851 = vld [vmem:[%s3918 + $0x16a] sm:$0xff]
        %v5852 = vld [vmem:[%s3918 + $0x172] sm:$0xff]
        %s5853 = scalar_lea.vmem %s3, 40
        %v5854 = vld [vmem:[%s5853] sm:$0xff]
        %v5856 = vsel %vm3862, %v5821, 0
        %v5859 = vsel %vm3862, %v5822, 0
        %v5862 = vsel %vm3862, %v5823, 0
        %v5865 = vsel %vm3862, %v5824, 0
        %v5868 = vsel %vm3862, %v5825, 0
        %v5871 = vsel %vm3862, %v5826, 0
        %v5874 = vsel %vm3862, %v5827, 0
        %v5877 = vsel %vm3862, %v5828, 0
        %v5880 = vsel %vm3862, %v5829, 0
        %v5883 = vsel %vm3862, %v5830, 0
        %v5886 = vsel %vm3862, %v5831, 0
        %v5889 = vsel %vm3862, %v5832, 0
        %v5892 = vsel %vm3862, %v5833, 0
        %v5895 = vsel %vm3862, %v5834, 0
        %v5898 = vsel %vm3862, %v5835, 0
        %v5901 = vsel %vm3862, %v5836, 0
        %v5904 = vsel %vm3862, %v5837, 0
        %v5907 = vsel %vm3862, %v5838, 0
        %v5910 = vsel %vm3862, %v5839, 0
        %v5913 = vsel %vm3862, %v5840, 0
        %v5916 = vsel %vm3862, %v5841, 0
        %v5919 = vsel %vm3862, %v5842, 0
        %v5922 = vsel %vm3862, %v5843, 0
        %v5925 = vsel %vm3862, %v5844, 0
        %v5928 = vsel %vm3862, %v5845, 0
        %v5931 = vsel %vm3862, %v5846, 0
        %v5934 = vsel %vm3862, %v5847, 0
        %v5937 = vsel %vm3862, %v5848, 0
        %v5940 = vsel %vm3862, %v5849, 0
        %v5943 = vsel %vm3862, %v5850, 0
        %v5946 = vsel %vm3862, %v5851, 0
        %v5949 = vsel %vm3862, %v5852, 0
        %5951 = vmatprep.subr.mxu0 0.0
        %5952 = vmatpush1.msra.mxu0 0.0
        %5953 = vmatprep.subr.mxu0 0.0
        %5954 = vmatpush1.msra.mxu0 0.0
        %5955 = vmatprep.subr.mxu0 0.0
        %5956 = vmatpush1.msra.mxu0 0.0
        %5957 = vmatprep.subr.mxu0 0.0
        %5958 = vmatpush1.msra.mxu0 0.0
        %5959 = vmatprep.subr.mxu0 0.0
        %5960 = vmatpush1.msra.mxu0 0.0
        %5961 = vmatprep.subr.mxu0 0.0
        %5962 = vmatpush1.msra.mxu0 0.0
        %5963 = vmatprep.subr.mxu0 0.0
        %5964 = vmatpush1.msra.mxu0 0.0
        %5965 = vmatprep.subr.mxu0 0.0
        %5966 = vmatpush1.msra.mxu0 0.0
        %5967 = vmatprep.subr.mxu0 0.0
        %5968 = vmatpush1.msra.mxu0 0.0
        %5969 = vmatprep.subr.mxu0 0.0
        %5970 = vmatpush1.msra.mxu0 0.0
        %5971 = vmatprep.subr.mxu0 0.0
        %5972 = vmatpush1.msra.mxu0 0.0
        %5973 = vmatprep.subr.mxu0 0.0
        %5974 = vmatpush1.msra.mxu0 0.0
        %5975 = vmatprep.subr.mxu0 0.0
        %5976 = vmatpush1.msra.mxu0 0.0
        %5977 = vmatprep.subr.mxu0 0.0
        %5978 = vmatpush1.msra.mxu0 0.0
        %5979 = vmatprep.subr.mxu0 0.0
        %5980 = vmatpush1.msra.mxu0 0.0
        %5981 = vmatprep.subr.mxu0 0.0
        %5982 = vmatpush1.msra.mxu0 %v5854
        %5983 = vmatprep.subr.mxu0 0.0
        %5984 = vmatpush2.msra.mxu0 0.0
        %5985 = vmatprep.subr.mxu0 0.0
        %5986 = vmatpush2.msra.mxu0 0.0
        %5987 = vmatprep.subr.mxu0 0.0
        %5988 = vmatpush2.msra.mxu0 0.0
        %5989 = vmatprep.subr.mxu0 0.0
        %5990 = vmatpush2.msra.mxu0 0.0
        %5991 = vmatprep.subr.mxu0 0.0
        %5992 = vmatpush2.msra.mxu0 0.0
        %5993 = vmatprep.subr.mxu0 0.0
        %5994 = vmatpush2.msra.mxu0 0.0
        %5995 = vmatprep.subr.mxu0 0.0
        %5996 = vmatpush2.msra.mxu0 0.0
        %5997 = vmatprep.subr.mxu0 0.0
        %5998 = vmatpush2.msra.mxu0 0.0
        %5999 = vmatprep.subr.mxu0 0.0
        %6000 = vmatpush2.msra.mxu0 0.0
        %6001 = vmatprep.subr.mxu0 0.0
        %6002 = vmatpush2.msra.mxu0 0.0
        %6003 = vmatprep.subr.mxu0 0.0
        %6004 = vmatpush2.msra.mxu0 0.0
        %6005 = vmatprep.subr.mxu0 0.0
        %6006 = vmatpush2.msra.mxu0 0.0
        %6007 = vmatprep.subr.mxu0 0.0
        %6008 = vmatpush2.msra.mxu0 0.0
        %6009 = vmatprep.subr.mxu0 0.0
        %6010 = vmatpush2.msra.mxu0 0.0
        %6011 = vmatprep.subr.mxu0 0.0
        %6012 = vmatpush2.msra.mxu0 0.0
        %6013 = vmatprep.subr.mxu0 0.0
        %6014 = vmatpush2.msra.mxu0 0.0
        %6015 = vmatprep.mubr.f32.mxu0 0.0
        %6016 = vmatmul.mubr.f32.gmra.mxu0 %v5856
        %v6017 = vpop.f32.mrf.mxu0
        %v6018 = vadd.f32 0.0, %v6017
        %v6019 = vpop.f32.mrf.mxu0
        %6020 = vmatprep.mubr.f32.mxu0 0.0
        %6021 = vmatmul.mubr.f32.gmra.mxu0 %v5859
        %v6022 = vpop.f32.mrf.mxu0
        %v6023 = vadd.f32 0.0, %v6022
        %v6024 = vpop.f32.mrf.mxu0
        %6025 = vmatprep.mubr.f32.mxu0 0.0
        %6026 = vmatmul.mubr.f32.gmra.mxu0 %v5862
        %v6027 = vpop.f32.mrf.mxu0
        %v6028 = vadd.f32 0.0, %v6027
        %v6029 = vpop.f32.mrf.mxu0
        %6030 = vmatprep.mubr.f32.mxu0 0.0
        %6031 = vmatmul.mubr.f32.gmra.mxu0 %v5865
        %v6032 = vpop.f32.mrf.mxu0
        %v6033 = vadd.f32 0.0, %v6032
        %v6034 = vpop.f32.mrf.mxu0
        %6035 = vmatprep.mubr.f32.mxu0 0.0
        %6036 = vmatmul.mubr.f32.gmra.mxu0 %v5868
        %v6037 = vpop.f32.mrf.mxu0
        %v6038 = vadd.f32 0.0, %v6037
        %v6039 = vpop.f32.mrf.mxu0
        %6040 = vmatprep.mubr.f32.mxu0 0.0
        %6041 = vmatmul.mubr.f32.gmra.mxu0 %v5871
        %v6042 = vpop.f32.mrf.mxu0
        %v6043 = vadd.f32 0.0, %v6042
        %v6044 = vpop.f32.mrf.mxu0
        %6045 = vmatprep.mubr.f32.mxu0 0.0
        %6046 = vmatmul.mubr.f32.gmra.mxu0 %v5874
        %v6047 = vpop.f32.mrf.mxu0
        %v6048 = vadd.f32 0.0, %v6047
        %v6049 = vpop.f32.mrf.mxu0
        %6050 = vmatprep.mubr.f32.mxu0 0.0
        %6051 = vmatmul.mubr.f32.gmra.mxu0 %v5877
        %v6052 = vpop.f32.mrf.mxu0
        %v6053 = vadd.f32 0.0, %v6052
        %v6054 = vpop.f32.mrf.mxu0
        %6055 = vmatprep.mubr.f32.mxu0 0.0
        %6056 = vmatmul.mubr.f32.gmra.mxu0 %v5880
        %v6057 = vpop.f32.mrf.mxu0
        %v6058 = vadd.f32 0.0, %v6057
        %v6059 = vpop.f32.mrf.mxu0
        %6060 = vmatprep.mubr.f32.mxu0 0.0
        %6061 = vmatmul.mubr.f32.gmra.mxu0 %v5883
        %v6062 = vpop.f32.mrf.mxu0
        %v6063 = vadd.f32 0.0, %v6062
        %v6064 = vpop.f32.mrf.mxu0
        %6065 = vmatprep.mubr.f32.mxu0 0.0
        %6066 = vmatmul.mubr.f32.gmra.mxu0 %v5886
        %v6067 = vpop.f32.mrf.mxu0
        %v6068 = vadd.f32 0.0, %v6067
        %v6069 = vpop.f32.mrf.mxu0
        %6070 = vmatprep.mubr.f32.mxu0 0.0
        %6071 = vmatmul.mubr.f32.gmra.mxu0 %v5889
        %v6072 = vpop.f32.mrf.mxu0
        %v6073 = vadd.f32 0.0, %v6072
        %v6074 = vpop.f32.mrf.mxu0
        %6075 = vmatprep.mubr.f32.mxu0 0.0
        %6076 = vmatmul.mubr.f32.gmra.mxu0 %v5892
        %v6077 = vpop.f32.mrf.mxu0
        %v6078 = vadd.f32 0.0, %v6077
        %v6079 = vpop.f32.mrf.mxu0
        %6080 = vmatprep.mubr.f32.mxu0 0.0
        %6081 = vmatmul.mubr.f32.gmra.mxu0 %v5895
        %v6082 = vpop.f32.mrf.mxu0
        %v6083 = vadd.f32 0.0, %v6082
        %v6084 = vpop.f32.mrf.mxu0
        %6085 = vmatprep.mubr.f32.mxu0 0.0
        %6086 = vmatmul.mubr.f32.gmra.mxu0 %v5898
        %v6087 = vpop.f32.mrf.mxu0
        %v6088 = vadd.f32 0.0, %v6087
        %v6089 = vpop.f32.mrf.mxu0
        %6090 = vmatprep.mubr.f32.mxu0 0.0
        %6091 = vmatmul.mubr.f32.gmra.mxu0 %v5901
        %v6092 = vpop.f32.mrf.mxu0
        %v6093 = vadd.f32 0.0, %v6092
        %v6094 = vpop.f32.mrf.mxu0
        %6095 = vmatprep.mubr.f32.mxu0 0.0
        %6096 = vmatmul.mubr.f32.gmra.mxu0 %v5904
        %v6097 = vpop.f32.mrf.mxu0
        %v6098 = vadd.f32 0.0, %v6097
        %v6099 = vpop.f32.mrf.mxu0
        %6100 = vmatprep.mubr.f32.mxu0 0.0
        %6101 = vmatmul.mubr.f32.gmra.mxu0 %v5907
        %v6102 = vpop.f32.mrf.mxu0
        %v6103 = vadd.f32 0.0, %v6102
        %v6104 = vpop.f32.mrf.mxu0
        %6105 = vmatprep.mubr.f32.mxu0 0.0
        %6106 = vmatmul.mubr.f32.gmra.mxu0 %v5910
        %v6107 = vpop.f32.mrf.mxu0
        %v6108 = vadd.f32 0.0, %v6107
        %v6109 = vpop.f32.mrf.mxu0
        %6110 = vmatprep.mubr.f32.mxu0 0.0
        %6111 = vmatmul.mubr.f32.gmra.mxu0 %v5913
        %v6112 = vpop.f32.mrf.mxu0
        %v6113 = vadd.f32 0.0, %v6112
        %v6114 = vpop.f32.mrf.mxu0
        %6115 = vmatprep.mubr.f32.mxu0 0.0
        %6116 = vmatmul.mubr.f32.gmra.mxu0 %v5916
        %v6117 = vpop.f32.mrf.mxu0
        %v6118 = vadd.f32 0.0, %v6117
        %v6119 = vpop.f32.mrf.mxu0
        %6120 = vmatprep.mubr.f32.mxu0 0.0
        %6121 = vmatmul.mubr.f32.gmra.mxu0 %v5919
        %v6122 = vpop.f32.mrf.mxu0
        %v6123 = vadd.f32 0.0, %v6122
        %v6124 = vpop.f32.mrf.mxu0
        %6125 = vmatprep.mubr.f32.mxu0 0.0
        %6126 = vmatmul.mubr.f32.gmra.mxu0 %v5922
        %v6127 = vpop.f32.mrf.mxu0
        %v6128 = vadd.f32 0.0, %v6127
        %v6129 = vpop.f32.mrf.mxu0
        %6130 = vmatprep.mubr.f32.mxu0 0.0
        %6131 = vmatmul.mubr.f32.gmra.mxu0 %v5925
        %v6132 = vpop.f32.mrf.mxu0
        %v6133 = vadd.f32 0.0, %v6132
        %v6134 = vpop.f32.mrf.mxu0
        %6135 = vmatprep.mubr.f32.mxu0 0.0
        %6136 = vmatmul.mubr.f32.gmra.mxu0 %v5928
        %v6137 = vpop.f32.mrf.mxu0
        %v6138 = vadd.f32 0.0, %v6137
        %v6139 = vpop.f32.mrf.mxu0
        %6140 = vmatprep.mubr.f32.mxu0 0.0
        %6141 = vmatmul.mubr.f32.gmra.mxu0 %v5931
        %v6142 = vpop.f32.mrf.mxu0
        %v6143 = vadd.f32 0.0, %v6142
        %v6144 = vpop.f32.mrf.mxu0
        %6145 = vmatprep.mubr.f32.mxu0 0.0
        %6146 = vmatmul.mubr.f32.gmra.mxu0 %v5934
        %v6147 = vpop.f32.mrf.mxu0
        %v6148 = vadd.f32 0.0, %v6147
        %v6149 = vpop.f32.mrf.mxu0
        %6150 = vmatprep.mubr.f32.mxu0 0.0
        %6151 = vmatmul.mubr.f32.gmra.mxu0 %v5937
        %v6152 = vpop.f32.mrf.mxu0
        %v6153 = vadd.f32 0.0, %v6152
        %v6154 = vpop.f32.mrf.mxu0
        %6155 = vmatprep.mubr.f32.mxu0 0.0
        %6156 = vmatmul.mubr.f32.gmra.mxu0 %v5940
        %v6157 = vpop.f32.mrf.mxu0
        %v6158 = vadd.f32 0.0, %v6157
        %v6159 = vpop.f32.mrf.mxu0
        %6160 = vmatprep.mubr.f32.mxu0 0.0
        %6161 = vmatmul.mubr.f32.gmra.mxu0 %v5943
        %v6162 = vpop.f32.mrf.mxu0
        %v6163 = vadd.f32 0.0, %v6162
        %v6164 = vpop.f32.mrf.mxu0
        %6165 = vmatprep.mubr.f32.mxu0 0.0
        %6166 = vmatmul.mubr.f32.gmra.mxu0 %v5946
        %v6167 = vpop.f32.mrf.mxu0
        %v6168 = vadd.f32 0.0, %v6167
        %v6169 = vpop.f32.mrf.mxu0
        %6170 = vmatprep.mubr.f32.mxu0 0.0
        %6171 = vmatmul.mubr.f32.gmra.mxu0 %v5949
        %v6172 = vpop.f32.mrf.mxu0
        %v6173 = vadd.f32 0.0, %v6172
        %v6174 = vpop.f32.mrf.mxu0
        %6175 = vdwg.mxu0
        %v6176 = vadd.f32 %v5789, %v6018
        %v6177 = vadd.f32 %v5790, %v6023
        %v6178 = vadd.f32 %v5791, %v6028
        %v6179 = vadd.f32 %v5792, %v6033
        %v6180 = vadd.f32 %v5793, %v6038
        %v6181 = vadd.f32 %v5794, %v6043
        %v6182 = vadd.f32 %v5795, %v6048
        %v6183 = vadd.f32 %v5796, %v6053
        %v6184 = vadd.f32 %v5797, %v6058
        %v6185 = vadd.f32 %v5798, %v6063
        %v6186 = vadd.f32 %v5799, %v6068
        %v6187 = vadd.f32 %v5800, %v6073
        %v6188 = vadd.f32 %v5801, %v6078
        %v6189 = vadd.f32 %v5802, %v6083
        %v6190 = vadd.f32 %v5803, %v6088
        %v6191 = vadd.f32 %v5804, %v6093
        %v6192 = vadd.f32 %v5805, %v6098
        %v6193 = vadd.f32 %v5806, %v6103
        %v6194 = vadd.f32 %v5807, %v6108
        %v6195 = vadd.f32 %v5808, %v6113
        %v6196 = vadd.f32 %v5809, %v6118
        %v6197 = vadd.f32 %v5810, %v6123
        %v6198 = vadd.f32 %v5811, %v6128
        %v6199 = vadd.f32 %v5812, %v6133
        %v6200 = vadd.f32 %v5813, %v6138
        %v6201 = vadd.f32 %v5814, %v6143
        %v6202 = vadd.f32 %v5815, %v6148
        %v6203 = vadd.f32 %v5816, %v6153
        %v6204 = vadd.f32 %v5817, %v6158
        %v6205 = vadd.f32 %v5818, %v6163
        %v6206 = vadd.f32 %v5819, %v6168
        %v6207 = vadd.f32 %v5820, %v6173
        %s6208 = scalar_lea.vmem [#allocation3], 48
        %v6209 = vld [vmem:[%s6208] sm:$0xff]
        %v6210 = vld [vmem:[%s6208 + $0x8] sm:$0xff]
        %v6211 = vld [vmem:[%s6208 + $0x18] sm:$0xff]
        %v6212 = vld [vmem:[%s6208 + $0x20] sm:$0xff]
        %v6213 = vld [vmem:[%s6208 + $0x30] sm:$0xff]
        %v6214 = vld [vmem:[%s6208 + $0x38] sm:$0xff]
        %v6215 = vld [vmem:[%s6208 + $0x48] sm:$0xff]
        %v6216 = vld [vmem:[%s6208 + $0x50] sm:$0xff]
        %v6217 = vld [vmem:[%s6208 + $0x60] sm:$0xff]
        %v6218 = vld [vmem:[%s6208 + $0x68] sm:$0xff]
        %v6219 = vld [vmem:[%s6208 + $0x78] sm:$0xff]
        %v6220 = vld [vmem:[%s6208 + $0x80] sm:$0xff]
        %v6221 = vld [vmem:[%s6208 + $0x90] sm:$0xff]
        %v6222 = vld [vmem:[%s6208 + $0x98] sm:$0xff]
        %v6223 = vld [vmem:[%s6208 + $0xa8] sm:$0xff]
        %v6224 = vld [vmem:[%s6208 + $0xb0] sm:$0xff]
        %v6225 = vld [vmem:[%s6208 + $0xc0] sm:$0xff]
        %v6226 = vld [vmem:[%s6208 + $0xc8] sm:$0xff]
        %v6227 = vld [vmem:[%s6208 + $0xd8] sm:$0xff]
        %v6228 = vld [vmem:[%s6208 + $0xe0] sm:$0xff]
        %v6229 = vld [vmem:[%s6208 + $0xf0] sm:$0xff]
        %v6230 = vld [vmem:[%s6208 + $0xf8] sm:$0xff]
        %v6231 = vld [vmem:[%s6208 + $0x108] sm:$0xff]
        %v6232 = vld [vmem:[%s6208 + $0x110] sm:$0xff]
        %v6233 = vld [vmem:[%s6208 + $0x120] sm:$0xff]
        %v6234 = vld [vmem:[%s6208 + $0x128] sm:$0xff]
        %v6235 = vld [vmem:[%s6208 + $0x138] sm:$0xff]
        %v6236 = vld [vmem:[%s6208 + $0x140] sm:$0xff]
        %v6237 = vld [vmem:[%s6208 + $0x150] sm:$0xff]
        %v6238 = vld [vmem:[%s6208 + $0x158] sm:$0xff]
        %v6239 = vld [vmem:[%s6208 + $0x168] sm:$0xff]
        %v6240 = vld [vmem:[%s6208 + $0x170] sm:$0xff]
        %s6241 = scalar_lea.vmem %s3, 48
        %v6242 = vld [vmem:[%s6241] sm:$0xff]
        %v6244 = vsel %vm3862, %v6209, 0
        %v6247 = vsel %vm3862, %v6210, 0
        %v6250 = vsel %vm3862, %v6211, 0
        %v6253 = vsel %vm3862, %v6212, 0
        %v6256 = vsel %vm3862, %v6213, 0
        %v6259 = vsel %vm3862, %v6214, 0
        %v6262 = vsel %vm3862, %v6215, 0
        %v6265 = vsel %vm3862, %v6216, 0
        %v6268 = vsel %vm3862, %v6217, 0
        %v6271 = vsel %vm3862, %v6218, 0
        %v6274 = vsel %vm3862, %v6219, 0
        %v6277 = vsel %vm3862, %v6220, 0
        %v6280 = vsel %vm3862, %v6221, 0
        %v6283 = vsel %vm3862, %v6222, 0
        %v6286 = vsel %vm3862, %v6223, 0
        %v6289 = vsel %vm3862, %v6224, 0
        %v6292 = vsel %vm3862, %v6225, 0
        %v6295 = vsel %vm3862, %v6226, 0
        %v6298 = vsel %vm3862, %v6227, 0
        %v6301 = vsel %vm3862, %v6228, 0
        %v6304 = vsel %vm3862, %v6229, 0
        %v6307 = vsel %vm3862, %v6230, 0
        %v6310 = vsel %vm3862, %v6231, 0
        %v6313 = vsel %vm3862, %v6232, 0
        %v6316 = vsel %vm3862, %v6233, 0
        %v6319 = vsel %vm3862, %v6234, 0
        %v6322 = vsel %vm3862, %v6235, 0
        %v6325 = vsel %vm3862, %v6236, 0
        %v6328 = vsel %vm3862, %v6237, 0
        %v6331 = vsel %vm3862, %v6238, 0
        %v6334 = vsel %vm3862, %v6239, 0
        %v6337 = vsel %vm3862, %v6240, 0
        %6339 = vmatprep.subr.mxu0 0.0
        %6340 = vmatpush1.msra.mxu0 0.0
        %6341 = vmatprep.subr.mxu0 0.0
        %6342 = vmatpush1.msra.mxu0 0.0
        %6343 = vmatprep.subr.mxu0 0.0
        %6344 = vmatpush1.msra.mxu0 0.0
        %6345 = vmatprep.subr.mxu0 0.0
        %6346 = vmatpush1.msra.mxu0 0.0
        %6347 = vmatprep.subr.mxu0 0.0
        %6348 = vmatpush1.msra.mxu0 0.0
        %6349 = vmatprep.subr.mxu0 0.0
        %6350 = vmatpush1.msra.mxu0 0.0
        %6351 = vmatprep.subr.mxu0 0.0
        %6352 = vmatpush1.msra.mxu0 0.0
        %6353 = vmatprep.subr.mxu0 0.0
        %6354 = vmatpush1.msra.mxu0 0.0
        %6355 = vmatprep.subr.mxu0 0.0
        %6356 = vmatpush1.msra.mxu0 0.0
        %6357 = vmatprep.subr.mxu0 0.0
        %6358 = vmatpush1.msra.mxu0 0.0
        %6359 = vmatprep.subr.mxu0 0.0
        %6360 = vmatpush1.msra.mxu0 0.0
        %6361 = vmatprep.subr.mxu0 0.0
        %6362 = vmatpush1.msra.mxu0 0.0
        %6363 = vmatprep.subr.mxu0 0.0
        %6364 = vmatpush1.msra.mxu0 0.0
        %6365 = vmatprep.subr.mxu0 0.0
        %6366 = vmatpush1.msra.mxu0 0.0
        %6367 = vmatprep.subr.mxu0 0.0
        %6368 = vmatpush1.msra.mxu0 0.0
        %6369 = vmatprep.subr.mxu0 0.0
        %6370 = vmatpush1.msra.mxu0 %v6242
        %6371 = vmatprep.subr.mxu0 0.0
        %6372 = vmatpush2.msra.mxu0 0.0
        %6373 = vmatprep.subr.mxu0 0.0
        %6374 = vmatpush2.msra.mxu0 0.0
        %6375 = vmatprep.subr.mxu0 0.0
        %6376 = vmatpush2.msra.mxu0 0.0
        %6377 = vmatprep.subr.mxu0 0.0
        %6378 = vmatpush2.msra.mxu0 0.0
        %6379 = vmatprep.subr.mxu0 0.0
        %6380 = vmatpush2.msra.mxu0 0.0
        %6381 = vmatprep.subr.mxu0 0.0
        %6382 = vmatpush2.msra.mxu0 0.0
        %6383 = vmatprep.subr.mxu0 0.0
        %6384 = vmatpush2.msra.mxu0 0.0
        %6385 = vmatprep.subr.mxu0 0.0
        %6386 = vmatpush2.msra.mxu0 0.0
        %6387 = vmatprep.subr.mxu0 0.0
        %6388 = vmatpush2.msra.mxu0 0.0
        %6389 = vmatprep.subr.mxu0 0.0
        %6390 = vmatpush2.msra.mxu0 0.0
        %6391 = vmatprep.subr.mxu0 0.0
        %6392 = vmatpush2.msra.mxu0 0.0
        %6393 = vmatprep.subr.mxu0 0.0
        %6394 = vmatpush2.msra.mxu0 0.0
        %6395 = vmatprep.subr.mxu0 0.0
        %6396 = vmatpush2.msra.mxu0 0.0
        %6397 = vmatprep.subr.mxu0 0.0
        %6398 = vmatpush2.msra.mxu0 0.0
        %6399 = vmatprep.subr.mxu0 0.0
        %6400 = vmatpush2.msra.mxu0 0.0
        %6401 = vmatprep.subr.mxu0 0.0
        %6402 = vmatpush2.msra.mxu0 0.0
        %6403 = vmatprep.mubr.f32.mxu0 0.0
        %6404 = vmatmul.mubr.f32.gmra.mxu0 %v6244
        %v6405 = vpop.f32.mrf.mxu0
        %v6406 = vadd.f32 0.0, %v6405
        %v6407 = vpop.f32.mrf.mxu0
        %6408 = vmatprep.mubr.f32.mxu0 0.0
        %6409 = vmatmul.mubr.f32.gmra.mxu0 %v6247
        %v6410 = vpop.f32.mrf.mxu0
        %v6411 = vadd.f32 0.0, %v6410
        %v6412 = vpop.f32.mrf.mxu0
        %6413 = vmatprep.mubr.f32.mxu0 0.0
        %6414 = vmatmul.mubr.f32.gmra.mxu0 %v6250
        %v6415 = vpop.f32.mrf.mxu0
        %v6416 = vadd.f32 0.0, %v6415
        %v6417 = vpop.f32.mrf.mxu0
        %6418 = vmatprep.mubr.f32.mxu0 0.0
        %6419 = vmatmul.mubr.f32.gmra.mxu0 %v6253
        %v6420 = vpop.f32.mrf.mxu0
        %v6421 = vadd.f32 0.0, %v6420
        %v6422 = vpop.f32.mrf.mxu0
        %6423 = vmatprep.mubr.f32.mxu0 0.0
        %6424 = vmatmul.mubr.f32.gmra.mxu0 %v6256
        %v6425 = vpop.f32.mrf.mxu0
        %v6426 = vadd.f32 0.0, %v6425
        %v6427 = vpop.f32.mrf.mxu0
        %6428 = vmatprep.mubr.f32.mxu0 0.0
        %6429 = vmatmul.mubr.f32.gmra.mxu0 %v6259
        %v6430 = vpop.f32.mrf.mxu0
        %v6431 = vadd.f32 0.0, %v6430
        %v6432 = vpop.f32.mrf.mxu0
        %6433 = vmatprep.mubr.f32.mxu0 0.0
        %6434 = vmatmul.mubr.f32.gmra.mxu0 %v6262
        %v6435 = vpop.f32.mrf.mxu0
        %v6436 = vadd.f32 0.0, %v6435
        %v6437 = vpop.f32.mrf.mxu0
        %6438 = vmatprep.mubr.f32.mxu0 0.0
        %6439 = vmatmul.mubr.f32.gmra.mxu0 %v6265
        %v6440 = vpop.f32.mrf.mxu0
        %v6441 = vadd.f32 0.0, %v6440
        %v6442 = vpop.f32.mrf.mxu0
        %6443 = vmatprep.mubr.f32.mxu0 0.0
        %6444 = vmatmul.mubr.f32.gmra.mxu0 %v6268
        %v6445 = vpop.f32.mrf.mxu0
        %v6446 = vadd.f32 0.0, %v6445
        %v6447 = vpop.f32.mrf.mxu0
        %6448 = vmatprep.mubr.f32.mxu0 0.0
        %6449 = vmatmul.mubr.f32.gmra.mxu0 %v6271
        %v6450 = vpop.f32.mrf.mxu0
        %v6451 = vadd.f32 0.0, %v6450
        %v6452 = vpop.f32.mrf.mxu0
        %6453 = vmatprep.mubr.f32.mxu0 0.0
        %6454 = vmatmul.mubr.f32.gmra.mxu0 %v6274
        %v6455 = vpop.f32.mrf.mxu0
        %v6456 = vadd.f32 0.0, %v6455
        %v6457 = vpop.f32.mrf.mxu0
        %6458 = vmatprep.mubr.f32.mxu0 0.0
        %6459 = vmatmul.mubr.f32.gmra.mxu0 %v6277
        %v6460 = vpop.f32.mrf.mxu0
        %v6461 = vadd.f32 0.0, %v6460
        %v6462 = vpop.f32.mrf.mxu0
        %6463 = vmatprep.mubr.f32.mxu0 0.0
        %6464 = vmatmul.mubr.f32.gmra.mxu0 %v6280
        %v6465 = vpop.f32.mrf.mxu0
        %v6466 = vadd.f32 0.0, %v6465
        %v6467 = vpop.f32.mrf.mxu0
        %6468 = vmatprep.mubr.f32.mxu0 0.0
        %6469 = vmatmul.mubr.f32.gmra.mxu0 %v6283
        %v6470 = vpop.f32.mrf.mxu0
        %v6471 = vadd.f32 0.0, %v6470
        %v6472 = vpop.f32.mrf.mxu0
        %6473 = vmatprep.mubr.f32.mxu0 0.0
        %6474 = vmatmul.mubr.f32.gmra.mxu0 %v6286
        %v6475 = vpop.f32.mrf.mxu0
        %v6476 = vadd.f32 0.0, %v6475
        %v6477 = vpop.f32.mrf.mxu0
        %6478 = vmatprep.mubr.f32.mxu0 0.0
        %6479 = vmatmul.mubr.f32.gmra.mxu0 %v6289
        %v6480 = vpop.f32.mrf.mxu0
        %v6481 = vadd.f32 0.0, %v6480
        %v6482 = vpop.f32.mrf.mxu0
        %6483 = vmatprep.mubr.f32.mxu0 0.0
        %6484 = vmatmul.mubr.f32.gmra.mxu0 %v6292
        %v6485 = vpop.f32.mrf.mxu0
        %v6486 = vadd.f32 0.0, %v6485
        %v6487 = vpop.f32.mrf.mxu0
        %6488 = vmatprep.mubr.f32.mxu0 0.0
        %6489 = vmatmul.mubr.f32.gmra.mxu0 %v6295
        %v6490 = vpop.f32.mrf.mxu0
        %v6491 = vadd.f32 0.0, %v6490
        %v6492 = vpop.f32.mrf.mxu0
        %6493 = vmatprep.mubr.f32.mxu0 0.0
        %6494 = vmatmul.mubr.f32.gmra.mxu0 %v6298
        %v6495 = vpop.f32.mrf.mxu0
        %v6496 = vadd.f32 0.0, %v6495
        %v6497 = vpop.f32.mrf.mxu0
        %6498 = vmatprep.mubr.f32.mxu0 0.0
        %6499 = vmatmul.mubr.f32.gmra.mxu0 %v6301
        %v6500 = vpop.f32.mrf.mxu0
        %v6501 = vadd.f32 0.0, %v6500
        %v6502 = vpop.f32.mrf.mxu0
        %6503 = vmatprep.mubr.f32.mxu0 0.0
        %6504 = vmatmul.mubr.f32.gmra.mxu0 %v6304
        %v6505 = vpop.f32.mrf.mxu0
        %v6506 = vadd.f32 0.0, %v6505
        %v6507 = vpop.f32.mrf.mxu0
        %6508 = vmatprep.mubr.f32.mxu0 0.0
        %6509 = vmatmul.mubr.f32.gmra.mxu0 %v6307
        %v6510 = vpop.f32.mrf.mxu0
        %v6511 = vadd.f32 0.0, %v6510
        %v6512 = vpop.f32.mrf.mxu0
        %6513 = vmatprep.mubr.f32.mxu0 0.0
        %6514 = vmatmul.mubr.f32.gmra.mxu0 %v6310
        %v6515 = vpop.f32.mrf.mxu0
        %v6516 = vadd.f32 0.0, %v6515
        %v6517 = vpop.f32.mrf.mxu0
        %6518 = vmatprep.mubr.f32.mxu0 0.0
        %6519 = vmatmul.mubr.f32.gmra.mxu0 %v6313
        %v6520 = vpop.f32.mrf.mxu0
        %v6521 = vadd.f32 0.0, %v6520
        %v6522 = vpop.f32.mrf.mxu0
        %6523 = vmatprep.mubr.f32.mxu0 0.0
        %6524 = vmatmul.mubr.f32.gmra.mxu0 %v6316
        %v6525 = vpop.f32.mrf.mxu0
        %v6526 = vadd.f32 0.0, %v6525
        %v6527 = vpop.f32.mrf.mxu0
        %6528 = vmatprep.mubr.f32.mxu0 0.0
        %6529 = vmatmul.mubr.f32.gmra.mxu0 %v6319
        %v6530 = vpop.f32.mrf.mxu0
        %v6531 = vadd.f32 0.0, %v6530
        %v6532 = vpop.f32.mrf.mxu0
        %6533 = vmatprep.mubr.f32.mxu0 0.0
        %6534 = vmatmul.mubr.f32.gmra.mxu0 %v6322
        %v6535 = vpop.f32.mrf.mxu0
        %v6536 = vadd.f32 0.0, %v6535
        %v6537 = vpop.f32.mrf.mxu0
        %6538 = vmatprep.mubr.f32.mxu0 0.0
        %6539 = vmatmul.mubr.f32.gmra.mxu0 %v6325
        %v6540 = vpop.f32.mrf.mxu0
        %v6541 = vadd.f32 0.0, %v6540
        %v6542 = vpop.f32.mrf.mxu0
        %6543 = vmatprep.mubr.f32.mxu0 0.0
        %6544 = vmatmul.mubr.f32.gmra.mxu0 %v6328
        %v6545 = vpop.f32.mrf.mxu0
        %v6546 = vadd.f32 0.0, %v6545
        %v6547 = vpop.f32.mrf.mxu0
        %6548 = vmatprep.mubr.f32.mxu0 0.0
        %6549 = vmatmul.mubr.f32.gmra.mxu0 %v6331
        %v6550 = vpop.f32.mrf.mxu0
        %v6551 = vadd.f32 0.0, %v6550
        %v6552 = vpop.f32.mrf.mxu0
        %6553 = vmatprep.mubr.f32.mxu0 0.0
        %6554 = vmatmul.mubr.f32.gmra.mxu0 %v6334
        %v6555 = vpop.f32.mrf.mxu0
        %v6556 = vadd.f32 0.0, %v6555
        %v6557 = vpop.f32.mrf.mxu0
        %6558 = vmatprep.mubr.f32.mxu0 0.0
        %6559 = vmatmul.mubr.f32.gmra.mxu0 %v6337
        %v6560 = vpop.f32.mrf.mxu0
        %v6561 = vadd.f32 0.0, %v6560
        %v6562 = vpop.f32.mrf.mxu0
        %6563 = vdwg.mxu0
        %v6564 = vadd.f32 %v6176, %v6406
        %v6565 = vadd.f32 %v6177, %v6411
        %v6566 = vadd.f32 %v6178, %v6416
        %v6567 = vadd.f32 %v6179, %v6421
        %v6568 = vadd.f32 %v6180, %v6426
        %v6569 = vadd.f32 %v6181, %v6431
        %v6570 = vadd.f32 %v6182, %v6436
        %v6571 = vadd.f32 %v6183, %v6441
        %v6572 = vadd.f32 %v6184, %v6446
        %v6573 = vadd.f32 %v6185, %v6451
        %v6574 = vadd.f32 %v6186, %v6456
        %v6575 = vadd.f32 %v6187, %v6461
        %v6576 = vadd.f32 %v6188, %v6466
        %v6577 = vadd.f32 %v6189, %v6471
        %v6578 = vadd.f32 %v6190, %v6476
        %v6579 = vadd.f32 %v6191, %v6481
        %v6580 = vadd.f32 %v6192, %v6486
        %v6581 = vadd.f32 %v6193, %v6491
        %v6582 = vadd.f32 %v6194, %v6496
        %v6583 = vadd.f32 %v6195, %v6501
        %v6584 = vadd.f32 %v6196, %v6506
        %v6585 = vadd.f32 %v6197, %v6511
        %v6586 = vadd.f32 %v6198, %v6516
        %v6587 = vadd.f32 %v6199, %v6521
        %v6588 = vadd.f32 %v6200, %v6526
        %v6589 = vadd.f32 %v6201, %v6531
        %v6590 = vadd.f32 %v6202, %v6536
        %v6591 = vadd.f32 %v6203, %v6541
        %v6592 = vadd.f32 %v6204, %v6546
        %v6593 = vadd.f32 %v6205, %v6551
        %v6594 = vadd.f32 %v6206, %v6556
        %v6595 = vadd.f32 %v6207, %v6561
        %v6596 = vld [vmem:[%s6208 + $0x1] sm:$0xff]
        %v6597 = vld [vmem:[%s6208 + $0x9] sm:$0xff]
        %v6598 = vld [vmem:[%s6208 + $0x19] sm:$0xff]
        %v6599 = vld [vmem:[%s6208 + $0x21] sm:$0xff]
        %v6600 = vld [vmem:[%s6208 + $0x31] sm:$0xff]
        %v6601 = vld [vmem:[%s6208 + $0x39] sm:$0xff]
        %v6602 = vld [vmem:[%s6208 + $0x49] sm:$0xff]
        %v6603 = vld [vmem:[%s6208 + $0x51] sm:$0xff]
        %v6604 = vld [vmem:[%s6208 + $0x61] sm:$0xff]
        %v6605 = vld [vmem:[%s6208 + $0x69] sm:$0xff]
        %v6606 = vld [vmem:[%s6208 + $0x79] sm:$0xff]
        %v6607 = vld [vmem:[%s6208 + $0x81] sm:$0xff]
        %v6608 = vld [vmem:[%s6208 + $0x91] sm:$0xff]
        %v6609 = vld [vmem:[%s6208 + $0x99] sm:$0xff]
        %v6610 = vld [vmem:[%s6208 + $0xa9] sm:$0xff]
        %v6611 = vld [vmem:[%s6208 + $0xb1] sm:$0xff]
        %v6612 = vld [vmem:[%s6208 + $0xc1] sm:$0xff]
        %v6613 = vld [vmem:[%s6208 + $0xc9] sm:$0xff]
        %v6614 = vld [vmem:[%s6208 + $0xd9] sm:$0xff]
        %v6615 = vld [vmem:[%s6208 + $0xe1] sm:$0xff]
        %v6616 = vld [vmem:[%s6208 + $0xf1] sm:$0xff]
        %v6617 = vld [vmem:[%s6208 + $0xf9] sm:$0xff]
        %v6618 = vld [vmem:[%s6208 + $0x109] sm:$0xff]
        %v6619 = vld [vmem:[%s6208 + $0x111] sm:$0xff]
        %v6620 = vld [vmem:[%s6208 + $0x121] sm:$0xff]
        %v6621 = vld [vmem:[%s6208 + $0x129] sm:$0xff]
        %v6622 = vld [vmem:[%s6208 + $0x139] sm:$0xff]
        %v6623 = vld [vmem:[%s6208 + $0x141] sm:$0xff]
        %v6624 = vld [vmem:[%s6208 + $0x151] sm:$0xff]
        %v6625 = vld [vmem:[%s6208 + $0x159] sm:$0xff]
        %v6626 = vld [vmem:[%s6208 + $0x169] sm:$0xff]
        %v6627 = vld [vmem:[%s6208 + $0x171] sm:$0xff]
        %s6628 = scalar_lea.vmem %s3, 56
        %v6629 = vld [vmem:[%s6628] sm:$0xff]
        %v6631 = vsel %vm3862, %v6596, 0
        %v6634 = vsel %vm3862, %v6597, 0
        %v6637 = vsel %vm3862, %v6598, 0
        %v6640 = vsel %vm3862, %v6599, 0
        %v6643 = vsel %vm3862, %v6600, 0
        %v6646 = vsel %vm3862, %v6601, 0
        %v6649 = vsel %vm3862, %v6602, 0
        %v6652 = vsel %vm3862, %v6603, 0
        %v6655 = vsel %vm3862, %v6604, 0
        %v6658 = vsel %vm3862, %v6605, 0
        %v6661 = vsel %vm3862, %v6606, 0
        %v6664 = vsel %vm3862, %v6607, 0
        %v6667 = vsel %vm3862, %v6608, 0
        %v6670 = vsel %vm3862, %v6609, 0
        %v6673 = vsel %vm3862, %v6610, 0
        %v6676 = vsel %vm3862, %v6611, 0
        %v6679 = vsel %vm3862, %v6612, 0
        %v6682 = vsel %vm3862, %v6613, 0
        %v6685 = vsel %vm3862, %v6614, 0
        %v6688 = vsel %vm3862, %v6615, 0
        %v6691 = vsel %vm3862, %v6616, 0
        %v6694 = vsel %vm3862, %v6617, 0
        %v6697 = vsel %vm3862, %v6618, 0
        %v6700 = vsel %vm3862, %v6619, 0
        %v6703 = vsel %vm3862, %v6620, 0
        %v6706 = vsel %vm3862, %v6621, 0
        %v6709 = vsel %vm3862, %v6622, 0
        %v6712 = vsel %vm3862, %v6623, 0
        %v6715 = vsel %vm3862, %v6624, 0
        %v6718 = vsel %vm3862, %v6625, 0
        %v6721 = vsel %vm3862, %v6626, 0
        %v6724 = vsel %vm3862, %v6627, 0
        %6726 = vmatprep.subr.mxu0 0.0
        %6727 = vmatpush1.msra.mxu0 0.0
        %6728 = vmatprep.subr.mxu0 0.0
        %6729 = vmatpush1.msra.mxu0 0.0
        %6730 = vmatprep.subr.mxu0 0.0
        %6731 = vmatpush1.msra.mxu0 0.0
        %6732 = vmatprep.subr.mxu0 0.0
        %6733 = vmatpush1.msra.mxu0 0.0
        %6734 = vmatprep.subr.mxu0 0.0
        %6735 = vmatpush1.msra.mxu0 0.0
        %6736 = vmatprep.subr.mxu0 0.0
        %6737 = vmatpush1.msra.mxu0 0.0
        %6738 = vmatprep.subr.mxu0 0.0
        %6739 = vmatpush1.msra.mxu0 0.0
        %6740 = vmatprep.subr.mxu0 0.0
        %6741 = vmatpush1.msra.mxu0 0.0
        %6742 = vmatprep.subr.mxu0 0.0
        %6743 = vmatpush1.msra.mxu0 0.0
        %6744 = vmatprep.subr.mxu0 0.0
        %6745 = vmatpush1.msra.mxu0 0.0
        %6746 = vmatprep.subr.mxu0 0.0
        %6747 = vmatpush1.msra.mxu0 0.0
        %6748 = vmatprep.subr.mxu0 0.0
        %6749 = vmatpush1.msra.mxu0 0.0
        %6750 = vmatprep.subr.mxu0 0.0
        %6751 = vmatpush1.msra.mxu0 0.0
        %6752 = vmatprep.subr.mxu0 0.0
        %6753 = vmatpush1.msra.mxu0 0.0
        %6754 = vmatprep.subr.mxu0 0.0
        %6755 = vmatpush1.msra.mxu0 0.0
        %6756 = vmatprep.subr.mxu0 0.0
        %6757 = vmatpush1.msra.mxu0 %v6629
        %6758 = vmatprep.subr.mxu0 0.0
        %6759 = vmatpush2.msra.mxu0 0.0
        %6760 = vmatprep.subr.mxu0 0.0
        %6761 = vmatpush2.msra.mxu0 0.0
        %6762 = vmatprep.subr.mxu0 0.0
        %6763 = vmatpush2.msra.mxu0 0.0
        %6764 = vmatprep.subr.mxu0 0.0
        %6765 = vmatpush2.msra.mxu0 0.0
        %6766 = vmatprep.subr.mxu0 0.0
        %6767 = vmatpush2.msra.mxu0 0.0
        %6768 = vmatprep.subr.mxu0 0.0
        %6769 = vmatpush2.msra.mxu0 0.0
        %6770 = vmatprep.subr.mxu0 0.0
        %6771 = vmatpush2.msra.mxu0 0.0
        %6772 = vmatprep.subr.mxu0 0.0
        %6773 = vmatpush2.msra.mxu0 0.0
        %6774 = vmatprep.subr.mxu0 0.0
        %6775 = vmatpush2.msra.mxu0 0.0
        %6776 = vmatprep.subr.mxu0 0.0
        %6777 = vmatpush2.msra.mxu0 0.0
        %6778 = vmatprep.subr.mxu0 0.0
        %6779 = vmatpush2.msra.mxu0 0.0
        %6780 = vmatprep.subr.mxu0 0.0
        %6781 = vmatpush2.msra.mxu0 0.0
        %6782 = vmatprep.subr.mxu0 0.0
        %6783 = vmatpush2.msra.mxu0 0.0
        %6784 = vmatprep.subr.mxu0 0.0
        %6785 = vmatpush2.msra.mxu0 0.0
        %6786 = vmatprep.subr.mxu0 0.0
        %6787 = vmatpush2.msra.mxu0 0.0
        %6788 = vmatprep.subr.mxu0 0.0
        %6789 = vmatpush2.msra.mxu0 0.0
        %6790 = vmatprep.mubr.f32.mxu0 0.0
        %6791 = vmatmul.mubr.f32.gmra.mxu0 %v6631
        %v6792 = vpop.f32.mrf.mxu0
        %v6793 = vadd.f32 0.0, %v6792
        %v6794 = vpop.f32.mrf.mxu0
        %6795 = vmatprep.mubr.f32.mxu0 0.0
        %6796 = vmatmul.mubr.f32.gmra.mxu0 %v6634
        %v6797 = vpop.f32.mrf.mxu0
        %v6798 = vadd.f32 0.0, %v6797
        %v6799 = vpop.f32.mrf.mxu0
        %6800 = vmatprep.mubr.f32.mxu0 0.0
        %6801 = vmatmul.mubr.f32.gmra.mxu0 %v6637
        %v6802 = vpop.f32.mrf.mxu0
        %v6803 = vadd.f32 0.0, %v6802
        %v6804 = vpop.f32.mrf.mxu0
        %6805 = vmatprep.mubr.f32.mxu0 0.0
        %6806 = vmatmul.mubr.f32.gmra.mxu0 %v6640
        %v6807 = vpop.f32.mrf.mxu0
        %v6808 = vadd.f32 0.0, %v6807
        %v6809 = vpop.f32.mrf.mxu0
        %6810 = vmatprep.mubr.f32.mxu0 0.0
        %6811 = vmatmul.mubr.f32.gmra.mxu0 %v6643
        %v6812 = vpop.f32.mrf.mxu0
        %v6813 = vadd.f32 0.0, %v6812
        %v6814 = vpop.f32.mrf.mxu0
        %6815 = vmatprep.mubr.f32.mxu0 0.0
        %6816 = vmatmul.mubr.f32.gmra.mxu0 %v6646
        %v6817 = vpop.f32.mrf.mxu0
        %v6818 = vadd.f32 0.0, %v6817
        %v6819 = vpop.f32.mrf.mxu0
        %6820 = vmatprep.mubr.f32.mxu0 0.0
        %6821 = vmatmul.mubr.f32.gmra.mxu0 %v6649
        %v6822 = vpop.f32.mrf.mxu0
        %v6823 = vadd.f32 0.0, %v6822
        %v6824 = vpop.f32.mrf.mxu0
        %6825 = vmatprep.mubr.f32.mxu0 0.0
        %6826 = vmatmul.mubr.f32.gmra.mxu0 %v6652
        %v6827 = vpop.f32.mrf.mxu0
        %v6828 = vadd.f32 0.0, %v6827
        %v6829 = vpop.f32.mrf.mxu0
        %6830 = vmatprep.mubr.f32.mxu0 0.0
        %6831 = vmatmul.mubr.f32.gmra.mxu0 %v6655
        %v6832 = vpop.f32.mrf.mxu0
        %v6833 = vadd.f32 0.0, %v6832
        %v6834 = vpop.f32.mrf.mxu0
        %6835 = vmatprep.mubr.f32.mxu0 0.0
        %6836 = vmatmul.mubr.f32.gmra.mxu0 %v6658
        %v6837 = vpop.f32.mrf.mxu0
        %v6838 = vadd.f32 0.0, %v6837
        %v6839 = vpop.f32.mrf.mxu0
        %6840 = vmatprep.mubr.f32.mxu0 0.0
        %6841 = vmatmul.mubr.f32.gmra.mxu0 %v6661
        %v6842 = vpop.f32.mrf.mxu0
        %v6843 = vadd.f32 0.0, %v6842
        %v6844 = vpop.f32.mrf.mxu0
        %6845 = vmatprep.mubr.f32.mxu0 0.0
        %6846 = vmatmul.mubr.f32.gmra.mxu0 %v6664
        %v6847 = vpop.f32.mrf.mxu0
        %v6848 = vadd.f32 0.0, %v6847
        %v6849 = vpop.f32.mrf.mxu0
        %6850 = vmatprep.mubr.f32.mxu0 0.0
        %6851 = vmatmul.mubr.f32.gmra.mxu0 %v6667
        %v6852 = vpop.f32.mrf.mxu0
        %v6853 = vadd.f32 0.0, %v6852
        %v6854 = vpop.f32.mrf.mxu0
        %6855 = vmatprep.mubr.f32.mxu0 0.0
        %6856 = vmatmul.mubr.f32.gmra.mxu0 %v6670
        %v6857 = vpop.f32.mrf.mxu0
        %v6858 = vadd.f32 0.0, %v6857
        %v6859 = vpop.f32.mrf.mxu0
        %6860 = vmatprep.mubr.f32.mxu0 0.0
        %6861 = vmatmul.mubr.f32.gmra.mxu0 %v6673
        %v6862 = vpop.f32.mrf.mxu0
        %v6863 = vadd.f32 0.0, %v6862
        %v6864 = vpop.f32.mrf.mxu0
        %6865 = vmatprep.mubr.f32.mxu0 0.0
        %6866 = vmatmul.mubr.f32.gmra.mxu0 %v6676
        %v6867 = vpop.f32.mrf.mxu0
        %v6868 = vadd.f32 0.0, %v6867
        %v6869 = vpop.f32.mrf.mxu0
        %6870 = vmatprep.mubr.f32.mxu0 0.0
        %6871 = vmatmul.mubr.f32.gmra.mxu0 %v6679
        %v6872 = vpop.f32.mrf.mxu0
        %v6873 = vadd.f32 0.0, %v6872
        %v6874 = vpop.f32.mrf.mxu0
        %6875 = vmatprep.mubr.f32.mxu0 0.0
        %6876 = vmatmul.mubr.f32.gmra.mxu0 %v6682
        %v6877 = vpop.f32.mrf.mxu0
        %v6878 = vadd.f32 0.0, %v6877
        %v6879 = vpop.f32.mrf.mxu0
        %6880 = vmatprep.mubr.f32.mxu0 0.0
        %6881 = vmatmul.mubr.f32.gmra.mxu0 %v6685
        %v6882 = vpop.f32.mrf.mxu0
        %v6883 = vadd.f32 0.0, %v6882
        %v6884 = vpop.f32.mrf.mxu0
        %6885 = vmatprep.mubr.f32.mxu0 0.0
        %6886 = vmatmul.mubr.f32.gmra.mxu0 %v6688
        %v6887 = vpop.f32.mrf.mxu0
        %v6888 = vadd.f32 0.0, %v6887
        %v6889 = vpop.f32.mrf.mxu0
        %6890 = vmatprep.mubr.f32.mxu0 0.0
        %6891 = vmatmul.mubr.f32.gmra.mxu0 %v6691
        %v6892 = vpop.f32.mrf.mxu0
        %v6893 = vadd.f32 0.0, %v6892
        %v6894 = vpop.f32.mrf.mxu0
        %6895 = vmatprep.mubr.f32.mxu0 0.0
        %6896 = vmatmul.mubr.f32.gmra.mxu0 %v6694
        %v6897 = vpop.f32.mrf.mxu0
        %v6898 = vadd.f32 0.0, %v6897
        %v6899 = vpop.f32.mrf.mxu0
        %6900 = vmatprep.mubr.f32.mxu0 0.0
        %6901 = vmatmul.mubr.f32.gmra.mxu0 %v6697
        %v6902 = vpop.f32.mrf.mxu0
        %v6903 = vadd.f32 0.0, %v6902
        %v6904 = vpop.f32.mrf.mxu0
        %6905 = vmatprep.mubr.f32.mxu0 0.0
        %6906 = vmatmul.mubr.f32.gmra.mxu0 %v6700
        %v6907 = vpop.f32.mrf.mxu0
        %v6908 = vadd.f32 0.0, %v6907
        %v6909 = vpop.f32.mrf.mxu0
        %6910 = vmatprep.mubr.f32.mxu0 0.0
        %6911 = vmatmul.mubr.f32.gmra.mxu0 %v6703
        %v6912 = vpop.f32.mrf.mxu0
        %v6913 = vadd.f32 0.0, %v6912
        %v6914 = vpop.f32.mrf.mxu0
        %6915 = vmatprep.mubr.f32.mxu0 0.0
        %6916 = vmatmul.mubr.f32.gmra.mxu0 %v6706
        %v6917 = vpop.f32.mrf.mxu0
        %v6918 = vadd.f32 0.0, %v6917
        %v6919 = vpop.f32.mrf.mxu0
        %6920 = vmatprep.mubr.f32.mxu0 0.0
        %6921 = vmatmul.mubr.f32.gmra.mxu0 %v6709
        %v6922 = vpop.f32.mrf.mxu0
        %v6923 = vadd.f32 0.0, %v6922
        %v6924 = vpop.f32.mrf.mxu0
        %6925 = vmatprep.mubr.f32.mxu0 0.0
        %6926 = vmatmul.mubr.f32.gmra.mxu0 %v6712
        %v6927 = vpop.f32.mrf.mxu0
        %v6928 = vadd.f32 0.0, %v6927
        %v6929 = vpop.f32.mrf.mxu0
        %6930 = vmatprep.mubr.f32.mxu0 0.0
        %6931 = vmatmul.mubr.f32.gmra.mxu0 %v6715
        %v6932 = vpop.f32.mrf.mxu0
        %v6933 = vadd.f32 0.0, %v6932
        %v6934 = vpop.f32.mrf.mxu0
        %6935 = vmatprep.mubr.f32.mxu0 0.0
        %6936 = vmatmul.mubr.f32.gmra.mxu0 %v6718
        %v6937 = vpop.f32.mrf.mxu0
        %v6938 = vadd.f32 0.0, %v6937
        %v6939 = vpop.f32.mrf.mxu0
        %6940 = vmatprep.mubr.f32.mxu0 0.0
        %6941 = vmatmul.mubr.f32.gmra.mxu0 %v6721
        %v6942 = vpop.f32.mrf.mxu0
        %v6943 = vadd.f32 0.0, %v6942
        %v6944 = vpop.f32.mrf.mxu0
        %6945 = vmatprep.mubr.f32.mxu0 0.0
        %6946 = vmatmul.mubr.f32.gmra.mxu0 %v6724
        %v6947 = vpop.f32.mrf.mxu0
        %v6948 = vadd.f32 0.0, %v6947
        %v6949 = vpop.f32.mrf.mxu0
        %6950 = vdwg.mxu0
        %v6951 = vadd.f32 %v6564, %v6793
        %v6952 = vadd.f32 %v6565, %v6798
        %v6953 = vadd.f32 %v6566, %v6803
        %v6954 = vadd.f32 %v6567, %v6808
        %v6955 = vadd.f32 %v6568, %v6813
        %v6956 = vadd.f32 %v6569, %v6818
        %v6957 = vadd.f32 %v6570, %v6823
        %v6958 = vadd.f32 %v6571, %v6828
        %v6959 = vadd.f32 %v6572, %v6833
        %v6960 = vadd.f32 %v6573, %v6838
        %v6961 = vadd.f32 %v6574, %v6843
        %v6962 = vadd.f32 %v6575, %v6848
        %v6963 = vadd.f32 %v6576, %v6853
        %v6964 = vadd.f32 %v6577, %v6858
        %v6965 = vadd.f32 %v6578, %v6863
        %v6966 = vadd.f32 %v6579, %v6868
        %v6967 = vadd.f32 %v6580, %v6873
        %v6968 = vadd.f32 %v6581, %v6878
        %v6969 = vadd.f32 %v6582, %v6883
        %v6970 = vadd.f32 %v6583, %v6888
        %v6971 = vadd.f32 %v6584, %v6893
        %v6972 = vadd.f32 %v6585, %v6898
        %v6973 = vadd.f32 %v6586, %v6903
        %v6974 = vadd.f32 %v6587, %v6908
        %v6975 = vadd.f32 %v6588, %v6913
        %v6976 = vadd.f32 %v6589, %v6918
        %v6977 = vadd.f32 %v6590, %v6923
        %v6978 = vadd.f32 %v6591, %v6928
        %v6979 = vadd.f32 %v6592, %v6933
        %v6980 = vadd.f32 %v6593, %v6938
        %v6981 = vadd.f32 %v6594, %v6943
        %v6982 = vadd.f32 %v6595, %v6948
        %v6983 = vld [vmem:[%s6208 + $0x2] sm:$0xff]
        %v6984 = vld [vmem:[%s6208 + $0xa] sm:$0xff]
        %v6985 = vld [vmem:[%s6208 + $0x1a] sm:$0xff]
        %v6986 = vld [vmem:[%s6208 + $0x22] sm:$0xff]
        %v6987 = vld [vmem:[%s6208 + $0x32] sm:$0xff]
        %v6988 = vld [vmem:[%s6208 + $0x3a] sm:$0xff]
        %v6989 = vld [vmem:[%s6208 + $0x4a] sm:$0xff]
        %v6990 = vld [vmem:[%s6208 + $0x52] sm:$0xff]
        %v6991 = vld [vmem:[%s6208 + $0x62] sm:$0xff]
        %v6992 = vld [vmem:[%s6208 + $0x6a] sm:$0xff]
        %v6993 = vld [vmem:[%s6208 + $0x7a] sm:$0xff]
        %v6994 = vld [vmem:[%s6208 + $0x82] sm:$0xff]
        %v6995 = vld [vmem:[%s6208 + $0x92] sm:$0xff]
        %v6996 = vld [vmem:[%s6208 + $0x9a] sm:$0xff]
        %v6997 = vld [vmem:[%s6208 + $0xaa] sm:$0xff]
        %v6998 = vld [vmem:[%s6208 + $0xb2] sm:$0xff]
        %v6999 = vld [vmem:[%s6208 + $0xc2] sm:$0xff]
        %v7000 = vld [vmem:[%s6208 + $0xca] sm:$0xff]
        %v7001 = vld [vmem:[%s6208 + $0xda] sm:$0xff]
        %v7002 = vld [vmem:[%s6208 + $0xe2] sm:$0xff]
        %v7003 = vld [vmem:[%s6208 + $0xf2] sm:$0xff]
        %v7004 = vld [vmem:[%s6208 + $0xfa] sm:$0xff]
        %v7005 = vld [vmem:[%s6208 + $0x10a] sm:$0xff]
        %v7006 = vld [vmem:[%s6208 + $0x112] sm:$0xff]
        %v7007 = vld [vmem:[%s6208 + $0x122] sm:$0xff]
        %v7008 = vld [vmem:[%s6208 + $0x12a] sm:$0xff]
        %v7009 = vld [vmem:[%s6208 + $0x13a] sm:$0xff]
        %v7010 = vld [vmem:[%s6208 + $0x142] sm:$0xff]
        %v7011 = vld [vmem:[%s6208 + $0x152] sm:$0xff]
        %v7012 = vld [vmem:[%s6208 + $0x15a] sm:$0xff]
        %v7013 = vld [vmem:[%s6208 + $0x16a] sm:$0xff]
        %v7014 = vld [vmem:[%s6208 + $0x172] sm:$0xff]
        %s7015 = scalar_lea.vmem %s3, 64
        %v7016 = vld [vmem:[%s7015] sm:$0xff]
        %v7018 = vsel %vm3862, %v6983, 0
        %v7021 = vsel %vm3862, %v6984, 0
        %v7024 = vsel %vm3862, %v6985, 0
        %v7027 = vsel %vm3862, %v6986, 0
        %v7030 = vsel %vm3862, %v6987, 0
        %v7033 = vsel %vm3862, %v6988, 0
        %v7036 = vsel %vm3862, %v6989, 0
        %v7039 = vsel %vm3862, %v6990, 0
        %v7042 = vsel %vm3862, %v6991, 0
        %v7045 = vsel %vm3862, %v6992, 0
        %v7048 = vsel %vm3862, %v6993, 0
        %v7051 = vsel %vm3862, %v6994, 0
        %v7054 = vsel %vm3862, %v6995, 0
        %v7057 = vsel %vm3862, %v6996, 0
        %v7060 = vsel %vm3862, %v6997, 0
        %v7063 = vsel %vm3862, %v6998, 0
        %v7066 = vsel %vm3862, %v6999, 0
        %v7069 = vsel %vm3862, %v7000, 0
        %v7072 = vsel %vm3862, %v7001, 0
        %v7075 = vsel %vm3862, %v7002, 0
        %v7078 = vsel %vm3862, %v7003, 0
        %v7081 = vsel %vm3862, %v7004, 0
        %v7084 = vsel %vm3862, %v7005, 0
        %v7087 = vsel %vm3862, %v7006, 0
        %v7090 = vsel %vm3862, %v7007, 0
        %v7093 = vsel %vm3862, %v7008, 0
        %v7096 = vsel %vm3862, %v7009, 0
        %v7099 = vsel %vm3862, %v7010, 0
        %v7102 = vsel %vm3862, %v7011, 0
        %v7105 = vsel %vm3862, %v7012, 0
        %v7108 = vsel %vm3862, %v7013, 0
        %v7111 = vsel %vm3862, %v7014, 0
        %7113 = vmatprep.subr.mxu0 0.0
        %7114 = vmatpush1.msra.mxu0 0.0
        %7115 = vmatprep.subr.mxu0 0.0
        %7116 = vmatpush1.msra.mxu0 0.0
        %7117 = vmatprep.subr.mxu0 0.0
        %7118 = vmatpush1.msra.mxu0 0.0
        %7119 = vmatprep.subr.mxu0 0.0
        %7120 = vmatpush1.msra.mxu0 0.0
        %7121 = vmatprep.subr.mxu0 0.0
        %7122 = vmatpush1.msra.mxu0 0.0
        %7123 = vmatprep.subr.mxu0 0.0
        %7124 = vmatpush1.msra.mxu0 0.0
        %7125 = vmatprep.subr.mxu0 0.0
        %7126 = vmatpush1.msra.mxu0 0.0
        %7127 = vmatprep.subr.mxu0 0.0
        %7128 = vmatpush1.msra.mxu0 0.0
        %7129 = vmatprep.subr.mxu0 0.0
        %7130 = vmatpush1.msra.mxu0 0.0
        %7131 = vmatprep.subr.mxu0 0.0
        %7132 = vmatpush1.msra.mxu0 0.0
        %7133 = vmatprep.subr.mxu0 0.0
        %7134 = vmatpush1.msra.mxu0 0.0
        %7135 = vmatprep.subr.mxu0 0.0
        %7136 = vmatpush1.msra.mxu0 0.0
        %7137 = vmatprep.subr.mxu0 0.0
        %7138 = vmatpush1.msra.mxu0 0.0
        %7139 = vmatprep.subr.mxu0 0.0
        %7140 = vmatpush1.msra.mxu0 0.0
        %7141 = vmatprep.subr.mxu0 0.0
        %7142 = vmatpush1.msra.mxu0 0.0
        %7143 = vmatprep.subr.mxu0 0.0
        %7144 = vmatpush1.msra.mxu0 %v7016
        %7145 = vmatprep.subr.mxu0 0.0
        %7146 = vmatpush2.msra.mxu0 0.0
        %7147 = vmatprep.subr.mxu0 0.0
        %7148 = vmatpush2.msra.mxu0 0.0
        %7149 = vmatprep.subr.mxu0 0.0
        %7150 = vmatpush2.msra.mxu0 0.0
        %7151 = vmatprep.subr.mxu0 0.0
        %7152 = vmatpush2.msra.mxu0 0.0
        %7153 = vmatprep.subr.mxu0 0.0
        %7154 = vmatpush2.msra.mxu0 0.0
        %7155 = vmatprep.subr.mxu0 0.0
        %7156 = vmatpush2.msra.mxu0 0.0
        %7157 = vmatprep.subr.mxu0 0.0
        %7158 = vmatpush2.msra.mxu0 0.0
        %7159 = vmatprep.subr.mxu0 0.0
        %7160 = vmatpush2.msra.mxu0 0.0
        %7161 = vmatprep.subr.mxu0 0.0
        %7162 = vmatpush2.msra.mxu0 0.0
        %7163 = vmatprep.subr.mxu0 0.0
        %7164 = vmatpush2.msra.mxu0 0.0
        %7165 = vmatprep.subr.mxu0 0.0
        %7166 = vmatpush2.msra.mxu0 0.0
        %7167 = vmatprep.subr.mxu0 0.0
        %7168 = vmatpush2.msra.mxu0 0.0
        %7169 = vmatprep.subr.mxu0 0.0
        %7170 = vmatpush2.msra.mxu0 0.0
        %7171 = vmatprep.subr.mxu0 0.0
        %7172 = vmatpush2.msra.mxu0 0.0
        %7173 = vmatprep.subr.mxu0 0.0
        %7174 = vmatpush2.msra.mxu0 0.0
        %7175 = vmatprep.subr.mxu0 0.0
        %7176 = vmatpush2.msra.mxu0 0.0
        %7177 = vmatprep.mubr.f32.mxu0 0.0
        %7178 = vmatmul.mubr.f32.gmra.mxu0 %v7018
        %v7179 = vpop.f32.mrf.mxu0
        %v7180 = vadd.f32 0.0, %v7179
        %v7181 = vpop.f32.mrf.mxu0
        %7182 = vmatprep.mubr.f32.mxu0 0.0
        %7183 = vmatmul.mubr.f32.gmra.mxu0 %v7021
        %v7184 = vpop.f32.mrf.mxu0
        %v7185 = vadd.f32 0.0, %v7184
        %v7186 = vpop.f32.mrf.mxu0
        %7187 = vmatprep.mubr.f32.mxu0 0.0
        %7188 = vmatmul.mubr.f32.gmra.mxu0 %v7024
        %v7189 = vpop.f32.mrf.mxu0
        %v7190 = vadd.f32 0.0, %v7189
        %v7191 = vpop.f32.mrf.mxu0
        %7192 = vmatprep.mubr.f32.mxu0 0.0
        %7193 = vmatmul.mubr.f32.gmra.mxu0 %v7027
        %v7194 = vpop.f32.mrf.mxu0
        %v7195 = vadd.f32 0.0, %v7194
        %v7196 = vpop.f32.mrf.mxu0
        %7197 = vmatprep.mubr.f32.mxu0 0.0
        %7198 = vmatmul.mubr.f32.gmra.mxu0 %v7030
        %v7199 = vpop.f32.mrf.mxu0
        %v7200 = vadd.f32 0.0, %v7199
        %v7201 = vpop.f32.mrf.mxu0
        %7202 = vmatprep.mubr.f32.mxu0 0.0
        %7203 = vmatmul.mubr.f32.gmra.mxu0 %v7033
        %v7204 = vpop.f32.mrf.mxu0
        %v7205 = vadd.f32 0.0, %v7204
        %v7206 = vpop.f32.mrf.mxu0
        %7207 = vmatprep.mubr.f32.mxu0 0.0
        %7208 = vmatmul.mubr.f32.gmra.mxu0 %v7036
        %v7209 = vpop.f32.mrf.mxu0
        %v7210 = vadd.f32 0.0, %v7209
        %v7211 = vpop.f32.mrf.mxu0
        %7212 = vmatprep.mubr.f32.mxu0 0.0
        %7213 = vmatmul.mubr.f32.gmra.mxu0 %v7039
        %v7214 = vpop.f32.mrf.mxu0
        %v7215 = vadd.f32 0.0, %v7214
        %v7216 = vpop.f32.mrf.mxu0
        %7217 = vmatprep.mubr.f32.mxu0 0.0
        %7218 = vmatmul.mubr.f32.gmra.mxu0 %v7042
        %v7219 = vpop.f32.mrf.mxu0
        %v7220 = vadd.f32 0.0, %v7219
        %v7221 = vpop.f32.mrf.mxu0
        %7222 = vmatprep.mubr.f32.mxu0 0.0
        %7223 = vmatmul.mubr.f32.gmra.mxu0 %v7045
        %v7224 = vpop.f32.mrf.mxu0
        %v7225 = vadd.f32 0.0, %v7224
        %v7226 = vpop.f32.mrf.mxu0
        %7227 = vmatprep.mubr.f32.mxu0 0.0
        %7228 = vmatmul.mubr.f32.gmra.mxu0 %v7048
        %v7229 = vpop.f32.mrf.mxu0
        %v7230 = vadd.f32 0.0, %v7229
        %v7231 = vpop.f32.mrf.mxu0
        %7232 = vmatprep.mubr.f32.mxu0 0.0
        %7233 = vmatmul.mubr.f32.gmra.mxu0 %v7051
        %v7234 = vpop.f32.mrf.mxu0
        %v7235 = vadd.f32 0.0, %v7234
        %v7236 = vpop.f32.mrf.mxu0
        %7237 = vmatprep.mubr.f32.mxu0 0.0
        %7238 = vmatmul.mubr.f32.gmra.mxu0 %v7054
        %v7239 = vpop.f32.mrf.mxu0
        %v7240 = vadd.f32 0.0, %v7239
        %v7241 = vpop.f32.mrf.mxu0
        %7242 = vmatprep.mubr.f32.mxu0 0.0
        %7243 = vmatmul.mubr.f32.gmra.mxu0 %v7057
        %v7244 = vpop.f32.mrf.mxu0
        %v7245 = vadd.f32 0.0, %v7244
        %v7246 = vpop.f32.mrf.mxu0
        %7247 = vmatprep.mubr.f32.mxu0 0.0
        %7248 = vmatmul.mubr.f32.gmra.mxu0 %v7060
        %v7249 = vpop.f32.mrf.mxu0
        %v7250 = vadd.f32 0.0, %v7249
        %v7251 = vpop.f32.mrf.mxu0
        %7252 = vmatprep.mubr.f32.mxu0 0.0
        %7253 = vmatmul.mubr.f32.gmra.mxu0 %v7063
        %v7254 = vpop.f32.mrf.mxu0
        %v7255 = vadd.f32 0.0, %v7254
        %v7256 = vpop.f32.mrf.mxu0
        %7257 = vmatprep.mubr.f32.mxu0 0.0
        %7258 = vmatmul.mubr.f32.gmra.mxu0 %v7066
        %v7259 = vpop.f32.mrf.mxu0
        %v7260 = vadd.f32 0.0, %v7259
        %v7261 = vpop.f32.mrf.mxu0
        %7262 = vmatprep.mubr.f32.mxu0 0.0
        %7263 = vmatmul.mubr.f32.gmra.mxu0 %v7069
        %v7264 = vpop.f32.mrf.mxu0
        %v7265 = vadd.f32 0.0, %v7264
        %v7266 = vpop.f32.mrf.mxu0
        %7267 = vmatprep.mubr.f32.mxu0 0.0
        %7268 = vmatmul.mubr.f32.gmra.mxu0 %v7072
        %v7269 = vpop.f32.mrf.mxu0
        %v7270 = vadd.f32 0.0, %v7269
        %v7271 = vpop.f32.mrf.mxu0
        %7272 = vmatprep.mubr.f32.mxu0 0.0
        %7273 = vmatmul.mubr.f32.gmra.mxu0 %v7075
        %v7274 = vpop.f32.mrf.mxu0
        %v7275 = vadd.f32 0.0, %v7274
        %v7276 = vpop.f32.mrf.mxu0
        %7277 = vmatprep.mubr.f32.mxu0 0.0
        %7278 = vmatmul.mubr.f32.gmra.mxu0 %v7078
        %v7279 = vpop.f32.mrf.mxu0
        %v7280 = vadd.f32 0.0, %v7279
        %v7281 = vpop.f32.mrf.mxu0
        %7282 = vmatprep.mubr.f32.mxu0 0.0
        %7283 = vmatmul.mubr.f32.gmra.mxu0 %v7081
        %v7284 = vpop.f32.mrf.mxu0
        %v7285 = vadd.f32 0.0, %v7284
        %v7286 = vpop.f32.mrf.mxu0
        %7287 = vmatprep.mubr.f32.mxu0 0.0
        %7288 = vmatmul.mubr.f32.gmra.mxu0 %v7084
        %v7289 = vpop.f32.mrf.mxu0
        %v7290 = vadd.f32 0.0, %v7289
        %v7291 = vpop.f32.mrf.mxu0
        %7292 = vmatprep.mubr.f32.mxu0 0.0
        %7293 = vmatmul.mubr.f32.gmra.mxu0 %v7087
        %v7294 = vpop.f32.mrf.mxu0
        %v7295 = vadd.f32 0.0, %v7294
        %v7296 = vpop.f32.mrf.mxu0
        %7297 = vmatprep.mubr.f32.mxu0 0.0
        %7298 = vmatmul.mubr.f32.gmra.mxu0 %v7090
        %v7299 = vpop.f32.mrf.mxu0
        %v7300 = vadd.f32 0.0, %v7299
        %v7301 = vpop.f32.mrf.mxu0
        %7302 = vmatprep.mubr.f32.mxu0 0.0
        %7303 = vmatmul.mubr.f32.gmra.mxu0 %v7093
        %v7304 = vpop.f32.mrf.mxu0
        %v7305 = vadd.f32 0.0, %v7304
        %v7306 = vpop.f32.mrf.mxu0
        %7307 = vmatprep.mubr.f32.mxu0 0.0
        %7308 = vmatmul.mubr.f32.gmra.mxu0 %v7096
        %v7309 = vpop.f32.mrf.mxu0
        %v7310 = vadd.f32 0.0, %v7309
        %v7311 = vpop.f32.mrf.mxu0
        %7312 = vmatprep.mubr.f32.mxu0 0.0
        %7313 = vmatmul.mubr.f32.gmra.mxu0 %v7099
        %v7314 = vpop.f32.mrf.mxu0
        %v7315 = vadd.f32 0.0, %v7314
        %v7316 = vpop.f32.mrf.mxu0
        %7317 = vmatprep.mubr.f32.mxu0 0.0
        %7318 = vmatmul.mubr.f32.gmra.mxu0 %v7102
        %v7319 = vpop.f32.mrf.mxu0
        %v7320 = vadd.f32 0.0, %v7319
        %v7321 = vpop.f32.mrf.mxu0
        %7322 = vmatprep.mubr.f32.mxu0 0.0
        %7323 = vmatmul.mubr.f32.gmra.mxu0 %v7105
        %v7324 = vpop.f32.mrf.mxu0
        %v7325 = vadd.f32 0.0, %v7324
        %v7326 = vpop.f32.mrf.mxu0
        %7327 = vmatprep.mubr.f32.mxu0 0.0
        %7328 = vmatmul.mubr.f32.gmra.mxu0 %v7108
        %v7329 = vpop.f32.mrf.mxu0
        %v7330 = vadd.f32 0.0, %v7329
        %v7331 = vpop.f32.mrf.mxu0
        %7332 = vmatprep.mubr.f32.mxu0 0.0
        %7333 = vmatmul.mubr.f32.gmra.mxu0 %v7111
        %v7334 = vpop.f32.mrf.mxu0
        %v7335 = vadd.f32 0.0, %v7334
        %v7336 = vpop.f32.mrf.mxu0
        %7337 = vdwg.mxu0
        %v7338 = vadd.f32 %v6951, %v7180
        %v7339 = vadd.f32 %v6952, %v7185
        %v7340 = vadd.f32 %v6953, %v7190
        %v7341 = vadd.f32 %v6954, %v7195
        %v7342 = vadd.f32 %v6955, %v7200
        %v7343 = vadd.f32 %v6956, %v7205
        %v7344 = vadd.f32 %v6957, %v7210
        %v7345 = vadd.f32 %v6958, %v7215
        %v7346 = vadd.f32 %v6959, %v7220
        %v7347 = vadd.f32 %v6960, %v7225
        %v7348 = vadd.f32 %v6961, %v7230
        %v7349 = vadd.f32 %v6962, %v7235
        %v7350 = vadd.f32 %v6963, %v7240
        %v7351 = vadd.f32 %v6964, %v7245
        %v7352 = vadd.f32 %v6965, %v7250
        %v7353 = vadd.f32 %v6966, %v7255
        %v7354 = vadd.f32 %v6967, %v7260
        %v7355 = vadd.f32 %v6968, %v7265
        %v7356 = vadd.f32 %v6969, %v7270
        %v7357 = vadd.f32 %v6970, %v7275
        %v7358 = vadd.f32 %v6971, %v7280
        %v7359 = vadd.f32 %v6972, %v7285
        %v7360 = vadd.f32 %v6973, %v7290
        %v7361 = vadd.f32 %v6974, %v7295
        %v7362 = vadd.f32 %v6975, %v7300
        %v7363 = vadd.f32 %v6976, %v7305
        %v7364 = vadd.f32 %v6977, %v7310
        %v7365 = vadd.f32 %v6978, %v7315
        %v7366 = vadd.f32 %v6979, %v7320
        %v7367 = vadd.f32 %v6980, %v7325
        %v7368 = vadd.f32 %v6981, %v7330
        %v7369 = vadd.f32 %v6982, %v7335
        %v7370 = vld [vmem:[%s4] sm:$0x1]
        %v7372 = vlaneseq
        %v7373 = vshrl.u32 %v7372, 7
        %v7374 = vsub.s32 0, %v7373
        %v7375 = vrot.slane %v7370, %v7374
        %v7377 = vadd.f32 %v7338, %v7375
        %v7378 = vadd.f32 %v7339, %v7375
        %v7379 = vadd.f32 %v7340, %v7375
        %v7380 = vadd.f32 %v7341, %v7375
        %v7381 = vadd.f32 %v7342, %v7375
        %v7382 = vadd.f32 %v7343, %v7375
        %v7383 = vadd.f32 %v7344, %v7375
        %v7384 = vadd.f32 %v7345, %v7375
        %v7385 = vadd.f32 %v7346, %v7375
        %v7386 = vadd.f32 %v7347, %v7375
        %v7387 = vadd.f32 %v7348, %v7375
        %v7388 = vadd.f32 %v7349, %v7375
        %v7389 = vadd.f32 %v7350, %v7375
        %v7390 = vadd.f32 %v7351, %v7375
        %v7391 = vadd.f32 %v7352, %v7375
        %v7392 = vadd.f32 %v7353, %v7375
        %v7393 = vadd.f32 %v7354, %v7375
        %v7394 = vadd.f32 %v7355, %v7375
        %v7395 = vadd.f32 %v7356, %v7375
        %v7396 = vadd.f32 %v7357, %v7375
        %v7397 = vadd.f32 %v7358, %v7375
        %v7398 = vadd.f32 %v7359, %v7375
        %v7399 = vadd.f32 %v7360, %v7375
        %v7400 = vadd.f32 %v7361, %v7375
        %v7401 = vadd.f32 %v7362, %v7375
        %v7402 = vadd.f32 %v7363, %v7375
        %v7403 = vadd.f32 %v7364, %v7375
        %v7404 = vadd.f32 %v7365, %v7375
        %v7405 = vadd.f32 %v7366, %v7375
        %v7406 = vadd.f32 %v7367, %v7375
        %v7407 = vadd.f32 %v7368, %v7375
        %v7408 = vadd.f32 %v7369, %v7375
        %v7409 = vmax.f32 %v7377, 0.0
        %v7410 = vmax.f32 %v7378, 0.0
        %v7411 = vmax.f32 %v7379, 0.0
        %v7412 = vmax.f32 %v7380, 0.0
        %v7413 = vmax.f32 %v7381, 0.0
        %v7414 = vmax.f32 %v7382, 0.0
        %v7415 = vmax.f32 %v7383, 0.0
        %v7416 = vmax.f32 %v7384, 0.0
        %v7417 = vmax.f32 %v7385, 0.0
        %v7418 = vmax.f32 %v7386, 0.0
        %v7419 = vmax.f32 %v7387, 0.0
        %v7420 = vmax.f32 %v7388, 0.0
        %v7421 = vmax.f32 %v7389, 0.0
        %v7422 = vmax.f32 %v7390, 0.0
        %v7423 = vmax.f32 %v7391, 0.0
        %v7424 = vmax.f32 %v7392, 0.0
        %v7425 = vmax.f32 %v7393, 0.0
        %v7426 = vmax.f32 %v7394, 0.0
        %v7427 = vmax.f32 %v7395, 0.0
        %v7428 = vmax.f32 %v7396, 0.0
        %v7429 = vmax.f32 %v7397, 0.0
        %v7430 = vmax.f32 %v7398, 0.0
        %v7431 = vmax.f32 %v7399, 0.0
        %v7432 = vmax.f32 %v7400, 0.0
        %v7433 = vmax.f32 %v7401, 0.0
        %v7434 = vmax.f32 %v7402, 0.0
        %v7435 = vmax.f32 %v7403, 0.0
        %v7436 = vmax.f32 %v7404, 0.0
        %v7437 = vmax.f32 %v7405, 0.0
        %v7438 = vmax.f32 %v7406, 0.0
        %v7439 = vmax.f32 %v7407, 0.0
        %v7440 = vmax.f32 %v7408, 0.0
        %vm7441 = vcmask 130048
        %7442 = vst.msk [vmem:[%s217] sm:$0xff] %vm7441, %v7409
        %7443 = vst.msk [vmem:[%s217 + $0x8] sm:$0xff] %vm7441, %v7410
        %7444 = vst.msk [vmem:[%s217 + $0x10] sm:$0xff] %vm7441, %v7411
        %7445 = vst.msk [vmem:[%s217 + $0x18] sm:$0xff] %vm7441, %v7412
        %7446 = vst.msk [vmem:[%s217 + $0x20] sm:$0xff] %vm7441, %v7413
        %7447 = vst.msk [vmem:[%s217 + $0x28] sm:$0xff] %vm7441, %v7414
        %7448 = vst.msk [vmem:[%s217 + $0x30] sm:$0xff] %vm7441, %v7415
        %7449 = vst.msk [vmem:[%s217 + $0x38] sm:$0xff] %vm7441, %v7416
        %7450 = vst.msk [vmem:[%s217 + $0x40] sm:$0xff] %vm7441, %v7417
        %7451 = vst.msk [vmem:[%s217 + $0x48] sm:$0xff] %vm7441, %v7418
        %7452 = vst.msk [vmem:[%s217 + $0x50] sm:$0xff] %vm7441, %v7419
        %7453 = vst.msk [vmem:[%s217 + $0x58] sm:$0xff] %vm7441, %v7420
        %7454 = vst.msk [vmem:[%s217 + $0x60] sm:$0xff] %vm7441, %v7421
        %7455 = vst.msk [vmem:[%s217 + $0x68] sm:$0xff] %vm7441, %v7422
        %7456 = vst.msk [vmem:[%s217 + $0x70] sm:$0xff] %vm7441, %v7423
        %7457 = vst.msk [vmem:[%s217 + $0x78] sm:$0xff] %vm7441, %v7424
        %7458 = vst.msk [vmem:[%s217 + $0x80] sm:$0xff] %vm7441, %v7425
        %7459 = vst.msk [vmem:[%s217 + $0x88] sm:$0xff] %vm7441, %v7426
        %7460 = vst.msk [vmem:[%s217 + $0x90] sm:$0xff] %vm7441, %v7427
        %7461 = vst.msk [vmem:[%s217 + $0x98] sm:$0xff] %vm7441, %v7428
        %7462 = vst.msk [vmem:[%s217 + $0xa0] sm:$0xff] %vm7441, %v7429
        %7463 = vst.msk [vmem:[%s217 + $0xa8] sm:$0xff] %vm7441, %v7430
        %7464 = vst.msk [vmem:[%s217 + $0xb0] sm:$0xff] %vm7441, %v7431
        %7465 = vst.msk [vmem:[%s217 + $0xb8] sm:$0xff] %vm7441, %v7432
        %7466 = vst.msk [vmem:[%s217 + $0xc0] sm:$0xff] %vm7441, %v7433
        %7467 = vst.msk [vmem:[%s217 + $0xc8] sm:$0xff] %vm7441, %v7434
        %7468 = vst.msk [vmem:[%s217 + $0xd0] sm:$0xff] %vm7441, %v7435
        %7469 = vst.msk [vmem:[%s217 + $0xd8] sm:$0xff] %vm7441, %v7436
        %7470 = vst.msk [vmem:[%s217 + $0xe0] sm:$0xff] %vm7441, %v7437
        %7471 = vst.msk [vmem:[%s217 + $0xe8] sm:$0xff] %vm7441, %v7438
        %7472 = vst.msk [vmem:[%s217 + $0xf0] sm:$0xff] %vm7441, %v7439
        %7473 = vst.msk [vmem:[%s217 + $0xf8] sm:$0xff] %vm7441, %v7440
        %s7474 = sand.u32 %s137, 1
        %s7475 = scalar_lea.sflag [#allocation5], %s7474
        %s7476 = sand.u32 %s137, 1
        %s7477 = smul.addr %s7476, 256
        %s7478 = scalar_lea.vmem [#allocation4], %s7477
        // Predicated region
        $region41: #{tpu_custom_call.1} parent=39 // pred_check
          %p7479 = pneg %p147
        $region42: #{tpu_custom_call.1} parent=39 // pred_check_branch
          %7481 = sbr.rel (%p7479) target = $region44
        $region43: #{tpu_custom_call.1} parent=39 // pred_region
          %s7483 = ssub.s32 4096, 4096
          %7484 = vsyncadd %s7475, %s7483
          %s7485 = smul.addr %s19, 32
          %s7486 = smul.addr %s7485, 128
          %s7487 = scalar_lea.hbm %s5, %s7486
          %s7488 = sshll.u32 %s7478, 4
          %s7489 = int_to_ptr.vmem [resolvable:$true] %s7488
          %7494 = dma.vmem_to_hbm [thread:$0]  %s7489, 4096, %s7487, %s7475, 128, 128, 8
        $region44: #{tpu_custom_call.1} parent=39 // pred_fallthru
          _
      $region40: #{tpu_custom_call.1} parent=5 // pred_fallthru
        _
      %p7495 = scmp.le.s32.totalorder 2, %s14
      // Predicated region
      $region45: #{tpu_custom_call.1} parent=5 // pred_check
        %p7496 = pneg %p7495
      $region46: #{tpu_custom_call.1} parent=5 // pred_check_branch
        %7498 = sbr.rel (%p7496) target = $region48
      $region47: #{tpu_custom_call.1} parent=5 // pred_region
        %s7499 = ssub.s32 %s14, 2
        // Predicated region
        $region49: #{tpu_custom_call.1} parent=47 // pred_check
          %p7500 = pneg %p153
        $region50: #{tpu_custom_call.1} parent=47 // pred_check_branch
          %7502 = sbr.rel (%p7500) target = $region52
        $region51: #{tpu_custom_call.1} parent=47 // pred_region
          %s7503 = sand.u32 %s138, 1
          %s7504 = scalar_lea.sflag [#allocation5], %s7503
          %s7505 = sand.u32 %s138, 1
          %s7506 = smul.addr %s7505, 256
          %s7507 = scalar_lea.vmem [#allocation4], %s7506
          %7508 = dma.done %s7504, 4096
        $region52: #{tpu_custom_call.1} parent=47 // pred_fallthru
          _
      $region48: #{tpu_custom_call.1} parent=5 // pred_fallthru
        _
    $region6: #{tpu_custom_call.1} parent=1 // loop_footer
      %s18 = sadd.s32 1, %s14
    $region7: #{tpu_custom_call.1} parent=1 // loop_footer_branch
      %13 = sbr.rel target = $region3
    $region8: #{tpu_custom_call.1} parent=1 // loop_exit
      _
    %7509 = vsyncpa [#allocation5], 1
    %s7510 = scalar_lea.sflag [#allocation5], 1
    %7511 = vsyncpa %s7510, 1

</llo_original>
